<compile_context>
chip_gen: v6e
topology: v6e:2x2x1
jax: 0.10.0
libtpu: 0.0.40
codegen_flags: <defaults>
</compile_context>

<pallas_src>
import functools

import jax
import jax.numpy as jnp
from jax import lax
from jax.experimental import pallas as pl
from jax.experimental.pallas import tpu as pltpu

EPS = 1e-5
_OFFSETS = tuple((ky - 1, kx - 1) for ky in range(3) for kx in range(3))


def _residual_block_kernel(x_ref, masks_ref, w_ref, bn_ref, alpha_ref, o_ref,
                           *, C, shifts):
  NC, P = x_ref.shape
  x = x_ref[...]                                    # (NC, P) lane-dense slab

  # Channel-share matrix: share[i, j] = 1 iff rows i and j hold the same
  # channel (rows are n*C + c).  Built once, tiny (NC x NC), used by both BNs.
  ri = lax.broadcasted_iota(jnp.int32, (NC, NC), 0) % C
  ci = lax.broadcasted_iota(jnp.int32, (NC, NC), 1) % C
  share = (ri == ci).astype(jnp.float32)

  inv_count = jnp.float32(1.0 / (P * (NC // C)))    # 1 / (N*H*W)

  def conv3x3(v, li):
    # out[n*C+co, p] = sum_{t,ci} w_bd[li,t][n*C+co, n*C+ci] * tap_t[n*C+ci, p]
    acc = jnp.zeros((NC, P), jnp.float32)
    for t, s in enumerate(shifts):
      if s == 0:
        tap = v                                     # centre tap: no shift, all-ones mask
      else:
        tap = pltpu.roll(v, shift=s, axis=1) * masks_ref[t]   # XLU roll + mask mul
      acc = acc + jnp.dot(w_ref[li, t], tap,                  # (NC,NC)@(NC,P) on MXU
                          preferred_element_type=jnp.float32,
                          precision=lax.Precision.HIGHEST)
    return acc                                      # no conv bias: BN cancels it

  def batchnorm(v, g_col, be_col):
    # One-pass training-mode BN over (N, H, W) for each channel.
    rs = jnp.concatenate([jnp.sum(v, axis=1, keepdims=True),
                          jnp.sum(v * v, axis=1, keepdims=True)], axis=1)  # (NC, 2)
    cs = jnp.dot(share, rs, preferred_element_type=jnp.float32,
                 precision=lax.Precision.HIGHEST)                          # (NC, 2)
    mean = cs[:, 0:1] * inv_count
    var = cs[:, 1:2] * inv_count - mean * mean
    scale = lax.rsqrt(var + EPS) * g_col            # (NC,1) factors combined first
    offset = be_col - mean * scale
    return v * scale + offset                       # single slab FMA

  y = batchnorm(conv3x3(x, 0), bn_ref[:, 0:1], bn_ref[:, 1:2])

  alpha = alpha_ref[0, 0]                           # PReLU scalar from SMEM
  y = jnp.where(y >= 0, y, alpha * y)

  z = batchnorm(conv3x3(y, 1), bn_ref[:, 2:3], bn_ref[:, 3:4])

  o_ref[...] = x + z                                # residual add, lane-dense store


@jax.jit
def residual_block(x_nchw, params):
  """x_nchw: (N, C, H, W) float32 (PyTorch layout). Returns the same layout."""
  N, C, H, W = x_nchw.shape
  P = H * W
  NC = N * C
  # Conv biases b1/b2 are exactly cancelled by training-mode BN mean subtraction.
  w1, _b1, g1, be1, a, w2, _b2, g2, be2 = params

  # ---- glue (pure reshapes + tiny compile-time constants; no HBM transpose) ----
  x_slab = x_nchw.reshape(NC, P).astype(jnp.float32)

  def block_diag_taps(w):                 # OIHW -> (9, NC, NC) = kron(I_N, w[ky,kx])
    taps = jnp.transpose(w, (2, 3, 0, 1)).reshape(9, C, C).astype(jnp.float32)
    eye = jnp.eye(N, dtype=jnp.float32)
    return jnp.einsum('nm,tij->tnimj', eye, taps).reshape(9, NC, NC)

  w_packed = jnp.stack([block_diag_taps(w1), block_diag_taps(w2)], axis=0)  # (2,9,NC,NC)

  row = lambda v: jnp.tile(v.astype(jnp.float32).reshape(-1), (N,)).reshape(NC, 1)
  bn_packed = jnp.concatenate([row(g1), row(be1), row(g2), row(be2)], axis=1)  # (NC,4)

  # 3x3 border masks and flat lane shifts (static; XLA constant-folds the masks).
  pix = jnp.arange(P, dtype=jnp.int32)
  hh, ww = pix // W, pix % W
  masks = jnp.stack(
      [((hh >= -oy) & (hh < H - oy) & (ww >= -ox) & (ww < W - ox)).astype(jnp.float32)
       for oy, ox in _OFFSETS], axis=0)                       # (9, P)
  masks = jnp.broadcast_to(masks[:, None, :], (9, NC, P))     # (9, NC, P)
  shifts = tuple((-(oy * W + ox)) % P for oy, ox in _OFFSETS)

  a_smem = jnp.asarray(a, jnp.float32).reshape(1, 1)

  vmem = pl.BlockSpec(memory_space=pltpu.MemorySpace.VMEM)
  smem = pl.BlockSpec(memory_space=pltpu.MemorySpace.SMEM)

  out_slab = pl.pallas_call(
      functools.partial(_residual_block_kernel, C=C, shifts=shifts),
      out_shape=jax.ShapeDtypeStruct((NC, P), jnp.float32),
      in_specs=[vmem,    # x slab
                vmem,    # packed border masks
                vmem,    # packed block-diagonal conv weights (both convs, 9 taps)
                vmem,    # packed BN gamma/beta rows
                smem],   # PReLU alpha scalar
      out_specs=vmem,
  )(x_slab, masks, w_packed, bn_packed, a_smem)

  return out_slab.reshape(N, C, H, W)


def _reference(x_nchw, params):
  """Pure-JAX reference mirroring the PyTorch forward (training-mode BN)."""
  w1, b1, g1, be1, a, w2, b2, g2, be2 = params

  def conv(x, w, b):
    y = lax.conv_general_dilated(
        x, w, window_strides=(1, 1), padding='SAME',
        dimension_numbers=('NCHW', 'OIHW', 'NCHW'),
        precision=lax.Precision.HIGHEST)
    return y + b.reshape(1, -1, 1, 1)

  def bn(x, g, be):
    mean = jnp.mean(x, axis=(0, 2, 3), keepdims=True)
    var = jnp.mean((x - mean) ** 2, axis=(0, 2, 3), keepdims=True)
    return (x - mean) / jnp.sqrt(var + EPS) * g.reshape(1, -1, 1, 1) \
        + be.reshape(1, -1, 1, 1)

  r = conv(x_nchw, w1, b1)
  r = bn(r, g1, be1)
  r = jnp.where(r >= 0, r, a * r)
  r = conv(r, w2, b2)
  r = bn(r, g2, be2)
  return x_nchw + r


if __name__ == "__main__":
  N, C, H, W = 2, 4, 16, 16   # PyTorch NCHW input shape

  key = jax.random.PRNGKey(0)
  k = jax.random.split(key, 10)
  x_nchw = jax.random.normal(k[0], (N, C, H, W), jnp.float32)

  # Deterministic synthetic parameters (nn.Conv2d OIHW / BatchNorm2d / PReLU).
  w1 = 0.1 * jax.random.normal(k[1], (C, C, 3, 3), jnp.float32)
  b1 = 0.1 * jax.random.normal(k[2], (C,), jnp.float32)
  g1 = 1.0 + 0.1 * jax.random.normal(k[3], (C,), jnp.float32)
  be1 = 0.1 * jax.random.normal(k[4], (C,), jnp.float32)
  a = jnp.float32(0.25)                     # PReLU default init
  w2 = 0.1 * jax.random.normal(k[5], (C, C, 3, 3), jnp.float32)
  b2 = 0.1 * jax.random.normal(k[6], (C,), jnp.float32)
  g2 = 1.0 + 0.1 * jax.random.normal(k[7], (C,), jnp.float32)
  be2 = 0.1 * jax.random.normal(k[8], (C,), jnp.float32)
  params = (w1, b1, g1, be1, a, w2, b2, g2, be2)

  out = jax.block_until_ready(residual_block(x_nchw, params))
  ref = jax.block_until_ready(_reference(x_nchw, params))

  assert out.shape == (N, C, H, W)
  assert jnp.allclose(out, ref, rtol=2e-4, atol=2e-4), \
      f"max abs err = {jnp.max(jnp.abs(out - ref))}"

  print("KERNEL_OK")
</pallas_src>

<mosaic_0001>
module attributes {stable_mosaic.version = 11 : i64} {
  func.func @_residual_block_kernel(%arg0: memref<8x256xf32, #tpu.memory_space<vmem>>, %arg1: memref<9x8x256xf32, #tpu.memory_space<vmem>>, %arg2: memref<2x9x8x8xf32, #tpu.memory_space<vmem>>, %arg3: memref<8x4xf32, #tpu.memory_space<vmem>>, %arg4: memref<1x1xf32, #tpu.memory_space<smem>>, %arg5: memref<8x256xf32, #tpu.memory_space<vmem>>) attributes {dimension_semantics = [], scalar_prefetch = 0 : i64, scratch_operands = 0 : i64, tpu.core_type = #tpu.core_type<tc>} {
    %c0 = arith.constant 0 : index
    %c0_0 = arith.constant 0 : index
    %0 = vector.load %arg0[%c0, %c0_0] : memref<8x256xf32, #tpu.memory_space<vmem>>, vector<8x256xf32>
    %1 = tpu.iota {dimensions = array<i32: 0>} : vector<8x8xi32>
    %c4_i32 = arith.constant 4 : i32
    %c0_i32 = arith.constant 0 : i32
    %2 = arith.cmpi eq, %c4_i32, %c0_i32 : i32
    %c1_i32 = arith.constant 1 : i32
    %3 = arith.select %2, %c1_i32, %c4_i32 : i32
    %4 = vector.broadcast %3 : i32 to vector<8x8xi32>
    %5 = arith.remsi %1, %4 : vector<8x8xi32>
    %c0_i32_1 = arith.constant 0 : i32
    %6 = vector.broadcast %c0_i32_1 : i32 to vector<8x8xi32>
    %7 = arith.cmpi ne, %5, %6 : vector<8x8xi32>
    %c0_i32_2 = arith.constant 0 : i32
    %8 = vector.broadcast %c0_i32_2 : i32 to vector<8x8xi32>
    %9 = arith.cmpi slt, %5, %8 : vector<8x8xi32>
    %c0_i32_3 = arith.constant 0 : i32
    %10 = arith.cmpi slt, %3, %c0_i32_3 : i32
    %11 = vector.broadcast %10 : i1 to vector<8x8xi1>
    %12 = vector.broadcast %11 : vector<8x8xi1> to vector<8x8xi1>
    %13 = arith.xori %9, %12 : vector<8x8xi1>
    %14 = arith.andi %13, %7 : vector<8x8xi1>
    %15 = vector.broadcast %3 : i32 to vector<8x8xi32>
    %16 = arith.addi %5, %15 : vector<8x8xi32>
    %17 = arith.select %14, %16, %5 : vector<8x8xi1>, vector<8x8xi32>
    %18 = tpu.iota {dimensions = array<i32: 1>} : vector<8x8xi32>
    %c4_i32_4 = arith.constant 4 : i32
    %c0_i32_5 = arith.constant 0 : i32
    %19 = arith.cmpi eq, %c4_i32_4, %c0_i32_5 : i32
    %c1_i32_6 = arith.constant 1 : i32
    %20 = arith.select %19, %c1_i32_6, %c4_i32_4 : i32
    %21 = vector.broadcast %20 : i32 to vector<8x8xi32>
    %22 = arith.remsi %18, %21 : vector<8x8xi32>
    %c0_i32_7 = arith.constant 0 : i32
    %23 = vector.broadcast %c0_i32_7 : i32 to vector<8x8xi32>
    %24 = arith.cmpi ne, %22, %23 : vector<8x8xi32>
    %c0_i32_8 = arith.constant 0 : i32
    %25 = vector.broadcast %c0_i32_8 : i32 to vector<8x8xi32>
    %26 = arith.cmpi slt, %22, %25 : vector<8x8xi32>
    %c0_i32_9 = arith.constant 0 : i32
    %27 = arith.cmpi slt, %20, %c0_i32_9 : i32
    %28 = vector.broadcast %27 : i1 to vector<8x8xi1>
    %29 = vector.broadcast %28 : vector<8x8xi1> to vector<8x8xi1>
    %30 = arith.xori %26, %29 : vector<8x8xi1>
    %31 = arith.andi %30, %24 : vector<8x8xi1>
    %32 = vector.broadcast %20 : i32 to vector<8x8xi32>
    %33 = arith.addi %22, %32 : vector<8x8xi32>
    %34 = arith.select %31, %33, %22 : vector<8x8xi1>, vector<8x8xi32>
    %35 = arith.cmpi eq, %17, %34 : vector<8x8xi32>
    %36 = arith.extui %35 : vector<8x8xi1> to vector<8x8xi32>
    %37 = arith.sitofp %36 : vector<8x8xi32> to vector<8x8xf32>
    %cst = arith.constant 0.000000e+00 : f32
    %38 = vector.broadcast %cst : f32 to vector<8x256xf32>
    %c17_i32 = arith.constant 17 : i32
    %39 = tpu.dynamic_rotate %0 by %c17_i32 dim 1 : vector<8x256xf32>, i32 -> vector<8x256xf32>
    %c0_10 = arith.constant 0 : index
    %c0_11 = arith.constant 0 : index
    %c0_12 = arith.constant 0 : index
    %40 = vector.load %arg1[%c0_10, %c0_11, %c0_12] : memref<9x8x256xf32, #tpu.memory_space<vmem>>, vector<1x8x256xf32>
    %41 = vector.shape_cast %40 : vector<1x8x256xf32> to vector<8x256xf32>
    %42 = arith.mulf %39, %41 : vector<8x256xf32>
    %c0_13 = arith.constant 0 : index
    %c0_14 = arith.constant 0 : index
    %c0_15 = arith.constant 0 : index
    %c0_16 = arith.constant 0 : index
    %43 = vector.load %arg2[%c0_13, %c0_14, %c0_15, %c0_16] : memref<2x9x8x8xf32, #tpu.memory_space<vmem>>, vector<1x1x8x8xf32>
    %44 = vector.shape_cast %43 : vector<1x1x8x8xf32> to vector<8x8xf32>
    %cst_17 = arith.constant dense<0.000000e+00> : vector<8x256xf32>
    %45 = tpu.matmul %44, %42, %cst_17 {dimension_numbers = #tpu.dot_dimension_numbers<[1], [0], [0], [1], [0, 0, 1, 1], [], []>, precision = #tpu.contract_precision<fp32>} : vector<8x8xf32>, vector<8x256xf32>, vector<8x256xf32> -> vector<8x256xf32>
    %46 = arith.addf %38, %45 : vector<8x256xf32>
    %c16_i32 = arith.constant 16 : i32
    %47 = tpu.dynamic_rotate %0 by %c16_i32 dim 1 : vector<8x256xf32>, i32 -> vector<8x256xf32>
    %c1 = arith.constant 1 : index
    %c0_18 = arith.constant 0 : index
    %c0_19 = arith.constant 0 : index
    %48 = vector.load %arg1[%c1, %c0_18, %c0_19] : memref<9x8x256xf32, #tpu.memory_space<vmem>>, vector<1x8x256xf32>
    %49 = vector.shape_cast %48 : vector<1x8x256xf32> to vector<8x256xf32>
    %50 = arith.mulf %47, %49 : vector<8x256xf32>
    %c0_20 = arith.constant 0 : index
    %c1_21 = arith.constant 1 : index
    %c0_22 = arith.constant 0 : index
    %c0_23 = arith.constant 0 : index
    %51 = vector.load %arg2[%c0_20, %c1_21, %c0_22, %c0_23] : memref<2x9x8x8xf32, #tpu.memory_space<vmem>>, vector<1x1x8x8xf32>
    %52 = vector.shape_cast %51 : vector<1x1x8x8xf32> to vector<8x8xf32>
    %cst_24 = arith.constant dense<0.000000e+00> : vector<8x256xf32>
    %53 = tpu.matmul %52, %50, %cst_24 {dimension_numbers = #tpu.dot_dimension_numbers<[1], [0], [0], [1], [0, 0, 1, 1], [], []>, precision = #tpu.contract_precision<fp32>} : vector<8x8xf32>, vector<8x256xf32>, vector<8x256xf32> -> vector<8x256xf32>
    %54 = arith.addf %46, %53 : vector<8x256xf32>
    %c15_i32 = arith.constant 15 : i32
    %55 = tpu.dynamic_rotate %0 by %c15_i32 dim 1 : vector<8x256xf32>, i32 -> vector<8x256xf32>
    %c2 = arith.constant 2 : index
    %c0_25 = arith.constant 0 : index
    %c0_26 = arith.constant 0 : index
    %56 = vector.load %arg1[%c2, %c0_25, %c0_26] : memref<9x8x256xf32, #tpu.memory_space<vmem>>, vector<1x8x256xf32>
    %57 = vector.shape_cast %56 : vector<1x8x256xf32> to vector<8x256xf32>
    %58 = arith.mulf %55, %57 : vector<8x256xf32>
    %c0_27 = arith.constant 0 : index
    %c2_28 = arith.constant 2 : index
    %c0_29 = arith.constant 0 : index
    %c0_30 = arith.constant 0 : index
    %59 = vector.load %arg2[%c0_27, %c2_28, %c0_29, %c0_30] : memref<2x9x8x8xf32, #tpu.memory_space<vmem>>, vector<1x1x8x8xf32>
    %60 = vector.shape_cast %59 : vector<1x1x8x8xf32> to vector<8x8xf32>
    %cst_31 = arith.constant dense<0.000000e+00> : vector<8x256xf32>
    %61 = tpu.matmul %60, %58, %cst_31 {dimension_numbers = #tpu.dot_dimension_numbers<[1], [0], [0], [1], [0, 0, 1, 1], [], []>, precision = #tpu.contract_precision<fp32>} : vector<8x8xf32>, vector<8x256xf32>, vector<8x256xf32> -> vector<8x256xf32>
    %62 = arith.addf %54, %61 : vector<8x256xf32>
    %c1_i32_32 = arith.constant 1 : i32
    %63 = tpu.dynamic_rotate %0 by %c1_i32_32 dim 1 : vector<8x256xf32>, i32 -> vector<8x256xf32>
    %c3 = arith.constant 3 : index
    %c0_33 = arith.constant 0 : index
    %c0_34 = arith.constant 0 : index
    %64 = vector.load %arg1[%c3, %c0_33, %c0_34] : memref<9x8x256xf32, #tpu.memory_space<vmem>>, vector<1x8x256xf32>
    %65 = vector.shape_cast %64 : vector<1x8x256xf32> to vector<8x256xf32>
    %66 = arith.mulf %63, %65 : vector<8x256xf32>
    %c0_35 = arith.constant 0 : index
    %c3_36 = arith.constant 3 : index
    %c0_37 = arith.constant 0 : index
    %c0_38 = arith.constant 0 : index
    %67 = vector.load %arg2[%c0_35, %c3_36, %c0_37, %c0_38] : memref<2x9x8x8xf32, #tpu.memory_space<vmem>>, vector<1x1x8x8xf32>
    %68 = vector.shape_cast %67 : vector<1x1x8x8xf32> to vector<8x8xf32>
    %cst_39 = arith.constant dense<0.000000e+00> : vector<8x256xf32>
    %69 = tpu.matmul %68, %66, %cst_39 {dimension_numbers = #tpu.dot_dimension_numbers<[1], [0], [0], [1], [0, 0, 1, 1], [], []>, precision = #tpu.contract_precision<fp32>} : vector<8x8xf32>, vector<8x256xf32>, vector<8x256xf32> -> vector<8x256xf32>
    %70 = arith.addf %62, %69 : vector<8x256xf32>
    %c0_40 = arith.constant 0 : index
    %c4 = arith.constant 4 : index
    %c0_41 = arith.constant 0 : index
    %c0_42 = arith.constant 0 : index
    %71 = vector.load %arg2[%c0_40, %c4, %c0_41, %c0_42] : memref<2x9x8x8xf32, #tpu.memory_space<vmem>>, vector<1x1x8x8xf32>
    %72 = vector.shape_cast %71 : vector<1x1x8x8xf32> to vector<8x8xf32>
    %cst_43 = arith.constant dense<0.000000e+00> : vector<8x256xf32>
    %73 = tpu.matmul %72, %0, %cst_43 {dimension_numbers = #tpu.dot_dimension_numbers<[1], [0], [0], [1], [0, 0, 1, 1], [], []>, precision = #tpu.contract_precision<fp32>} : vector<8x8xf32>, vector<8x256xf32>, vector<8x256xf32> -> vector<8x256xf32>
    %74 = arith.addf %70, %73 : vector<8x256xf32>
    %c255_i32 = arith.constant 255 : i32
    %75 = tpu.dynamic_rotate %0 by %c255_i32 dim 1 : vector<8x256xf32>, i32 -> vector<8x256xf32>
    %c5 = arith.constant 5 : index
    %c0_44 = arith.constant 0 : index
    %c0_45 = arith.constant 0 : index
    %76 = vector.load %arg1[%c5, %c0_44, %c0_45] : memref<9x8x256xf32, #tpu.memory_space<vmem>>, vector<1x8x256xf32>
    %77 = vector.shape_cast %76 : vector<1x8x256xf32> to vector<8x256xf32>
    %78 = arith.mulf %75, %77 : vector<8x256xf32>
    %c0_46 = arith.constant 0 : index
    %c5_47 = arith.constant 5 : index
    %c0_48 = arith.constant 0 : index
    %c0_49 = arith.constant 0 : index
    %79 = vector.load %arg2[%c0_46, %c5_47, %c0_48, %c0_49] : memref<2x9x8x8xf32, #tpu.memory_space<vmem>>, vector<1x1x8x8xf32>
    %80 = vector.shape_cast %79 : vector<1x1x8x8xf32> to vector<8x8xf32>
    %cst_50 = arith.constant dense<0.000000e+00> : vector<8x256xf32>
    %81 = tpu.matmul %80, %78, %cst_50 {dimension_numbers = #tpu.dot_dimension_numbers<[1], [0], [0], [1], [0, 0, 1, 1], [], []>, precision = #tpu.contract_precision<fp32>} : vector<8x8xf32>, vector<8x256xf32>, vector<8x256xf32> -> vector<8x256xf32>
    %82 = arith.addf %74, %81 : vector<8x256xf32>
    %c241_i32 = arith.constant 241 : i32
    %83 = tpu.dynamic_rotate %0 by %c241_i32 dim 1 : vector<8x256xf32>, i32 -> vector<8x256xf32>
    %c6 = arith.constant 6 : index
    %c0_51 = arith.constant 0 : index
    %c0_52 = arith.constant 0 : index
    %84 = vector.load %arg1[%c6, %c0_51, %c0_52] : memref<9x8x256xf32, #tpu.memory_space<vmem>>, vector<1x8x256xf32>
    %85 = vector.shape_cast %84 : vector<1x8x256xf32> to vector<8x256xf32>
    %86 = arith.mulf %83, %85 : vector<8x256xf32>
    %c0_53 = arith.constant 0 : index
    %c6_54 = arith.constant 6 : index
    %c0_55 = arith.constant 0 : index
    %c0_56 = arith.constant 0 : index
    %87 = vector.load %arg2[%c0_53, %c6_54, %c0_55, %c0_56] : memref<2x9x8x8xf32, #tpu.memory_space<vmem>>, vector<1x1x8x8xf32>
    %88 = vector.shape_cast %87 : vector<1x1x8x8xf32> to vector<8x8xf32>
    %cst_57 = arith.constant dense<0.000000e+00> : vector<8x256xf32>
    %89 = tpu.matmul %88, %86, %cst_57 {dimension_numbers = #tpu.dot_dimension_numbers<[1], [0], [0], [1], [0, 0, 1, 1], [], []>, precision = #tpu.contract_precision<fp32>} : vector<8x8xf32>, vector<8x256xf32>, vector<8x256xf32> -> vector<8x256xf32>
    %90 = arith.addf %82, %89 : vector<8x256xf32>
    %c240_i32 = arith.constant 240 : i32
    %91 = tpu.dynamic_rotate %0 by %c240_i32 dim 1 : vector<8x256xf32>, i32 -> vector<8x256xf32>
    %c7 = arith.constant 7 : index
    %c0_58 = arith.constant 0 : index
    %c0_59 = arith.constant 0 : index
    %92 = vector.load %arg1[%c7, %c0_58, %c0_59] : memref<9x8x256xf32, #tpu.memory_space<vmem>>, vector<1x8x256xf32>
    %93 = vector.shape_cast %92 : vector<1x8x256xf32> to vector<8x256xf32>
    %94 = arith.mulf %91, %93 : vector<8x256xf32>
    %c0_60 = arith.constant 0 : index
    %c7_61 = arith.constant 7 : index
    %c0_62 = arith.constant 0 : index
    %c0_63 = arith.constant 0 : index
    %95 = vector.load %arg2[%c0_60, %c7_61, %c0_62, %c0_63] : memref<2x9x8x8xf32, #tpu.memory_space<vmem>>, vector<1x1x8x8xf32>
    %96 = vector.shape_cast %95 : vector<1x1x8x8xf32> to vector<8x8xf32>
    %cst_64 = arith.constant dense<0.000000e+00> : vector<8x256xf32>
    %97 = tpu.matmul %96, %94, %cst_64 {dimension_numbers = #tpu.dot_dimension_numbers<[1], [0], [0], [1], [0, 0, 1, 1], [], []>, precision = #tpu.contract_precision<fp32>} : vector<8x8xf32>, vector<8x256xf32>, vector<8x256xf32> -> vector<8x256xf32>
    %98 = arith.addf %90, %97 : vector<8x256xf32>
    %c239_i32 = arith.constant 239 : i32
    %99 = tpu.dynamic_rotate %0 by %c239_i32 dim 1 : vector<8x256xf32>, i32 -> vector<8x256xf32>
    %c8 = arith.constant 8 : index
    %c0_65 = arith.constant 0 : index
    %c0_66 = arith.constant 0 : index
    %100 = vector.load %arg1[%c8, %c0_65, %c0_66] : memref<9x8x256xf32, #tpu.memory_space<vmem>>, vector<1x8x256xf32>
    %101 = vector.shape_cast %100 : vector<1x8x256xf32> to vector<8x256xf32>
    %102 = arith.mulf %99, %101 : vector<8x256xf32>
    %c0_67 = arith.constant 0 : index
    %c8_68 = arith.constant 8 : index
    %c0_69 = arith.constant 0 : index
    %c0_70 = arith.constant 0 : index
    %103 = vector.load %arg2[%c0_67, %c8_68, %c0_69, %c0_70] : memref<2x9x8x8xf32, #tpu.memory_space<vmem>>, vector<1x1x8x8xf32>
    %104 = vector.shape_cast %103 : vector<1x1x8x8xf32> to vector<8x8xf32>
    %cst_71 = arith.constant dense<0.000000e+00> : vector<8x256xf32>
    %105 = tpu.matmul %104, %102, %cst_71 {dimension_numbers = #tpu.dot_dimension_numbers<[1], [0], [0], [1], [0, 0, 1, 1], [], []>, precision = #tpu.contract_precision<fp32>} : vector<8x8xf32>, vector<8x256xf32>, vector<8x256xf32> -> vector<8x256xf32>
    %106 = arith.addf %98, %105 : vector<8x256xf32>
    %c0_72 = arith.constant 0 : index
    %c0_73 = arith.constant 0 : index
    %107 = vector.load %arg3[%c0_72, %c0_73] : memref<8x4xf32, #tpu.memory_space<vmem>>, vector<8x1xf32>
    %c0_74 = arith.constant 0 : index
    %c1_75 = arith.constant 1 : index
    %108 = vector.load %arg3[%c0_74, %c1_75] : memref<8x4xf32, #tpu.memory_space<vmem>>, vector<8x1xf32>
    %cst_76 = arith.constant dense<0.000000e+00> : vector<8xf32>
    %109 = vector.multi_reduction <add>, %106, %cst_76 [1] : vector<8x256xf32> to vector<8xf32>
    %110 = vector.shape_cast %109 : vector<8xf32> to vector<8x1xf32>
    %111 = arith.mulf %106, %106 : vector<8x256xf32>
    %cst_77 = arith.constant dense<0.000000e+00> : vector<8xf32>
    %112 = vector.multi_reduction <add>, %111, %cst_77 [1] : vector<8x256xf32> to vector<8xf32>
    %113 = vector.shape_cast %112 : vector<8xf32> to vector<8x1xf32>
    %114 = tpu.concatenate %110, %113 in 1 : vector<8x1xf32>, vector<8x1xf32> -> vector<8x2xf32>
    %cst_78 = arith.constant dense<0.000000e+00> : vector<8x2xf32>
    %115 = tpu.matmul %37, %114, %cst_78 {dimension_numbers = #tpu.dot_dimension_numbers<[1], [0], [0], [1], [0, 0, 1, 1], [], []>, precision = #tpu.contract_precision<fp32>} : vector<8x8xf32>, vector<8x2xf32>, vector<8x2xf32> -> vector<8x2xf32>
    %116 = vector.extract_strided_slice %115 {offsets = [0, 0], sizes = [8, 1], strides = [1, 1]} : vector<8x2xf32> to vector<8x1xf32>
    %cst_79 = arith.constant 0.001953125 : f32
    %117 = vector.broadcast %cst_79 : f32 to vector<8x1xf32>
    %118 = arith.mulf %116, %117 : vector<8x1xf32>
    %119 = vector.extract_strided_slice %115 {offsets = [0, 1], sizes = [8, 1], strides = [1, 1]} : vector<8x2xf32> to vector<8x1xf32>
    %cst_80 = arith.constant 0.001953125 : f32
    %120 = vector.broadcast %cst_80 : f32 to vector<8x1xf32>
    %121 = arith.mulf %119, %120 : vector<8x1xf32>
    %122 = arith.mulf %118, %118 : vector<8x1xf32>
    %123 = arith.subf %121, %122 : vector<8x1xf32>
    %cst_81 = arith.constant 9.99999974E-6 : f32
    %124 = vector.broadcast %cst_81 : f32 to vector<8x1xf32>
    %125 = arith.addf %123, %124 : vector<8x1xf32>
    %126 = math.rsqrt %125 : vector<8x1xf32>
    %127 = arith.mulf %126, %107 : vector<8x1xf32>
    %128 = arith.mulf %118, %127 : vector<8x1xf32>
    %129 = arith.subf %108, %128 : vector<8x1xf32>
    %130 = vector.broadcast %127 : vector<8x1xf32> to vector<8x256xf32>
    %131 = arith.mulf %106, %130 : vector<8x256xf32>
    %132 = vector.broadcast %129 : vector<8x1xf32> to vector<8x256xf32>
    %133 = arith.addf %131, %132 : vector<8x256xf32>
    %c0_82 = arith.constant 0 : index
    %c0_83 = arith.constant 0 : index
    %134 = memref.load %arg4[%c0_82, %c0_83] : memref<1x1xf32, #tpu.memory_space<smem>>
    %cst_84 = arith.constant 0.000000e+00 : f32
    %135 = vector.broadcast %cst_84 : f32 to vector<8x256xf32>
    %136 = arith.cmpf oge, %133, %135 : vector<8x256xf32>
    %137 = vector.broadcast %134 : f32 to vector<8x256xf32>
    %138 = arith.mulf %137, %133 : vector<8x256xf32>
    %139 = arith.select %136, %133, %138 : vector<8x256xi1>, vector<8x256xf32>
    %cst_85 = arith.constant 0.000000e+00 : f32
    %140 = vector.broadcast %cst_85 : f32 to vector<8x256xf32>
    %c17_i32_86 = arith.constant 17 : i32
    %141 = tpu.dynamic_rotate %139 by %c17_i32_86 dim 1 : vector<8x256xf32>, i32 -> vector<8x256xf32>
    %c0_87 = arith.constant 0 : index
    %c0_88 = arith.constant 0 : index
    %c0_89 = arith.constant 0 : index
    %142 = vector.load %arg1[%c0_87, %c0_88, %c0_89] : memref<9x8x256xf32, #tpu.memory_space<vmem>>, vector<1x8x256xf32>
    %143 = vector.shape_cast %142 : vector<1x8x256xf32> to vector<8x256xf32>
    %144 = arith.mulf %141, %143 : vector<8x256xf32>
    %c1_90 = arith.constant 1 : index
    %c0_91 = arith.constant 0 : index
    %c0_92 = arith.constant 0 : index
    %c0_93 = arith.constant 0 : index
    %145 = vector.load %arg2[%c1_90, %c0_91, %c0_92, %c0_93] : memref<2x9x8x8xf32, #tpu.memory_space<vmem>>, vector<1x1x8x8xf32>
    %146 = vector.shape_cast %145 : vector<1x1x8x8xf32> to vector<8x8xf32>
    %cst_94 = arith.constant dense<0.000000e+00> : vector<8x256xf32>
    %147 = tpu.matmul %146, %144, %cst_94 {dimension_numbers = #tpu.dot_dimension_numbers<[1], [0], [0], [1], [0, 0, 1, 1], [], []>, precision = #tpu.contract_precision<fp32>} : vector<8x8xf32>, vector<8x256xf32>, vector<8x256xf32> -> vector<8x256xf32>
    %148 = arith.addf %140, %147 : vector<8x256xf32>
    %c16_i32_95 = arith.constant 16 : i32
    %149 = tpu.dynamic_rotate %139 by %c16_i32_95 dim 1 : vector<8x256xf32>, i32 -> vector<8x256xf32>
    %c1_96 = arith.constant 1 : index
    %c0_97 = arith.constant 0 : index
    %c0_98 = arith.constant 0 : index
    %150 = vector.load %arg1[%c1_96, %c0_97, %c0_98] : memref<9x8x256xf32, #tpu.memory_space<vmem>>, vector<1x8x256xf32>
    %151 = vector.shape_cast %150 : vector<1x8x256xf32> to vector<8x256xf32>
    %152 = arith.mulf %149, %151 : vector<8x256xf32>
    %c1_99 = arith.constant 1 : index
    %c1_100 = arith.constant 1 : index
    %c0_101 = arith.constant 0 : index
    %c0_102 = arith.constant 0 : index
    %153 = vector.load %arg2[%c1_99, %c1_100, %c0_101, %c0_102] : memref<2x9x8x8xf32, #tpu.memory_space<vmem>>, vector<1x1x8x8xf32>
    %154 = vector.shape_cast %153 : vector<1x1x8x8xf32> to vector<8x8xf32>
    %cst_103 = arith.constant dense<0.000000e+00> : vector<8x256xf32>
    %155 = tpu.matmul %154, %152, %cst_103 {dimension_numbers = #tpu.dot_dimension_numbers<[1], [0], [0], [1], [0, 0, 1, 1], [], []>, precision = #tpu.contract_precision<fp32>} : vector<8x8xf32>, vector<8x256xf32>, vector<8x256xf32> -> vector<8x256xf32>
    %156 = arith.addf %148, %155 : vector<8x256xf32>
    %c15_i32_104 = arith.constant 15 : i32
    %157 = tpu.dynamic_rotate %139 by %c15_i32_104 dim 1 : vector<8x256xf32>, i32 -> vector<8x256xf32>
    %c2_105 = arith.constant 2 : index
    %c0_106 = arith.constant 0 : index
    %c0_107 = arith.constant 0 : index
    %158 = vector.load %arg1[%c2_105, %c0_106, %c0_107] : memref<9x8x256xf32, #tpu.memory_space<vmem>>, vector<1x8x256xf32>
    %159 = vector.shape_cast %158 : vector<1x8x256xf32> to vector<8x256xf32>
    %160 = arith.mulf %157, %159 : vector<8x256xf32>
    %c1_108 = arith.constant 1 : index
    %c2_109 = arith.constant 2 : index
    %c0_110 = arith.constant 0 : index
    %c0_111 = arith.constant 0 : index
    %161 = vector.load %arg2[%c1_108, %c2_109, %c0_110, %c0_111] : memref<2x9x8x8xf32, #tpu.memory_space<vmem>>, vector<1x1x8x8xf32>
    %162 = vector.shape_cast %161 : vector<1x1x8x8xf32> to vector<8x8xf32>
    %cst_112 = arith.constant dense<0.000000e+00> : vector<8x256xf32>
    %163 = tpu.matmul %162, %160, %cst_112 {dimension_numbers = #tpu.dot_dimension_numbers<[1], [0], [0], [1], [0, 0, 1, 1], [], []>, precision = #tpu.contract_precision<fp32>} : vector<8x8xf32>, vector<8x256xf32>, vector<8x256xf32> -> vector<8x256xf32>
    %164 = arith.addf %156, %163 : vector<8x256xf32>
    %c1_i32_113 = arith.constant 1 : i32
    %165 = tpu.dynamic_rotate %139 by %c1_i32_113 dim 1 : vector<8x256xf32>, i32 -> vector<8x256xf32>
    %c3_114 = arith.constant 3 : index
    %c0_115 = arith.constant 0 : index
    %c0_116 = arith.constant 0 : index
    %166 = vector.load %arg1[%c3_114, %c0_115, %c0_116] : memref<9x8x256xf32, #tpu.memory_space<vmem>>, vector<1x8x256xf32>
    %167 = vector.shape_cast %166 : vector<1x8x256xf32> to vector<8x256xf32>
    %168 = arith.mulf %165, %167 : vector<8x256xf32>
    %c1_117 = arith.constant 1 : index
    %c3_118 = arith.constant 3 : index
    %c0_119 = arith.constant 0 : index
    %c0_120 = arith.constant 0 : index
    %169 = vector.load %arg2[%c1_117, %c3_118, %c0_119, %c0_120] : memref<2x9x8x8xf32, #tpu.memory_space<vmem>>, vector<1x1x8x8xf32>
    %170 = vector.shape_cast %169 : vector<1x1x8x8xf32> to vector<8x8xf32>
    %cst_121 = arith.constant dense<0.000000e+00> : vector<8x256xf32>
    %171 = tpu.matmul %170, %168, %cst_121 {dimension_numbers = #tpu.dot_dimension_numbers<[1], [0], [0], [1], [0, 0, 1, 1], [], []>, precision = #tpu.contract_precision<fp32>} : vector<8x8xf32>, vector<8x256xf32>, vector<8x256xf32> -> vector<8x256xf32>
    %172 = arith.addf %164, %171 : vector<8x256xf32>
    %c1_122 = arith.constant 1 : index
    %c4_123 = arith.constant 4 : index
    %c0_124 = arith.constant 0 : index
    %c0_125 = arith.constant 0 : index
    %173 = vector.load %arg2[%c1_122, %c4_123, %c0_124, %c0_125] : memref<2x9x8x8xf32, #tpu.memory_space<vmem>>, vector<1x1x8x8xf32>
    %174 = vector.shape_cast %173 : vector<1x1x8x8xf32> to vector<8x8xf32>
    %cst_126 = arith.constant dense<0.000000e+00> : vector<8x256xf32>
    %175 = tpu.matmul %174, %139, %cst_126 {dimension_numbers = #tpu.dot_dimension_numbers<[1], [0], [0], [1], [0, 0, 1, 1], [], []>, precision = #tpu.contract_precision<fp32>} : vector<8x8xf32>, vector<8x256xf32>, vector<8x256xf32> -> vector<8x256xf32>
    %176 = arith.addf %172, %175 : vector<8x256xf32>
    %c255_i32_127 = arith.constant 255 : i32
    %177 = tpu.dynamic_rotate %139 by %c255_i32_127 dim 1 : vector<8x256xf32>, i32 -> vector<8x256xf32>
    %c5_128 = arith.constant 5 : index
    %c0_129 = arith.constant 0 : index
    %c0_130 = arith.constant 0 : index
    %178 = vector.load %arg1[%c5_128, %c0_129, %c0_130] : memref<9x8x256xf32, #tpu.memory_space<vmem>>, vector<1x8x256xf32>
    %179 = vector.shape_cast %178 : vector<1x8x256xf32> to vector<8x256xf32>
    %180 = arith.mulf %177, %179 : vector<8x256xf32>
    %c1_131 = arith.constant 1 : index
    %c5_132 = arith.constant 5 : index
    %c0_133 = arith.constant 0 : index
    %c0_134 = arith.constant 0 : index
    %181 = vector.load %arg2[%c1_131, %c5_132, %c0_133, %c0_134] : memref<2x9x8x8xf32, #tpu.memory_space<vmem>>, vector<1x1x8x8xf32>
    %182 = vector.shape_cast %181 : vector<1x1x8x8xf32> to vector<8x8xf32>
    %cst_135 = arith.constant dense<0.000000e+00> : vector<8x256xf32>
    %183 = tpu.matmul %182, %180, %cst_135 {dimension_numbers = #tpu.dot_dimension_numbers<[1], [0], [0], [1], [0, 0, 1, 1], [], []>, precision = #tpu.contract_precision<fp32>} : vector<8x8xf32>, vector<8x256xf32>, vector<8x256xf32> -> vector<8x256xf32>
    %184 = arith.addf %176, %183 : vector<8x256xf32>
    %c241_i32_136 = arith.constant 241 : i32
    %185 = tpu.dynamic_rotate %139 by %c241_i32_136 dim 1 : vector<8x256xf32>, i32 -> vector<8x256xf32>
    %c6_137 = arith.constant 6 : index
    %c0_138 = arith.constant 0 : index
    %c0_139 = arith.constant 0 : index
    %186 = vector.load %arg1[%c6_137, %c0_138, %c0_139] : memref<9x8x256xf32, #tpu.memory_space<vmem>>, vector<1x8x256xf32>
    %187 = vector.shape_cast %186 : vector<1x8x256xf32> to vector<8x256xf32>
    %188 = arith.mulf %185, %187 : vector<8x256xf32>
    %c1_140 = arith.constant 1 : index
    %c6_141 = arith.constant 6 : index
    %c0_142 = arith.constant 0 : index
    %c0_143 = arith.constant 0 : index
    %189 = vector.load %arg2[%c1_140, %c6_141, %c0_142, %c0_143] : memref<2x9x8x8xf32, #tpu.memory_space<vmem>>, vector<1x1x8x8xf32>
    %190 = vector.shape_cast %189 : vector<1x1x8x8xf32> to vector<8x8xf32>
    %cst_144 = arith.constant dense<0.000000e+00> : vector<8x256xf32>
    %191 = tpu.matmul %190, %188, %cst_144 {dimension_numbers = #tpu.dot_dimension_numbers<[1], [0], [0], [1], [0, 0, 1, 1], [], []>, precision = #tpu.contract_precision<fp32>} : vector<8x8xf32>, vector<8x256xf32>, vector<8x256xf32> -> vector<8x256xf32>
    %192 = arith.addf %184, %191 : vector<8x256xf32>
    %c240_i32_145 = arith.constant 240 : i32
    %193 = tpu.dynamic_rotate %139 by %c240_i32_145 dim 1 : vector<8x256xf32>, i32 -> vector<8x256xf32>
    %c7_146 = arith.constant 7 : index
    %c0_147 = arith.constant 0 : index
    %c0_148 = arith.constant 0 : index
    %194 = vector.load %arg1[%c7_146, %c0_147, %c0_148] : memref<9x8x256xf32, #tpu.memory_space<vmem>>, vector<1x8x256xf32>
    %195 = vector.shape_cast %194 : vector<1x8x256xf32> to vector<8x256xf32>
    %196 = arith.mulf %193, %195 : vector<8x256xf32>
    %c1_149 = arith.constant 1 : index
    %c7_150 = arith.constant 7 : index
    %c0_151 = arith.constant 0 : index
    %c0_152 = arith.constant 0 : index
    %197 = vector.load %arg2[%c1_149, %c7_150, %c0_151, %c0_152] : memref<2x9x8x8xf32, #tpu.memory_space<vmem>>, vector<1x1x8x8xf32>
    %198 = vector.shape_cast %197 : vector<1x1x8x8xf32> to vector<8x8xf32>
    %cst_153 = arith.constant dense<0.000000e+00> : vector<8x256xf32>
    %199 = tpu.matmul %198, %196, %cst_153 {dimension_numbers = #tpu.dot_dimension_numbers<[1], [0], [0], [1], [0, 0, 1, 1], [], []>, precision = #tpu.contract_precision<fp32>} : vector<8x8xf32>, vector<8x256xf32>, vector<8x256xf32> -> vector<8x256xf32>
    %200 = arith.addf %192, %199 : vector<8x256xf32>
    %c239_i32_154 = arith.constant 239 : i32
    %201 = tpu.dynamic_rotate %139 by %c239_i32_154 dim 1 : vector<8x256xf32>, i32 -> vector<8x256xf32>
    %c8_155 = arith.constant 8 : index
    %c0_156 = arith.constant 0 : index
    %c0_157 = arith.constant 0 : index
    %202 = vector.load %arg1[%c8_155, %c0_156, %c0_157] : memref<9x8x256xf32, #tpu.memory_space<vmem>>, vector<1x8x256xf32>
    %203 = vector.shape_cast %202 : vector<1x8x256xf32> to vector<8x256xf32>
    %204 = arith.mulf %201, %203 : vector<8x256xf32>
    %c1_158 = arith.constant 1 : index
    %c8_159 = arith.constant 8 : index
    %c0_160 = arith.constant 0 : index
    %c0_161 = arith.constant 0 : index
    %205 = vector.load %arg2[%c1_158, %c8_159, %c0_160, %c0_161] : memref<2x9x8x8xf32, #tpu.memory_space<vmem>>, vector<1x1x8x8xf32>
    %206 = vector.shape_cast %205 : vector<1x1x8x8xf32> to vector<8x8xf32>
    %cst_162 = arith.constant dense<0.000000e+00> : vector<8x256xf32>
    %207 = tpu.matmul %206, %204, %cst_162 {dimension_numbers = #tpu.dot_dimension_numbers<[1], [0], [0], [1], [0, 0, 1, 1], [], []>, precision = #tpu.contract_precision<fp32>} : vector<8x8xf32>, vector<8x256xf32>, vector<8x256xf32> -> vector<8x256xf32>
    %208 = arith.addf %200, %207 : vector<8x256xf32>
    %c0_163 = arith.constant 0 : index
    %c2_164 = arith.constant 2 : index
    %209 = vector.load %arg3[%c0_163, %c2_164] : memref<8x4xf32, #tpu.memory_space<vmem>>, vector<8x1xf32>
    %c0_165 = arith.constant 0 : index
    %c3_166 = arith.constant 3 : index
    %210 = vector.load %arg3[%c0_165, %c3_166] : memref<8x4xf32, #tpu.memory_space<vmem>>, vector<8x1xf32>
    %cst_167 = arith.constant dense<0.000000e+00> : vector<8xf32>
    %211 = vector.multi_reduction <add>, %208, %cst_167 [1] : vector<8x256xf32> to vector<8xf32>
    %212 = vector.shape_cast %211 : vector<8xf32> to vector<8x1xf32>
    %213 = arith.mulf %208, %208 : vector<8x256xf32>
    %cst_168 = arith.constant dense<0.000000e+00> : vector<8xf32>
    %214 = vector.multi_reduction <add>, %213, %cst_168 [1] : vector<8x256xf32> to vector<8xf32>
    %215 = vector.shape_cast %214 : vector<8xf32> to vector<8x1xf32>
    %216 = tpu.concatenate %212, %215 in 1 : vector<8x1xf32>, vector<8x1xf32> -> vector<8x2xf32>
    %cst_169 = arith.constant dense<0.000000e+00> : vector<8x2xf32>
    %217 = tpu.matmul %37, %216, %cst_169 {dimension_numbers = #tpu.dot_dimension_numbers<[1], [0], [0], [1], [0, 0, 1, 1], [], []>, precision = #tpu.contract_precision<fp32>} : vector<8x8xf32>, vector<8x2xf32>, vector<8x2xf32> -> vector<8x2xf32>
    %218 = vector.extract_strided_slice %217 {offsets = [0, 0], sizes = [8, 1], strides = [1, 1]} : vector<8x2xf32> to vector<8x1xf32>
    %cst_170 = arith.constant 0.001953125 : f32
    %219 = vector.broadcast %cst_170 : f32 to vector<8x1xf32>
    %220 = arith.mulf %218, %219 : vector<8x1xf32>
    %221 = vector.extract_strided_slice %217 {offsets = [0, 1], sizes = [8, 1], strides = [1, 1]} : vector<8x2xf32> to vector<8x1xf32>
    %cst_171 = arith.constant 0.001953125 : f32
    %222 = vector.broadcast %cst_171 : f32 to vector<8x1xf32>
    %223 = arith.mulf %221, %222 : vector<8x1xf32>
    %224 = arith.mulf %220, %220 : vector<8x1xf32>
    %225 = arith.subf %223, %224 : vector<8x1xf32>
    %cst_172 = arith.constant 9.99999974E-6 : f32
    %226 = vector.broadcast %cst_172 : f32 to vector<8x1xf32>
    %227 = arith.addf %225, %226 : vector<8x1xf32>
    %228 = math.rsqrt %227 : vector<8x1xf32>
    %229 = arith.mulf %228, %209 : vector<8x1xf32>
    %230 = arith.mulf %220, %229 : vector<8x1xf32>
    %231 = arith.subf %210, %230 : vector<8x1xf32>
    %232 = vector.broadcast %229 : vector<8x1xf32> to vector<8x256xf32>
    %233 = arith.mulf %208, %232 : vector<8x256xf32>
    %234 = vector.broadcast %231 : vector<8x1xf32> to vector<8x256xf32>
    %235 = arith.addf %233, %234 : vector<8x256xf32>
    %236 = arith.addf %0, %235 : vector<8x256xf32>
    %c0_173 = arith.constant 0 : index
    %c0_174 = arith.constant 0 : index
    %237 = vector.load %arg5[%c0_173, %c0_174] : memref<8x256xf32, #tpu.memory_space<vmem>>, vector<8x256xf32>
    tpu.vector_store %arg5[%c0_173, %c0_174], %236 {strides = array<i32>} : memref<8x256xf32, #tpu.memory_space<vmem>>, vector<8x256xf32>,
    return
  }
}

</mosaic_0001>

<llo_original>
// kernel: tile.23
$region0: #{tile.23}
  #allocation0 [shape = 's32[1]{0}', space=sflag, size = 0x4, scoped, tag = 'scoped memory for tile.23']
  %s0 = inlined_call_operand.vmem [shape: f32[4], index: 0, kind: input, shape index: {}]
  %s1 = inlined_call_operand.vmem [shape: f32[2,4], index: 1, kind: output, shape index: {}]
  // Predicated region
  $region2: #{tile.23} parent=0 // pred_check
    _
  $region3: #{tile.23} parent=0 // pred_check_branch
    %3 = sbr.rel (0) target = $region5
  $region4: #{tile.23} parent=0 // pred_region
    _
  $region5: #{tile.23} parent=0 // pred_fallthru
    _
  %v4 = vld [vmem:[%s0] ss:$0 sm:$0xff]
  %5 = vst [vmem:[%s1] sm:$0x3] %v4

// kernel: tile.3
$region0: #{tile.3}
  %s0 = inlined_call_operand.vmem [shape: f32[2,4], index: 0, kind: input, shape index: {}]
  %s1 = inlined_call_operand.vmem [shape: f32[8,1], index: 1, kind: output, shape index: {}]
  $region1: #{tile.3} parent=0
    #allocation0 [shape = 'u8[4096]{0}', space=vmem, size = 0x1000, scoped, tag = 'scoped mem for input reshape']
    %s3 = sshll.u32 1, 2
    %s4 = ssub.s32 %s3, 1
    %v5 = vld [vmem:[%s0] sm:%s4]
    %6 = vst [vmem:[#allocation0] sm:%s4] %v5
    %v7 = vld [vmem:[#allocation0] sm:$0x3]
    %vm8 = vcmask 7168
    %9 = vst.msk [vmem:[%s1] ss:$4 sm:$0x3] %vm8, %v7
    %v10 = vld [vmem:[#allocation0] sm:$0x3]
    %11 = vrot.lane.b32.xlu0 %v10, 127
    %v12 = vpop.permute.xlu0 %11
    %vm13 = vcmask 7168
    %s14 = scalar_lea.vmem %s1, 1
    %15 = vst.msk [vmem:[%s14] ss:$4 sm:$0x3] %vm13, %v12
    %v16 = vld [vmem:[#allocation0] sm:$0x3]
    %17 = vrot.lane.b32.xlu0 %v16, 126
    %v18 = vpop.permute.xlu0 %17
    %vm19 = vcmask 7168
    %s20 = scalar_lea.vmem %s1, 2
    %21 = vst.msk [vmem:[%s20] ss:$4 sm:$0x3] %vm19, %v18
    %v22 = vld [vmem:[#allocation0] sm:$0x3]
    %23 = vrot.lane.b32.xlu0 %v22, 125
    %v24 = vpop.permute.xlu0 %23
    %vm25 = vcmask 7168
    %s26 = scalar_lea.vmem %s1, 3
    %27 = vst.msk [vmem:[%s26] ss:$4 sm:$0x3] %vm25, %v24

// kernel: residual_block.1
$region0: #{residual_block.1}
  #allocation0 [shape = 'u32[]', space=smem, size = 0x4, offset = 0x4, fixed_abs, tag = 'smem constant byte address 0x4 - core index']
  #allocation1 [shape = 'u32[144,128]{1,0:T(1,128)}', space=vmem, size = 0x12000, scoped, tag = 'internal scratch']
  #allocation2 [shape = 'f32[1,1]{1,0:T(1,128)S(6)}', space=smem, size = 0x200, scoped, tag = 'scoped memory for residual_block.1']
  %s0 = inlined_call_operand.vmem [shape: f32[8,256], index: 0, kind: input, shape index: {}]
  %s1 = inlined_call_operand.vmem [shape: f32[9,8,256], index: 1, kind: input, shape index: {}]
  %s2 = inlined_call_operand.vmem [shape: f32[2,9,8,8], index: 2, kind: input, shape index: {}]
  %s3 = inlined_call_operand.vmem [shape: f32[8,4], index: 3, kind: input, shape index: {}]
  %s4 = inlined_call_operand.<no memory space> [shape: f32[1,1], index: 4, kind: input, shape index: {}]
  %s5 = inlined_call_operand.vmem [shape: f32[8,256], index: 5, kind: output, shape index: {}]
  %s6 = sld [smem:[#allocation0]]
  $region30: #{residual_block.1} parent=0
    _
  %s8 = ssub.s32 1, %s6
  %s9 = scalar_select 0, %s8, %s6
  %10 = sst [smem:[#allocation2]] %s4
  // Predicated region
  $region2: #{residual_block.1} parent=0 // pred_check
    _
  $region3: #{residual_block.1} parent=0 // pred_check_branch
    %12 = sbr.rel (0) target = $region5
  $region4: #{residual_block.1} parent=0 // pred_region
    _
  $region5: #{residual_block.1} parent=0 // pred_fallthru
    _
  // Predicated region
  $region6: #{residual_block.1} parent=0 // pred_check
    _
  $region7: #{residual_block.1} parent=0 // pred_check_branch
    %14 = sbr.rel (0) target = $region9
  $region8: #{residual_block.1} parent=0 // pred_region
    _
  $region9: #{residual_block.1} parent=0 // pred_fallthru
    _
  // Predicated region
  $region10: #{residual_block.1} parent=0 // pred_check
    _
  $region11: #{residual_block.1} parent=0 // pred_check_branch
    %16 = sbr.rel (0) target = $region13
  $region12: #{residual_block.1} parent=0 // pred_region
    _
  $region13: #{residual_block.1} parent=0 // pred_fallthru
    _
  // Predicated region
  $region14: #{residual_block.1} parent=0 // pred_check
    _
  $region15: #{residual_block.1} parent=0 // pred_check_branch
    %18 = sbr.rel (0) target = $region17
  $region16: #{residual_block.1} parent=0 // pred_region
    _
  $region17: #{residual_block.1} parent=0 // pred_fallthru
    _
  // Predicated region
  $region18: #{residual_block.1} parent=0 // pred_check
    _
  $region19: #{residual_block.1} parent=0 // pred_check_branch
    %20 = sbr.rel (0) target = $region21
  $region20: #{residual_block.1} parent=0 // pred_region
    _
  $region21: #{residual_block.1} parent=0 // pred_fallthru
    _
  %v21 = vld [vmem:[%s0] sm:$0xff]
  %v22 = vld [vmem:[%s0 + $0x8] sm:$0xff]
  %v23 = vlaneseq
  %v24 = vshrl.u32 %v23, 7
  %vm25 = vcmp.lt.s32.totalorder %v24, 0
  %v26 = vsub.s32 0, %v24
  %v27 = vsel %vm25, %v26, %v24
  %v28 = vshrl.u32 %v27, 2
  %v29 = vand.u32 %v27, 3
  %v30 = vsub.s32 0, %v29
  %v31 = vsel %vm25, %v30, %v29
  %vm32 = vcmp.ne.s32.totalorder %v31, 0
  %vm33 = vcmp.lt.s32.totalorder %v31, 0
  %vm34 = vmand %vm33, %vm32
  %v35 = vadd.s32 %v31, 4
  %v36 = vsel %vm34, %v35, %v31
  %v37 = vlaneseq
  %v38 = vand.u32 %v37, 127
  %vm39 = vcmp.lt.s32.totalorder %v38, 0
  %v40 = vsub.s32 0, %v38
  %v41 = vsel %vm39, %v40, %v38
  %v42 = vshrl.u32 %v41, 2
  %v43 = vand.u32 %v41, 3
  %v44 = vsub.s32 0, %v43
  %v45 = vsel %vm39, %v44, %v43
  %vm46 = vcmp.ne.s32.totalorder %v45, 0
  %vm47 = vcmp.lt.s32.totalorder %v45, 0
  %vm48 = vmand %vm47, %vm46
  %v49 = vadd.s32 %v45, 4
  %v50 = vsel %vm48, %v49, %v45
  %vm51 = vcmp.eq.s32.totalorder %v36, %v50
  %v52 = vsel %vm51, 1, 0
  %v53 = vcvt.s32.f32 %v52
  %54 = vrot.lane.b32.xlu0 %v21, 17
  %v55 = vpop.permute.xlu0 %54
  %56 = vrot.lane.b32.xlu0 %v22, 17
  %v57 = vpop.permute.xlu0 %56
  %vm58 = vcmp.lt.s32.totalorder %v38, 17
  %v59 = vsel %vm58, %v55, %v57
  %v60 = vsel %vm58, %v57, %v55
  %v61 = vld [vmem:[%s1] sm:$0xff]
  %v62 = vld [vmem:[%s1 + $0x8] sm:$0xff]
  %v63 = vmul.f32 %v60, %v61
  %v64 = vmul.f32 %v59, %v62
  %v65 = vld [vmem:[%s2] sm:$0xff]
  %66 = vrot.lane.b32.xlu0 %v21, 16
  %v67 = vpop.permute.xlu0 %66
  %68 = vrot.lane.b32.xlu0 %v22, 16
  %v69 = vpop.permute.xlu0 %68
  %vm70 = vcmp.lt.s32.totalorder %v38, 16
  %v71 = vsel %vm70, %v67, %v69
  %v72 = vsel %vm70, %v69, %v67
  %s73 = scalar_lea.vmem %s1, 16
  %v74 = vld [vmem:[%s73] sm:$0xff]
  %v75 = vld [vmem:[%s73 + $0x8] sm:$0xff]
  %v76 = vmul.f32 %v72, %v74
  %v77 = vmul.f32 %v71, %v75
  %s78 = scalar_lea.vmem %s2, 8
  %v79 = vld [vmem:[%s78] sm:$0xff]
  %vm80 = vcmask 64512
  %v82 = vsel %vm80, %v79, 0
  %84 = vmatprep.subr.mxu0 0.0
  %85 = vmatpush1.msra.mxu0 0.0
  %86 = vmatprep.subr.mxu0 0.0
  %87 = vmatpush1.msra.mxu0 0.0
  %88 = vmatprep.subr.mxu0 0.0
  %89 = vmatpush1.msra.mxu0 0.0
  %90 = vmatprep.subr.mxu0 0.0
  %91 = vmatpush1.msra.mxu0 0.0
  %92 = vmatprep.subr.mxu0 0.0
  %93 = vmatpush1.msra.mxu0 0.0
  %94 = vmatprep.subr.mxu0 0.0
  %95 = vmatpush1.msra.mxu0 0.0
  %96 = vmatprep.subr.mxu0 0.0
  %97 = vmatpush1.msra.mxu0 0.0
  %98 = vmatprep.subr.mxu0 0.0
  %99 = vmatpush1.msra.mxu0 0.0
  %100 = vmatprep.subr.mxu0 0.0
  %101 = vmatpush1.msra.mxu0 0.0
  %102 = vmatprep.subr.mxu0 0.0
  %103 = vmatpush1.msra.mxu0 0.0
  %104 = vmatprep.subr.mxu0 0.0
  %105 = vmatpush1.msra.mxu0 0.0
  %106 = vmatprep.subr.mxu0 0.0
  %107 = vmatpush1.msra.mxu0 0.0
  %108 = vmatprep.subr.mxu0 0.0
  %109 = vmatpush1.msra.mxu0 0.0
  %110 = vmatprep.subr.mxu0 0.0
  %111 = vmatpush1.msra.mxu0 0.0
  %112 = vmatprep.subr.mxu0 0.0
  %113 = vmatpush1.msra.mxu0 0.0
  %v114 = vand.u32 %v77, 4294901760
  %115 = vmatprep.subr.mxu0 %v114
  %v116 = vand.u32 %v76, 4294901760
  %117 = vmatpush1.msra.mxu0 %v116
  %118 = vmatprep.subr.mxu0 0.0
  %119 = vmatpush2.msra.mxu0 0.0
  %120 = vmatprep.subr.mxu0 0.0
  %121 = vmatpush2.msra.mxu0 0.0
  %122 = vmatprep.subr.mxu0 0.0
  %123 = vmatpush2.msra.mxu0 0.0
  %124 = vmatprep.subr.mxu0 0.0
  %125 = vmatpush2.msra.mxu0 0.0
  %126 = vmatprep.subr.mxu0 0.0
  %127 = vmatpush2.msra.mxu0 0.0
  %128 = vmatprep.subr.mxu0 0.0
  %129 = vmatpush2.msra.mxu0 0.0
  %130 = vmatprep.subr.mxu0 0.0
  %131 = vmatpush2.msra.mxu0 0.0
  %132 = vmatprep.subr.mxu0 0.0
  %133 = vmatpush2.msra.mxu0 0.0
  %134 = vmatprep.subr.mxu0 0.0
  %135 = vmatpush2.msra.mxu0 0.0
  %136 = vmatprep.subr.mxu0 0.0
  %137 = vmatpush2.msra.mxu0 0.0
  %138 = vmatprep.subr.mxu0 0.0
  %139 = vmatpush2.msra.mxu0 0.0
  %140 = vmatprep.subr.mxu0 0.0
  %141 = vmatpush2.msra.mxu0 0.0
  %142 = vmatprep.subr.mxu0 0.0
  %143 = vmatpush2.msra.mxu0 0.0
  %144 = vmatprep.subr.mxu0 0.0
  %145 = vmatpush2.msra.mxu0 0.0
  %146 = vmatprep.subr.mxu0 0.0
  %147 = vmatpush2.msra.mxu0 0.0
  %148 = vmatprep.subr.mxu0 0.0
  %149 = vmatpush2.msra.mxu0 0.0
  %150 = vmatprep.mubr.f32.mxu0 0.0
  %v151 = vand.u32 %v82, 4294901760
  %v152 = vsub.f32 %v82, %v151
  %v153 = vand.u32 %v152, 4294901760
  %v154 = vsub.f32 %v152, %v153
  %v155 = vand.u32 %v154, 4294901760
  %156 = vmatmul.mubr.f32.gmra.mxu0 %v155
  %v157 = vpop.f32.mrf.mxu0
  %v158 = vadd.f32 0.0, %v157
  %v159 = vpop.f32.mrf.mxu0
  %v160 = vadd.f32 0.0, %v159
  %161 = vdwg.mxu0
  %162 = vmatprep.subr.mxu0 0.0
  %163 = vmatpush1.msra.mxu0 0.0
  %164 = vmatprep.subr.mxu0 0.0
  %165 = vmatpush1.msra.mxu0 0.0
  %166 = vmatprep.subr.mxu0 0.0
  %167 = vmatpush1.msra.mxu0 0.0
  %168 = vmatprep.subr.mxu0 0.0
  %169 = vmatpush1.msra.mxu0 0.0
  %170 = vmatprep.subr.mxu0 0.0
  %171 = vmatpush1.msra.mxu0 0.0
  %172 = vmatprep.subr.mxu0 0.0
  %173 = vmatpush1.msra.mxu0 0.0
  %174 = vmatprep.subr.mxu0 0.0
  %175 = vmatpush1.msra.mxu0 0.0
  %176 = vmatprep.subr.mxu0 0.0
  %177 = vmatpush1.msra.mxu0 0.0
  %178 = vmatprep.subr.mxu0 0.0
  %179 = vmatpush1.msra.mxu0 0.0
  %180 = vmatprep.subr.mxu0 0.0
  %181 = vmatpush1.msra.mxu0 0.0
  %182 = vmatprep.subr.mxu0 0.0
  %183 = vmatpush1.msra.mxu0 0.0
  %184 = vmatprep.subr.mxu0 0.0
  %185 = vmatpush1.msra.mxu0 0.0
  %186 = vmatprep.subr.mxu0 0.0
  %187 = vmatpush1.msra.mxu0 0.0
  %188 = vmatprep.subr.mxu0 0.0
  %189 = vmatpush1.msra.mxu0 0.0
  %190 = vmatprep.subr.mxu0 0.0
  %191 = vmatpush1.msra.mxu0 0.0
  %v192 = vand.u32 %v77, 4294901760
  %v193 = vsub.f32 %v77, %v192
  %v194 = vand.u32 %v193, 4294901760
  %v195 = vsub.f32 %v193, %v194
  %v196 = vand.u32 %v195, 4294901760
  %197 = vmatprep.subr.mxu0 %v196
  %v198 = vand.u32 %v76, 4294901760
  %v199 = vsub.f32 %v76, %v198
  %v200 = vand.u32 %v199, 4294901760
  %v201 = vsub.f32 %v199, %v200
  %v202 = vand.u32 %v201, 4294901760
  %203 = vmatpush1.msra.mxu0 %v202
  %204 = vmatprep.subr.mxu0 0.0
  %205 = vmatpush2.msra.mxu0 0.0
  %206 = vmatprep.subr.mxu0 0.0
  %207 = vmatpush2.msra.mxu0 0.0
  %208 = vmatprep.subr.mxu0 0.0
  %209 = vmatpush2.msra.mxu0 0.0
  %210 = vmatprep.subr.mxu0 0.0
  %211 = vmatpush2.msra.mxu0 0.0
  %212 = vmatprep.subr.mxu0 0.0
  %213 = vmatpush2.msra.mxu0 0.0
  %214 = vmatprep.subr.mxu0 0.0
  %215 = vmatpush2.msra.mxu0 0.0
  %216 = vmatprep.subr.mxu0 0.0
  %217 = vmatpush2.msra.mxu0 0.0
  %218 = vmatprep.subr.mxu0 0.0
  %219 = vmatpush2.msra.mxu0 0.0
  %220 = vmatprep.subr.mxu0 0.0
  %221 = vmatpush2.msra.mxu0 0.0
  %222 = vmatprep.subr.mxu0 0.0
  %223 = vmatpush2.msra.mxu0 0.0
  %224 = vmatprep.subr.mxu0 0.0
  %225 = vmatpush2.msra.mxu0 0.0
  %226 = vmatprep.subr.mxu0 0.0
  %227 = vmatpush2.msra.mxu0 0.0
  %228 = vmatprep.subr.mxu0 0.0
  %229 = vmatpush2.msra.mxu0 0.0
  %230 = vmatprep.subr.mxu0 0.0
  %231 = vmatpush2.msra.mxu0 0.0
  %232 = vmatprep.subr.mxu0 0.0
  %233 = vmatpush2.msra.mxu0 0.0
  %234 = vmatprep.subr.mxu0 0.0
  %235 = vmatpush2.msra.mxu0 0.0
  %236 = vmatprep.mubr.f32.mxu0 0.0
  %v237 = vand.u32 %v82, 4294901760
  %238 = vmatmul.mubr.f32.gmra.mxu0 %v237
  %v239 = vpop.f32.mrf.mxu0
  %v240 = vadd.f32 %v158, %v239
  %v241 = vpop.f32.mrf.mxu0
  %v242 = vadd.f32 %v160, %v241
  %243 = vdwg.mxu0
  %244 = vmatprep.subr.mxu0 0.0
  %245 = vmatpush1.msra.mxu0 0.0
  %246 = vmatprep.subr.mxu0 0.0
  %247 = vmatpush1.msra.mxu0 0.0
  %248 = vmatprep.subr.mxu0 0.0
  %249 = vmatpush1.msra.mxu0 0.0
  %250 = vmatprep.subr.mxu0 0.0
  %251 = vmatpush1.msra.mxu0 0.0
  %252 = vmatprep.subr.mxu0 0.0
  %253 = vmatpush1.msra.mxu0 0.0
  %254 = vmatprep.subr.mxu0 0.0
  %255 = vmatpush1.msra.mxu0 0.0
  %256 = vmatprep.subr.mxu0 0.0
  %257 = vmatpush1.msra.mxu0 0.0
  %258 = vmatprep.subr.mxu0 0.0
  %259 = vmatpush1.msra.mxu0 0.0
  %260 = vmatprep.subr.mxu0 0.0
  %261 = vmatpush1.msra.mxu0 0.0
  %262 = vmatprep.subr.mxu0 0.0
  %263 = vmatpush1.msra.mxu0 0.0
  %264 = vmatprep.subr.mxu0 0.0
  %265 = vmatpush1.msra.mxu0 0.0
  %266 = vmatprep.subr.mxu0 0.0
  %267 = vmatpush1.msra.mxu0 0.0
  %268 = vmatprep.subr.mxu0 0.0
  %269 = vmatpush1.msra.mxu0 0.0
  %270 = vmatprep.subr.mxu0 0.0
  %271 = vmatpush1.msra.mxu0 0.0
  %272 = vmatprep.subr.mxu0 0.0
  %273 = vmatpush1.msra.mxu0 0.0
  %v274 = vand.u32 %v77, 4294901760
  %v275 = vsub.f32 %v77, %v274
  %276 = vmatprep.subr.mxu0 %v275
  %v277 = vand.u32 %v76, 4294901760
  %v278 = vsub.f32 %v76, %v277
  %279 = vmatpush1.msra.mxu0 %v278
  %280 = vmatprep.subr.mxu0 0.0
  %281 = vmatpush2.msra.mxu0 0.0
  %282 = vmatprep.subr.mxu0 0.0
  %283 = vmatpush2.msra.mxu0 0.0
  %284 = vmatprep.subr.mxu0 0.0
  %285 = vmatpush2.msra.mxu0 0.0
  %286 = vmatprep.subr.mxu0 0.0
  %287 = vmatpush2.msra.mxu0 0.0
  %288 = vmatprep.subr.mxu0 0.0
  %289 = vmatpush2.msra.mxu0 0.0
  %290 = vmatprep.subr.mxu0 0.0
  %291 = vmatpush2.msra.mxu0 0.0
  %292 = vmatprep.subr.mxu0 0.0
  %293 = vmatpush2.msra.mxu0 0.0
  %294 = vmatprep.subr.mxu0 0.0
  %295 = vmatpush2.msra.mxu0 0.0
  %296 = vmatprep.subr.mxu0 0.0
  %297 = vmatpush2.msra.mxu0 0.0
  %298 = vmatprep.subr.mxu0 0.0
  %299 = vmatpush2.msra.mxu0 0.0
  %300 = vmatprep.subr.mxu0 0.0
  %301 = vmatpush2.msra.mxu0 0.0
  %302 = vmatprep.subr.mxu0 0.0
  %303 = vmatpush2.msra.mxu0 0.0
  %304 = vmatprep.subr.mxu0 0.0
  %305 = vmatpush2.msra.mxu0 0.0
  %306 = vmatprep.subr.mxu0 0.0
  %307 = vmatpush2.msra.mxu0 0.0
  %308 = vmatprep.subr.mxu0 0.0
  %309 = vmatpush2.msra.mxu0 0.0
  %310 = vmatprep.subr.mxu0 0.0
  %311 = vmatpush2.msra.mxu0 0.0
  %312 = vmatprep.mubr.f32.mxu0 0.0
  %v313 = vand.u32 %v82, 4294901760
  %v314 = vsub.f32 %v82, %v313
  %315 = vmatmul.mubr.f32.gmra.mxu0 %v314
  %v316 = vpop.f32.mrf.mxu0
  %v317 = vadd.f32 %v240, %v316
  %v318 = vpop.f32.mrf.mxu0
  %v319 = vadd.f32 %v242, %v318
  %320 = vdwg.mxu0
  %321 = vmatprep.subr.mxu0 0.0
  %322 = vmatpush1.msra.mxu0 0.0
  %323 = vmatprep.subr.mxu0 0.0
  %324 = vmatpush1.msra.mxu0 0.0
  %325 = vmatprep.subr.mxu0 0.0
  %326 = vmatpush1.msra.mxu0 0.0
  %327 = vmatprep.subr.mxu0 0.0
  %328 = vmatpush1.msra.mxu0 0.0
  %329 = vmatprep.subr.mxu0 0.0
  %330 = vmatpush1.msra.mxu0 0.0
  %331 = vmatprep.subr.mxu0 0.0
  %332 = vmatpush1.msra.mxu0 0.0
  %333 = vmatprep.subr.mxu0 0.0
  %334 = vmatpush1.msra.mxu0 0.0
  %335 = vmatprep.subr.mxu0 0.0
  %336 = vmatpush1.msra.mxu0 0.0
  %337 = vmatprep.subr.mxu0 0.0
  %338 = vmatpush1.msra.mxu0 0.0
  %339 = vmatprep.subr.mxu0 0.0
  %340 = vmatpush1.msra.mxu0 0.0
  %341 = vmatprep.subr.mxu0 0.0
  %342 = vmatpush1.msra.mxu0 0.0
  %343 = vmatprep.subr.mxu0 0.0
  %344 = vmatpush1.msra.mxu0 0.0
  %345 = vmatprep.subr.mxu0 0.0
  %346 = vmatpush1.msra.mxu0 0.0
  %347 = vmatprep.subr.mxu0 0.0
  %348 = vmatpush1.msra.mxu0 0.0
  %349 = vmatprep.subr.mxu0 0.0
  %350 = vmatpush1.msra.mxu0 0.0
  %v351 = vand.u32 %v77, 4294901760
  %352 = vmatprep.subr.mxu0 %v351
  %v353 = vand.u32 %v76, 4294901760
  %354 = vmatpush1.msra.mxu0 %v353
  %355 = vmatprep.subr.mxu0 0.0
  %356 = vmatpush2.msra.mxu0 0.0
  %357 = vmatprep.subr.mxu0 0.0
  %358 = vmatpush2.msra.mxu0 0.0
  %359 = vmatprep.subr.mxu0 0.0
  %360 = vmatpush2.msra.mxu0 0.0
  %361 = vmatprep.subr.mxu0 0.0
  %362 = vmatpush2.msra.mxu0 0.0
  %363 = vmatprep.subr.mxu0 0.0
  %364 = vmatpush2.msra.mxu0 0.0
  %365 = vmatprep.subr.mxu0 0.0
  %366 = vmatpush2.msra.mxu0 0.0
  %367 = vmatprep.subr.mxu0 0.0
  %368 = vmatpush2.msra.mxu0 0.0
  %369 = vmatprep.subr.mxu0 0.0
  %370 = vmatpush2.msra.mxu0 0.0
  %371 = vmatprep.subr.mxu0 0.0
  %372 = vmatpush2.msra.mxu0 0.0
  %373 = vmatprep.subr.mxu0 0.0
  %374 = vmatpush2.msra.mxu0 0.0
  %375 = vmatprep.subr.mxu0 0.0
  %376 = vmatpush2.msra.mxu0 0.0
  %377 = vmatprep.subr.mxu0 0.0
  %378 = vmatpush2.msra.mxu0 0.0
  %379 = vmatprep.subr.mxu0 0.0
  %380 = vmatpush2.msra.mxu0 0.0
  %381 = vmatprep.subr.mxu0 0.0
  %382 = vmatpush2.msra.mxu0 0.0
  %383 = vmatprep.subr.mxu0 0.0
  %384 = vmatpush2.msra.mxu0 0.0
  %385 = vmatprep.subr.mxu0 0.0
  %386 = vmatpush2.msra.mxu0 0.0
  %387 = vmatprep.mubr.f32.mxu0 0.0
  %v388 = vand.u32 %v82, 4294901760
  %v389 = vsub.f32 %v82, %v388
  %v390 = vand.u32 %v389, 4294901760
  %391 = vmatmul.mubr.f32.gmra.mxu0 %v390
  %v392 = vpop.f32.mrf.mxu0
  %v393 = vadd.f32 %v317, %v392
  %v394 = vpop.f32.mrf.mxu0
  %v395 = vadd.f32 %v319, %v394
  %396 = vdwg.mxu0
  %397 = vmatprep.subr.mxu0 0.0
  %398 = vmatpush1.msra.mxu0 0.0
  %399 = vmatprep.subr.mxu0 0.0
  %400 = vmatpush1.msra.mxu0 0.0
  %401 = vmatprep.subr.mxu0 0.0
  %402 = vmatpush1.msra.mxu0 0.0
  %403 = vmatprep.subr.mxu0 0.0
  %404 = vmatpush1.msra.mxu0 0.0
  %405 = vmatprep.subr.mxu0 0.0
  %406 = vmatpush1.msra.mxu0 0.0
  %407 = vmatprep.subr.mxu0 0.0
  %408 = vmatpush1.msra.mxu0 0.0
  %409 = vmatprep.subr.mxu0 0.0
  %410 = vmatpush1.msra.mxu0 0.0
  %411 = vmatprep.subr.mxu0 0.0
  %412 = vmatpush1.msra.mxu0 0.0
  %413 = vmatprep.subr.mxu0 0.0
  %414 = vmatpush1.msra.mxu0 0.0
  %415 = vmatprep.subr.mxu0 0.0
  %416 = vmatpush1.msra.mxu0 0.0
  %417 = vmatprep.subr.mxu0 0.0
  %418 = vmatpush1.msra.mxu0 0.0
  %419 = vmatprep.subr.mxu0 0.0
  %420 = vmatpush1.msra.mxu0 0.0
  %421 = vmatprep.subr.mxu0 0.0
  %422 = vmatpush1.msra.mxu0 0.0
  %423 = vmatprep.subr.mxu0 0.0
  %424 = vmatpush1.msra.mxu0 0.0
  %425 = vmatprep.subr.mxu0 0.0
  %426 = vmatpush1.msra.mxu0 0.0
  %v427 = vand.u32 %v77, 4294901760
  %v428 = vsub.f32 %v77, %v427
  %v429 = vand.u32 %v428, 4294901760
  %430 = vmatprep.subr.mxu0 %v429
  %v431 = vand.u32 %v76, 4294901760
  %v432 = vsub.f32 %v76, %v431
  %v433 = vand.u32 %v432, 4294901760
  %434 = vmatpush1.msra.mxu0 %v433
  %435 = vmatprep.subr.mxu0 0.0
  %436 = vmatpush2.msra.mxu0 0.0
  %437 = vmatprep.subr.mxu0 0.0
  %438 = vmatpush2.msra.mxu0 0.0
  %439 = vmatprep.subr.mxu0 0.0
  %440 = vmatpush2.msra.mxu0 0.0
  %441 = vmatprep.subr.mxu0 0.0
  %442 = vmatpush2.msra.mxu0 0.0
  %443 = vmatprep.subr.mxu0 0.0
  %444 = vmatpush2.msra.mxu0 0.0
  %445 = vmatprep.subr.mxu0 0.0
  %446 = vmatpush2.msra.mxu0 0.0
  %447 = vmatprep.subr.mxu0 0.0
  %448 = vmatpush2.msra.mxu0 0.0
  %449 = vmatprep.subr.mxu0 0.0
  %450 = vmatpush2.msra.mxu0 0.0
  %451 = vmatprep.subr.mxu0 0.0
  %452 = vmatpush2.msra.mxu0 0.0
  %453 = vmatprep.subr.mxu0 0.0
  %454 = vmatpush2.msra.mxu0 0.0
  %455 = vmatprep.subr.mxu0 0.0
  %456 = vmatpush2.msra.mxu0 0.0
  %457 = vmatprep.subr.mxu0 0.0
  %458 = vmatpush2.msra.mxu0 0.0
  %459 = vmatprep.subr.mxu0 0.0
  %460 = vmatpush2.msra.mxu0 0.0
  %461 = vmatprep.subr.mxu0 0.0
  %462 = vmatpush2.msra.mxu0 0.0
  %463 = vmatprep.subr.mxu0 0.0
  %464 = vmatpush2.msra.mxu0 0.0
  %465 = vmatprep.subr.mxu0 0.0
  %466 = vmatpush2.msra.mxu0 0.0
  %467 = vmatprep.mubr.f32.mxu0 0.0
  %v468 = vand.u32 %v82, 4294901760
  %469 = vmatmul.mubr.f32.gmra.mxu0 %v468
  %v470 = vpop.f32.mrf.mxu0
  %v471 = vadd.f32 %v393, %v470
  %v472 = vpop.f32.mrf.mxu0
  %v473 = vadd.f32 %v395, %v472
  %474 = vdwg.mxu0
  %475 = vmatprep.subr.mxu0 0.0
  %476 = vmatpush1.msra.mxu0 0.0
  %477 = vmatprep.subr.mxu0 0.0
  %478 = vmatpush1.msra.mxu0 0.0
  %479 = vmatprep.subr.mxu0 0.0
  %480 = vmatpush1.msra.mxu0 0.0
  %481 = vmatprep.subr.mxu0 0.0
  %482 = vmatpush1.msra.mxu0 0.0
  %483 = vmatprep.subr.mxu0 0.0
  %484 = vmatpush1.msra.mxu0 0.0
  %485 = vmatprep.subr.mxu0 0.0
  %486 = vmatpush1.msra.mxu0 0.0
  %487 = vmatprep.subr.mxu0 0.0
  %488 = vmatpush1.msra.mxu0 0.0
  %489 = vmatprep.subr.mxu0 0.0
  %490 = vmatpush1.msra.mxu0 0.0
  %491 = vmatprep.subr.mxu0 0.0
  %492 = vmatpush1.msra.mxu0 0.0
  %493 = vmatprep.subr.mxu0 0.0
  %494 = vmatpush1.msra.mxu0 0.0
  %495 = vmatprep.subr.mxu0 0.0
  %496 = vmatpush1.msra.mxu0 0.0
  %497 = vmatprep.subr.mxu0 0.0
  %498 = vmatpush1.msra.mxu0 0.0
  %499 = vmatprep.subr.mxu0 0.0
  %500 = vmatpush1.msra.mxu0 0.0
  %501 = vmatprep.subr.mxu0 0.0
  %502 = vmatpush1.msra.mxu0 0.0
  %503 = vmatprep.subr.mxu0 0.0
  %504 = vmatpush1.msra.mxu0 0.0
  %v505 = vand.u32 %v77, 4294901760
  %506 = vmatprep.subr.mxu0 %v505
  %v507 = vand.u32 %v76, 4294901760
  %508 = vmatpush1.msra.mxu0 %v507
  %509 = vmatprep.subr.mxu0 0.0
  %510 = vmatpush2.msra.mxu0 0.0
  %511 = vmatprep.subr.mxu0 0.0
  %512 = vmatpush2.msra.mxu0 0.0
  %513 = vmatprep.subr.mxu0 0.0
  %514 = vmatpush2.msra.mxu0 0.0
  %515 = vmatprep.subr.mxu0 0.0
  %516 = vmatpush2.msra.mxu0 0.0
  %517 = vmatprep.subr.mxu0 0.0
  %518 = vmatpush2.msra.mxu0 0.0
  %519 = vmatprep.subr.mxu0 0.0
  %520 = vmatpush2.msra.mxu0 0.0
  %521 = vmatprep.subr.mxu0 0.0
  %522 = vmatpush2.msra.mxu0 0.0
  %523 = vmatprep.subr.mxu0 0.0
  %524 = vmatpush2.msra.mxu0 0.0
  %525 = vmatprep.subr.mxu0 0.0
  %526 = vmatpush2.msra.mxu0 0.0
  %527 = vmatprep.subr.mxu0 0.0
  %528 = vmatpush2.msra.mxu0 0.0
  %529 = vmatprep.subr.mxu0 0.0
  %530 = vmatpush2.msra.mxu0 0.0
  %531 = vmatprep.subr.mxu0 0.0
  %532 = vmatpush2.msra.mxu0 0.0
  %533 = vmatprep.subr.mxu0 0.0
  %534 = vmatpush2.msra.mxu0 0.0
  %535 = vmatprep.subr.mxu0 0.0
  %536 = vmatpush2.msra.mxu0 0.0
  %537 = vmatprep.subr.mxu0 0.0
  %538 = vmatpush2.msra.mxu0 0.0
  %539 = vmatprep.subr.mxu0 0.0
  %540 = vmatpush2.msra.mxu0 0.0
  %541 = vmatprep.mubr.f32.mxu0 0.0
  %v542 = vand.u32 %v82, 4294901760
  %543 = vmatmul.mubr.f32.gmra.mxu0 %v542
  %v544 = vpop.f32.mrf.mxu0
  %v545 = vadd.f32 %v471, %v544
  %v546 = vpop.f32.mrf.mxu0
  %v547 = vadd.f32 %v473, %v546
  %548 = vdwg.mxu0
  %v550 = vsel %vm80, %v65, 0
  %552 = vmatprep.subr.mxu0 0.0
  %553 = vmatpush1.msra.mxu0 0.0
  %554 = vmatprep.subr.mxu0 0.0
  %555 = vmatpush1.msra.mxu0 0.0
  %556 = vmatprep.subr.mxu0 0.0
  %557 = vmatpush1.msra.mxu0 0.0
  %558 = vmatprep.subr.mxu0 0.0
  %559 = vmatpush1.msra.mxu0 0.0
  %560 = vmatprep.subr.mxu0 0.0
  %561 = vmatpush1.msra.mxu0 0.0
  %562 = vmatprep.subr.mxu0 0.0
  %563 = vmatpush1.msra.mxu0 0.0
  %564 = vmatprep.subr.mxu0 0.0
  %565 = vmatpush1.msra.mxu0 0.0
  %566 = vmatprep.subr.mxu0 0.0
  %567 = vmatpush1.msra.mxu0 0.0
  %568 = vmatprep.subr.mxu0 0.0
  %569 = vmatpush1.msra.mxu0 0.0
  %570 = vmatprep.subr.mxu0 0.0
  %571 = vmatpush1.msra.mxu0 0.0
  %572 = vmatprep.subr.mxu0 0.0
  %573 = vmatpush1.msra.mxu0 0.0
  %574 = vmatprep.subr.mxu0 0.0
  %575 = vmatpush1.msra.mxu0 0.0
  %576 = vmatprep.subr.mxu0 0.0
  %577 = vmatpush1.msra.mxu0 0.0
  %578 = vmatprep.subr.mxu0 0.0
  %579 = vmatpush1.msra.mxu0 0.0
  %580 = vmatprep.subr.mxu0 0.0
  %581 = vmatpush1.msra.mxu0 0.0
  %v582 = vand.u32 %v64, 4294901760
  %583 = vmatprep.subr.mxu0 %v582
  %v584 = vand.u32 %v63, 4294901760
  %585 = vmatpush1.msra.mxu0 %v584
  %586 = vmatprep.subr.mxu0 0.0
  %587 = vmatpush2.msra.mxu0 0.0
  %588 = vmatprep.subr.mxu0 0.0
  %589 = vmatpush2.msra.mxu0 0.0
  %590 = vmatprep.subr.mxu0 0.0
  %591 = vmatpush2.msra.mxu0 0.0
  %592 = vmatprep.subr.mxu0 0.0
  %593 = vmatpush2.msra.mxu0 0.0
  %594 = vmatprep.subr.mxu0 0.0
  %595 = vmatpush2.msra.mxu0 0.0
  %596 = vmatprep.subr.mxu0 0.0
  %597 = vmatpush2.msra.mxu0 0.0
  %598 = vmatprep.subr.mxu0 0.0
  %599 = vmatpush2.msra.mxu0 0.0
  %600 = vmatprep.subr.mxu0 0.0
  %601 = vmatpush2.msra.mxu0 0.0
  %602 = vmatprep.subr.mxu0 0.0
  %603 = vmatpush2.msra.mxu0 0.0
  %604 = vmatprep.subr.mxu0 0.0
  %605 = vmatpush2.msra.mxu0 0.0
  %606 = vmatprep.subr.mxu0 0.0
  %607 = vmatpush2.msra.mxu0 0.0
  %608 = vmatprep.subr.mxu0 0.0
  %609 = vmatpush2.msra.mxu0 0.0
  %610 = vmatprep.subr.mxu0 0.0
  %611 = vmatpush2.msra.mxu0 0.0
  %612 = vmatprep.subr.mxu0 0.0
  %613 = vmatpush2.msra.mxu0 0.0
  %614 = vmatprep.subr.mxu0 0.0
  %615 = vmatpush2.msra.mxu0 0.0
  %616 = vmatprep.subr.mxu0 0.0
  %617 = vmatpush2.msra.mxu0 0.0
  %618 = vmatprep.mubr.f32.mxu0 0.0
  %v619 = vand.u32 %v550, 4294901760
  %v620 = vsub.f32 %v550, %v619
  %v621 = vand.u32 %v620, 4294901760
  %v622 = vsub.f32 %v620, %v621
  %v623 = vand.u32 %v622, 4294901760
  %624 = vmatmul.mubr.f32.gmra.mxu0 %v623
  %v625 = vpop.f32.mrf.mxu0
  %v626 = vadd.f32 %v545, %v625
  %v627 = vpop.f32.mrf.mxu0
  %v628 = vadd.f32 %v547, %v627
  %629 = vdwg.mxu0
  %630 = vmatprep.subr.mxu0 0.0
  %631 = vmatpush1.msra.mxu0 0.0
  %632 = vmatprep.subr.mxu0 0.0
  %633 = vmatpush1.msra.mxu0 0.0
  %634 = vmatprep.subr.mxu0 0.0
  %635 = vmatpush1.msra.mxu0 0.0
  %636 = vmatprep.subr.mxu0 0.0
  %637 = vmatpush1.msra.mxu0 0.0
  %638 = vmatprep.subr.mxu0 0.0
  %639 = vmatpush1.msra.mxu0 0.0
  %640 = vmatprep.subr.mxu0 0.0
  %641 = vmatpush1.msra.mxu0 0.0
  %642 = vmatprep.subr.mxu0 0.0
  %643 = vmatpush1.msra.mxu0 0.0
  %644 = vmatprep.subr.mxu0 0.0
  %645 = vmatpush1.msra.mxu0 0.0
  %646 = vmatprep.subr.mxu0 0.0
  %647 = vmatpush1.msra.mxu0 0.0
  %648 = vmatprep.subr.mxu0 0.0
  %649 = vmatpush1.msra.mxu0 0.0
  %650 = vmatprep.subr.mxu0 0.0
  %651 = vmatpush1.msra.mxu0 0.0
  %652 = vmatprep.subr.mxu0 0.0
  %653 = vmatpush1.msra.mxu0 0.0
  %654 = vmatprep.subr.mxu0 0.0
  %655 = vmatpush1.msra.mxu0 0.0
  %656 = vmatprep.subr.mxu0 0.0
  %657 = vmatpush1.msra.mxu0 0.0
  %658 = vmatprep.subr.mxu0 0.0
  %659 = vmatpush1.msra.mxu0 0.0
  %v660 = vand.u32 %v64, 4294901760
  %v661 = vsub.f32 %v64, %v660
  %v662 = vand.u32 %v661, 4294901760
  %v663 = vsub.f32 %v661, %v662
  %v664 = vand.u32 %v663, 4294901760
  %665 = vmatprep.subr.mxu0 %v664
  %v666 = vand.u32 %v63, 4294901760
  %v667 = vsub.f32 %v63, %v666
  %v668 = vand.u32 %v667, 4294901760
  %v669 = vsub.f32 %v667, %v668
  %v670 = vand.u32 %v669, 4294901760
  %671 = vmatpush1.msra.mxu0 %v670
  %672 = vmatprep.subr.mxu0 0.0
  %673 = vmatpush2.msra.mxu0 0.0
  %674 = vmatprep.subr.mxu0 0.0
  %675 = vmatpush2.msra.mxu0 0.0
  %676 = vmatprep.subr.mxu0 0.0
  %677 = vmatpush2.msra.mxu0 0.0
  %678 = vmatprep.subr.mxu0 0.0
  %679 = vmatpush2.msra.mxu0 0.0
  %680 = vmatprep.subr.mxu0 0.0
  %681 = vmatpush2.msra.mxu0 0.0
  %682 = vmatprep.subr.mxu0 0.0
  %683 = vmatpush2.msra.mxu0 0.0
  %684 = vmatprep.subr.mxu0 0.0
  %685 = vmatpush2.msra.mxu0 0.0
  %686 = vmatprep.subr.mxu0 0.0
  %687 = vmatpush2.msra.mxu0 0.0
  %688 = vmatprep.subr.mxu0 0.0
  %689 = vmatpush2.msra.mxu0 0.0
  %690 = vmatprep.subr.mxu0 0.0
  %691 = vmatpush2.msra.mxu0 0.0
  %692 = vmatprep.subr.mxu0 0.0
  %693 = vmatpush2.msra.mxu0 0.0
  %694 = vmatprep.subr.mxu0 0.0
  %695 = vmatpush2.msra.mxu0 0.0
  %696 = vmatprep.subr.mxu0 0.0
  %697 = vmatpush2.msra.mxu0 0.0
  %698 = vmatprep.subr.mxu0 0.0
  %699 = vmatpush2.msra.mxu0 0.0
  %700 = vmatprep.subr.mxu0 0.0
  %701 = vmatpush2.msra.mxu0 0.0
  %702 = vmatprep.subr.mxu0 0.0
  %703 = vmatpush2.msra.mxu0 0.0
  %704 = vmatprep.mubr.f32.mxu0 0.0
  %v705 = vand.u32 %v550, 4294901760
  %706 = vmatmul.mubr.f32.gmra.mxu0 %v705
  %v707 = vpop.f32.mrf.mxu0
  %v708 = vadd.f32 %v626, %v707
  %v709 = vpop.f32.mrf.mxu0
  %v710 = vadd.f32 %v628, %v709
  %711 = vdwg.mxu0
  %712 = vmatprep.subr.mxu0 0.0
  %713 = vmatpush1.msra.mxu0 0.0
  %714 = vmatprep.subr.mxu0 0.0
  %715 = vmatpush1.msra.mxu0 0.0
  %716 = vmatprep.subr.mxu0 0.0
  %717 = vmatpush1.msra.mxu0 0.0
  %718 = vmatprep.subr.mxu0 0.0
  %719 = vmatpush1.msra.mxu0 0.0
  %720 = vmatprep.subr.mxu0 0.0
  %721 = vmatpush1.msra.mxu0 0.0
  %722 = vmatprep.subr.mxu0 0.0
  %723 = vmatpush1.msra.mxu0 0.0
  %724 = vmatprep.subr.mxu0 0.0
  %725 = vmatpush1.msra.mxu0 0.0
  %726 = vmatprep.subr.mxu0 0.0
  %727 = vmatpush1.msra.mxu0 0.0
  %728 = vmatprep.subr.mxu0 0.0
  %729 = vmatpush1.msra.mxu0 0.0
  %730 = vmatprep.subr.mxu0 0.0
  %731 = vmatpush1.msra.mxu0 0.0
  %732 = vmatprep.subr.mxu0 0.0
  %733 = vmatpush1.msra.mxu0 0.0
  %734 = vmatprep.subr.mxu0 0.0
  %735 = vmatpush1.msra.mxu0 0.0
  %736 = vmatprep.subr.mxu0 0.0
  %737 = vmatpush1.msra.mxu0 0.0
  %738 = vmatprep.subr.mxu0 0.0
  %739 = vmatpush1.msra.mxu0 0.0
  %740 = vmatprep.subr.mxu0 0.0
  %741 = vmatpush1.msra.mxu0 0.0
  %v742 = vand.u32 %v64, 4294901760
  %v743 = vsub.f32 %v64, %v742
  %744 = vmatprep.subr.mxu0 %v743
  %v745 = vand.u32 %v63, 4294901760
  %v746 = vsub.f32 %v63, %v745
  %747 = vmatpush1.msra.mxu0 %v746
  %748 = vmatprep.subr.mxu0 0.0
  %749 = vmatpush2.msra.mxu0 0.0
  %750 = vmatprep.subr.mxu0 0.0
  %751 = vmatpush2.msra.mxu0 0.0
  %752 = vmatprep.subr.mxu0 0.0
  %753 = vmatpush2.msra.mxu0 0.0
  %754 = vmatprep.subr.mxu0 0.0
  %755 = vmatpush2.msra.mxu0 0.0
  %756 = vmatprep.subr.mxu0 0.0
  %757 = vmatpush2.msra.mxu0 0.0
  %758 = vmatprep.subr.mxu0 0.0
  %759 = vmatpush2.msra.mxu0 0.0
  %760 = vmatprep.subr.mxu0 0.0
  %761 = vmatpush2.msra.mxu0 0.0
  %762 = vmatprep.subr.mxu0 0.0
  %763 = vmatpush2.msra.mxu0 0.0
  %764 = vmatprep.subr.mxu0 0.0
  %765 = vmatpush2.msra.mxu0 0.0
  %766 = vmatprep.subr.mxu0 0.0
  %767 = vmatpush2.msra.mxu0 0.0
  %768 = vmatprep.subr.mxu0 0.0
  %769 = vmatpush2.msra.mxu0 0.0
  %770 = vmatprep.subr.mxu0 0.0
  %771 = vmatpush2.msra.mxu0 0.0
  %772 = vmatprep.subr.mxu0 0.0
  %773 = vmatpush2.msra.mxu0 0.0
  %774 = vmatprep.subr.mxu0 0.0
  %775 = vmatpush2.msra.mxu0 0.0
  %776 = vmatprep.subr.mxu0 0.0
  %777 = vmatpush2.msra.mxu0 0.0
  %778 = vmatprep.subr.mxu0 0.0
  %779 = vmatpush2.msra.mxu0 0.0
  %780 = vmatprep.mubr.f32.mxu0 0.0
  %v781 = vand.u32 %v550, 4294901760
  %v782 = vsub.f32 %v550, %v781
  %783 = vmatmul.mubr.f32.gmra.mxu0 %v782
  %v784 = vpop.f32.mrf.mxu0
  %v785 = vadd.f32 %v708, %v784
  %v786 = vpop.f32.mrf.mxu0
  %v787 = vadd.f32 %v710, %v786
  %788 = vdwg.mxu0
  %789 = vmatprep.subr.mxu0 0.0
  %790 = vmatpush1.msra.mxu0 0.0
  %791 = vmatprep.subr.mxu0 0.0
  %792 = vmatpush1.msra.mxu0 0.0
  %793 = vmatprep.subr.mxu0 0.0
  %794 = vmatpush1.msra.mxu0 0.0
  %795 = vmatprep.subr.mxu0 0.0
  %796 = vmatpush1.msra.mxu0 0.0
  %797 = vmatprep.subr.mxu0 0.0
  %798 = vmatpush1.msra.mxu0 0.0
  %799 = vmatprep.subr.mxu0 0.0
  %800 = vmatpush1.msra.mxu0 0.0
  %801 = vmatprep.subr.mxu0 0.0
  %802 = vmatpush1.msra.mxu0 0.0
  %803 = vmatprep.subr.mxu0 0.0
  %804 = vmatpush1.msra.mxu0 0.0
  %805 = vmatprep.subr.mxu0 0.0
  %806 = vmatpush1.msra.mxu0 0.0
  %807 = vmatprep.subr.mxu0 0.0
  %808 = vmatpush1.msra.mxu0 0.0
  %809 = vmatprep.subr.mxu0 0.0
  %810 = vmatpush1.msra.mxu0 0.0
  %811 = vmatprep.subr.mxu0 0.0
  %812 = vmatpush1.msra.mxu0 0.0
  %813 = vmatprep.subr.mxu0 0.0
  %814 = vmatpush1.msra.mxu0 0.0
  %815 = vmatprep.subr.mxu0 0.0
  %816 = vmatpush1.msra.mxu0 0.0
  %817 = vmatprep.subr.mxu0 0.0
  %818 = vmatpush1.msra.mxu0 0.0
  %v819 = vand.u32 %v64, 4294901760
  %820 = vmatprep.subr.mxu0 %v819
  %v821 = vand.u32 %v63, 4294901760
  %822 = vmatpush1.msra.mxu0 %v821
  %823 = vmatprep.subr.mxu0 0.0
  %824 = vmatpush2.msra.mxu0 0.0
  %825 = vmatprep.subr.mxu0 0.0
  %826 = vmatpush2.msra.mxu0 0.0
  %827 = vmatprep.subr.mxu0 0.0
  %828 = vmatpush2.msra.mxu0 0.0
  %829 = vmatprep.subr.mxu0 0.0
  %830 = vmatpush2.msra.mxu0 0.0
  %831 = vmatprep.subr.mxu0 0.0
  %832 = vmatpush2.msra.mxu0 0.0
  %833 = vmatprep.subr.mxu0 0.0
  %834 = vmatpush2.msra.mxu0 0.0
  %835 = vmatprep.subr.mxu0 0.0
  %836 = vmatpush2.msra.mxu0 0.0
  %837 = vmatprep.subr.mxu0 0.0
  %838 = vmatpush2.msra.mxu0 0.0
  %839 = vmatprep.subr.mxu0 0.0
  %840 = vmatpush2.msra.mxu0 0.0
  %841 = vmatprep.subr.mxu0 0.0
  %842 = vmatpush2.msra.mxu0 0.0
  %843 = vmatprep.subr.mxu0 0.0
  %844 = vmatpush2.msra.mxu0 0.0
  %845 = vmatprep.subr.mxu0 0.0
  %846 = vmatpush2.msra.mxu0 0.0
  %847 = vmatprep.subr.mxu0 0.0
  %848 = vmatpush2.msra.mxu0 0.0
  %849 = vmatprep.subr.mxu0 0.0
  %850 = vmatpush2.msra.mxu0 0.0
  %851 = vmatprep.subr.mxu0 0.0
  %852 = vmatpush2.msra.mxu0 0.0
  %853 = vmatprep.subr.mxu0 0.0
  %854 = vmatpush2.msra.mxu0 0.0
  %855 = vmatprep.mubr.f32.mxu0 0.0
  %v856 = vand.u32 %v550, 4294901760
  %v857 = vsub.f32 %v550, %v856
  %v858 = vand.u32 %v857, 4294901760
  %859 = vmatmul.mubr.f32.gmra.mxu0 %v858
  %v860 = vpop.f32.mrf.mxu0
  %v861 = vadd.f32 %v785, %v860
  %v862 = vpop.f32.mrf.mxu0
  %v863 = vadd.f32 %v787, %v862
  %864 = vdwg.mxu0
  %865 = vmatprep.subr.mxu0 0.0
  %866 = vmatpush1.msra.mxu0 0.0
  %867 = vmatprep.subr.mxu0 0.0
  %868 = vmatpush1.msra.mxu0 0.0
  %869 = vmatprep.subr.mxu0 0.0
  %870 = vmatpush1.msra.mxu0 0.0
  %871 = vmatprep.subr.mxu0 0.0
  %872 = vmatpush1.msra.mxu0 0.0
  %873 = vmatprep.subr.mxu0 0.0
  %874 = vmatpush1.msra.mxu0 0.0
  %875 = vmatprep.subr.mxu0 0.0
  %876 = vmatpush1.msra.mxu0 0.0
  %877 = vmatprep.subr.mxu0 0.0
  %878 = vmatpush1.msra.mxu0 0.0
  %879 = vmatprep.subr.mxu0 0.0
  %880 = vmatpush1.msra.mxu0 0.0
  %881 = vmatprep.subr.mxu0 0.0
  %882 = vmatpush1.msra.mxu0 0.0
  %883 = vmatprep.subr.mxu0 0.0
  %884 = vmatpush1.msra.mxu0 0.0
  %885 = vmatprep.subr.mxu0 0.0
  %886 = vmatpush1.msra.mxu0 0.0
  %887 = vmatprep.subr.mxu0 0.0
  %888 = vmatpush1.msra.mxu0 0.0
  %889 = vmatprep.subr.mxu0 0.0
  %890 = vmatpush1.msra.mxu0 0.0
  %891 = vmatprep.subr.mxu0 0.0
  %892 = vmatpush1.msra.mxu0 0.0
  %893 = vmatprep.subr.mxu0 0.0
  %894 = vmatpush1.msra.mxu0 0.0
  %v895 = vand.u32 %v64, 4294901760
  %v896 = vsub.f32 %v64, %v895
  %v897 = vand.u32 %v896, 4294901760
  %898 = vmatprep.subr.mxu0 %v897
  %v899 = vand.u32 %v63, 4294901760
  %v900 = vsub.f32 %v63, %v899
  %v901 = vand.u32 %v900, 4294901760
  %902 = vmatpush1.msra.mxu0 %v901
  %903 = vmatprep.subr.mxu0 0.0
  %904 = vmatpush2.msra.mxu0 0.0
  %905 = vmatprep.subr.mxu0 0.0
  %906 = vmatpush2.msra.mxu0 0.0
  %907 = vmatprep.subr.mxu0 0.0
  %908 = vmatpush2.msra.mxu0 0.0
  %909 = vmatprep.subr.mxu0 0.0
  %910 = vmatpush2.msra.mxu0 0.0
  %911 = vmatprep.subr.mxu0 0.0
  %912 = vmatpush2.msra.mxu0 0.0
  %913 = vmatprep.subr.mxu0 0.0
  %914 = vmatpush2.msra.mxu0 0.0
  %915 = vmatprep.subr.mxu0 0.0
  %916 = vmatpush2.msra.mxu0 0.0
  %917 = vmatprep.subr.mxu0 0.0
  %918 = vmatpush2.msra.mxu0 0.0
  %919 = vmatprep.subr.mxu0 0.0
  %920 = vmatpush2.msra.mxu0 0.0
  %921 = vmatprep.subr.mxu0 0.0
  %922 = vmatpush2.msra.mxu0 0.0
  %923 = vmatprep.subr.mxu0 0.0
  %924 = vmatpush2.msra.mxu0 0.0
  %925 = vmatprep.subr.mxu0 0.0
  %926 = vmatpush2.msra.mxu0 0.0
  %927 = vmatprep.subr.mxu0 0.0
  %928 = vmatpush2.msra.mxu0 0.0
  %929 = vmatprep.subr.mxu0 0.0
  %930 = vmatpush2.msra.mxu0 0.0
  %931 = vmatprep.subr.mxu0 0.0
  %932 = vmatpush2.msra.mxu0 0.0
  %933 = vmatprep.subr.mxu0 0.0
  %934 = vmatpush2.msra.mxu0 0.0
  %935 = vmatprep.mubr.f32.mxu0 0.0
  %v936 = vand.u32 %v550, 4294901760
  %937 = vmatmul.mubr.f32.gmra.mxu0 %v936
  %v938 = vpop.f32.mrf.mxu0
  %v939 = vadd.f32 %v861, %v938
  %v940 = vpop.f32.mrf.mxu0
  %v941 = vadd.f32 %v863, %v940
  %942 = vdwg.mxu0
  %943 = vmatprep.subr.mxu0 0.0
  %944 = vmatpush1.msra.mxu0 0.0
  %945 = vmatprep.subr.mxu0 0.0
  %946 = vmatpush1.msra.mxu0 0.0
  %947 = vmatprep.subr.mxu0 0.0
  %948 = vmatpush1.msra.mxu0 0.0
  %949 = vmatprep.subr.mxu0 0.0
  %950 = vmatpush1.msra.mxu0 0.0
  %951 = vmatprep.subr.mxu0 0.0
  %952 = vmatpush1.msra.mxu0 0.0
  %953 = vmatprep.subr.mxu0 0.0
  %954 = vmatpush1.msra.mxu0 0.0
  %955 = vmatprep.subr.mxu0 0.0
  %956 = vmatpush1.msra.mxu0 0.0
  %957 = vmatprep.subr.mxu0 0.0
  %958 = vmatpush1.msra.mxu0 0.0
  %959 = vmatprep.subr.mxu0 0.0
  %960 = vmatpush1.msra.mxu0 0.0
  %961 = vmatprep.subr.mxu0 0.0
  %962 = vmatpush1.msra.mxu0 0.0
  %963 = vmatprep.subr.mxu0 0.0
  %964 = vmatpush1.msra.mxu0 0.0
  %965 = vmatprep.subr.mxu0 0.0
  %966 = vmatpush1.msra.mxu0 0.0
  %967 = vmatprep.subr.mxu0 0.0
  %968 = vmatpush1.msra.mxu0 0.0
  %969 = vmatprep.subr.mxu0 0.0
  %970 = vmatpush1.msra.mxu0 0.0
  %971 = vmatprep.subr.mxu0 0.0
  %972 = vmatpush1.msra.mxu0 0.0
  %v973 = vand.u32 %v64, 4294901760
  %974 = vmatprep.subr.mxu0 %v973
  %v975 = vand.u32 %v63, 4294901760
  %976 = vmatpush1.msra.mxu0 %v975
  %977 = vmatprep.subr.mxu0 0.0
  %978 = vmatpush2.msra.mxu0 0.0
  %979 = vmatprep.subr.mxu0 0.0
  %980 = vmatpush2.msra.mxu0 0.0
  %981 = vmatprep.subr.mxu0 0.0
  %982 = vmatpush2.msra.mxu0 0.0
  %983 = vmatprep.subr.mxu0 0.0
  %984 = vmatpush2.msra.mxu0 0.0
  %985 = vmatprep.subr.mxu0 0.0
  %986 = vmatpush2.msra.mxu0 0.0
  %987 = vmatprep.subr.mxu0 0.0
  %988 = vmatpush2.msra.mxu0 0.0
  %989 = vmatprep.subr.mxu0 0.0
  %990 = vmatpush2.msra.mxu0 0.0
  %991 = vmatprep.subr.mxu0 0.0
  %992 = vmatpush2.msra.mxu0 0.0
  %993 = vmatprep.subr.mxu0 0.0
  %994 = vmatpush2.msra.mxu0 0.0
  %995 = vmatprep.subr.mxu0 0.0
  %996 = vmatpush2.msra.mxu0 0.0
  %997 = vmatprep.subr.mxu0 0.0
  %998 = vmatpush2.msra.mxu0 0.0
  %999 = vmatprep.subr.mxu0 0.0
  %1000 = vmatpush2.msra.mxu0 0.0
  %1001 = vmatprep.subr.mxu0 0.0
  %1002 = vmatpush2.msra.mxu0 0.0
  %1003 = vmatprep.subr.mxu0 0.0
  %1004 = vmatpush2.msra.mxu0 0.0
  %1005 = vmatprep.subr.mxu0 0.0
  %1006 = vmatpush2.msra.mxu0 0.0
  %1007 = vmatprep.subr.mxu0 0.0
  %1008 = vmatpush2.msra.mxu0 0.0
  %1009 = vmatprep.mubr.f32.mxu0 0.0
  %v1010 = vand.u32 %v550, 4294901760
  %1011 = vmatmul.mubr.f32.gmra.mxu0 %v1010
  %v1012 = vpop.f32.mrf.mxu0
  %v1013 = vadd.f32 %v939, %v1012
  %v1014 = vpop.f32.mrf.mxu0
  %v1015 = vadd.f32 %v941, %v1014
  %1016 = vdwg.mxu0
  %1017 = vrot.lane.b32.xlu0 %v21, 15
  %v1018 = vpop.permute.xlu0 %1017
  %1019 = vrot.lane.b32.xlu0 %v22, 15
  %v1020 = vpop.permute.xlu0 %1019
  %vm1021 = vcmp.lt.s32.totalorder %v38, 15
  %v1022 = vsel %vm1021, %v1018, %v1020
  %v1023 = vsel %vm1021, %v1020, %v1018
  %s1024 = scalar_lea.vmem %s1, 32
  %v1025 = vld [vmem:[%s1024] sm:$0xff]
  %v1026 = vld [vmem:[%s1024 + $0x8] sm:$0xff]
  %v1027 = vmul.f32 %v1023, %v1025
  %v1028 = vmul.f32 %v1022, %v1026
  %s1029 = scalar_lea.vmem %s2, 16
  %v1030 = vld [vmem:[%s1029] sm:$0xff]
  %v1032 = vsel %vm80, %v1030, 0
  %1034 = vmatprep.subr.mxu0 0.0
  %1035 = vmatpush1.msra.mxu0 0.0
  %1036 = vmatprep.subr.mxu0 0.0
  %1037 = vmatpush1.msra.mxu0 0.0
  %1038 = vmatprep.subr.mxu0 0.0
  %1039 = vmatpush1.msra.mxu0 0.0
  %1040 = vmatprep.subr.mxu0 0.0
  %1041 = vmatpush1.msra.mxu0 0.0
  %1042 = vmatprep.subr.mxu0 0.0
  %1043 = vmatpush1.msra.mxu0 0.0
  %1044 = vmatprep.subr.mxu0 0.0
  %1045 = vmatpush1.msra.mxu0 0.0
  %1046 = vmatprep.subr.mxu0 0.0
  %1047 = vmatpush1.msra.mxu0 0.0
  %1048 = vmatprep.subr.mxu0 0.0
  %1049 = vmatpush1.msra.mxu0 0.0
  %1050 = vmatprep.subr.mxu0 0.0
  %1051 = vmatpush1.msra.mxu0 0.0
  %1052 = vmatprep.subr.mxu0 0.0
  %1053 = vmatpush1.msra.mxu0 0.0
  %1054 = vmatprep.subr.mxu0 0.0
  %1055 = vmatpush1.msra.mxu0 0.0
  %1056 = vmatprep.subr.mxu0 0.0
  %1057 = vmatpush1.msra.mxu0 0.0
  %1058 = vmatprep.subr.mxu0 0.0
  %1059 = vmatpush1.msra.mxu0 0.0
  %1060 = vmatprep.subr.mxu0 0.0
  %1061 = vmatpush1.msra.mxu0 0.0
  %1062 = vmatprep.subr.mxu0 0.0
  %1063 = vmatpush1.msra.mxu0 0.0
  %v1064 = vand.u32 %v1028, 4294901760
  %1065 = vmatprep.subr.mxu0 %v1064
  %v1066 = vand.u32 %v1027, 4294901760
  %1067 = vmatpush1.msra.mxu0 %v1066
  %1068 = vmatprep.subr.mxu0 0.0
  %1069 = vmatpush2.msra.mxu0 0.0
  %1070 = vmatprep.subr.mxu0 0.0
  %1071 = vmatpush2.msra.mxu0 0.0
  %1072 = vmatprep.subr.mxu0 0.0
  %1073 = vmatpush2.msra.mxu0 0.0
  %1074 = vmatprep.subr.mxu0 0.0
  %1075 = vmatpush2.msra.mxu0 0.0
  %1076 = vmatprep.subr.mxu0 0.0
  %1077 = vmatpush2.msra.mxu0 0.0
  %1078 = vmatprep.subr.mxu0 0.0
  %1079 = vmatpush2.msra.mxu0 0.0
  %1080 = vmatprep.subr.mxu0 0.0
  %1081 = vmatpush2.msra.mxu0 0.0
  %1082 = vmatprep.subr.mxu0 0.0
  %1083 = vmatpush2.msra.mxu0 0.0
  %1084 = vmatprep.subr.mxu0 0.0
  %1085 = vmatpush2.msra.mxu0 0.0
  %1086 = vmatprep.subr.mxu0 0.0
  %1087 = vmatpush2.msra.mxu0 0.0
  %1088 = vmatprep.subr.mxu0 0.0
  %1089 = vmatpush2.msra.mxu0 0.0
  %1090 = vmatprep.subr.mxu0 0.0
  %1091 = vmatpush2.msra.mxu0 0.0
  %1092 = vmatprep.subr.mxu0 0.0
  %1093 = vmatpush2.msra.mxu0 0.0
  %1094 = vmatprep.subr.mxu0 0.0
  %1095 = vmatpush2.msra.mxu0 0.0
  %1096 = vmatprep.subr.mxu0 0.0
  %1097 = vmatpush2.msra.mxu0 0.0
  %1098 = vmatprep.subr.mxu0 0.0
  %1099 = vmatpush2.msra.mxu0 0.0
  %1100 = vmatprep.mubr.f32.mxu0 0.0
  %v1101 = vand.u32 %v1032, 4294901760
  %v1102 = vsub.f32 %v1032, %v1101
  %v1103 = vand.u32 %v1102, 4294901760
  %v1104 = vsub.f32 %v1102, %v1103
  %v1105 = vand.u32 %v1104, 4294901760
  %1106 = vmatmul.mubr.f32.gmra.mxu0 %v1105
  %v1107 = vpop.f32.mrf.mxu0
  %v1108 = vadd.f32 0.0, %v1107
  %v1109 = vpop.f32.mrf.mxu0
  %v1110 = vadd.f32 0.0, %v1109
  %1111 = vdwg.mxu0
  %1112 = vmatprep.subr.mxu0 0.0
  %1113 = vmatpush1.msra.mxu0 0.0
  %1114 = vmatprep.subr.mxu0 0.0
  %1115 = vmatpush1.msra.mxu0 0.0
  %1116 = vmatprep.subr.mxu0 0.0
  %1117 = vmatpush1.msra.mxu0 0.0
  %1118 = vmatprep.subr.mxu0 0.0
  %1119 = vmatpush1.msra.mxu0 0.0
  %1120 = vmatprep.subr.mxu0 0.0
  %1121 = vmatpush1.msra.mxu0 0.0
  %1122 = vmatprep.subr.mxu0 0.0
  %1123 = vmatpush1.msra.mxu0 0.0
  %1124 = vmatprep.subr.mxu0 0.0
  %1125 = vmatpush1.msra.mxu0 0.0
  %1126 = vmatprep.subr.mxu0 0.0
  %1127 = vmatpush1.msra.mxu0 0.0
  %1128 = vmatprep.subr.mxu0 0.0
  %1129 = vmatpush1.msra.mxu0 0.0
  %1130 = vmatprep.subr.mxu0 0.0
  %1131 = vmatpush1.msra.mxu0 0.0
  %1132 = vmatprep.subr.mxu0 0.0
  %1133 = vmatpush1.msra.mxu0 0.0
  %1134 = vmatprep.subr.mxu0 0.0
  %1135 = vmatpush1.msra.mxu0 0.0
  %1136 = vmatprep.subr.mxu0 0.0
  %1137 = vmatpush1.msra.mxu0 0.0
  %1138 = vmatprep.subr.mxu0 0.0
  %1139 = vmatpush1.msra.mxu0 0.0
  %1140 = vmatprep.subr.mxu0 0.0
  %1141 = vmatpush1.msra.mxu0 0.0
  %v1142 = vand.u32 %v1028, 4294901760
  %v1143 = vsub.f32 %v1028, %v1142
  %v1144 = vand.u32 %v1143, 4294901760
  %v1145 = vsub.f32 %v1143, %v1144
  %v1146 = vand.u32 %v1145, 4294901760
  %1147 = vmatprep.subr.mxu0 %v1146
  %v1148 = vand.u32 %v1027, 4294901760
  %v1149 = vsub.f32 %v1027, %v1148
  %v1150 = vand.u32 %v1149, 4294901760
  %v1151 = vsub.f32 %v1149, %v1150
  %v1152 = vand.u32 %v1151, 4294901760
  %1153 = vmatpush1.msra.mxu0 %v1152
  %1154 = vmatprep.subr.mxu0 0.0
  %1155 = vmatpush2.msra.mxu0 0.0
  %1156 = vmatprep.subr.mxu0 0.0
  %1157 = vmatpush2.msra.mxu0 0.0
  %1158 = vmatprep.subr.mxu0 0.0
  %1159 = vmatpush2.msra.mxu0 0.0
  %1160 = vmatprep.subr.mxu0 0.0
  %1161 = vmatpush2.msra.mxu0 0.0
  %1162 = vmatprep.subr.mxu0 0.0
  %1163 = vmatpush2.msra.mxu0 0.0
  %1164 = vmatprep.subr.mxu0 0.0
  %1165 = vmatpush2.msra.mxu0 0.0
  %1166 = vmatprep.subr.mxu0 0.0
  %1167 = vmatpush2.msra.mxu0 0.0
  %1168 = vmatprep.subr.mxu0 0.0
  %1169 = vmatpush2.msra.mxu0 0.0
  %1170 = vmatprep.subr.mxu0 0.0
  %1171 = vmatpush2.msra.mxu0 0.0
  %1172 = vmatprep.subr.mxu0 0.0
  %1173 = vmatpush2.msra.mxu0 0.0
  %1174 = vmatprep.subr.mxu0 0.0
  %1175 = vmatpush2.msra.mxu0 0.0
  %1176 = vmatprep.subr.mxu0 0.0
  %1177 = vmatpush2.msra.mxu0 0.0
  %1178 = vmatprep.subr.mxu0 0.0
  %1179 = vmatpush2.msra.mxu0 0.0
  %1180 = vmatprep.subr.mxu0 0.0
  %1181 = vmatpush2.msra.mxu0 0.0
  %1182 = vmatprep.subr.mxu0 0.0
  %1183 = vmatpush2.msra.mxu0 0.0
  %1184 = vmatprep.subr.mxu0 0.0
  %1185 = vmatpush2.msra.mxu0 0.0
  %1186 = vmatprep.mubr.f32.mxu0 0.0
  %v1187 = vand.u32 %v1032, 4294901760
  %1188 = vmatmul.mubr.f32.gmra.mxu0 %v1187
  %v1189 = vpop.f32.mrf.mxu0
  %v1190 = vadd.f32 %v1108, %v1189
  %v1191 = vpop.f32.mrf.mxu0
  %v1192 = vadd.f32 %v1110, %v1191
  %1193 = vdwg.mxu0
  %1194 = vmatprep.subr.mxu0 0.0
  %1195 = vmatpush1.msra.mxu0 0.0
  %1196 = vmatprep.subr.mxu0 0.0
  %1197 = vmatpush1.msra.mxu0 0.0
  %1198 = vmatprep.subr.mxu0 0.0
  %1199 = vmatpush1.msra.mxu0 0.0
  %1200 = vmatprep.subr.mxu0 0.0
  %1201 = vmatpush1.msra.mxu0 0.0
  %1202 = vmatprep.subr.mxu0 0.0
  %1203 = vmatpush1.msra.mxu0 0.0
  %1204 = vmatprep.subr.mxu0 0.0
  %1205 = vmatpush1.msra.mxu0 0.0
  %1206 = vmatprep.subr.mxu0 0.0
  %1207 = vmatpush1.msra.mxu0 0.0
  %1208 = vmatprep.subr.mxu0 0.0
  %1209 = vmatpush1.msra.mxu0 0.0
  %1210 = vmatprep.subr.mxu0 0.0
  %1211 = vmatpush1.msra.mxu0 0.0
  %1212 = vmatprep.subr.mxu0 0.0
  %1213 = vmatpush1.msra.mxu0 0.0
  %1214 = vmatprep.subr.mxu0 0.0
  %1215 = vmatpush1.msra.mxu0 0.0
  %1216 = vmatprep.subr.mxu0 0.0
  %1217 = vmatpush1.msra.mxu0 0.0
  %1218 = vmatprep.subr.mxu0 0.0
  %1219 = vmatpush1.msra.mxu0 0.0
  %1220 = vmatprep.subr.mxu0 0.0
  %1221 = vmatpush1.msra.mxu0 0.0
  %1222 = vmatprep.subr.mxu0 0.0
  %1223 = vmatpush1.msra.mxu0 0.0
  %v1224 = vand.u32 %v1028, 4294901760
  %v1225 = vsub.f32 %v1028, %v1224
  %1226 = vmatprep.subr.mxu0 %v1225
  %v1227 = vand.u32 %v1027, 4294901760
  %v1228 = vsub.f32 %v1027, %v1227
  %1229 = vmatpush1.msra.mxu0 %v1228
  %1230 = vmatprep.subr.mxu0 0.0
  %1231 = vmatpush2.msra.mxu0 0.0
  %1232 = vmatprep.subr.mxu0 0.0
  %1233 = vmatpush2.msra.mxu0 0.0
  %1234 = vmatprep.subr.mxu0 0.0
  %1235 = vmatpush2.msra.mxu0 0.0
  %1236 = vmatprep.subr.mxu0 0.0
  %1237 = vmatpush2.msra.mxu0 0.0
  %1238 = vmatprep.subr.mxu0 0.0
  %1239 = vmatpush2.msra.mxu0 0.0
  %1240 = vmatprep.subr.mxu0 0.0
  %1241 = vmatpush2.msra.mxu0 0.0
  %1242 = vmatprep.subr.mxu0 0.0
  %1243 = vmatpush2.msra.mxu0 0.0
  %1244 = vmatprep.subr.mxu0 0.0
  %1245 = vmatpush2.msra.mxu0 0.0
  %1246 = vmatprep.subr.mxu0 0.0
  %1247 = vmatpush2.msra.mxu0 0.0
  %1248 = vmatprep.subr.mxu0 0.0
  %1249 = vmatpush2.msra.mxu0 0.0
  %1250 = vmatprep.subr.mxu0 0.0
  %1251 = vmatpush2.msra.mxu0 0.0
  %1252 = vmatprep.subr.mxu0 0.0
  %1253 = vmatpush2.msra.mxu0 0.0
  %1254 = vmatprep.subr.mxu0 0.0
  %1255 = vmatpush2.msra.mxu0 0.0
  %1256 = vmatprep.subr.mxu0 0.0
  %1257 = vmatpush2.msra.mxu0 0.0
  %1258 = vmatprep.subr.mxu0 0.0
  %1259 = vmatpush2.msra.mxu0 0.0
  %1260 = vmatprep.subr.mxu0 0.0
  %1261 = vmatpush2.msra.mxu0 0.0
  %1262 = vmatprep.mubr.f32.mxu0 0.0
  %v1263 = vand.u32 %v1032, 4294901760
  %v1264 = vsub.f32 %v1032, %v1263
  %1265 = vmatmul.mubr.f32.gmra.mxu0 %v1264
  %v1266 = vpop.f32.mrf.mxu0
  %v1267 = vadd.f32 %v1190, %v1266
  %v1268 = vpop.f32.mrf.mxu0
  %v1269 = vadd.f32 %v1192, %v1268
  %1270 = vdwg.mxu0
  %1271 = vmatprep.subr.mxu0 0.0
  %1272 = vmatpush1.msra.mxu0 0.0
  %1273 = vmatprep.subr.mxu0 0.0
  %1274 = vmatpush1.msra.mxu0 0.0
  %1275 = vmatprep.subr.mxu0 0.0
  %1276 = vmatpush1.msra.mxu0 0.0
  %1277 = vmatprep.subr.mxu0 0.0
  %1278 = vmatpush1.msra.mxu0 0.0
  %1279 = vmatprep.subr.mxu0 0.0
  %1280 = vmatpush1.msra.mxu0 0.0
  %1281 = vmatprep.subr.mxu0 0.0
  %1282 = vmatpush1.msra.mxu0 0.0
  %1283 = vmatprep.subr.mxu0 0.0
  %1284 = vmatpush1.msra.mxu0 0.0
  %1285 = vmatprep.subr.mxu0 0.0
  %1286 = vmatpush1.msra.mxu0 0.0
  %1287 = vmatprep.subr.mxu0 0.0
  %1288 = vmatpush1.msra.mxu0 0.0
  %1289 = vmatprep.subr.mxu0 0.0
  %1290 = vmatpush1.msra.mxu0 0.0
  %1291 = vmatprep.subr.mxu0 0.0
  %1292 = vmatpush1.msra.mxu0 0.0
  %1293 = vmatprep.subr.mxu0 0.0
  %1294 = vmatpush1.msra.mxu0 0.0
  %1295 = vmatprep.subr.mxu0 0.0
  %1296 = vmatpush1.msra.mxu0 0.0
  %1297 = vmatprep.subr.mxu0 0.0
  %1298 = vmatpush1.msra.mxu0 0.0
  %1299 = vmatprep.subr.mxu0 0.0
  %1300 = vmatpush1.msra.mxu0 0.0
  %v1301 = vand.u32 %v1028, 4294901760
  %1302 = vmatprep.subr.mxu0 %v1301
  %v1303 = vand.u32 %v1027, 4294901760
  %1304 = vmatpush1.msra.mxu0 %v1303
  %1305 = vmatprep.subr.mxu0 0.0
  %1306 = vmatpush2.msra.mxu0 0.0
  %1307 = vmatprep.subr.mxu0 0.0
  %1308 = vmatpush2.msra.mxu0 0.0
  %1309 = vmatprep.subr.mxu0 0.0
  %1310 = vmatpush2.msra.mxu0 0.0
  %1311 = vmatprep.subr.mxu0 0.0
  %1312 = vmatpush2.msra.mxu0 0.0
  %1313 = vmatprep.subr.mxu0 0.0
  %1314 = vmatpush2.msra.mxu0 0.0
  %1315 = vmatprep.subr.mxu0 0.0
  %1316 = vmatpush2.msra.mxu0 0.0
  %1317 = vmatprep.subr.mxu0 0.0
  %1318 = vmatpush2.msra.mxu0 0.0
  %1319 = vmatprep.subr.mxu0 0.0
  %1320 = vmatpush2.msra.mxu0 0.0
  %1321 = vmatprep.subr.mxu0 0.0
  %1322 = vmatpush2.msra.mxu0 0.0
  %1323 = vmatprep.subr.mxu0 0.0
  %1324 = vmatpush2.msra.mxu0 0.0
  %1325 = vmatprep.subr.mxu0 0.0
  %1326 = vmatpush2.msra.mxu0 0.0
  %1327 = vmatprep.subr.mxu0 0.0
  %1328 = vmatpush2.msra.mxu0 0.0
  %1329 = vmatprep.subr.mxu0 0.0
  %1330 = vmatpush2.msra.mxu0 0.0
  %1331 = vmatprep.subr.mxu0 0.0
  %1332 = vmatpush2.msra.mxu0 0.0
  %1333 = vmatprep.subr.mxu0 0.0
  %1334 = vmatpush2.msra.mxu0 0.0
  %1335 = vmatprep.subr.mxu0 0.0
  %1336 = vmatpush2.msra.mxu0 0.0
  %1337 = vmatprep.mubr.f32.mxu0 0.0
  %v1338 = vand.u32 %v1032, 4294901760
  %v1339 = vsub.f32 %v1032, %v1338
  %v1340 = vand.u32 %v1339, 4294901760
  %1341 = vmatmul.mubr.f32.gmra.mxu0 %v1340
  %v1342 = vpop.f32.mrf.mxu0
  %v1343 = vadd.f32 %v1267, %v1342
  %v1344 = vpop.f32.mrf.mxu0
  %v1345 = vadd.f32 %v1269, %v1344
  %1346 = vdwg.mxu0
  %1347 = vmatprep.subr.mxu0 0.0
  %1348 = vmatpush1.msra.mxu0 0.0
  %1349 = vmatprep.subr.mxu0 0.0
  %1350 = vmatpush1.msra.mxu0 0.0
  %1351 = vmatprep.subr.mxu0 0.0
  %1352 = vmatpush1.msra.mxu0 0.0
  %1353 = vmatprep.subr.mxu0 0.0
  %1354 = vmatpush1.msra.mxu0 0.0
  %1355 = vmatprep.subr.mxu0 0.0
  %1356 = vmatpush1.msra.mxu0 0.0
  %1357 = vmatprep.subr.mxu0 0.0
  %1358 = vmatpush1.msra.mxu0 0.0
  %1359 = vmatprep.subr.mxu0 0.0
  %1360 = vmatpush1.msra.mxu0 0.0
  %1361 = vmatprep.subr.mxu0 0.0
  %1362 = vmatpush1.msra.mxu0 0.0
  %1363 = vmatprep.subr.mxu0 0.0
  %1364 = vmatpush1.msra.mxu0 0.0
  %1365 = vmatprep.subr.mxu0 0.0
  %1366 = vmatpush1.msra.mxu0 0.0
  %1367 = vmatprep.subr.mxu0 0.0
  %1368 = vmatpush1.msra.mxu0 0.0
  %1369 = vmatprep.subr.mxu0 0.0
  %1370 = vmatpush1.msra.mxu0 0.0
  %1371 = vmatprep.subr.mxu0 0.0
  %1372 = vmatpush1.msra.mxu0 0.0
  %1373 = vmatprep.subr.mxu0 0.0
  %1374 = vmatpush1.msra.mxu0 0.0
  %1375 = vmatprep.subr.mxu0 0.0
  %1376 = vmatpush1.msra.mxu0 0.0
  %v1377 = vand.u32 %v1028, 4294901760
  %v1378 = vsub.f32 %v1028, %v1377
  %v1379 = vand.u32 %v1378, 4294901760
  %1380 = vmatprep.subr.mxu0 %v1379
  %v1381 = vand.u32 %v1027, 4294901760
  %v1382 = vsub.f32 %v1027, %v1381
  %v1383 = vand.u32 %v1382, 4294901760
  %1384 = vmatpush1.msra.mxu0 %v1383
  %1385 = vmatprep.subr.mxu0 0.0
  %1386 = vmatpush2.msra.mxu0 0.0
  %1387 = vmatprep.subr.mxu0 0.0
  %1388 = vmatpush2.msra.mxu0 0.0
  %1389 = vmatprep.subr.mxu0 0.0
  %1390 = vmatpush2.msra.mxu0 0.0
  %1391 = vmatprep.subr.mxu0 0.0
  %1392 = vmatpush2.msra.mxu0 0.0
  %1393 = vmatprep.subr.mxu0 0.0
  %1394 = vmatpush2.msra.mxu0 0.0
  %1395 = vmatprep.subr.mxu0 0.0
  %1396 = vmatpush2.msra.mxu0 0.0
  %1397 = vmatprep.subr.mxu0 0.0
  %1398 = vmatpush2.msra.mxu0 0.0
  %1399 = vmatprep.subr.mxu0 0.0
  %1400 = vmatpush2.msra.mxu0 0.0
  %1401 = vmatprep.subr.mxu0 0.0
  %1402 = vmatpush2.msra.mxu0 0.0
  %1403 = vmatprep.subr.mxu0 0.0
  %1404 = vmatpush2.msra.mxu0 0.0
  %1405 = vmatprep.subr.mxu0 0.0
  %1406 = vmatpush2.msra.mxu0 0.0
  %1407 = vmatprep.subr.mxu0 0.0
  %1408 = vmatpush2.msra.mxu0 0.0
  %1409 = vmatprep.subr.mxu0 0.0
  %1410 = vmatpush2.msra.mxu0 0.0
  %1411 = vmatprep.subr.mxu0 0.0
  %1412 = vmatpush2.msra.mxu0 0.0
  %1413 = vmatprep.subr.mxu0 0.0
  %1414 = vmatpush2.msra.mxu0 0.0
  %1415 = vmatprep.subr.mxu0 0.0
  %1416 = vmatpush2.msra.mxu0 0.0
  %1417 = vmatprep.mubr.f32.mxu0 0.0
  %v1418 = vand.u32 %v1032, 4294901760
  %1419 = vmatmul.mubr.f32.gmra.mxu0 %v1418
  %v1420 = vpop.f32.mrf.mxu0
  %v1421 = vadd.f32 %v1343, %v1420
  %v1422 = vpop.f32.mrf.mxu0
  %v1423 = vadd.f32 %v1345, %v1422
  %1424 = vdwg.mxu0
  %1425 = vmatprep.subr.mxu0 0.0
  %1426 = vmatpush1.msra.mxu0 0.0
  %1427 = vmatprep.subr.mxu0 0.0
  %1428 = vmatpush1.msra.mxu0 0.0
  %1429 = vmatprep.subr.mxu0 0.0
  %1430 = vmatpush1.msra.mxu0 0.0
  %1431 = vmatprep.subr.mxu0 0.0
  %1432 = vmatpush1.msra.mxu0 0.0
  %1433 = vmatprep.subr.mxu0 0.0
  %1434 = vmatpush1.msra.mxu0 0.0
  %1435 = vmatprep.subr.mxu0 0.0
  %1436 = vmatpush1.msra.mxu0 0.0
  %1437 = vmatprep.subr.mxu0 0.0
  %1438 = vmatpush1.msra.mxu0 0.0
  %1439 = vmatprep.subr.mxu0 0.0
  %1440 = vmatpush1.msra.mxu0 0.0
  %1441 = vmatprep.subr.mxu0 0.0
  %1442 = vmatpush1.msra.mxu0 0.0
  %1443 = vmatprep.subr.mxu0 0.0
  %1444 = vmatpush1.msra.mxu0 0.0
  %1445 = vmatprep.subr.mxu0 0.0
  %1446 = vmatpush1.msra.mxu0 0.0
  %1447 = vmatprep.subr.mxu0 0.0
  %1448 = vmatpush1.msra.mxu0 0.0
  %1449 = vmatprep.subr.mxu0 0.0
  %1450 = vmatpush1.msra.mxu0 0.0
  %1451 = vmatprep.subr.mxu0 0.0
  %1452 = vmatpush1.msra.mxu0 0.0
  %1453 = vmatprep.subr.mxu0 0.0
  %1454 = vmatpush1.msra.mxu0 0.0
  %v1455 = vand.u32 %v1028, 4294901760
  %1456 = vmatprep.subr.mxu0 %v1455
  %v1457 = vand.u32 %v1027, 4294901760
  %1458 = vmatpush1.msra.mxu0 %v1457
  %1459 = vmatprep.subr.mxu0 0.0
  %1460 = vmatpush2.msra.mxu0 0.0
  %1461 = vmatprep.subr.mxu0 0.0
  %1462 = vmatpush2.msra.mxu0 0.0
  %1463 = vmatprep.subr.mxu0 0.0
  %1464 = vmatpush2.msra.mxu0 0.0
  %1465 = vmatprep.subr.mxu0 0.0
  %1466 = vmatpush2.msra.mxu0 0.0
  %1467 = vmatprep.subr.mxu0 0.0
  %1468 = vmatpush2.msra.mxu0 0.0
  %1469 = vmatprep.subr.mxu0 0.0
  %1470 = vmatpush2.msra.mxu0 0.0
  %1471 = vmatprep.subr.mxu0 0.0
  %1472 = vmatpush2.msra.mxu0 0.0
  %1473 = vmatprep.subr.mxu0 0.0
  %1474 = vmatpush2.msra.mxu0 0.0
  %1475 = vmatprep.subr.mxu0 0.0
  %1476 = vmatpush2.msra.mxu0 0.0
  %1477 = vmatprep.subr.mxu0 0.0
  %1478 = vmatpush2.msra.mxu0 0.0
  %1479 = vmatprep.subr.mxu0 0.0
  %1480 = vmatpush2.msra.mxu0 0.0
  %1481 = vmatprep.subr.mxu0 0.0
  %1482 = vmatpush2.msra.mxu0 0.0
  %1483 = vmatprep.subr.mxu0 0.0
  %1484 = vmatpush2.msra.mxu0 0.0
  %1485 = vmatprep.subr.mxu0 0.0
  %1486 = vmatpush2.msra.mxu0 0.0
  %1487 = vmatprep.subr.mxu0 0.0
  %1488 = vmatpush2.msra.mxu0 0.0
  %1489 = vmatprep.subr.mxu0 0.0
  %1490 = vmatpush2.msra.mxu0 0.0
  %1491 = vmatprep.mubr.f32.mxu0 0.0
  %v1492 = vand.u32 %v1032, 4294901760
  %1493 = vmatmul.mubr.f32.gmra.mxu0 %v1492
  %v1494 = vpop.f32.mrf.mxu0
  %v1495 = vadd.f32 %v1421, %v1494
  %v1496 = vpop.f32.mrf.mxu0
  %v1497 = vadd.f32 %v1423, %v1496
  %1498 = vdwg.mxu0
  %v1499 = vadd.f32 %v1013, %v1495
  %v1500 = vadd.f32 %v1015, %v1497
  %1501 = vrot.lane.b32.xlu0 %v21, 1
  %v1502 = vpop.permute.xlu0 %1501
  %1503 = vrot.lane.b32.xlu0 %v22, 1
  %v1504 = vpop.permute.xlu0 %1503
  %vm1505 = vcmp.lt.s32.totalorder %v38, 1
  %v1506 = vsel %vm1505, %v1502, %v1504
  %v1507 = vsel %vm1505, %v1504, %v1502
  %s1508 = scalar_lea.vmem %s1, 48
  %v1509 = vld [vmem:[%s1508] sm:$0xff]
  %v1510 = vld [vmem:[%s1508 + $0x8] sm:$0xff]
  %v1511 = vmul.f32 %v1507, %v1509
  %v1512 = vmul.f32 %v1506, %v1510
  %s1513 = scalar_lea.vmem %s2, 24
  %v1514 = vld [vmem:[%s1513] sm:$0xff]
  %v1516 = vsel %vm80, %v1514, 0
  %1518 = vmatprep.subr.mxu0 0.0
  %1519 = vmatpush1.msra.mxu0 0.0
  %1520 = vmatprep.subr.mxu0 0.0
  %1521 = vmatpush1.msra.mxu0 0.0
  %1522 = vmatprep.subr.mxu0 0.0
  %1523 = vmatpush1.msra.mxu0 0.0
  %1524 = vmatprep.subr.mxu0 0.0
  %1525 = vmatpush1.msra.mxu0 0.0
  %1526 = vmatprep.subr.mxu0 0.0
  %1527 = vmatpush1.msra.mxu0 0.0
  %1528 = vmatprep.subr.mxu0 0.0
  %1529 = vmatpush1.msra.mxu0 0.0
  %1530 = vmatprep.subr.mxu0 0.0
  %1531 = vmatpush1.msra.mxu0 0.0
  %1532 = vmatprep.subr.mxu0 0.0
  %1533 = vmatpush1.msra.mxu0 0.0
  %1534 = vmatprep.subr.mxu0 0.0
  %1535 = vmatpush1.msra.mxu0 0.0
  %1536 = vmatprep.subr.mxu0 0.0
  %1537 = vmatpush1.msra.mxu0 0.0
  %1538 = vmatprep.subr.mxu0 0.0
  %1539 = vmatpush1.msra.mxu0 0.0
  %1540 = vmatprep.subr.mxu0 0.0
  %1541 = vmatpush1.msra.mxu0 0.0
  %1542 = vmatprep.subr.mxu0 0.0
  %1543 = vmatpush1.msra.mxu0 0.0
  %1544 = vmatprep.subr.mxu0 0.0
  %1545 = vmatpush1.msra.mxu0 0.0
  %1546 = vmatprep.subr.mxu0 0.0
  %1547 = vmatpush1.msra.mxu0 0.0
  %v1548 = vand.u32 %v1512, 4294901760
  %1549 = vmatprep.subr.mxu0 %v1548
  %v1550 = vand.u32 %v1511, 4294901760
  %1551 = vmatpush1.msra.mxu0 %v1550
  %1552 = vmatprep.subr.mxu0 0.0
  %1553 = vmatpush2.msra.mxu0 0.0
  %1554 = vmatprep.subr.mxu0 0.0
  %1555 = vmatpush2.msra.mxu0 0.0
  %1556 = vmatprep.subr.mxu0 0.0
  %1557 = vmatpush2.msra.mxu0 0.0
  %1558 = vmatprep.subr.mxu0 0.0
  %1559 = vmatpush2.msra.mxu0 0.0
  %1560 = vmatprep.subr.mxu0 0.0
  %1561 = vmatpush2.msra.mxu0 0.0
  %1562 = vmatprep.subr.mxu0 0.0
  %1563 = vmatpush2.msra.mxu0 0.0
  %1564 = vmatprep.subr.mxu0 0.0
  %1565 = vmatpush2.msra.mxu0 0.0
  %1566 = vmatprep.subr.mxu0 0.0
  %1567 = vmatpush2.msra.mxu0 0.0
  %1568 = vmatprep.subr.mxu0 0.0
  %1569 = vmatpush2.msra.mxu0 0.0
  %1570 = vmatprep.subr.mxu0 0.0
  %1571 = vmatpush2.msra.mxu0 0.0
  %1572 = vmatprep.subr.mxu0 0.0
  %1573 = vmatpush2.msra.mxu0 0.0
  %1574 = vmatprep.subr.mxu0 0.0
  %1575 = vmatpush2.msra.mxu0 0.0
  %1576 = vmatprep.subr.mxu0 0.0
  %1577 = vmatpush2.msra.mxu0 0.0
  %1578 = vmatprep.subr.mxu0 0.0
  %1579 = vmatpush2.msra.mxu0 0.0
  %1580 = vmatprep.subr.mxu0 0.0
  %1581 = vmatpush2.msra.mxu0 0.0
  %1582 = vmatprep.subr.mxu0 0.0
  %1583 = vmatpush2.msra.mxu0 0.0
  %1584 = vmatprep.mubr.f32.mxu0 0.0
  %v1585 = vand.u32 %v1516, 4294901760
  %v1586 = vsub.f32 %v1516, %v1585
  %v1587 = vand.u32 %v1586, 4294901760
  %v1588 = vsub.f32 %v1586, %v1587
  %v1589 = vand.u32 %v1588, 4294901760
  %1590 = vmatmul.mubr.f32.gmra.mxu0 %v1589
  %v1591 = vpop.f32.mrf.mxu0
  %v1592 = vadd.f32 0.0, %v1591
  %v1593 = vpop.f32.mrf.mxu0
  %v1594 = vadd.f32 0.0, %v1593
  %1595 = vdwg.mxu0
  %1596 = vmatprep.subr.mxu0 0.0
  %1597 = vmatpush1.msra.mxu0 0.0
  %1598 = vmatprep.subr.mxu0 0.0
  %1599 = vmatpush1.msra.mxu0 0.0
  %1600 = vmatprep.subr.mxu0 0.0
  %1601 = vmatpush1.msra.mxu0 0.0
  %1602 = vmatprep.subr.mxu0 0.0
  %1603 = vmatpush1.msra.mxu0 0.0
  %1604 = vmatprep.subr.mxu0 0.0
  %1605 = vmatpush1.msra.mxu0 0.0
  %1606 = vmatprep.subr.mxu0 0.0
  %1607 = vmatpush1.msra.mxu0 0.0
  %1608 = vmatprep.subr.mxu0 0.0
  %1609 = vmatpush1.msra.mxu0 0.0
  %1610 = vmatprep.subr.mxu0 0.0
  %1611 = vmatpush1.msra.mxu0 0.0
  %1612 = vmatprep.subr.mxu0 0.0
  %1613 = vmatpush1.msra.mxu0 0.0
  %1614 = vmatprep.subr.mxu0 0.0
  %1615 = vmatpush1.msra.mxu0 0.0
  %1616 = vmatprep.subr.mxu0 0.0
  %1617 = vmatpush1.msra.mxu0 0.0
  %1618 = vmatprep.subr.mxu0 0.0
  %1619 = vmatpush1.msra.mxu0 0.0
  %1620 = vmatprep.subr.mxu0 0.0
  %1621 = vmatpush1.msra.mxu0 0.0
  %1622 = vmatprep.subr.mxu0 0.0
  %1623 = vmatpush1.msra.mxu0 0.0
  %1624 = vmatprep.subr.mxu0 0.0
  %1625 = vmatpush1.msra.mxu0 0.0
  %v1626 = vand.u32 %v1512, 4294901760
  %v1627 = vsub.f32 %v1512, %v1626
  %v1628 = vand.u32 %v1627, 4294901760
  %v1629 = vsub.f32 %v1627, %v1628
  %v1630 = vand.u32 %v1629, 4294901760
  %1631 = vmatprep.subr.mxu0 %v1630
  %v1632 = vand.u32 %v1511, 4294901760
  %v1633 = vsub.f32 %v1511, %v1632
  %v1634 = vand.u32 %v1633, 4294901760
  %v1635 = vsub.f32 %v1633, %v1634
  %v1636 = vand.u32 %v1635, 4294901760
  %1637 = vmatpush1.msra.mxu0 %v1636
  %1638 = vmatprep.subr.mxu0 0.0
  %1639 = vmatpush2.msra.mxu0 0.0
  %1640 = vmatprep.subr.mxu0 0.0
  %1641 = vmatpush2.msra.mxu0 0.0
  %1642 = vmatprep.subr.mxu0 0.0
  %1643 = vmatpush2.msra.mxu0 0.0
  %1644 = vmatprep.subr.mxu0 0.0
  %1645 = vmatpush2.msra.mxu0 0.0
  %1646 = vmatprep.subr.mxu0 0.0
  %1647 = vmatpush2.msra.mxu0 0.0
  %1648 = vmatprep.subr.mxu0 0.0
  %1649 = vmatpush2.msra.mxu0 0.0
  %1650 = vmatprep.subr.mxu0 0.0
  %1651 = vmatpush2.msra.mxu0 0.0
  %1652 = vmatprep.subr.mxu0 0.0
  %1653 = vmatpush2.msra.mxu0 0.0
  %1654 = vmatprep.subr.mxu0 0.0
  %1655 = vmatpush2.msra.mxu0 0.0
  %1656 = vmatprep.subr.mxu0 0.0
  %1657 = vmatpush2.msra.mxu0 0.0
  %1658 = vmatprep.subr.mxu0 0.0
  %1659 = vmatpush2.msra.mxu0 0.0
  %1660 = vmatprep.subr.mxu0 0.0
  %1661 = vmatpush2.msra.mxu0 0.0
  %1662 = vmatprep.subr.mxu0 0.0
  %1663 = vmatpush2.msra.mxu0 0.0
  %1664 = vmatprep.subr.mxu0 0.0
  %1665 = vmatpush2.msra.mxu0 0.0
  %1666 = vmatprep.subr.mxu0 0.0
  %1667 = vmatpush2.msra.mxu0 0.0
  %1668 = vmatprep.subr.mxu0 0.0
  %1669 = vmatpush2.msra.mxu0 0.0
  %1670 = vmatprep.mubr.f32.mxu0 0.0
  %v1671 = vand.u32 %v1516, 4294901760
  %1672 = vmatmul.mubr.f32.gmra.mxu0 %v1671
  %v1673 = vpop.f32.mrf.mxu0
  %v1674 = vadd.f32 %v1592, %v1673
  %v1675 = vpop.f32.mrf.mxu0
  %v1676 = vadd.f32 %v1594, %v1675
  %1677 = vdwg.mxu0
  %1678 = vmatprep.subr.mxu0 0.0
  %1679 = vmatpush1.msra.mxu0 0.0
  %1680 = vmatprep.subr.mxu0 0.0
  %1681 = vmatpush1.msra.mxu0 0.0
  %1682 = vmatprep.subr.mxu0 0.0
  %1683 = vmatpush1.msra.mxu0 0.0
  %1684 = vmatprep.subr.mxu0 0.0
  %1685 = vmatpush1.msra.mxu0 0.0
  %1686 = vmatprep.subr.mxu0 0.0
  %1687 = vmatpush1.msra.mxu0 0.0
  %1688 = vmatprep.subr.mxu0 0.0
  %1689 = vmatpush1.msra.mxu0 0.0
  %1690 = vmatprep.subr.mxu0 0.0
  %1691 = vmatpush1.msra.mxu0 0.0
  %1692 = vmatprep.subr.mxu0 0.0
  %1693 = vmatpush1.msra.mxu0 0.0
  %1694 = vmatprep.subr.mxu0 0.0
  %1695 = vmatpush1.msra.mxu0 0.0
  %1696 = vmatprep.subr.mxu0 0.0
  %1697 = vmatpush1.msra.mxu0 0.0
  %1698 = vmatprep.subr.mxu0 0.0
  %1699 = vmatpush1.msra.mxu0 0.0
  %1700 = vmatprep.subr.mxu0 0.0
  %1701 = vmatpush1.msra.mxu0 0.0
  %1702 = vmatprep.subr.mxu0 0.0
  %1703 = vmatpush1.msra.mxu0 0.0
  %1704 = vmatprep.subr.mxu0 0.0
  %1705 = vmatpush1.msra.mxu0 0.0
  %1706 = vmatprep.subr.mxu0 0.0
  %1707 = vmatpush1.msra.mxu0 0.0
  %v1708 = vand.u32 %v1512, 4294901760
  %v1709 = vsub.f32 %v1512, %v1708
  %1710 = vmatprep.subr.mxu0 %v1709
  %v1711 = vand.u32 %v1511, 4294901760
  %v1712 = vsub.f32 %v1511, %v1711
  %1713 = vmatpush1.msra.mxu0 %v1712
  %1714 = vmatprep.subr.mxu0 0.0
  %1715 = vmatpush2.msra.mxu0 0.0
  %1716 = vmatprep.subr.mxu0 0.0
  %1717 = vmatpush2.msra.mxu0 0.0
  %1718 = vmatprep.subr.mxu0 0.0
  %1719 = vmatpush2.msra.mxu0 0.0
  %1720 = vmatprep.subr.mxu0 0.0
  %1721 = vmatpush2.msra.mxu0 0.0
  %1722 = vmatprep.subr.mxu0 0.0
  %1723 = vmatpush2.msra.mxu0 0.0
  %1724 = vmatprep.subr.mxu0 0.0
  %1725 = vmatpush2.msra.mxu0 0.0
  %1726 = vmatprep.subr.mxu0 0.0
  %1727 = vmatpush2.msra.mxu0 0.0
  %1728 = vmatprep.subr.mxu0 0.0
  %1729 = vmatpush2.msra.mxu0 0.0
  %1730 = vmatprep.subr.mxu0 0.0
  %1731 = vmatpush2.msra.mxu0 0.0
  %1732 = vmatprep.subr.mxu0 0.0
  %1733 = vmatpush2.msra.mxu0 0.0
  %1734 = vmatprep.subr.mxu0 0.0
  %1735 = vmatpush2.msra.mxu0 0.0
  %1736 = vmatprep.subr.mxu0 0.0
  %1737 = vmatpush2.msra.mxu0 0.0
  %1738 = vmatprep.subr.mxu0 0.0
  %1739 = vmatpush2.msra.mxu0 0.0
  %1740 = vmatprep.subr.mxu0 0.0
  %1741 = vmatpush2.msra.mxu0 0.0
  %1742 = vmatprep.subr.mxu0 0.0
  %1743 = vmatpush2.msra.mxu0 0.0
  %1744 = vmatprep.subr.mxu0 0.0
  %1745 = vmatpush2.msra.mxu0 0.0
  %1746 = vmatprep.mubr.f32.mxu0 0.0
  %v1747 = vand.u32 %v1516, 4294901760
  %v1748 = vsub.f32 %v1516, %v1747
  %1749 = vmatmul.mubr.f32.gmra.mxu0 %v1748
  %v1750 = vpop.f32.mrf.mxu0
  %v1751 = vadd.f32 %v1674, %v1750
  %v1752 = vpop.f32.mrf.mxu0
  %v1753 = vadd.f32 %v1676, %v1752
  %1754 = vdwg.mxu0
  %1755 = vmatprep.subr.mxu0 0.0
  %1756 = vmatpush1.msra.mxu0 0.0
  %1757 = vmatprep.subr.mxu0 0.0
  %1758 = vmatpush1.msra.mxu0 0.0
  %1759 = vmatprep.subr.mxu0 0.0
  %1760 = vmatpush1.msra.mxu0 0.0
  %1761 = vmatprep.subr.mxu0 0.0
  %1762 = vmatpush1.msra.mxu0 0.0
  %1763 = vmatprep.subr.mxu0 0.0
  %1764 = vmatpush1.msra.mxu0 0.0
  %1765 = vmatprep.subr.mxu0 0.0
  %1766 = vmatpush1.msra.mxu0 0.0
  %1767 = vmatprep.subr.mxu0 0.0
  %1768 = vmatpush1.msra.mxu0 0.0
  %1769 = vmatprep.subr.mxu0 0.0
  %1770 = vmatpush1.msra.mxu0 0.0
  %1771 = vmatprep.subr.mxu0 0.0
  %1772 = vmatpush1.msra.mxu0 0.0
  %1773 = vmatprep.subr.mxu0 0.0
  %1774 = vmatpush1.msra.mxu0 0.0
  %1775 = vmatprep.subr.mxu0 0.0
  %1776 = vmatpush1.msra.mxu0 0.0
  %1777 = vmatprep.subr.mxu0 0.0
  %1778 = vmatpush1.msra.mxu0 0.0
  %1779 = vmatprep.subr.mxu0 0.0
  %1780 = vmatpush1.msra.mxu0 0.0
  %1781 = vmatprep.subr.mxu0 0.0
  %1782 = vmatpush1.msra.mxu0 0.0
  %1783 = vmatprep.subr.mxu0 0.0
  %1784 = vmatpush1.msra.mxu0 0.0
  %v1785 = vand.u32 %v1512, 4294901760
  %1786 = vmatprep.subr.mxu0 %v1785
  %v1787 = vand.u32 %v1511, 4294901760
  %1788 = vmatpush1.msra.mxu0 %v1787
  %1789 = vmatprep.subr.mxu0 0.0
  %1790 = vmatpush2.msra.mxu0 0.0
  %1791 = vmatprep.subr.mxu0 0.0
  %1792 = vmatpush2.msra.mxu0 0.0
  %1793 = vmatprep.subr.mxu0 0.0
  %1794 = vmatpush2.msra.mxu0 0.0
  %1795 = vmatprep.subr.mxu0 0.0
  %1796 = vmatpush2.msra.mxu0 0.0
  %1797 = vmatprep.subr.mxu0 0.0
  %1798 = vmatpush2.msra.mxu0 0.0
  %1799 = vmatprep.subr.mxu0 0.0
  %1800 = vmatpush2.msra.mxu0 0.0
  %1801 = vmatprep.subr.mxu0 0.0
  %1802 = vmatpush2.msra.mxu0 0.0
  %1803 = vmatprep.subr.mxu0 0.0
  %1804 = vmatpush2.msra.mxu0 0.0
  %1805 = vmatprep.subr.mxu0 0.0
  %1806 = vmatpush2.msra.mxu0 0.0
  %1807 = vmatprep.subr.mxu0 0.0
  %1808 = vmatpush2.msra.mxu0 0.0
  %1809 = vmatprep.subr.mxu0 0.0
  %1810 = vmatpush2.msra.mxu0 0.0
  %1811 = vmatprep.subr.mxu0 0.0
  %1812 = vmatpush2.msra.mxu0 0.0
  %1813 = vmatprep.subr.mxu0 0.0
  %1814 = vmatpush2.msra.mxu0 0.0
  %1815 = vmatprep.subr.mxu0 0.0
  %1816 = vmatpush2.msra.mxu0 0.0
  %1817 = vmatprep.subr.mxu0 0.0
  %1818 = vmatpush2.msra.mxu0 0.0
  %1819 = vmatprep.subr.mxu0 0.0
  %1820 = vmatpush2.msra.mxu0 0.0
  %1821 = vmatprep.mubr.f32.mxu0 0.0
  %v1822 = vand.u32 %v1516, 4294901760
  %v1823 = vsub.f32 %v1516, %v1822
  %v1824 = vand.u32 %v1823, 4294901760
  %1825 = vmatmul.mubr.f32.gmra.mxu0 %v1824
  %v1826 = vpop.f32.mrf.mxu0
  %v1827 = vadd.f32 %v1751, %v1826
  %v1828 = vpop.f32.mrf.mxu0
  %v1829 = vadd.f32 %v1753, %v1828
  %1830 = vdwg.mxu0
  %1831 = vmatprep.subr.mxu0 0.0
  %1832 = vmatpush1.msra.mxu0 0.0
  %1833 = vmatprep.subr.mxu0 0.0
  %1834 = vmatpush1.msra.mxu0 0.0
  %1835 = vmatprep.subr.mxu0 0.0
  %1836 = vmatpush1.msra.mxu0 0.0
  %1837 = vmatprep.subr.mxu0 0.0
  %1838 = vmatpush1.msra.mxu0 0.0
  %1839 = vmatprep.subr.mxu0 0.0
  %1840 = vmatpush1.msra.mxu0 0.0
  %1841 = vmatprep.subr.mxu0 0.0
  %1842 = vmatpush1.msra.mxu0 0.0
  %1843 = vmatprep.subr.mxu0 0.0
  %1844 = vmatpush1.msra.mxu0 0.0
  %1845 = vmatprep.subr.mxu0 0.0
  %1846 = vmatpush1.msra.mxu0 0.0
  %1847 = vmatprep.subr.mxu0 0.0
  %1848 = vmatpush1.msra.mxu0 0.0
  %1849 = vmatprep.subr.mxu0 0.0
  %1850 = vmatpush1.msra.mxu0 0.0
  %1851 = vmatprep.subr.mxu0 0.0
  %1852 = vmatpush1.msra.mxu0 0.0
  %1853 = vmatprep.subr.mxu0 0.0
  %1854 = vmatpush1.msra.mxu0 0.0
  %1855 = vmatprep.subr.mxu0 0.0
  %1856 = vmatpush1.msra.mxu0 0.0
  %1857 = vmatprep.subr.mxu0 0.0
  %1858 = vmatpush1.msra.mxu0 0.0
  %1859 = vmatprep.subr.mxu0 0.0
  %1860 = vmatpush1.msra.mxu0 0.0
  %v1861 = vand.u32 %v1512, 4294901760
  %v1862 = vsub.f32 %v1512, %v1861
  %v1863 = vand.u32 %v1862, 4294901760
  %1864 = vmatprep.subr.mxu0 %v1863
  %v1865 = vand.u32 %v1511, 4294901760
  %v1866 = vsub.f32 %v1511, %v1865
  %v1867 = vand.u32 %v1866, 4294901760
  %1868 = vmatpush1.msra.mxu0 %v1867
  %1869 = vmatprep.subr.mxu0 0.0
  %1870 = vmatpush2.msra.mxu0 0.0
  %1871 = vmatprep.subr.mxu0 0.0
  %1872 = vmatpush2.msra.mxu0 0.0
  %1873 = vmatprep.subr.mxu0 0.0
  %1874 = vmatpush2.msra.mxu0 0.0
  %1875 = vmatprep.subr.mxu0 0.0
  %1876 = vmatpush2.msra.mxu0 0.0
  %1877 = vmatprep.subr.mxu0 0.0
  %1878 = vmatpush2.msra.mxu0 0.0
  %1879 = vmatprep.subr.mxu0 0.0
  %1880 = vmatpush2.msra.mxu0 0.0
  %1881 = vmatprep.subr.mxu0 0.0
  %1882 = vmatpush2.msra.mxu0 0.0
  %1883 = vmatprep.subr.mxu0 0.0
  %1884 = vmatpush2.msra.mxu0 0.0
  %1885 = vmatprep.subr.mxu0 0.0
  %1886 = vmatpush2.msra.mxu0 0.0
  %1887 = vmatprep.subr.mxu0 0.0
  %1888 = vmatpush2.msra.mxu0 0.0
  %1889 = vmatprep.subr.mxu0 0.0
  %1890 = vmatpush2.msra.mxu0 0.0
  %1891 = vmatprep.subr.mxu0 0.0
  %1892 = vmatpush2.msra.mxu0 0.0
  %1893 = vmatprep.subr.mxu0 0.0
  %1894 = vmatpush2.msra.mxu0 0.0
  %1895 = vmatprep.subr.mxu0 0.0
  %1896 = vmatpush2.msra.mxu0 0.0
  %1897 = vmatprep.subr.mxu0 0.0
  %1898 = vmatpush2.msra.mxu0 0.0
  %1899 = vmatprep.subr.mxu0 0.0
  %1900 = vmatpush2.msra.mxu0 0.0
  %1901 = vmatprep.mubr.f32.mxu0 0.0
  %v1902 = vand.u32 %v1516, 4294901760
  %1903 = vmatmul.mubr.f32.gmra.mxu0 %v1902
  %v1904 = vpop.f32.mrf.mxu0
  %v1905 = vadd.f32 %v1827, %v1904
  %v1906 = vpop.f32.mrf.mxu0
  %v1907 = vadd.f32 %v1829, %v1906
  %1908 = vdwg.mxu0
  %1909 = vmatprep.subr.mxu0 0.0
  %1910 = vmatpush1.msra.mxu0 0.0
  %1911 = vmatprep.subr.mxu0 0.0
  %1912 = vmatpush1.msra.mxu0 0.0
  %1913 = vmatprep.subr.mxu0 0.0
  %1914 = vmatpush1.msra.mxu0 0.0
  %1915 = vmatprep.subr.mxu0 0.0
  %1916 = vmatpush1.msra.mxu0 0.0
  %1917 = vmatprep.subr.mxu0 0.0
  %1918 = vmatpush1.msra.mxu0 0.0
  %1919 = vmatprep.subr.mxu0 0.0
  %1920 = vmatpush1.msra.mxu0 0.0
  %1921 = vmatprep.subr.mxu0 0.0
  %1922 = vmatpush1.msra.mxu0 0.0
  %1923 = vmatprep.subr.mxu0 0.0
  %1924 = vmatpush1.msra.mxu0 0.0
  %1925 = vmatprep.subr.mxu0 0.0
  %1926 = vmatpush1.msra.mxu0 0.0
  %1927 = vmatprep.subr.mxu0 0.0
  %1928 = vmatpush1.msra.mxu0 0.0
  %1929 = vmatprep.subr.mxu0 0.0
  %1930 = vmatpush1.msra.mxu0 0.0
  %1931 = vmatprep.subr.mxu0 0.0
  %1932 = vmatpush1.msra.mxu0 0.0
  %1933 = vmatprep.subr.mxu0 0.0
  %1934 = vmatpush1.msra.mxu0 0.0
  %1935 = vmatprep.subr.mxu0 0.0
  %1936 = vmatpush1.msra.mxu0 0.0
  %1937 = vmatprep.subr.mxu0 0.0
  %1938 = vmatpush1.msra.mxu0 0.0
  %v1939 = vand.u32 %v1512, 4294901760
  %1940 = vmatprep.subr.mxu0 %v1939
  %v1941 = vand.u32 %v1511, 4294901760
  %1942 = vmatpush1.msra.mxu0 %v1941
  %1943 = vmatprep.subr.mxu0 0.0
  %1944 = vmatpush2.msra.mxu0 0.0
  %1945 = vmatprep.subr.mxu0 0.0
  %1946 = vmatpush2.msra.mxu0 0.0
  %1947 = vmatprep.subr.mxu0 0.0
  %1948 = vmatpush2.msra.mxu0 0.0
  %1949 = vmatprep.subr.mxu0 0.0
  %1950 = vmatpush2.msra.mxu0 0.0
  %1951 = vmatprep.subr.mxu0 0.0
  %1952 = vmatpush2.msra.mxu0 0.0
  %1953 = vmatprep.subr.mxu0 0.0
  %1954 = vmatpush2.msra.mxu0 0.0
  %1955 = vmatprep.subr.mxu0 0.0
  %1956 = vmatpush2.msra.mxu0 0.0
  %1957 = vmatprep.subr.mxu0 0.0
  %1958 = vmatpush2.msra.mxu0 0.0
  %1959 = vmatprep.subr.mxu0 0.0
  %1960 = vmatpush2.msra.mxu0 0.0
  %1961 = vmatprep.subr.mxu0 0.0
  %1962 = vmatpush2.msra.mxu0 0.0
  %1963 = vmatprep.subr.mxu0 0.0
  %1964 = vmatpush2.msra.mxu0 0.0
  %1965 = vmatprep.subr.mxu0 0.0
  %1966 = vmatpush2.msra.mxu0 0.0
  %1967 = vmatprep.subr.mxu0 0.0
  %1968 = vmatpush2.msra.mxu0 0.0
  %1969 = vmatprep.subr.mxu0 0.0
  %1970 = vmatpush2.msra.mxu0 0.0
  %1971 = vmatprep.subr.mxu0 0.0
  %1972 = vmatpush2.msra.mxu0 0.0
  %1973 = vmatprep.subr.mxu0 0.0
  %1974 = vmatpush2.msra.mxu0 0.0
  %1975 = vmatprep.mubr.f32.mxu0 0.0
  %v1976 = vand.u32 %v1516, 4294901760
  %1977 = vmatmul.mubr.f32.gmra.mxu0 %v1976
  %v1978 = vpop.f32.mrf.mxu0
  %v1979 = vadd.f32 %v1905, %v1978
  %v1980 = vpop.f32.mrf.mxu0
  %v1981 = vadd.f32 %v1907, %v1980
  %1982 = vdwg.mxu0
  %v1983 = vadd.f32 %v1499, %v1979
  %v1984 = vadd.f32 %v1500, %v1981
  %s1985 = scalar_lea.vmem %s2, 32
  %v1986 = vld [vmem:[%s1985] sm:$0xff]
  %v1988 = vsel %vm80, %v1986, 0
  %1990 = vmatprep.subr.mxu0 0.0
  %1991 = vmatpush1.msra.mxu0 0.0
  %1992 = vmatprep.subr.mxu0 0.0
  %1993 = vmatpush1.msra.mxu0 0.0
  %1994 = vmatprep.subr.mxu0 0.0
  %1995 = vmatpush1.msra.mxu0 0.0
  %1996 = vmatprep.subr.mxu0 0.0
  %1997 = vmatpush1.msra.mxu0 0.0
  %1998 = vmatprep.subr.mxu0 0.0
  %1999 = vmatpush1.msra.mxu0 0.0
  %2000 = vmatprep.subr.mxu0 0.0
  %2001 = vmatpush1.msra.mxu0 0.0
  %2002 = vmatprep.subr.mxu0 0.0
  %2003 = vmatpush1.msra.mxu0 0.0
  %2004 = vmatprep.subr.mxu0 0.0
  %2005 = vmatpush1.msra.mxu0 0.0
  %2006 = vmatprep.subr.mxu0 0.0
  %2007 = vmatpush1.msra.mxu0 0.0
  %2008 = vmatprep.subr.mxu0 0.0
  %2009 = vmatpush1.msra.mxu0 0.0
  %2010 = vmatprep.subr.mxu0 0.0
  %2011 = vmatpush1.msra.mxu0 0.0
  %2012 = vmatprep.subr.mxu0 0.0
  %2013 = vmatpush1.msra.mxu0 0.0
  %2014 = vmatprep.subr.mxu0 0.0
  %2015 = vmatpush1.msra.mxu0 0.0
  %2016 = vmatprep.subr.mxu0 0.0
  %2017 = vmatpush1.msra.mxu0 0.0
  %2018 = vmatprep.subr.mxu0 0.0
  %2019 = vmatpush1.msra.mxu0 0.0
  %v2020 = vand.u32 %v22, 4294901760
  %2021 = vmatprep.subr.mxu0 %v2020
  %v2022 = vand.u32 %v21, 4294901760
  %2023 = vmatpush1.msra.mxu0 %v2022
  %2024 = vmatprep.subr.mxu0 0.0
  %2025 = vmatpush2.msra.mxu0 0.0
  %2026 = vmatprep.subr.mxu0 0.0
  %2027 = vmatpush2.msra.mxu0 0.0
  %2028 = vmatprep.subr.mxu0 0.0
  %2029 = vmatpush2.msra.mxu0 0.0
  %2030 = vmatprep.subr.mxu0 0.0
  %2031 = vmatpush2.msra.mxu0 0.0
  %2032 = vmatprep.subr.mxu0 0.0
  %2033 = vmatpush2.msra.mxu0 0.0
  %2034 = vmatprep.subr.mxu0 0.0
  %2035 = vmatpush2.msra.mxu0 0.0
  %2036 = vmatprep.subr.mxu0 0.0
  %2037 = vmatpush2.msra.mxu0 0.0
  %2038 = vmatprep.subr.mxu0 0.0
  %2039 = vmatpush2.msra.mxu0 0.0
  %2040 = vmatprep.subr.mxu0 0.0
  %2041 = vmatpush2.msra.mxu0 0.0
  %2042 = vmatprep.subr.mxu0 0.0
  %2043 = vmatpush2.msra.mxu0 0.0
  %2044 = vmatprep.subr.mxu0 0.0
  %2045 = vmatpush2.msra.mxu0 0.0
  %2046 = vmatprep.subr.mxu0 0.0
  %2047 = vmatpush2.msra.mxu0 0.0
  %2048 = vmatprep.subr.mxu0 0.0
  %2049 = vmatpush2.msra.mxu0 0.0
  %2050 = vmatprep.subr.mxu0 0.0
  %2051 = vmatpush2.msra.mxu0 0.0
  %2052 = vmatprep.subr.mxu0 0.0
  %2053 = vmatpush2.msra.mxu0 0.0
  %2054 = vmatprep.subr.mxu0 0.0
  %2055 = vmatpush2.msra.mxu0 0.0
  %2056 = vmatprep.mubr.f32.mxu0 0.0
  %v2057 = vand.u32 %v1988, 4294901760
  %v2058 = vsub.f32 %v1988, %v2057
  %v2059 = vand.u32 %v2058, 4294901760
  %v2060 = vsub.f32 %v2058, %v2059
  %v2061 = vand.u32 %v2060, 4294901760
  %2062 = vmatmul.mubr.f32.gmra.mxu0 %v2061
  %v2063 = vpop.f32.mrf.mxu0
  %v2064 = vadd.f32 0.0, %v2063
  %v2065 = vpop.f32.mrf.mxu0
  %v2066 = vadd.f32 0.0, %v2065
  %2067 = vdwg.mxu0
  %2068 = vmatprep.subr.mxu0 0.0
  %2069 = vmatpush1.msra.mxu0 0.0
  %2070 = vmatprep.subr.mxu0 0.0
  %2071 = vmatpush1.msra.mxu0 0.0
  %2072 = vmatprep.subr.mxu0 0.0
  %2073 = vmatpush1.msra.mxu0 0.0
  %2074 = vmatprep.subr.mxu0 0.0
  %2075 = vmatpush1.msra.mxu0 0.0
  %2076 = vmatprep.subr.mxu0 0.0
  %2077 = vmatpush1.msra.mxu0 0.0
  %2078 = vmatprep.subr.mxu0 0.0
  %2079 = vmatpush1.msra.mxu0 0.0
  %2080 = vmatprep.subr.mxu0 0.0
  %2081 = vmatpush1.msra.mxu0 0.0
  %2082 = vmatprep.subr.mxu0 0.0
  %2083 = vmatpush1.msra.mxu0 0.0
  %2084 = vmatprep.subr.mxu0 0.0
  %2085 = vmatpush1.msra.mxu0 0.0
  %2086 = vmatprep.subr.mxu0 0.0
  %2087 = vmatpush1.msra.mxu0 0.0
  %2088 = vmatprep.subr.mxu0 0.0
  %2089 = vmatpush1.msra.mxu0 0.0
  %2090 = vmatprep.subr.mxu0 0.0
  %2091 = vmatpush1.msra.mxu0 0.0
  %2092 = vmatprep.subr.mxu0 0.0
  %2093 = vmatpush1.msra.mxu0 0.0
  %2094 = vmatprep.subr.mxu0 0.0
  %2095 = vmatpush1.msra.mxu0 0.0
  %2096 = vmatprep.subr.mxu0 0.0
  %2097 = vmatpush1.msra.mxu0 0.0
  %v2098 = vand.u32 %v22, 4294901760
  %v2099 = vsub.f32 %v22, %v2098
  %v2100 = vand.u32 %v2099, 4294901760
  %v2101 = vsub.f32 %v2099, %v2100
  %v2102 = vand.u32 %v2101, 4294901760
  %2103 = vmatprep.subr.mxu0 %v2102
  %v2104 = vand.u32 %v21, 4294901760
  %v2105 = vsub.f32 %v21, %v2104
  %v2106 = vand.u32 %v2105, 4294901760
  %v2107 = vsub.f32 %v2105, %v2106
  %v2108 = vand.u32 %v2107, 4294901760
  %2109 = vmatpush1.msra.mxu0 %v2108
  %2110 = vmatprep.subr.mxu0 0.0
  %2111 = vmatpush2.msra.mxu0 0.0
  %2112 = vmatprep.subr.mxu0 0.0
  %2113 = vmatpush2.msra.mxu0 0.0
  %2114 = vmatprep.subr.mxu0 0.0
  %2115 = vmatpush2.msra.mxu0 0.0
  %2116 = vmatprep.subr.mxu0 0.0
  %2117 = vmatpush2.msra.mxu0 0.0
  %2118 = vmatprep.subr.mxu0 0.0
  %2119 = vmatpush2.msra.mxu0 0.0
  %2120 = vmatprep.subr.mxu0 0.0
  %2121 = vmatpush2.msra.mxu0 0.0
  %2122 = vmatprep.subr.mxu0 0.0
  %2123 = vmatpush2.msra.mxu0 0.0
  %2124 = vmatprep.subr.mxu0 0.0
  %2125 = vmatpush2.msra.mxu0 0.0
  %2126 = vmatprep.subr.mxu0 0.0
  %2127 = vmatpush2.msra.mxu0 0.0
  %2128 = vmatprep.subr.mxu0 0.0
  %2129 = vmatpush2.msra.mxu0 0.0
  %2130 = vmatprep.subr.mxu0 0.0
  %2131 = vmatpush2.msra.mxu0 0.0
  %2132 = vmatprep.subr.mxu0 0.0
  %2133 = vmatpush2.msra.mxu0 0.0
  %2134 = vmatprep.subr.mxu0 0.0
  %2135 = vmatpush2.msra.mxu0 0.0
  %2136 = vmatprep.subr.mxu0 0.0
  %2137 = vmatpush2.msra.mxu0 0.0
  %2138 = vmatprep.subr.mxu0 0.0
  %2139 = vmatpush2.msra.mxu0 0.0
  %2140 = vmatprep.subr.mxu0 0.0
  %2141 = vmatpush2.msra.mxu0 0.0
  %2142 = vmatprep.mubr.f32.mxu0 0.0
  %v2143 = vand.u32 %v1988, 4294901760
  %2144 = vmatmul.mubr.f32.gmra.mxu0 %v2143
  %v2145 = vpop.f32.mrf.mxu0
  %v2146 = vadd.f32 %v2064, %v2145
  %v2147 = vpop.f32.mrf.mxu0
  %v2148 = vadd.f32 %v2066, %v2147
  %2149 = vdwg.mxu0
  %2150 = vmatprep.subr.mxu0 0.0
  %2151 = vmatpush1.msra.mxu0 0.0
  %2152 = vmatprep.subr.mxu0 0.0
  %2153 = vmatpush1.msra.mxu0 0.0
  %2154 = vmatprep.subr.mxu0 0.0
  %2155 = vmatpush1.msra.mxu0 0.0
  %2156 = vmatprep.subr.mxu0 0.0
  %2157 = vmatpush1.msra.mxu0 0.0
  %2158 = vmatprep.subr.mxu0 0.0
  %2159 = vmatpush1.msra.mxu0 0.0
  %2160 = vmatprep.subr.mxu0 0.0
  %2161 = vmatpush1.msra.mxu0 0.0
  %2162 = vmatprep.subr.mxu0 0.0
  %2163 = vmatpush1.msra.mxu0 0.0
  %2164 = vmatprep.subr.mxu0 0.0
  %2165 = vmatpush1.msra.mxu0 0.0
  %2166 = vmatprep.subr.mxu0 0.0
  %2167 = vmatpush1.msra.mxu0 0.0
  %2168 = vmatprep.subr.mxu0 0.0
  %2169 = vmatpush1.msra.mxu0 0.0
  %2170 = vmatprep.subr.mxu0 0.0
  %2171 = vmatpush1.msra.mxu0 0.0
  %2172 = vmatprep.subr.mxu0 0.0
  %2173 = vmatpush1.msra.mxu0 0.0
  %2174 = vmatprep.subr.mxu0 0.0
  %2175 = vmatpush1.msra.mxu0 0.0
  %2176 = vmatprep.subr.mxu0 0.0
  %2177 = vmatpush1.msra.mxu0 0.0
  %2178 = vmatprep.subr.mxu0 0.0
  %2179 = vmatpush1.msra.mxu0 0.0
  %v2180 = vand.u32 %v22, 4294901760
  %v2181 = vsub.f32 %v22, %v2180
  %2182 = vmatprep.subr.mxu0 %v2181
  %v2183 = vand.u32 %v21, 4294901760
  %v2184 = vsub.f32 %v21, %v2183
  %2185 = vmatpush1.msra.mxu0 %v2184
  %2186 = vmatprep.subr.mxu0 0.0
  %2187 = vmatpush2.msra.mxu0 0.0
  %2188 = vmatprep.subr.mxu0 0.0
  %2189 = vmatpush2.msra.mxu0 0.0
  %2190 = vmatprep.subr.mxu0 0.0
  %2191 = vmatpush2.msra.mxu0 0.0
  %2192 = vmatprep.subr.mxu0 0.0
  %2193 = vmatpush2.msra.mxu0 0.0
  %2194 = vmatprep.subr.mxu0 0.0
  %2195 = vmatpush2.msra.mxu0 0.0
  %2196 = vmatprep.subr.mxu0 0.0
  %2197 = vmatpush2.msra.mxu0 0.0
  %2198 = vmatprep.subr.mxu0 0.0
  %2199 = vmatpush2.msra.mxu0 0.0
  %2200 = vmatprep.subr.mxu0 0.0
  %2201 = vmatpush2.msra.mxu0 0.0
  %2202 = vmatprep.subr.mxu0 0.0
  %2203 = vmatpush2.msra.mxu0 0.0
  %2204 = vmatprep.subr.mxu0 0.0
  %2205 = vmatpush2.msra.mxu0 0.0
  %2206 = vmatprep.subr.mxu0 0.0
  %2207 = vmatpush2.msra.mxu0 0.0
  %2208 = vmatprep.subr.mxu0 0.0
  %2209 = vmatpush2.msra.mxu0 0.0
  %2210 = vmatprep.subr.mxu0 0.0
  %2211 = vmatpush2.msra.mxu0 0.0
  %2212 = vmatprep.subr.mxu0 0.0
  %2213 = vmatpush2.msra.mxu0 0.0
  %2214 = vmatprep.subr.mxu0 0.0
  %2215 = vmatpush2.msra.mxu0 0.0
  %2216 = vmatprep.subr.mxu0 0.0
  %2217 = vmatpush2.msra.mxu0 0.0
  %2218 = vmatprep.mubr.f32.mxu0 0.0
  %v2219 = vand.u32 %v1988, 4294901760
  %v2220 = vsub.f32 %v1988, %v2219
  %2221 = vmatmul.mubr.f32.gmra.mxu0 %v2220
  %v2222 = vpop.f32.mrf.mxu0
  %v2223 = vadd.f32 %v2146, %v2222
  %v2224 = vpop.f32.mrf.mxu0
  %v2225 = vadd.f32 %v2148, %v2224
  %2226 = vdwg.mxu0
  %2227 = vmatprep.subr.mxu0 0.0
  %2228 = vmatpush1.msra.mxu0 0.0
  %2229 = vmatprep.subr.mxu0 0.0
  %2230 = vmatpush1.msra.mxu0 0.0
  %2231 = vmatprep.subr.mxu0 0.0
  %2232 = vmatpush1.msra.mxu0 0.0
  %2233 = vmatprep.subr.mxu0 0.0
  %2234 = vmatpush1.msra.mxu0 0.0
  %2235 = vmatprep.subr.mxu0 0.0
  %2236 = vmatpush1.msra.mxu0 0.0
  %2237 = vmatprep.subr.mxu0 0.0
  %2238 = vmatpush1.msra.mxu0 0.0
  %2239 = vmatprep.subr.mxu0 0.0
  %2240 = vmatpush1.msra.mxu0 0.0
  %2241 = vmatprep.subr.mxu0 0.0
  %2242 = vmatpush1.msra.mxu0 0.0
  %2243 = vmatprep.subr.mxu0 0.0
  %2244 = vmatpush1.msra.mxu0 0.0
  %2245 = vmatprep.subr.mxu0 0.0
  %2246 = vmatpush1.msra.mxu0 0.0
  %2247 = vmatprep.subr.mxu0 0.0
  %2248 = vmatpush1.msra.mxu0 0.0
  %2249 = vmatprep.subr.mxu0 0.0
  %2250 = vmatpush1.msra.mxu0 0.0
  %2251 = vmatprep.subr.mxu0 0.0
  %2252 = vmatpush1.msra.mxu0 0.0
  %2253 = vmatprep.subr.mxu0 0.0
  %2254 = vmatpush1.msra.mxu0 0.0
  %2255 = vmatprep.subr.mxu0 0.0
  %2256 = vmatpush1.msra.mxu0 0.0
  %v2257 = vand.u32 %v22, 4294901760
  %2258 = vmatprep.subr.mxu0 %v2257
  %v2259 = vand.u32 %v21, 4294901760
  %2260 = vmatpush1.msra.mxu0 %v2259
  %2261 = vmatprep.subr.mxu0 0.0
  %2262 = vmatpush2.msra.mxu0 0.0
  %2263 = vmatprep.subr.mxu0 0.0
  %2264 = vmatpush2.msra.mxu0 0.0
  %2265 = vmatprep.subr.mxu0 0.0
  %2266 = vmatpush2.msra.mxu0 0.0
  %2267 = vmatprep.subr.mxu0 0.0
  %2268 = vmatpush2.msra.mxu0 0.0
  %2269 = vmatprep.subr.mxu0 0.0
  %2270 = vmatpush2.msra.mxu0 0.0
  %2271 = vmatprep.subr.mxu0 0.0
  %2272 = vmatpush2.msra.mxu0 0.0
  %2273 = vmatprep.subr.mxu0 0.0
  %2274 = vmatpush2.msra.mxu0 0.0
  %2275 = vmatprep.subr.mxu0 0.0
  %2276 = vmatpush2.msra.mxu0 0.0
  %2277 = vmatprep.subr.mxu0 0.0
  %2278 = vmatpush2.msra.mxu0 0.0
  %2279 = vmatprep.subr.mxu0 0.0
  %2280 = vmatpush2.msra.mxu0 0.0
  %2281 = vmatprep.subr.mxu0 0.0
  %2282 = vmatpush2.msra.mxu0 0.0
  %2283 = vmatprep.subr.mxu0 0.0
  %2284 = vmatpush2.msra.mxu0 0.0
  %2285 = vmatprep.subr.mxu0 0.0
  %2286 = vmatpush2.msra.mxu0 0.0
  %2287 = vmatprep.subr.mxu0 0.0
  %2288 = vmatpush2.msra.mxu0 0.0
  %2289 = vmatprep.subr.mxu0 0.0
  %2290 = vmatpush2.msra.mxu0 0.0
  %2291 = vmatprep.subr.mxu0 0.0
  %2292 = vmatpush2.msra.mxu0 0.0
  %2293 = vmatprep.mubr.f32.mxu0 0.0
  %v2294 = vand.u32 %v1988, 4294901760
  %v2295 = vsub.f32 %v1988, %v2294
  %v2296 = vand.u32 %v2295, 4294901760
  %2297 = vmatmul.mubr.f32.gmra.mxu0 %v2296
  %v2298 = vpop.f32.mrf.mxu0
  %v2299 = vadd.f32 %v2223, %v2298
  %v2300 = vpop.f32.mrf.mxu0
  %v2301 = vadd.f32 %v2225, %v2300
  %2302 = vdwg.mxu0
  %2303 = vmatprep.subr.mxu0 0.0
  %2304 = vmatpush1.msra.mxu0 0.0
  %2305 = vmatprep.subr.mxu0 0.0
  %2306 = vmatpush1.msra.mxu0 0.0
  %2307 = vmatprep.subr.mxu0 0.0
  %2308 = vmatpush1.msra.mxu0 0.0
  %2309 = vmatprep.subr.mxu0 0.0
  %2310 = vmatpush1.msra.mxu0 0.0
  %2311 = vmatprep.subr.mxu0 0.0
  %2312 = vmatpush1.msra.mxu0 0.0
  %2313 = vmatprep.subr.mxu0 0.0
  %2314 = vmatpush1.msra.mxu0 0.0
  %2315 = vmatprep.subr.mxu0 0.0
  %2316 = vmatpush1.msra.mxu0 0.0
  %2317 = vmatprep.subr.mxu0 0.0
  %2318 = vmatpush1.msra.mxu0 0.0
  %2319 = vmatprep.subr.mxu0 0.0
  %2320 = vmatpush1.msra.mxu0 0.0
  %2321 = vmatprep.subr.mxu0 0.0
  %2322 = vmatpush1.msra.mxu0 0.0
  %2323 = vmatprep.subr.mxu0 0.0
  %2324 = vmatpush1.msra.mxu0 0.0
  %2325 = vmatprep.subr.mxu0 0.0
  %2326 = vmatpush1.msra.mxu0 0.0
  %2327 = vmatprep.subr.mxu0 0.0
  %2328 = vmatpush1.msra.mxu0 0.0
  %2329 = vmatprep.subr.mxu0 0.0
  %2330 = vmatpush1.msra.mxu0 0.0
  %2331 = vmatprep.subr.mxu0 0.0
  %2332 = vmatpush1.msra.mxu0 0.0
  %v2333 = vand.u32 %v22, 4294901760
  %v2334 = vsub.f32 %v22, %v2333
  %v2335 = vand.u32 %v2334, 4294901760
  %2336 = vmatprep.subr.mxu0 %v2335
  %v2337 = vand.u32 %v21, 4294901760
  %v2338 = vsub.f32 %v21, %v2337
  %v2339 = vand.u32 %v2338, 4294901760
  %2340 = vmatpush1.msra.mxu0 %v2339
  %2341 = vmatprep.subr.mxu0 0.0
  %2342 = vmatpush2.msra.mxu0 0.0
  %2343 = vmatprep.subr.mxu0 0.0
  %2344 = vmatpush2.msra.mxu0 0.0
  %2345 = vmatprep.subr.mxu0 0.0
  %2346 = vmatpush2.msra.mxu0 0.0
  %2347 = vmatprep.subr.mxu0 0.0
  %2348 = vmatpush2.msra.mxu0 0.0
  %2349 = vmatprep.subr.mxu0 0.0
  %2350 = vmatpush2.msra.mxu0 0.0
  %2351 = vmatprep.subr.mxu0 0.0
  %2352 = vmatpush2.msra.mxu0 0.0
  %2353 = vmatprep.subr.mxu0 0.0
  %2354 = vmatpush2.msra.mxu0 0.0
  %2355 = vmatprep.subr.mxu0 0.0
  %2356 = vmatpush2.msra.mxu0 0.0
  %2357 = vmatprep.subr.mxu0 0.0
  %2358 = vmatpush2.msra.mxu0 0.0
  %2359 = vmatprep.subr.mxu0 0.0
  %2360 = vmatpush2.msra.mxu0 0.0
  %2361 = vmatprep.subr.mxu0 0.0
  %2362 = vmatpush2.msra.mxu0 0.0
  %2363 = vmatprep.subr.mxu0 0.0
  %2364 = vmatpush2.msra.mxu0 0.0
  %2365 = vmatprep.subr.mxu0 0.0
  %2366 = vmatpush2.msra.mxu0 0.0
  %2367 = vmatprep.subr.mxu0 0.0
  %2368 = vmatpush2.msra.mxu0 0.0
  %2369 = vmatprep.subr.mxu0 0.0
  %2370 = vmatpush2.msra.mxu0 0.0
  %2371 = vmatprep.subr.mxu0 0.0
  %2372 = vmatpush2.msra.mxu0 0.0
  %2373 = vmatprep.mubr.f32.mxu0 0.0
  %v2374 = vand.u32 %v1988, 4294901760
  %2375 = vmatmul.mubr.f32.gmra.mxu0 %v2374
  %v2376 = vpop.f32.mrf.mxu0
  %v2377 = vadd.f32 %v2299, %v2376
  %v2378 = vpop.f32.mrf.mxu0
  %v2379 = vadd.f32 %v2301, %v2378
  %2380 = vdwg.mxu0
  %2381 = vmatprep.subr.mxu0 0.0
  %2382 = vmatpush1.msra.mxu0 0.0
  %2383 = vmatprep.subr.mxu0 0.0
  %2384 = vmatpush1.msra.mxu0 0.0
  %2385 = vmatprep.subr.mxu0 0.0
  %2386 = vmatpush1.msra.mxu0 0.0
  %2387 = vmatprep.subr.mxu0 0.0
  %2388 = vmatpush1.msra.mxu0 0.0
  %2389 = vmatprep.subr.mxu0 0.0
  %2390 = vmatpush1.msra.mxu0 0.0
  %2391 = vmatprep.subr.mxu0 0.0
  %2392 = vmatpush1.msra.mxu0 0.0
  %2393 = vmatprep.subr.mxu0 0.0
  %2394 = vmatpush1.msra.mxu0 0.0
  %2395 = vmatprep.subr.mxu0 0.0
  %2396 = vmatpush1.msra.mxu0 0.0
  %2397 = vmatprep.subr.mxu0 0.0
  %2398 = vmatpush1.msra.mxu0 0.0
  %2399 = vmatprep.subr.mxu0 0.0
  %2400 = vmatpush1.msra.mxu0 0.0
  %2401 = vmatprep.subr.mxu0 0.0
  %2402 = vmatpush1.msra.mxu0 0.0
  %2403 = vmatprep.subr.mxu0 0.0
  %2404 = vmatpush1.msra.mxu0 0.0
  %2405 = vmatprep.subr.mxu0 0.0
  %2406 = vmatpush1.msra.mxu0 0.0
  %2407 = vmatprep.subr.mxu0 0.0
  %2408 = vmatpush1.msra.mxu0 0.0
  %2409 = vmatprep.subr.mxu0 0.0
  %2410 = vmatpush1.msra.mxu0 0.0
  %v2411 = vand.u32 %v22, 4294901760
  %2412 = vmatprep.subr.mxu0 %v2411
  %v2413 = vand.u32 %v21, 4294901760
  %2414 = vmatpush1.msra.mxu0 %v2413
  %2415 = vmatprep.subr.mxu0 0.0
  %2416 = vmatpush2.msra.mxu0 0.0
  %2417 = vmatprep.subr.mxu0 0.0
  %2418 = vmatpush2.msra.mxu0 0.0
  %2419 = vmatprep.subr.mxu0 0.0
  %2420 = vmatpush2.msra.mxu0 0.0
  %2421 = vmatprep.subr.mxu0 0.0
  %2422 = vmatpush2.msra.mxu0 0.0
  %2423 = vmatprep.subr.mxu0 0.0
  %2424 = vmatpush2.msra.mxu0 0.0
  %2425 = vmatprep.subr.mxu0 0.0
  %2426 = vmatpush2.msra.mxu0 0.0
  %2427 = vmatprep.subr.mxu0 0.0
  %2428 = vmatpush2.msra.mxu0 0.0
  %2429 = vmatprep.subr.mxu0 0.0
  %2430 = vmatpush2.msra.mxu0 0.0
  %2431 = vmatprep.subr.mxu0 0.0
  %2432 = vmatpush2.msra.mxu0 0.0
  %2433 = vmatprep.subr.mxu0 0.0
  %2434 = vmatpush2.msra.mxu0 0.0
  %2435 = vmatprep.subr.mxu0 0.0
  %2436 = vmatpush2.msra.mxu0 0.0
  %2437 = vmatprep.subr.mxu0 0.0
  %2438 = vmatpush2.msra.mxu0 0.0
  %2439 = vmatprep.subr.mxu0 0.0
  %2440 = vmatpush2.msra.mxu0 0.0
  %2441 = vmatprep.subr.mxu0 0.0
  %2442 = vmatpush2.msra.mxu0 0.0
  %2443 = vmatprep.subr.mxu0 0.0
  %2444 = vmatpush2.msra.mxu0 0.0
  %2445 = vmatprep.subr.mxu0 0.0
  %2446 = vmatpush2.msra.mxu0 0.0
  %2447 = vmatprep.mubr.f32.mxu0 0.0
  %v2448 = vand.u32 %v1988, 4294901760
  %2449 = vmatmul.mubr.f32.gmra.mxu0 %v2448
  %v2450 = vpop.f32.mrf.mxu0
  %v2451 = vadd.f32 %v2377, %v2450
  %v2452 = vpop.f32.mrf.mxu0
  %v2453 = vadd.f32 %v2379, %v2452
  %2454 = vdwg.mxu0
  %v2455 = vadd.f32 %v1983, %v2451
  %v2456 = vadd.f32 %v1984, %v2453
  %2457 = vrot.lane.b32.xlu0 %v21, 127
  %v2458 = vpop.permute.xlu0 %2457
  %2459 = vrot.lane.b32.xlu0 %v22, 127
  %v2460 = vpop.permute.xlu0 %2459
  %vm2461 = vcmp.lt.s32.totalorder %v38, 127
  %v2462 = vsel %vm2461, %v2458, %v2460
  %v2463 = vsel %vm2461, %v2460, %v2458
  %s2464 = scalar_lea.vmem %s1, 80
  %v2465 = vld [vmem:[%s2464] sm:$0xff]
  %v2466 = vld [vmem:[%s2464 + $0x8] sm:$0xff]
  %v2467 = vmul.f32 %v2462, %v2465
  %v2468 = vmul.f32 %v2463, %v2466
  %s2469 = scalar_lea.vmem %s2, 40
  %v2470 = vld [vmem:[%s2469] sm:$0xff]
  %v2472 = vsel %vm80, %v2470, 0
  %2474 = vmatprep.subr.mxu0 0.0
  %2475 = vmatpush1.msra.mxu0 0.0
  %2476 = vmatprep.subr.mxu0 0.0
  %2477 = vmatpush1.msra.mxu0 0.0
  %2478 = vmatprep.subr.mxu0 0.0
  %2479 = vmatpush1.msra.mxu0 0.0
  %2480 = vmatprep.subr.mxu0 0.0
  %2481 = vmatpush1.msra.mxu0 0.0
  %2482 = vmatprep.subr.mxu0 0.0
  %2483 = vmatpush1.msra.mxu0 0.0
  %2484 = vmatprep.subr.mxu0 0.0
  %2485 = vmatpush1.msra.mxu0 0.0
  %2486 = vmatprep.subr.mxu0 0.0
  %2487 = vmatpush1.msra.mxu0 0.0
  %2488 = vmatprep.subr.mxu0 0.0
  %2489 = vmatpush1.msra.mxu0 0.0
  %2490 = vmatprep.subr.mxu0 0.0
  %2491 = vmatpush1.msra.mxu0 0.0
  %2492 = vmatprep.subr.mxu0 0.0
  %2493 = vmatpush1.msra.mxu0 0.0
  %2494 = vmatprep.subr.mxu0 0.0
  %2495 = vmatpush1.msra.mxu0 0.0
  %2496 = vmatprep.subr.mxu0 0.0
  %2497 = vmatpush1.msra.mxu0 0.0
  %2498 = vmatprep.subr.mxu0 0.0
  %2499 = vmatpush1.msra.mxu0 0.0
  %2500 = vmatprep.subr.mxu0 0.0
  %2501 = vmatpush1.msra.mxu0 0.0
  %2502 = vmatprep.subr.mxu0 0.0
  %2503 = vmatpush1.msra.mxu0 0.0
  %v2504 = vand.u32 %v2468, 4294901760
  %2505 = vmatprep.subr.mxu0 %v2504
  %v2506 = vand.u32 %v2467, 4294901760
  %2507 = vmatpush1.msra.mxu0 %v2506
  %2508 = vmatprep.subr.mxu0 0.0
  %2509 = vmatpush2.msra.mxu0 0.0
  %2510 = vmatprep.subr.mxu0 0.0
  %2511 = vmatpush2.msra.mxu0 0.0
  %2512 = vmatprep.subr.mxu0 0.0
  %2513 = vmatpush2.msra.mxu0 0.0
  %2514 = vmatprep.subr.mxu0 0.0
  %2515 = vmatpush2.msra.mxu0 0.0
  %2516 = vmatprep.subr.mxu0 0.0
  %2517 = vmatpush2.msra.mxu0 0.0
  %2518 = vmatprep.subr.mxu0 0.0
  %2519 = vmatpush2.msra.mxu0 0.0
  %2520 = vmatprep.subr.mxu0 0.0
  %2521 = vmatpush2.msra.mxu0 0.0
  %2522 = vmatprep.subr.mxu0 0.0
  %2523 = vmatpush2.msra.mxu0 0.0
  %2524 = vmatprep.subr.mxu0 0.0
  %2525 = vmatpush2.msra.mxu0 0.0
  %2526 = vmatprep.subr.mxu0 0.0
  %2527 = vmatpush2.msra.mxu0 0.0
  %2528 = vmatprep.subr.mxu0 0.0
  %2529 = vmatpush2.msra.mxu0 0.0
  %2530 = vmatprep.subr.mxu0 0.0
  %2531 = vmatpush2.msra.mxu0 0.0
  %2532 = vmatprep.subr.mxu0 0.0
  %2533 = vmatpush2.msra.mxu0 0.0
  %2534 = vmatprep.subr.mxu0 0.0
  %2535 = vmatpush2.msra.mxu0 0.0
  %2536 = vmatprep.subr.mxu0 0.0
  %2537 = vmatpush2.msra.mxu0 0.0
  %2538 = vmatprep.subr.mxu0 0.0
  %2539 = vmatpush2.msra.mxu0 0.0
  %2540 = vmatprep.mubr.f32.mxu0 0.0
  %v2541 = vand.u32 %v2472, 4294901760
  %v2542 = vsub.f32 %v2472, %v2541
  %v2543 = vand.u32 %v2542, 4294901760
  %v2544 = vsub.f32 %v2542, %v2543
  %v2545 = vand.u32 %v2544, 4294901760
  %2546 = vmatmul.mubr.f32.gmra.mxu0 %v2545
  %v2547 = vpop.f32.mrf.mxu0
  %v2548 = vadd.f32 0.0, %v2547
  %v2549 = vpop.f32.mrf.mxu0
  %v2550 = vadd.f32 0.0, %v2549
  %2551 = vdwg.mxu0
  %2552 = vmatprep.subr.mxu0 0.0
  %2553 = vmatpush1.msra.mxu0 0.0
  %2554 = vmatprep.subr.mxu0 0.0
  %2555 = vmatpush1.msra.mxu0 0.0
  %2556 = vmatprep.subr.mxu0 0.0
  %2557 = vmatpush1.msra.mxu0 0.0
  %2558 = vmatprep.subr.mxu0 0.0
  %2559 = vmatpush1.msra.mxu0 0.0
  %2560 = vmatprep.subr.mxu0 0.0
  %2561 = vmatpush1.msra.mxu0 0.0
  %2562 = vmatprep.subr.mxu0 0.0
  %2563 = vmatpush1.msra.mxu0 0.0
  %2564 = vmatprep.subr.mxu0 0.0
  %2565 = vmatpush1.msra.mxu0 0.0
  %2566 = vmatprep.subr.mxu0 0.0
  %2567 = vmatpush1.msra.mxu0 0.0
  %2568 = vmatprep.subr.mxu0 0.0
  %2569 = vmatpush1.msra.mxu0 0.0
  %2570 = vmatprep.subr.mxu0 0.0
  %2571 = vmatpush1.msra.mxu0 0.0
  %2572 = vmatprep.subr.mxu0 0.0
  %2573 = vmatpush1.msra.mxu0 0.0
  %2574 = vmatprep.subr.mxu0 0.0
  %2575 = vmatpush1.msra.mxu0 0.0
  %2576 = vmatprep.subr.mxu0 0.0
  %2577 = vmatpush1.msra.mxu0 0.0
  %2578 = vmatprep.subr.mxu0 0.0
  %2579 = vmatpush1.msra.mxu0 0.0
  %2580 = vmatprep.subr.mxu0 0.0
  %2581 = vmatpush1.msra.mxu0 0.0
  %v2582 = vand.u32 %v2468, 4294901760
  %v2583 = vsub.f32 %v2468, %v2582
  %v2584 = vand.u32 %v2583, 4294901760
  %v2585 = vsub.f32 %v2583, %v2584
  %v2586 = vand.u32 %v2585, 4294901760
  %2587 = vmatprep.subr.mxu0 %v2586
  %v2588 = vand.u32 %v2467, 4294901760
  %v2589 = vsub.f32 %v2467, %v2588
  %v2590 = vand.u32 %v2589, 4294901760
  %v2591 = vsub.f32 %v2589, %v2590
  %v2592 = vand.u32 %v2591, 4294901760
  %2593 = vmatpush1.msra.mxu0 %v2592
  %2594 = vmatprep.subr.mxu0 0.0
  %2595 = vmatpush2.msra.mxu0 0.0
  %2596 = vmatprep.subr.mxu0 0.0
  %2597 = vmatpush2.msra.mxu0 0.0
  %2598 = vmatprep.subr.mxu0 0.0
  %2599 = vmatpush2.msra.mxu0 0.0
  %2600 = vmatprep.subr.mxu0 0.0
  %2601 = vmatpush2.msra.mxu0 0.0
  %2602 = vmatprep.subr.mxu0 0.0
  %2603 = vmatpush2.msra.mxu0 0.0
  %2604 = vmatprep.subr.mxu0 0.0
  %2605 = vmatpush2.msra.mxu0 0.0
  %2606 = vmatprep.subr.mxu0 0.0
  %2607 = vmatpush2.msra.mxu0 0.0
  %2608 = vmatprep.subr.mxu0 0.0
  %2609 = vmatpush2.msra.mxu0 0.0
  %2610 = vmatprep.subr.mxu0 0.0
  %2611 = vmatpush2.msra.mxu0 0.0
  %2612 = vmatprep.subr.mxu0 0.0
  %2613 = vmatpush2.msra.mxu0 0.0
  %2614 = vmatprep.subr.mxu0 0.0
  %2615 = vmatpush2.msra.mxu0 0.0
  %2616 = vmatprep.subr.mxu0 0.0
  %2617 = vmatpush2.msra.mxu0 0.0
  %2618 = vmatprep.subr.mxu0 0.0
  %2619 = vmatpush2.msra.mxu0 0.0
  %2620 = vmatprep.subr.mxu0 0.0
  %2621 = vmatpush2.msra.mxu0 0.0
  %2622 = vmatprep.subr.mxu0 0.0
  %2623 = vmatpush2.msra.mxu0 0.0
  %2624 = vmatprep.subr.mxu0 0.0
  %2625 = vmatpush2.msra.mxu0 0.0
  %2626 = vmatprep.mubr.f32.mxu0 0.0
  %v2627 = vand.u32 %v2472, 4294901760
  %2628 = vmatmul.mubr.f32.gmra.mxu0 %v2627
  %v2629 = vpop.f32.mrf.mxu0
  %v2630 = vadd.f32 %v2548, %v2629
  %v2631 = vpop.f32.mrf.mxu0
  %v2632 = vadd.f32 %v2550, %v2631
  %2633 = vdwg.mxu0
  %2634 = vmatprep.subr.mxu0 0.0
  %2635 = vmatpush1.msra.mxu0 0.0
  %2636 = vmatprep.subr.mxu0 0.0
  %2637 = vmatpush1.msra.mxu0 0.0
  %2638 = vmatprep.subr.mxu0 0.0
  %2639 = vmatpush1.msra.mxu0 0.0
  %2640 = vmatprep.subr.mxu0 0.0
  %2641 = vmatpush1.msra.mxu0 0.0
  %2642 = vmatprep.subr.mxu0 0.0
  %2643 = vmatpush1.msra.mxu0 0.0
  %2644 = vmatprep.subr.mxu0 0.0
  %2645 = vmatpush1.msra.mxu0 0.0
  %2646 = vmatprep.subr.mxu0 0.0
  %2647 = vmatpush1.msra.mxu0 0.0
  %2648 = vmatprep.subr.mxu0 0.0
  %2649 = vmatpush1.msra.mxu0 0.0
  %2650 = vmatprep.subr.mxu0 0.0
  %2651 = vmatpush1.msra.mxu0 0.0
  %2652 = vmatprep.subr.mxu0 0.0
  %2653 = vmatpush1.msra.mxu0 0.0
  %2654 = vmatprep.subr.mxu0 0.0
  %2655 = vmatpush1.msra.mxu0 0.0
  %2656 = vmatprep.subr.mxu0 0.0
  %2657 = vmatpush1.msra.mxu0 0.0
  %2658 = vmatprep.subr.mxu0 0.0
  %2659 = vmatpush1.msra.mxu0 0.0
  %2660 = vmatprep.subr.mxu0 0.0
  %2661 = vmatpush1.msra.mxu0 0.0
  %2662 = vmatprep.subr.mxu0 0.0
  %2663 = vmatpush1.msra.mxu0 0.0
  %v2664 = vand.u32 %v2468, 4294901760
  %v2665 = vsub.f32 %v2468, %v2664
  %2666 = vmatprep.subr.mxu0 %v2665
  %v2667 = vand.u32 %v2467, 4294901760
  %v2668 = vsub.f32 %v2467, %v2667
  %2669 = vmatpush1.msra.mxu0 %v2668
  %2670 = vmatprep.subr.mxu0 0.0
  %2671 = vmatpush2.msra.mxu0 0.0
  %2672 = vmatprep.subr.mxu0 0.0
  %2673 = vmatpush2.msra.mxu0 0.0
  %2674 = vmatprep.subr.mxu0 0.0
  %2675 = vmatpush2.msra.mxu0 0.0
  %2676 = vmatprep.subr.mxu0 0.0
  %2677 = vmatpush2.msra.mxu0 0.0
  %2678 = vmatprep.subr.mxu0 0.0
  %2679 = vmatpush2.msra.mxu0 0.0
  %2680 = vmatprep.subr.mxu0 0.0
  %2681 = vmatpush2.msra.mxu0 0.0
  %2682 = vmatprep.subr.mxu0 0.0
  %2683 = vmatpush2.msra.mxu0 0.0
  %2684 = vmatprep.subr.mxu0 0.0
  %2685 = vmatpush2.msra.mxu0 0.0
  %2686 = vmatprep.subr.mxu0 0.0
  %2687 = vmatpush2.msra.mxu0 0.0
  %2688 = vmatprep.subr.mxu0 0.0
  %2689 = vmatpush2.msra.mxu0 0.0
  %2690 = vmatprep.subr.mxu0 0.0
  %2691 = vmatpush2.msra.mxu0 0.0
  %2692 = vmatprep.subr.mxu0 0.0
  %2693 = vmatpush2.msra.mxu0 0.0
  %2694 = vmatprep.subr.mxu0 0.0
  %2695 = vmatpush2.msra.mxu0 0.0
  %2696 = vmatprep.subr.mxu0 0.0
  %2697 = vmatpush2.msra.mxu0 0.0
  %2698 = vmatprep.subr.mxu0 0.0
  %2699 = vmatpush2.msra.mxu0 0.0
  %2700 = vmatprep.subr.mxu0 0.0
  %2701 = vmatpush2.msra.mxu0 0.0
  %2702 = vmatprep.mubr.f32.mxu0 0.0
  %v2703 = vand.u32 %v2472, 4294901760
  %v2704 = vsub.f32 %v2472, %v2703
  %2705 = vmatmul.mubr.f32.gmra.mxu0 %v2704
  %v2706 = vpop.f32.mrf.mxu0
  %v2707 = vadd.f32 %v2630, %v2706
  %v2708 = vpop.f32.mrf.mxu0
  %v2709 = vadd.f32 %v2632, %v2708
  %2710 = vdwg.mxu0
  %2711 = vmatprep.subr.mxu0 0.0
  %2712 = vmatpush1.msra.mxu0 0.0
  %2713 = vmatprep.subr.mxu0 0.0
  %2714 = vmatpush1.msra.mxu0 0.0
  %2715 = vmatprep.subr.mxu0 0.0
  %2716 = vmatpush1.msra.mxu0 0.0
  %2717 = vmatprep.subr.mxu0 0.0
  %2718 = vmatpush1.msra.mxu0 0.0
  %2719 = vmatprep.subr.mxu0 0.0
  %2720 = vmatpush1.msra.mxu0 0.0
  %2721 = vmatprep.subr.mxu0 0.0
  %2722 = vmatpush1.msra.mxu0 0.0
  %2723 = vmatprep.subr.mxu0 0.0
  %2724 = vmatpush1.msra.mxu0 0.0
  %2725 = vmatprep.subr.mxu0 0.0
  %2726 = vmatpush1.msra.mxu0 0.0
  %2727 = vmatprep.subr.mxu0 0.0
  %2728 = vmatpush1.msra.mxu0 0.0
  %2729 = vmatprep.subr.mxu0 0.0
  %2730 = vmatpush1.msra.mxu0 0.0
  %2731 = vmatprep.subr.mxu0 0.0
  %2732 = vmatpush1.msra.mxu0 0.0
  %2733 = vmatprep.subr.mxu0 0.0
  %2734 = vmatpush1.msra.mxu0 0.0
  %2735 = vmatprep.subr.mxu0 0.0
  %2736 = vmatpush1.msra.mxu0 0.0
  %2737 = vmatprep.subr.mxu0 0.0
  %2738 = vmatpush1.msra.mxu0 0.0
  %2739 = vmatprep.subr.mxu0 0.0
  %2740 = vmatpush1.msra.mxu0 0.0
  %v2741 = vand.u32 %v2468, 4294901760
  %2742 = vmatprep.subr.mxu0 %v2741
  %v2743 = vand.u32 %v2467, 4294901760
  %2744 = vmatpush1.msra.mxu0 %v2743
  %2745 = vmatprep.subr.mxu0 0.0
  %2746 = vmatpush2.msra.mxu0 0.0
  %2747 = vmatprep.subr.mxu0 0.0
  %2748 = vmatpush2.msra.mxu0 0.0
  %2749 = vmatprep.subr.mxu0 0.0
  %2750 = vmatpush2.msra.mxu0 0.0
  %2751 = vmatprep.subr.mxu0 0.0
  %2752 = vmatpush2.msra.mxu0 0.0
  %2753 = vmatprep.subr.mxu0 0.0
  %2754 = vmatpush2.msra.mxu0 0.0
  %2755 = vmatprep.subr.mxu0 0.0
  %2756 = vmatpush2.msra.mxu0 0.0
  %2757 = vmatprep.subr.mxu0 0.0
  %2758 = vmatpush2.msra.mxu0 0.0
  %2759 = vmatprep.subr.mxu0 0.0
  %2760 = vmatpush2.msra.mxu0 0.0
  %2761 = vmatprep.subr.mxu0 0.0
  %2762 = vmatpush2.msra.mxu0 0.0
  %2763 = vmatprep.subr.mxu0 0.0
  %2764 = vmatpush2.msra.mxu0 0.0
  %2765 = vmatprep.subr.mxu0 0.0
  %2766 = vmatpush2.msra.mxu0 0.0
  %2767 = vmatprep.subr.mxu0 0.0
  %2768 = vmatpush2.msra.mxu0 0.0
  %2769 = vmatprep.subr.mxu0 0.0
  %2770 = vmatpush2.msra.mxu0 0.0
  %2771 = vmatprep.subr.mxu0 0.0
  %2772 = vmatpush2.msra.mxu0 0.0
  %2773 = vmatprep.subr.mxu0 0.0
  %2774 = vmatpush2.msra.mxu0 0.0
  %2775 = vmatprep.subr.mxu0 0.0
  %2776 = vmatpush2.msra.mxu0 0.0
  %2777 = vmatprep.mubr.f32.mxu0 0.0
  %v2778 = vand.u32 %v2472, 4294901760
  %v2779 = vsub.f32 %v2472, %v2778
  %v2780 = vand.u32 %v2779, 4294901760
  %2781 = vmatmul.mubr.f32.gmra.mxu0 %v2780
  %v2782 = vpop.f32.mrf.mxu0
  %v2783 = vadd.f32 %v2707, %v2782
  %v2784 = vpop.f32.mrf.mxu0
  %v2785 = vadd.f32 %v2709, %v2784
  %2786 = vdwg.mxu0
  %2787 = vmatprep.subr.mxu0 0.0
  %2788 = vmatpush1.msra.mxu0 0.0
  %2789 = vmatprep.subr.mxu0 0.0
  %2790 = vmatpush1.msra.mxu0 0.0
  %2791 = vmatprep.subr.mxu0 0.0
  %2792 = vmatpush1.msra.mxu0 0.0
  %2793 = vmatprep.subr.mxu0 0.0
  %2794 = vmatpush1.msra.mxu0 0.0
  %2795 = vmatprep.subr.mxu0 0.0
  %2796 = vmatpush1.msra.mxu0 0.0
  %2797 = vmatprep.subr.mxu0 0.0
  %2798 = vmatpush1.msra.mxu0 0.0
  %2799 = vmatprep.subr.mxu0 0.0
  %2800 = vmatpush1.msra.mxu0 0.0
  %2801 = vmatprep.subr.mxu0 0.0
  %2802 = vmatpush1.msra.mxu0 0.0
  %2803 = vmatprep.subr.mxu0 0.0
  %2804 = vmatpush1.msra.mxu0 0.0
  %2805 = vmatprep.subr.mxu0 0.0
  %2806 = vmatpush1.msra.mxu0 0.0
  %2807 = vmatprep.subr.mxu0 0.0
  %2808 = vmatpush1.msra.mxu0 0.0
  %2809 = vmatprep.subr.mxu0 0.0
  %2810 = vmatpush1.msra.mxu0 0.0
  %2811 = vmatprep.subr.mxu0 0.0
  %2812 = vmatpush1.msra.mxu0 0.0
  %2813 = vmatprep.subr.mxu0 0.0
  %2814 = vmatpush1.msra.mxu0 0.0
  %2815 = vmatprep.subr.mxu0 0.0
  %2816 = vmatpush1.msra.mxu0 0.0
  %v2817 = vand.u32 %v2468, 4294901760
  %v2818 = vsub.f32 %v2468, %v2817
  %v2819 = vand.u32 %v2818, 4294901760
  %2820 = vmatprep.subr.mxu0 %v2819
  %v2821 = vand.u32 %v2467, 4294901760
  %v2822 = vsub.f32 %v2467, %v2821
  %v2823 = vand.u32 %v2822, 4294901760
  %2824 = vmatpush1.msra.mxu0 %v2823
  %2825 = vmatprep.subr.mxu0 0.0
  %2826 = vmatpush2.msra.mxu0 0.0
  %2827 = vmatprep.subr.mxu0 0.0
  %2828 = vmatpush2.msra.mxu0 0.0
  %2829 = vmatprep.subr.mxu0 0.0
  %2830 = vmatpush2.msra.mxu0 0.0
  %2831 = vmatprep.subr.mxu0 0.0
  %2832 = vmatpush2.msra.mxu0 0.0
  %2833 = vmatprep.subr.mxu0 0.0
  %2834 = vmatpush2.msra.mxu0 0.0
  %2835 = vmatprep.subr.mxu0 0.0
  %2836 = vmatpush2.msra.mxu0 0.0
  %2837 = vmatprep.subr.mxu0 0.0
  %2838 = vmatpush2.msra.mxu0 0.0
  %2839 = vmatprep.subr.mxu0 0.0
  %2840 = vmatpush2.msra.mxu0 0.0
  %2841 = vmatprep.subr.mxu0 0.0
  %2842 = vmatpush2.msra.mxu0 0.0
  %2843 = vmatprep.subr.mxu0 0.0
  %2844 = vmatpush2.msra.mxu0 0.0
  %2845 = vmatprep.subr.mxu0 0.0
  %2846 = vmatpush2.msra.mxu0 0.0
  %2847 = vmatprep.subr.mxu0 0.0
  %2848 = vmatpush2.msra.mxu0 0.0
  %2849 = vmatprep.subr.mxu0 0.0
  %2850 = vmatpush2.msra.mxu0 0.0
  %2851 = vmatprep.subr.mxu0 0.0
  %2852 = vmatpush2.msra.mxu0 0.0
  %2853 = vmatprep.subr.mxu0 0.0
  %2854 = vmatpush2.msra.mxu0 0.0
  %2855 = vmatprep.subr.mxu0 0.0
  %2856 = vmatpush2.msra.mxu0 0.0
  %2857 = vmatprep.mubr.f32.mxu0 0.0
  %v2858 = vand.u32 %v2472, 4294901760
  %2859 = vmatmul.mubr.f32.gmra.mxu0 %v2858
  %v2860 = vpop.f32.mrf.mxu0
  %v2861 = vadd.f32 %v2783, %v2860
  %v2862 = vpop.f32.mrf.mxu0
  %v2863 = vadd.f32 %v2785, %v2862
  %2864 = vdwg.mxu0
  %2865 = vmatprep.subr.mxu0 0.0
  %2866 = vmatpush1.msra.mxu0 0.0
  %2867 = vmatprep.subr.mxu0 0.0
  %2868 = vmatpush1.msra.mxu0 0.0
  %2869 = vmatprep.subr.mxu0 0.0
  %2870 = vmatpush1.msra.mxu0 0.0
  %2871 = vmatprep.subr.mxu0 0.0
  %2872 = vmatpush1.msra.mxu0 0.0
  %2873 = vmatprep.subr.mxu0 0.0
  %2874 = vmatpush1.msra.mxu0 0.0
  %2875 = vmatprep.subr.mxu0 0.0
  %2876 = vmatpush1.msra.mxu0 0.0
  %2877 = vmatprep.subr.mxu0 0.0
  %2878 = vmatpush1.msra.mxu0 0.0
  %2879 = vmatprep.subr.mxu0 0.0
  %2880 = vmatpush1.msra.mxu0 0.0
  %2881 = vmatprep.subr.mxu0 0.0
  %2882 = vmatpush1.msra.mxu0 0.0
  %2883 = vmatprep.subr.mxu0 0.0
  %2884 = vmatpush1.msra.mxu0 0.0
  %2885 = vmatprep.subr.mxu0 0.0
  %2886 = vmatpush1.msra.mxu0 0.0
  %2887 = vmatprep.subr.mxu0 0.0
  %2888 = vmatpush1.msra.mxu0 0.0
  %2889 = vmatprep.subr.mxu0 0.0
  %2890 = vmatpush1.msra.mxu0 0.0
  %2891 = vmatprep.subr.mxu0 0.0
  %2892 = vmatpush1.msra.mxu0 0.0
  %2893 = vmatprep.subr.mxu0 0.0
  %2894 = vmatpush1.msra.mxu0 0.0
  %v2895 = vand.u32 %v2468, 4294901760
  %2896 = vmatprep.subr.mxu0 %v2895
  %v2897 = vand.u32 %v2467, 4294901760
  %2898 = vmatpush1.msra.mxu0 %v2897
  %2899 = vmatprep.subr.mxu0 0.0
  %2900 = vmatpush2.msra.mxu0 0.0
  %2901 = vmatprep.subr.mxu0 0.0
  %2902 = vmatpush2.msra.mxu0 0.0
  %2903 = vmatprep.subr.mxu0 0.0
  %2904 = vmatpush2.msra.mxu0 0.0
  %2905 = vmatprep.subr.mxu0 0.0
  %2906 = vmatpush2.msra.mxu0 0.0
  %2907 = vmatprep.subr.mxu0 0.0
  %2908 = vmatpush2.msra.mxu0 0.0
  %2909 = vmatprep.subr.mxu0 0.0
  %2910 = vmatpush2.msra.mxu0 0.0
  %2911 = vmatprep.subr.mxu0 0.0
  %2912 = vmatpush2.msra.mxu0 0.0
  %2913 = vmatprep.subr.mxu0 0.0
  %2914 = vmatpush2.msra.mxu0 0.0
  %2915 = vmatprep.subr.mxu0 0.0
  %2916 = vmatpush2.msra.mxu0 0.0
  %2917 = vmatprep.subr.mxu0 0.0
  %2918 = vmatpush2.msra.mxu0 0.0
  %2919 = vmatprep.subr.mxu0 0.0
  %2920 = vmatpush2.msra.mxu0 0.0
  %2921 = vmatprep.subr.mxu0 0.0
  %2922 = vmatpush2.msra.mxu0 0.0
  %2923 = vmatprep.subr.mxu0 0.0
  %2924 = vmatpush2.msra.mxu0 0.0
  %2925 = vmatprep.subr.mxu0 0.0
  %2926 = vmatpush2.msra.mxu0 0.0
  %2927 = vmatprep.subr.mxu0 0.0
  %2928 = vmatpush2.msra.mxu0 0.0
  %2929 = vmatprep.subr.mxu0 0.0
  %2930 = vmatpush2.msra.mxu0 0.0
  %2931 = vmatprep.mubr.f32.mxu0 0.0
  %v2932 = vand.u32 %v2472, 4294901760
  %2933 = vmatmul.mubr.f32.gmra.mxu0 %v2932
  %v2934 = vpop.f32.mrf.mxu0
  %v2935 = vadd.f32 %v2861, %v2934
  %v2936 = vpop.f32.mrf.mxu0
  %v2937 = vadd.f32 %v2863, %v2936
  %2938 = vdwg.mxu0
  %v2939 = vadd.f32 %v2455, %v2935
  %v2940 = vadd.f32 %v2456, %v2937
  %2941 = vrot.lane.b32.xlu0 %v21, 113
  %v2942 = vpop.permute.xlu0 %2941
  %2943 = vrot.lane.b32.xlu0 %v22, 113
  %v2944 = vpop.permute.xlu0 %2943
  %vm2945 = vcmp.lt.s32.totalorder %v38, 113
  %v2946 = vsel %vm2945, %v2942, %v2944
  %v2947 = vsel %vm2945, %v2944, %v2942
  %s2948 = scalar_lea.vmem %s1, 96
  %v2949 = vld [vmem:[%s2948] sm:$0xff]
  %v2950 = vld [vmem:[%s2948 + $0x8] sm:$0xff]
  %v2951 = vmul.f32 %v2946, %v2949
  %v2952 = vmul.f32 %v2947, %v2950
  %s2953 = scalar_lea.vmem %s2, 48
  %v2954 = vld [vmem:[%s2953] sm:$0xff]
  %v2956 = vsel %vm80, %v2954, 0
  %2958 = vmatprep.subr.mxu0 0.0
  %2959 = vmatpush1.msra.mxu0 0.0
  %2960 = vmatprep.subr.mxu0 0.0
  %2961 = vmatpush1.msra.mxu0 0.0
  %2962 = vmatprep.subr.mxu0 0.0
  %2963 = vmatpush1.msra.mxu0 0.0
  %2964 = vmatprep.subr.mxu0 0.0
  %2965 = vmatpush1.msra.mxu0 0.0
  %2966 = vmatprep.subr.mxu0 0.0
  %2967 = vmatpush1.msra.mxu0 0.0
  %2968 = vmatprep.subr.mxu0 0.0
  %2969 = vmatpush1.msra.mxu0 0.0
  %2970 = vmatprep.subr.mxu0 0.0
  %2971 = vmatpush1.msra.mxu0 0.0
  %2972 = vmatprep.subr.mxu0 0.0
  %2973 = vmatpush1.msra.mxu0 0.0
  %2974 = vmatprep.subr.mxu0 0.0
  %2975 = vmatpush1.msra.mxu0 0.0
  %2976 = vmatprep.subr.mxu0 0.0
  %2977 = vmatpush1.msra.mxu0 0.0
  %2978 = vmatprep.subr.mxu0 0.0
  %2979 = vmatpush1.msra.mxu0 0.0
  %2980 = vmatprep.subr.mxu0 0.0
  %2981 = vmatpush1.msra.mxu0 0.0
  %2982 = vmatprep.subr.mxu0 0.0
  %2983 = vmatpush1.msra.mxu0 0.0
  %2984 = vmatprep.subr.mxu0 0.0
  %2985 = vmatpush1.msra.mxu0 0.0
  %2986 = vmatprep.subr.mxu0 0.0
  %2987 = vmatpush1.msra.mxu0 0.0
  %v2988 = vand.u32 %v2952, 4294901760
  %2989 = vmatprep.subr.mxu0 %v2988
  %v2990 = vand.u32 %v2951, 4294901760
  %2991 = vmatpush1.msra.mxu0 %v2990
  %2992 = vmatprep.subr.mxu0 0.0
  %2993 = vmatpush2.msra.mxu0 0.0
  %2994 = vmatprep.subr.mxu0 0.0
  %2995 = vmatpush2.msra.mxu0 0.0
  %2996 = vmatprep.subr.mxu0 0.0
  %2997 = vmatpush2.msra.mxu0 0.0
  %2998 = vmatprep.subr.mxu0 0.0
  %2999 = vmatpush2.msra.mxu0 0.0
  %3000 = vmatprep.subr.mxu0 0.0
  %3001 = vmatpush2.msra.mxu0 0.0
  %3002 = vmatprep.subr.mxu0 0.0
  %3003 = vmatpush2.msra.mxu0 0.0
  %3004 = vmatprep.subr.mxu0 0.0
  %3005 = vmatpush2.msra.mxu0 0.0
  %3006 = vmatprep.subr.mxu0 0.0
  %3007 = vmatpush2.msra.mxu0 0.0
  %3008 = vmatprep.subr.mxu0 0.0
  %3009 = vmatpush2.msra.mxu0 0.0
  %3010 = vmatprep.subr.mxu0 0.0
  %3011 = vmatpush2.msra.mxu0 0.0
  %3012 = vmatprep.subr.mxu0 0.0
  %3013 = vmatpush2.msra.mxu0 0.0
  %3014 = vmatprep.subr.mxu0 0.0
  %3015 = vmatpush2.msra.mxu0 0.0
  %3016 = vmatprep.subr.mxu0 0.0
  %3017 = vmatpush2.msra.mxu0 0.0
  %3018 = vmatprep.subr.mxu0 0.0
  %3019 = vmatpush2.msra.mxu0 0.0
  %3020 = vmatprep.subr.mxu0 0.0
  %3021 = vmatpush2.msra.mxu0 0.0
  %3022 = vmatprep.subr.mxu0 0.0
  %3023 = vmatpush2.msra.mxu0 0.0
  %3024 = vmatprep.mubr.f32.mxu0 0.0
  %v3025 = vand.u32 %v2956, 4294901760
  %v3026 = vsub.f32 %v2956, %v3025
  %v3027 = vand.u32 %v3026, 4294901760
  %v3028 = vsub.f32 %v3026, %v3027
  %v3029 = vand.u32 %v3028, 4294901760
  %3030 = vmatmul.mubr.f32.gmra.mxu0 %v3029
  %v3031 = vpop.f32.mrf.mxu0
  %v3032 = vadd.f32 0.0, %v3031
  %v3033 = vpop.f32.mrf.mxu0
  %v3034 = vadd.f32 0.0, %v3033
  %3035 = vdwg.mxu0
  %3036 = vmatprep.subr.mxu0 0.0
  %3037 = vmatpush1.msra.mxu0 0.0
  %3038 = vmatprep.subr.mxu0 0.0
  %3039 = vmatpush1.msra.mxu0 0.0
  %3040 = vmatprep.subr.mxu0 0.0
  %3041 = vmatpush1.msra.mxu0 0.0
  %3042 = vmatprep.subr.mxu0 0.0
  %3043 = vmatpush1.msra.mxu0 0.0
  %3044 = vmatprep.subr.mxu0 0.0
  %3045 = vmatpush1.msra.mxu0 0.0
  %3046 = vmatprep.subr.mxu0 0.0
  %3047 = vmatpush1.msra.mxu0 0.0
  %3048 = vmatprep.subr.mxu0 0.0
  %3049 = vmatpush1.msra.mxu0 0.0
  %3050 = vmatprep.subr.mxu0 0.0
  %3051 = vmatpush1.msra.mxu0 0.0
  %3052 = vmatprep.subr.mxu0 0.0
  %3053 = vmatpush1.msra.mxu0 0.0
  %3054 = vmatprep.subr.mxu0 0.0
  %3055 = vmatpush1.msra.mxu0 0.0
  %3056 = vmatprep.subr.mxu0 0.0
  %3057 = vmatpush1.msra.mxu0 0.0
  %3058 = vmatprep.subr.mxu0 0.0
  %3059 = vmatpush1.msra.mxu0 0.0
  %3060 = vmatprep.subr.mxu0 0.0
  %3061 = vmatpush1.msra.mxu0 0.0
  %3062 = vmatprep.subr.mxu0 0.0
  %3063 = vmatpush1.msra.mxu0 0.0
  %3064 = vmatprep.subr.mxu0 0.0
  %3065 = vmatpush1.msra.mxu0 0.0
  %v3066 = vand.u32 %v2952, 4294901760
  %v3067 = vsub.f32 %v2952, %v3066
  %v3068 = vand.u32 %v3067, 4294901760
  %v3069 = vsub.f32 %v3067, %v3068
  %v3070 = vand.u32 %v3069, 4294901760
  %3071 = vmatprep.subr.mxu0 %v3070
  %v3072 = vand.u32 %v2951, 4294901760
  %v3073 = vsub.f32 %v2951, %v3072
  %v3074 = vand.u32 %v3073, 4294901760
  %v3075 = vsub.f32 %v3073, %v3074
  %v3076 = vand.u32 %v3075, 4294901760
  %3077 = vmatpush1.msra.mxu0 %v3076
  %3078 = vmatprep.subr.mxu0 0.0
  %3079 = vmatpush2.msra.mxu0 0.0
  %3080 = vmatprep.subr.mxu0 0.0
  %3081 = vmatpush2.msra.mxu0 0.0
  %3082 = vmatprep.subr.mxu0 0.0
  %3083 = vmatpush2.msra.mxu0 0.0
  %3084 = vmatprep.subr.mxu0 0.0
  %3085 = vmatpush2.msra.mxu0 0.0
  %3086 = vmatprep.subr.mxu0 0.0
  %3087 = vmatpush2.msra.mxu0 0.0
  %3088 = vmatprep.subr.mxu0 0.0
  %3089 = vmatpush2.msra.mxu0 0.0
  %3090 = vmatprep.subr.mxu0 0.0
  %3091 = vmatpush2.msra.mxu0 0.0
  %3092 = vmatprep.subr.mxu0 0.0
  %3093 = vmatpush2.msra.mxu0 0.0
  %3094 = vmatprep.subr.mxu0 0.0
  %3095 = vmatpush2.msra.mxu0 0.0
  %3096 = vmatprep.subr.mxu0 0.0
  %3097 = vmatpush2.msra.mxu0 0.0
  %3098 = vmatprep.subr.mxu0 0.0
  %3099 = vmatpush2.msra.mxu0 0.0
  %3100 = vmatprep.subr.mxu0 0.0
  %3101 = vmatpush2.msra.mxu0 0.0
  %3102 = vmatprep.subr.mxu0 0.0
  %3103 = vmatpush2.msra.mxu0 0.0
  %3104 = vmatprep.subr.mxu0 0.0
  %3105 = vmatpush2.msra.mxu0 0.0
  %3106 = vmatprep.subr.mxu0 0.0
  %3107 = vmatpush2.msra.mxu0 0.0
  %3108 = vmatprep.subr.mxu0 0.0
  %3109 = vmatpush2.msra.mxu0 0.0
  %3110 = vmatprep.mubr.f32.mxu0 0.0
  %v3111 = vand.u32 %v2956, 4294901760
  %3112 = vmatmul.mubr.f32.gmra.mxu0 %v3111
  %v3113 = vpop.f32.mrf.mxu0
  %v3114 = vadd.f32 %v3032, %v3113
  %v3115 = vpop.f32.mrf.mxu0
  %v3116 = vadd.f32 %v3034, %v3115
  %3117 = vdwg.mxu0
  %3118 = vmatprep.subr.mxu0 0.0
  %3119 = vmatpush1.msra.mxu0 0.0
  %3120 = vmatprep.subr.mxu0 0.0
  %3121 = vmatpush1.msra.mxu0 0.0
  %3122 = vmatprep.subr.mxu0 0.0
  %3123 = vmatpush1.msra.mxu0 0.0
  %3124 = vmatprep.subr.mxu0 0.0
  %3125 = vmatpush1.msra.mxu0 0.0
  %3126 = vmatprep.subr.mxu0 0.0
  %3127 = vmatpush1.msra.mxu0 0.0
  %3128 = vmatprep.subr.mxu0 0.0
  %3129 = vmatpush1.msra.mxu0 0.0
  %3130 = vmatprep.subr.mxu0 0.0
  %3131 = vmatpush1.msra.mxu0 0.0
  %3132 = vmatprep.subr.mxu0 0.0
  %3133 = vmatpush1.msra.mxu0 0.0
  %3134 = vmatprep.subr.mxu0 0.0
  %3135 = vmatpush1.msra.mxu0 0.0
  %3136 = vmatprep.subr.mxu0 0.0
  %3137 = vmatpush1.msra.mxu0 0.0
  %3138 = vmatprep.subr.mxu0 0.0
  %3139 = vmatpush1.msra.mxu0 0.0
  %3140 = vmatprep.subr.mxu0 0.0
  %3141 = vmatpush1.msra.mxu0 0.0
  %3142 = vmatprep.subr.mxu0 0.0
  %3143 = vmatpush1.msra.mxu0 0.0
  %3144 = vmatprep.subr.mxu0 0.0
  %3145 = vmatpush1.msra.mxu0 0.0
  %3146 = vmatprep.subr.mxu0 0.0
  %3147 = vmatpush1.msra.mxu0 0.0
  %v3148 = vand.u32 %v2952, 4294901760
  %v3149 = vsub.f32 %v2952, %v3148
  %3150 = vmatprep.subr.mxu0 %v3149
  %v3151 = vand.u32 %v2951, 4294901760
  %v3152 = vsub.f32 %v2951, %v3151
  %3153 = vmatpush1.msra.mxu0 %v3152
  %3154 = vmatprep.subr.mxu0 0.0
  %3155 = vmatpush2.msra.mxu0 0.0
  %3156 = vmatprep.subr.mxu0 0.0
  %3157 = vmatpush2.msra.mxu0 0.0
  %3158 = vmatprep.subr.mxu0 0.0
  %3159 = vmatpush2.msra.mxu0 0.0
  %3160 = vmatprep.subr.mxu0 0.0
  %3161 = vmatpush2.msra.mxu0 0.0
  %3162 = vmatprep.subr.mxu0 0.0
  %3163 = vmatpush2.msra.mxu0 0.0
  %3164 = vmatprep.subr.mxu0 0.0
  %3165 = vmatpush2.msra.mxu0 0.0
  %3166 = vmatprep.subr.mxu0 0.0
  %3167 = vmatpush2.msra.mxu0 0.0
  %3168 = vmatprep.subr.mxu0 0.0
  %3169 = vmatpush2.msra.mxu0 0.0
  %3170 = vmatprep.subr.mxu0 0.0
  %3171 = vmatpush2.msra.mxu0 0.0
  %3172 = vmatprep.subr.mxu0 0.0
  %3173 = vmatpush2.msra.mxu0 0.0
  %3174 = vmatprep.subr.mxu0 0.0
  %3175 = vmatpush2.msra.mxu0 0.0
  %3176 = vmatprep.subr.mxu0 0.0
  %3177 = vmatpush2.msra.mxu0 0.0
  %3178 = vmatprep.subr.mxu0 0.0
  %3179 = vmatpush2.msra.mxu0 0.0
  %3180 = vmatprep.subr.mxu0 0.0
  %3181 = vmatpush2.msra.mxu0 0.0
  %3182 = vmatprep.subr.mxu0 0.0
  %3183 = vmatpush2.msra.mxu0 0.0
  %3184 = vmatprep.subr.mxu0 0.0
  %3185 = vmatpush2.msra.mxu0 0.0
  %3186 = vmatprep.mubr.f32.mxu0 0.0
  %v3187 = vand.u32 %v2956, 4294901760
  %v3188 = vsub.f32 %v2956, %v3187
  %3189 = vmatmul.mubr.f32.gmra.mxu0 %v3188
  %v3190 = vpop.f32.mrf.mxu0
  %v3191 = vadd.f32 %v3114, %v3190
  %v3192 = vpop.f32.mrf.mxu0
  %v3193 = vadd.f32 %v3116, %v3192
  %3194 = vdwg.mxu0
  %3195 = vmatprep.subr.mxu0 0.0
  %3196 = vmatpush1.msra.mxu0 0.0
  %3197 = vmatprep.subr.mxu0 0.0
  %3198 = vmatpush1.msra.mxu0 0.0
  %3199 = vmatprep.subr.mxu0 0.0
  %3200 = vmatpush1.msra.mxu0 0.0
  %3201 = vmatprep.subr.mxu0 0.0
  %3202 = vmatpush1.msra.mxu0 0.0
  %3203 = vmatprep.subr.mxu0 0.0
  %3204 = vmatpush1.msra.mxu0 0.0
  %3205 = vmatprep.subr.mxu0 0.0
  %3206 = vmatpush1.msra.mxu0 0.0
  %3207 = vmatprep.subr.mxu0 0.0
  %3208 = vmatpush1.msra.mxu0 0.0
  %3209 = vmatprep.subr.mxu0 0.0
  %3210 = vmatpush1.msra.mxu0 0.0
  %3211 = vmatprep.subr.mxu0 0.0
  %3212 = vmatpush1.msra.mxu0 0.0
  %3213 = vmatprep.subr.mxu0 0.0
  %3214 = vmatpush1.msra.mxu0 0.0
  %3215 = vmatprep.subr.mxu0 0.0
  %3216 = vmatpush1.msra.mxu0 0.0
  %3217 = vmatprep.subr.mxu0 0.0
  %3218 = vmatpush1.msra.mxu0 0.0
  %3219 = vmatprep.subr.mxu0 0.0
  %3220 = vmatpush1.msra.mxu0 0.0
  %3221 = vmatprep.subr.mxu0 0.0
  %3222 = vmatpush1.msra.mxu0 0.0
  %3223 = vmatprep.subr.mxu0 0.0
  %3224 = vmatpush1.msra.mxu0 0.0
  %v3225 = vand.u32 %v2952, 4294901760
  %3226 = vmatprep.subr.mxu0 %v3225
  %v3227 = vand.u32 %v2951, 4294901760
  %3228 = vmatpush1.msra.mxu0 %v3227
  %3229 = vmatprep.subr.mxu0 0.0
  %3230 = vmatpush2.msra.mxu0 0.0
  %3231 = vmatprep.subr.mxu0 0.0
  %3232 = vmatpush2.msra.mxu0 0.0
  %3233 = vmatprep.subr.mxu0 0.0
  %3234 = vmatpush2.msra.mxu0 0.0
  %3235 = vmatprep.subr.mxu0 0.0
  %3236 = vmatpush2.msra.mxu0 0.0
  %3237 = vmatprep.subr.mxu0 0.0
  %3238 = vmatpush2.msra.mxu0 0.0
  %3239 = vmatprep.subr.mxu0 0.0
  %3240 = vmatpush2.msra.mxu0 0.0
  %3241 = vmatprep.subr.mxu0 0.0
  %3242 = vmatpush2.msra.mxu0 0.0
  %3243 = vmatprep.subr.mxu0 0.0
  %3244 = vmatpush2.msra.mxu0 0.0
  %3245 = vmatprep.subr.mxu0 0.0
  %3246 = vmatpush2.msra.mxu0 0.0
  %3247 = vmatprep.subr.mxu0 0.0
  %3248 = vmatpush2.msra.mxu0 0.0
  %3249 = vmatprep.subr.mxu0 0.0
  %3250 = vmatpush2.msra.mxu0 0.0
  %3251 = vmatprep.subr.mxu0 0.0
  %3252 = vmatpush2.msra.mxu0 0.0
  %3253 = vmatprep.subr.mxu0 0.0
  %3254 = vmatpush2.msra.mxu0 0.0
  %3255 = vmatprep.subr.mxu0 0.0
  %3256 = vmatpush2.msra.mxu0 0.0
  %3257 = vmatprep.subr.mxu0 0.0
  %3258 = vmatpush2.msra.mxu0 0.0
  %3259 = vmatprep.subr.mxu0 0.0
  %3260 = vmatpush2.msra.mxu0 0.0
  %3261 = vmatprep.mubr.f32.mxu0 0.0
  %v3262 = vand.u32 %v2956, 4294901760
  %v3263 = vsub.f32 %v2956, %v3262
  %v3264 = vand.u32 %v3263, 4294901760
  %3265 = vmatmul.mubr.f32.gmra.mxu0 %v3264
  %v3266 = vpop.f32.mrf.mxu0
  %v3267 = vadd.f32 %v3191, %v3266
  %v3268 = vpop.f32.mrf.mxu0
  %v3269 = vadd.f32 %v3193, %v3268
  %3270 = vdwg.mxu0
  %3271 = vmatprep.subr.mxu0 0.0
  %3272 = vmatpush1.msra.mxu0 0.0
  %3273 = vmatprep.subr.mxu0 0.0
  %3274 = vmatpush1.msra.mxu0 0.0
  %3275 = vmatprep.subr.mxu0 0.0
  %3276 = vmatpush1.msra.mxu0 0.0
  %3277 = vmatprep.subr.mxu0 0.0
  %3278 = vmatpush1.msra.mxu0 0.0
  %3279 = vmatprep.subr.mxu0 0.0
  %3280 = vmatpush1.msra.mxu0 0.0
  %3281 = vmatprep.subr.mxu0 0.0
  %3282 = vmatpush1.msra.mxu0 0.0
  %3283 = vmatprep.subr.mxu0 0.0
  %3284 = vmatpush1.msra.mxu0 0.0
  %3285 = vmatprep.subr.mxu0 0.0
  %3286 = vmatpush1.msra.mxu0 0.0
  %3287 = vmatprep.subr.mxu0 0.0
  %3288 = vmatpush1.msra.mxu0 0.0
  %3289 = vmatprep.subr.mxu0 0.0
  %3290 = vmatpush1.msra.mxu0 0.0
  %3291 = vmatprep.subr.mxu0 0.0
  %3292 = vmatpush1.msra.mxu0 0.0
  %3293 = vmatprep.subr.mxu0 0.0
  %3294 = vmatpush1.msra.mxu0 0.0
  %3295 = vmatprep.subr.mxu0 0.0
  %3296 = vmatpush1.msra.mxu0 0.0
  %3297 = vmatprep.subr.mxu0 0.0
  %3298 = vmatpush1.msra.mxu0 0.0
  %3299 = vmatprep.subr.mxu0 0.0
  %3300 = vmatpush1.msra.mxu0 0.0
  %v3301 = vand.u32 %v2952, 4294901760
  %v3302 = vsub.f32 %v2952, %v3301
  %v3303 = vand.u32 %v3302, 4294901760
  %3304 = vmatprep.subr.mxu0 %v3303
  %v3305 = vand.u32 %v2951, 4294901760
  %v3306 = vsub.f32 %v2951, %v3305
  %v3307 = vand.u32 %v3306, 4294901760
  %3308 = vmatpush1.msra.mxu0 %v3307
  %3309 = vmatprep.subr.mxu0 0.0
  %3310 = vmatpush2.msra.mxu0 0.0
  %3311 = vmatprep.subr.mxu0 0.0
  %3312 = vmatpush2.msra.mxu0 0.0
  %3313 = vmatprep.subr.mxu0 0.0
  %3314 = vmatpush2.msra.mxu0 0.0
  %3315 = vmatprep.subr.mxu0 0.0
  %3316 = vmatpush2.msra.mxu0 0.0
  %3317 = vmatprep.subr.mxu0 0.0
  %3318 = vmatpush2.msra.mxu0 0.0
  %3319 = vmatprep.subr.mxu0 0.0
  %3320 = vmatpush2.msra.mxu0 0.0
  %3321 = vmatprep.subr.mxu0 0.0
  %3322 = vmatpush2.msra.mxu0 0.0
  %3323 = vmatprep.subr.mxu0 0.0
  %3324 = vmatpush2.msra.mxu0 0.0
  %3325 = vmatprep.subr.mxu0 0.0
  %3326 = vmatpush2.msra.mxu0 0.0
  %3327 = vmatprep.subr.mxu0 0.0
  %3328 = vmatpush2.msra.mxu0 0.0
  %3329 = vmatprep.subr.mxu0 0.0
  %3330 = vmatpush2.msra.mxu0 0.0
  %3331 = vmatprep.subr.mxu0 0.0
  %3332 = vmatpush2.msra.mxu0 0.0
  %3333 = vmatprep.subr.mxu0 0.0
  %3334 = vmatpush2.msra.mxu0 0.0
  %3335 = vmatprep.subr.mxu0 0.0
  %3336 = vmatpush2.msra.mxu0 0.0
  %3337 = vmatprep.subr.mxu0 0.0
  %3338 = vmatpush2.msra.mxu0 0.0
  %3339 = vmatprep.subr.mxu0 0.0
  %3340 = vmatpush2.msra.mxu0 0.0
  %3341 = vmatprep.mubr.f32.mxu0 0.0
  %v3342 = vand.u32 %v2956, 4294901760
  %3343 = vmatmul.mubr.f32.gmra.mxu0 %v3342
  %v3344 = vpop.f32.mrf.mxu0
  %v3345 = vadd.f32 %v3267, %v3344
  %v3346 = vpop.f32.mrf.mxu0
  %v3347 = vadd.f32 %v3269, %v3346
  %3348 = vdwg.mxu0
  %3349 = vmatprep.subr.mxu0 0.0
  %3350 = vmatpush1.msra.mxu0 0.0
  %3351 = vmatprep.subr.mxu0 0.0
  %3352 = vmatpush1.msra.mxu0 0.0
  %3353 = vmatprep.subr.mxu0 0.0
  %3354 = vmatpush1.msra.mxu0 0.0
  %3355 = vmatprep.subr.mxu0 0.0
  %3356 = vmatpush1.msra.mxu0 0.0
  %3357 = vmatprep.subr.mxu0 0.0
  %3358 = vmatpush1.msra.mxu0 0.0
  %3359 = vmatprep.subr.mxu0 0.0
  %3360 = vmatpush1.msra.mxu0 0.0
  %3361 = vmatprep.subr.mxu0 0.0
  %3362 = vmatpush1.msra.mxu0 0.0
  %3363 = vmatprep.subr.mxu0 0.0
  %3364 = vmatpush1.msra.mxu0 0.0
  %3365 = vmatprep.subr.mxu0 0.0
  %3366 = vmatpush1.msra.mxu0 0.0
  %3367 = vmatprep.subr.mxu0 0.0
  %3368 = vmatpush1.msra.mxu0 0.0
  %3369 = vmatprep.subr.mxu0 0.0
  %3370 = vmatpush1.msra.mxu0 0.0
  %3371 = vmatprep.subr.mxu0 0.0
  %3372 = vmatpush1.msra.mxu0 0.0
  %3373 = vmatprep.subr.mxu0 0.0
  %3374 = vmatpush1.msra.mxu0 0.0
  %3375 = vmatprep.subr.mxu0 0.0
  %3376 = vmatpush1.msra.mxu0 0.0
  %3377 = vmatprep.subr.mxu0 0.0
  %3378 = vmatpush1.msra.mxu0 0.0
  %v3379 = vand.u32 %v2952, 4294901760
  %3380 = vmatprep.subr.mxu0 %v3379
  %v3381 = vand.u32 %v2951, 4294901760
  %3382 = vmatpush1.msra.mxu0 %v3381
  %3383 = vmatprep.subr.mxu0 0.0
  %3384 = vmatpush2.msra.mxu0 0.0
  %3385 = vmatprep.subr.mxu0 0.0
  %3386 = vmatpush2.msra.mxu0 0.0
  %3387 = vmatprep.subr.mxu0 0.0
  %3388 = vmatpush2.msra.mxu0 0.0
  %3389 = vmatprep.subr.mxu0 0.0
  %3390 = vmatpush2.msra.mxu0 0.0
  %3391 = vmatprep.subr.mxu0 0.0
  %3392 = vmatpush2.msra.mxu0 0.0
  %3393 = vmatprep.subr.mxu0 0.0
  %3394 = vmatpush2.msra.mxu0 0.0
  %3395 = vmatprep.subr.mxu0 0.0
  %3396 = vmatpush2.msra.mxu0 0.0
  %3397 = vmatprep.subr.mxu0 0.0
  %3398 = vmatpush2.msra.mxu0 0.0
  %3399 = vmatprep.subr.mxu0 0.0
  %3400 = vmatpush2.msra.mxu0 0.0
  %3401 = vmatprep.subr.mxu0 0.0
  %3402 = vmatpush2.msra.mxu0 0.0
  %3403 = vmatprep.subr.mxu0 0.0
  %3404 = vmatpush2.msra.mxu0 0.0
  %3405 = vmatprep.subr.mxu0 0.0
  %3406 = vmatpush2.msra.mxu0 0.0
  %3407 = vmatprep.subr.mxu0 0.0
  %3408 = vmatpush2.msra.mxu0 0.0
  %3409 = vmatprep.subr.mxu0 0.0
  %3410 = vmatpush2.msra.mxu0 0.0
  %3411 = vmatprep.subr.mxu0 0.0
  %3412 = vmatpush2.msra.mxu0 0.0
  %3413 = vmatprep.subr.mxu0 0.0
  %3414 = vmatpush2.msra.mxu0 0.0
  %3415 = vmatprep.mubr.f32.mxu0 0.0
  %v3416 = vand.u32 %v2956, 4294901760
  %3417 = vmatmul.mubr.f32.gmra.mxu0 %v3416
  %v3418 = vpop.f32.mrf.mxu0
  %v3419 = vadd.f32 %v3345, %v3418
  %v3420 = vpop.f32.mrf.mxu0
  %v3421 = vadd.f32 %v3347, %v3420
  %3422 = vdwg.mxu0
  %v3423 = vadd.f32 %v2939, %v3419
  %v3424 = vadd.f32 %v2940, %v3421
  %3425 = vrot.lane.b32.xlu0 %v21, 112
  %v3426 = vpop.permute.xlu0 %3425
  %3427 = vrot.lane.b32.xlu0 %v22, 112
  %v3428 = vpop.permute.xlu0 %3427
  %vm3429 = vcmp.lt.s32.totalorder %v38, 112
  %v3430 = vsel %vm3429, %v3426, %v3428
  %v3431 = vsel %vm3429, %v3428, %v3426
  %s3432 = scalar_lea.vmem %s1, 112
  %v3433 = vld [vmem:[%s3432] sm:$0xff]
  %v3434 = vld [vmem:[%s3432 + $0x8] sm:$0xff]
  %v3435 = vmul.f32 %v3430, %v3433
  %v3436 = vmul.f32 %v3431, %v3434
  %s3437 = scalar_lea.vmem %s2, 56
  %v3438 = vld [vmem:[%s3437] sm:$0xff]
  %v3440 = vsel %vm80, %v3438, 0
  %3442 = vmatprep.subr.mxu0 0.0
  %3443 = vmatpush1.msra.mxu0 0.0
  %3444 = vmatprep.subr.mxu0 0.0
  %3445 = vmatpush1.msra.mxu0 0.0
  %3446 = vmatprep.subr.mxu0 0.0
  %3447 = vmatpush1.msra.mxu0 0.0
  %3448 = vmatprep.subr.mxu0 0.0
  %3449 = vmatpush1.msra.mxu0 0.0
  %3450 = vmatprep.subr.mxu0 0.0
  %3451 = vmatpush1.msra.mxu0 0.0
  %3452 = vmatprep.subr.mxu0 0.0
  %3453 = vmatpush1.msra.mxu0 0.0
  %3454 = vmatprep.subr.mxu0 0.0
  %3455 = vmatpush1.msra.mxu0 0.0
  %3456 = vmatprep.subr.mxu0 0.0
  %3457 = vmatpush1.msra.mxu0 0.0
  %3458 = vmatprep.subr.mxu0 0.0
  %3459 = vmatpush1.msra.mxu0 0.0
  %3460 = vmatprep.subr.mxu0 0.0
  %3461 = vmatpush1.msra.mxu0 0.0
  %3462 = vmatprep.subr.mxu0 0.0
  %3463 = vmatpush1.msra.mxu0 0.0
  %3464 = vmatprep.subr.mxu0 0.0
  %3465 = vmatpush1.msra.mxu0 0.0
  %3466 = vmatprep.subr.mxu0 0.0
  %3467 = vmatpush1.msra.mxu0 0.0
  %3468 = vmatprep.subr.mxu0 0.0
  %3469 = vmatpush1.msra.mxu0 0.0
  %3470 = vmatprep.subr.mxu0 0.0
  %3471 = vmatpush1.msra.mxu0 0.0
  %v3472 = vand.u32 %v3436, 4294901760
  %3473 = vmatprep.subr.mxu0 %v3472
  %v3474 = vand.u32 %v3435, 4294901760
  %3475 = vmatpush1.msra.mxu0 %v3474
  %3476 = vmatprep.subr.mxu0 0.0
  %3477 = vmatpush2.msra.mxu0 0.0
  %3478 = vmatprep.subr.mxu0 0.0
  %3479 = vmatpush2.msra.mxu0 0.0
  %3480 = vmatprep.subr.mxu0 0.0
  %3481 = vmatpush2.msra.mxu0 0.0
  %3482 = vmatprep.subr.mxu0 0.0
  %3483 = vmatpush2.msra.mxu0 0.0
  %3484 = vmatprep.subr.mxu0 0.0
  %3485 = vmatpush2.msra.mxu0 0.0
  %3486 = vmatprep.subr.mxu0 0.0
  %3487 = vmatpush2.msra.mxu0 0.0
  %3488 = vmatprep.subr.mxu0 0.0
  %3489 = vmatpush2.msra.mxu0 0.0
  %3490 = vmatprep.subr.mxu0 0.0
  %3491 = vmatpush2.msra.mxu0 0.0
  %3492 = vmatprep.subr.mxu0 0.0
  %3493 = vmatpush2.msra.mxu0 0.0
  %3494 = vmatprep.subr.mxu0 0.0
  %3495 = vmatpush2.msra.mxu0 0.0
  %3496 = vmatprep.subr.mxu0 0.0
  %3497 = vmatpush2.msra.mxu0 0.0
  %3498 = vmatprep.subr.mxu0 0.0
  %3499 = vmatpush2.msra.mxu0 0.0
  %3500 = vmatprep.subr.mxu0 0.0
  %3501 = vmatpush2.msra.mxu0 0.0
  %3502 = vmatprep.subr.mxu0 0.0
  %3503 = vmatpush2.msra.mxu0 0.0
  %3504 = vmatprep.subr.mxu0 0.0
  %3505 = vmatpush2.msra.mxu0 0.0
  %3506 = vmatprep.subr.mxu0 0.0
  %3507 = vmatpush2.msra.mxu0 0.0
  %3508 = vmatprep.mubr.f32.mxu0 0.0
  %v3509 = vand.u32 %v3440, 4294901760
  %v3510 = vsub.f32 %v3440, %v3509
  %v3511 = vand.u32 %v3510, 4294901760
  %v3512 = vsub.f32 %v3510, %v3511
  %v3513 = vand.u32 %v3512, 4294901760
  %3514 = vmatmul.mubr.f32.gmra.mxu0 %v3513
  %v3515 = vpop.f32.mrf.mxu0
  %v3516 = vadd.f32 0.0, %v3515
  %v3517 = vpop.f32.mrf.mxu0
  %v3518 = vadd.f32 0.0, %v3517
  %3519 = vdwg.mxu0
  %3520 = vmatprep.subr.mxu0 0.0
  %3521 = vmatpush1.msra.mxu0 0.0
  %3522 = vmatprep.subr.mxu0 0.0
  %3523 = vmatpush1.msra.mxu0 0.0
  %3524 = vmatprep.subr.mxu0 0.0
  %3525 = vmatpush1.msra.mxu0 0.0
  %3526 = vmatprep.subr.mxu0 0.0
  %3527 = vmatpush1.msra.mxu0 0.0
  %3528 = vmatprep.subr.mxu0 0.0
  %3529 = vmatpush1.msra.mxu0 0.0
  %3530 = vmatprep.subr.mxu0 0.0
  %3531 = vmatpush1.msra.mxu0 0.0
  %3532 = vmatprep.subr.mxu0 0.0
  %3533 = vmatpush1.msra.mxu0 0.0
  %3534 = vmatprep.subr.mxu0 0.0
  %3535 = vmatpush1.msra.mxu0 0.0
  %3536 = vmatprep.subr.mxu0 0.0
  %3537 = vmatpush1.msra.mxu0 0.0
  %3538 = vmatprep.subr.mxu0 0.0
  %3539 = vmatpush1.msra.mxu0 0.0
  %3540 = vmatprep.subr.mxu0 0.0
  %3541 = vmatpush1.msra.mxu0 0.0
  %3542 = vmatprep.subr.mxu0 0.0
  %3543 = vmatpush1.msra.mxu0 0.0
  %3544 = vmatprep.subr.mxu0 0.0
  %3545 = vmatpush1.msra.mxu0 0.0
  %3546 = vmatprep.subr.mxu0 0.0
  %3547 = vmatpush1.msra.mxu0 0.0
  %3548 = vmatprep.subr.mxu0 0.0
  %3549 = vmatpush1.msra.mxu0 0.0
  %v3550 = vand.u32 %v3436, 4294901760
  %v3551 = vsub.f32 %v3436, %v3550
  %v3552 = vand.u32 %v3551, 4294901760
  %v3553 = vsub.f32 %v3551, %v3552
  %v3554 = vand.u32 %v3553, 4294901760
  %3555 = vmatprep.subr.mxu0 %v3554
  %v3556 = vand.u32 %v3435, 4294901760
  %v3557 = vsub.f32 %v3435, %v3556
  %v3558 = vand.u32 %v3557, 4294901760
  %v3559 = vsub.f32 %v3557, %v3558
  %v3560 = vand.u32 %v3559, 4294901760
  %3561 = vmatpush1.msra.mxu0 %v3560
  %3562 = vmatprep.subr.mxu0 0.0
  %3563 = vmatpush2.msra.mxu0 0.0
  %3564 = vmatprep.subr.mxu0 0.0
  %3565 = vmatpush2.msra.mxu0 0.0
  %3566 = vmatprep.subr.mxu0 0.0
  %3567 = vmatpush2.msra.mxu0 0.0
  %3568 = vmatprep.subr.mxu0 0.0
  %3569 = vmatpush2.msra.mxu0 0.0
  %3570 = vmatprep.subr.mxu0 0.0
  %3571 = vmatpush2.msra.mxu0 0.0
  %3572 = vmatprep.subr.mxu0 0.0
  %3573 = vmatpush2.msra.mxu0 0.0
  %3574 = vmatprep.subr.mxu0 0.0
  %3575 = vmatpush2.msra.mxu0 0.0
  %3576 = vmatprep.subr.mxu0 0.0
  %3577 = vmatpush2.msra.mxu0 0.0
  %3578 = vmatprep.subr.mxu0 0.0
  %3579 = vmatpush2.msra.mxu0 0.0
  %3580 = vmatprep.subr.mxu0 0.0
  %3581 = vmatpush2.msra.mxu0 0.0
  %3582 = vmatprep.subr.mxu0 0.0
  %3583 = vmatpush2.msra.mxu0 0.0
  %3584 = vmatprep.subr.mxu0 0.0
  %3585 = vmatpush2.msra.mxu0 0.0
  %3586 = vmatprep.subr.mxu0 0.0
  %3587 = vmatpush2.msra.mxu0 0.0
  %3588 = vmatprep.subr.mxu0 0.0
  %3589 = vmatpush2.msra.mxu0 0.0
  %3590 = vmatprep.subr.mxu0 0.0
  %3591 = vmatpush2.msra.mxu0 0.0
  %3592 = vmatprep.subr.mxu0 0.0
  %3593 = vmatpush2.msra.mxu0 0.0
  %3594 = vmatprep.mubr.f32.mxu0 0.0
  %v3595 = vand.u32 %v3440, 4294901760
  %3596 = vmatmul.mubr.f32.gmra.mxu0 %v3595
  %v3597 = vpop.f32.mrf.mxu0
  %v3598 = vadd.f32 %v3516, %v3597
  %v3599 = vpop.f32.mrf.mxu0
  %v3600 = vadd.f32 %v3518, %v3599
  %3601 = vdwg.mxu0
  %3602 = vmatprep.subr.mxu0 0.0
  %3603 = vmatpush1.msra.mxu0 0.0
  %3604 = vmatprep.subr.mxu0 0.0
  %3605 = vmatpush1.msra.mxu0 0.0
  %3606 = vmatprep.subr.mxu0 0.0
  %3607 = vmatpush1.msra.mxu0 0.0
  %3608 = vmatprep.subr.mxu0 0.0
  %3609 = vmatpush1.msra.mxu0 0.0
  %3610 = vmatprep.subr.mxu0 0.0
  %3611 = vmatpush1.msra.mxu0 0.0
  %3612 = vmatprep.subr.mxu0 0.0
  %3613 = vmatpush1.msra.mxu0 0.0
  %3614 = vmatprep.subr.mxu0 0.0
  %3615 = vmatpush1.msra.mxu0 0.0
  %3616 = vmatprep.subr.mxu0 0.0
  %3617 = vmatpush1.msra.mxu0 0.0
  %3618 = vmatprep.subr.mxu0 0.0
  %3619 = vmatpush1.msra.mxu0 0.0
  %3620 = vmatprep.subr.mxu0 0.0
  %3621 = vmatpush1.msra.mxu0 0.0
  %3622 = vmatprep.subr.mxu0 0.0
  %3623 = vmatpush1.msra.mxu0 0.0
  %3624 = vmatprep.subr.mxu0 0.0
  %3625 = vmatpush1.msra.mxu0 0.0
  %3626 = vmatprep.subr.mxu0 0.0
  %3627 = vmatpush1.msra.mxu0 0.0
  %3628 = vmatprep.subr.mxu0 0.0
  %3629 = vmatpush1.msra.mxu0 0.0
  %3630 = vmatprep.subr.mxu0 0.0
  %3631 = vmatpush1.msra.mxu0 0.0
  %v3632 = vand.u32 %v3436, 4294901760
  %v3633 = vsub.f32 %v3436, %v3632
  %3634 = vmatprep.subr.mxu0 %v3633
  %v3635 = vand.u32 %v3435, 4294901760
  %v3636 = vsub.f32 %v3435, %v3635
  %3637 = vmatpush1.msra.mxu0 %v3636
  %3638 = vmatprep.subr.mxu0 0.0
  %3639 = vmatpush2.msra.mxu0 0.0
  %3640 = vmatprep.subr.mxu0 0.0
  %3641 = vmatpush2.msra.mxu0 0.0
  %3642 = vmatprep.subr.mxu0 0.0
  %3643 = vmatpush2.msra.mxu0 0.0
  %3644 = vmatprep.subr.mxu0 0.0
  %3645 = vmatpush2.msra.mxu0 0.0
  %3646 = vmatprep.subr.mxu0 0.0
  %3647 = vmatpush2.msra.mxu0 0.0
  %3648 = vmatprep.subr.mxu0 0.0
  %3649 = vmatpush2.msra.mxu0 0.0
  %3650 = vmatprep.subr.mxu0 0.0
  %3651 = vmatpush2.msra.mxu0 0.0
  %3652 = vmatprep.subr.mxu0 0.0
  %3653 = vmatpush2.msra.mxu0 0.0
  %3654 = vmatprep.subr.mxu0 0.0
  %3655 = vmatpush2.msra.mxu0 0.0
  %3656 = vmatprep.subr.mxu0 0.0
  %3657 = vmatpush2.msra.mxu0 0.0
  %3658 = vmatprep.subr.mxu0 0.0
  %3659 = vmatpush2.msra.mxu0 0.0
  %3660 = vmatprep.subr.mxu0 0.0
  %3661 = vmatpush2.msra.mxu0 0.0
  %3662 = vmatprep.subr.mxu0 0.0
  %3663 = vmatpush2.msra.mxu0 0.0
  %3664 = vmatprep.subr.mxu0 0.0
  %3665 = vmatpush2.msra.mxu0 0.0
  %3666 = vmatprep.subr.mxu0 0.0
  %3667 = vmatpush2.msra.mxu0 0.0
  %3668 = vmatprep.subr.mxu0 0.0
  %3669 = vmatpush2.msra.mxu0 0.0
  %3670 = vmatprep.mubr.f32.mxu0 0.0
  %v3671 = vand.u32 %v3440, 4294901760
  %v3672 = vsub.f32 %v3440, %v3671
  %3673 = vmatmul.mubr.f32.gmra.mxu0 %v3672
  %v3674 = vpop.f32.mrf.mxu0
  %v3675 = vadd.f32 %v3598, %v3674
  %v3676 = vpop.f32.mrf.mxu0
  %v3677 = vadd.f32 %v3600, %v3676
  %3678 = vdwg.mxu0
  %3679 = vmatprep.subr.mxu0 0.0
  %3680 = vmatpush1.msra.mxu0 0.0
  %3681 = vmatprep.subr.mxu0 0.0
  %3682 = vmatpush1.msra.mxu0 0.0
  %3683 = vmatprep.subr.mxu0 0.0
  %3684 = vmatpush1.msra.mxu0 0.0
  %3685 = vmatprep.subr.mxu0 0.0
  %3686 = vmatpush1.msra.mxu0 0.0
  %3687 = vmatprep.subr.mxu0 0.0
  %3688 = vmatpush1.msra.mxu0 0.0
  %3689 = vmatprep.subr.mxu0 0.0
  %3690 = vmatpush1.msra.mxu0 0.0
  %3691 = vmatprep.subr.mxu0 0.0
  %3692 = vmatpush1.msra.mxu0 0.0
  %3693 = vmatprep.subr.mxu0 0.0
  %3694 = vmatpush1.msra.mxu0 0.0
  %3695 = vmatprep.subr.mxu0 0.0
  %3696 = vmatpush1.msra.mxu0 0.0
  %3697 = vmatprep.subr.mxu0 0.0
  %3698 = vmatpush1.msra.mxu0 0.0
  %3699 = vmatprep.subr.mxu0 0.0
  %3700 = vmatpush1.msra.mxu0 0.0
  %3701 = vmatprep.subr.mxu0 0.0
  %3702 = vmatpush1.msra.mxu0 0.0
  %3703 = vmatprep.subr.mxu0 0.0
  %3704 = vmatpush1.msra.mxu0 0.0
  %3705 = vmatprep.subr.mxu0 0.0
  %3706 = vmatpush1.msra.mxu0 0.0
  %3707 = vmatprep.subr.mxu0 0.0
  %3708 = vmatpush1.msra.mxu0 0.0
  %v3709 = vand.u32 %v3436, 4294901760
  %3710 = vmatprep.subr.mxu0 %v3709
  %v3711 = vand.u32 %v3435, 4294901760
  %3712 = vmatpush1.msra.mxu0 %v3711
  %3713 = vmatprep.subr.mxu0 0.0
  %3714 = vmatpush2.msra.mxu0 0.0
  %3715 = vmatprep.subr.mxu0 0.0
  %3716 = vmatpush2.msra.mxu0 0.0
  %3717 = vmatprep.subr.mxu0 0.0
  %3718 = vmatpush2.msra.mxu0 0.0
  %3719 = vmatprep.subr.mxu0 0.0
  %3720 = vmatpush2.msra.mxu0 0.0
  %3721 = vmatprep.subr.mxu0 0.0
  %3722 = vmatpush2.msra.mxu0 0.0
  %3723 = vmatprep.subr.mxu0 0.0
  %3724 = vmatpush2.msra.mxu0 0.0
  %3725 = vmatprep.subr.mxu0 0.0
  %3726 = vmatpush2.msra.mxu0 0.0
  %3727 = vmatprep.subr.mxu0 0.0
  %3728 = vmatpush2.msra.mxu0 0.0
  %3729 = vmatprep.subr.mxu0 0.0
  %3730 = vmatpush2.msra.mxu0 0.0
  %3731 = vmatprep.subr.mxu0 0.0
  %3732 = vmatpush2.msra.mxu0 0.0
  %3733 = vmatprep.subr.mxu0 0.0
  %3734 = vmatpush2.msra.mxu0 0.0
  %3735 = vmatprep.subr.mxu0 0.0
  %3736 = vmatpush2.msra.mxu0 0.0
  %3737 = vmatprep.subr.mxu0 0.0
  %3738 = vmatpush2.msra.mxu0 0.0
  %3739 = vmatprep.subr.mxu0 0.0
  %3740 = vmatpush2.msra.mxu0 0.0
  %3741 = vmatprep.subr.mxu0 0.0
  %3742 = vmatpush2.msra.mxu0 0.0
  %3743 = vmatprep.subr.mxu0 0.0
  %3744 = vmatpush2.msra.mxu0 0.0
  %3745 = vmatprep.mubr.f32.mxu0 0.0
  %v3746 = vand.u32 %v3440, 4294901760
  %v3747 = vsub.f32 %v3440, %v3746
  %v3748 = vand.u32 %v3747, 4294901760
  %3749 = vmatmul.mubr.f32.gmra.mxu0 %v3748
  %v3750 = vpop.f32.mrf.mxu0
  %v3751 = vadd.f32 %v3675, %v3750
  %v3752 = vpop.f32.mrf.mxu0
  %v3753 = vadd.f32 %v3677, %v3752
  %3754 = vdwg.mxu0
  %3755 = vmatprep.subr.mxu0 0.0
  %3756 = vmatpush1.msra.mxu0 0.0
  %3757 = vmatprep.subr.mxu0 0.0
  %3758 = vmatpush1.msra.mxu0 0.0
  %3759 = vmatprep.subr.mxu0 0.0
  %3760 = vmatpush1.msra.mxu0 0.0
  %3761 = vmatprep.subr.mxu0 0.0
  %3762 = vmatpush1.msra.mxu0 0.0
  %3763 = vmatprep.subr.mxu0 0.0
  %3764 = vmatpush1.msra.mxu0 0.0
  %3765 = vmatprep.subr.mxu0 0.0
  %3766 = vmatpush1.msra.mxu0 0.0
  %3767 = vmatprep.subr.mxu0 0.0
  %3768 = vmatpush1.msra.mxu0 0.0
  %3769 = vmatprep.subr.mxu0 0.0
  %3770 = vmatpush1.msra.mxu0 0.0
  %3771 = vmatprep.subr.mxu0 0.0
  %3772 = vmatpush1.msra.mxu0 0.0
  %3773 = vmatprep.subr.mxu0 0.0
  %3774 = vmatpush1.msra.mxu0 0.0
  %3775 = vmatprep.subr.mxu0 0.0
  %3776 = vmatpush1.msra.mxu0 0.0
  %3777 = vmatprep.subr.mxu0 0.0
  %3778 = vmatpush1.msra.mxu0 0.0
  %3779 = vmatprep.subr.mxu0 0.0
  %3780 = vmatpush1.msra.mxu0 0.0
  %3781 = vmatprep.subr.mxu0 0.0
  %3782 = vmatpush1.msra.mxu0 0.0
  %3783 = vmatprep.subr.mxu0 0.0
  %3784 = vmatpush1.msra.mxu0 0.0
  %v3785 = vand.u32 %v3436, 4294901760
  %v3786 = vsub.f32 %v3436, %v3785
  %v3787 = vand.u32 %v3786, 4294901760
  %3788 = vmatprep.subr.mxu0 %v3787
  %v3789 = vand.u32 %v3435, 4294901760
  %v3790 = vsub.f32 %v3435, %v3789
  %v3791 = vand.u32 %v3790, 4294901760
  %3792 = vmatpush1.msra.mxu0 %v3791
  %3793 = vmatprep.subr.mxu0 0.0
  %3794 = vmatpush2.msra.mxu0 0.0
  %3795 = vmatprep.subr.mxu0 0.0
  %3796 = vmatpush2.msra.mxu0 0.0
  %3797 = vmatprep.subr.mxu0 0.0
  %3798 = vmatpush2.msra.mxu0 0.0
  %3799 = vmatprep.subr.mxu0 0.0
  %3800 = vmatpush2.msra.mxu0 0.0
  %3801 = vmatprep.subr.mxu0 0.0
  %3802 = vmatpush2.msra.mxu0 0.0
  %3803 = vmatprep.subr.mxu0 0.0
  %3804 = vmatpush2.msra.mxu0 0.0
  %3805 = vmatprep.subr.mxu0 0.0
  %3806 = vmatpush2.msra.mxu0 0.0
  %3807 = vmatprep.subr.mxu0 0.0
  %3808 = vmatpush2.msra.mxu0 0.0
  %3809 = vmatprep.subr.mxu0 0.0
  %3810 = vmatpush2.msra.mxu0 0.0
  %3811 = vmatprep.subr.mxu0 0.0
  %3812 = vmatpush2.msra.mxu0 0.0
  %3813 = vmatprep.subr.mxu0 0.0
  %3814 = vmatpush2.msra.mxu0 0.0
  %3815 = vmatprep.subr.mxu0 0.0
  %3816 = vmatpush2.msra.mxu0 0.0
  %3817 = vmatprep.subr.mxu0 0.0
  %3818 = vmatpush2.msra.mxu0 0.0
  %3819 = vmatprep.subr.mxu0 0.0
  %3820 = vmatpush2.msra.mxu0 0.0
  %3821 = vmatprep.subr.mxu0 0.0
  %3822 = vmatpush2.msra.mxu0 0.0
  %3823 = vmatprep.subr.mxu0 0.0
  %3824 = vmatpush2.msra.mxu0 0.0
  %3825 = vmatprep.mubr.f32.mxu0 0.0
  %v3826 = vand.u32 %v3440, 4294901760
  %3827 = vmatmul.mubr.f32.gmra.mxu0 %v3826
  %v3828 = vpop.f32.mrf.mxu0
  %v3829 = vadd.f32 %v3751, %v3828
  %v3830 = vpop.f32.mrf.mxu0
  %v3831 = vadd.f32 %v3753, %v3830
  %3832 = vdwg.mxu0
  %3833 = vmatprep.subr.mxu0 0.0
  %3834 = vmatpush1.msra.mxu0 0.0
  %3835 = vmatprep.subr.mxu0 0.0
  %3836 = vmatpush1.msra.mxu0 0.0
  %3837 = vmatprep.subr.mxu0 0.0
  %3838 = vmatpush1.msra.mxu0 0.0
  %3839 = vmatprep.subr.mxu0 0.0
  %3840 = vmatpush1.msra.mxu0 0.0
  %3841 = vmatprep.subr.mxu0 0.0
  %3842 = vmatpush1.msra.mxu0 0.0
  %3843 = vmatprep.subr.mxu0 0.0
  %3844 = vmatpush1.msra.mxu0 0.0
  %3845 = vmatprep.subr.mxu0 0.0
  %3846 = vmatpush1.msra.mxu0 0.0
  %3847 = vmatprep.subr.mxu0 0.0
  %3848 = vmatpush1.msra.mxu0 0.0
  %3849 = vmatprep.subr.mxu0 0.0
  %3850 = vmatpush1.msra.mxu0 0.0
  %3851 = vmatprep.subr.mxu0 0.0
  %3852 = vmatpush1.msra.mxu0 0.0
  %3853 = vmatprep.subr.mxu0 0.0
  %3854 = vmatpush1.msra.mxu0 0.0
  %3855 = vmatprep.subr.mxu0 0.0
  %3856 = vmatpush1.msra.mxu0 0.0
  %3857 = vmatprep.subr.mxu0 0.0
  %3858 = vmatpush1.msra.mxu0 0.0
  %3859 = vmatprep.subr.mxu0 0.0
  %3860 = vmatpush1.msra.mxu0 0.0
  %3861 = vmatprep.subr.mxu0 0.0
  %3862 = vmatpush1.msra.mxu0 0.0
  %v3863 = vand.u32 %v3436, 4294901760
  %3864 = vmatprep.subr.mxu0 %v3863
  %v3865 = vand.u32 %v3435, 4294901760
  %3866 = vmatpush1.msra.mxu0 %v3865
  %3867 = vmatprep.subr.mxu0 0.0
  %3868 = vmatpush2.msra.mxu0 0.0
  %3869 = vmatprep.subr.mxu0 0.0
  %3870 = vmatpush2.msra.mxu0 0.0
  %3871 = vmatprep.subr.mxu0 0.0
  %3872 = vmatpush2.msra.mxu0 0.0
  %3873 = vmatprep.subr.mxu0 0.0
  %3874 = vmatpush2.msra.mxu0 0.0
  %3875 = vmatprep.subr.mxu0 0.0
  %3876 = vmatpush2.msra.mxu0 0.0
  %3877 = vmatprep.subr.mxu0 0.0
  %3878 = vmatpush2.msra.mxu0 0.0
  %3879 = vmatprep.subr.mxu0 0.0
  %3880 = vmatpush2.msra.mxu0 0.0
  %3881 = vmatprep.subr.mxu0 0.0
  %3882 = vmatpush2.msra.mxu0 0.0
  %3883 = vmatprep.subr.mxu0 0.0
  %3884 = vmatpush2.msra.mxu0 0.0
  %3885 = vmatprep.subr.mxu0 0.0
  %3886 = vmatpush2.msra.mxu0 0.0
  %3887 = vmatprep.subr.mxu0 0.0
  %3888 = vmatpush2.msra.mxu0 0.0
  %3889 = vmatprep.subr.mxu0 0.0
  %3890 = vmatpush2.msra.mxu0 0.0
  %3891 = vmatprep.subr.mxu0 0.0
  %3892 = vmatpush2.msra.mxu0 0.0
  %3893 = vmatprep.subr.mxu0 0.0
  %3894 = vmatpush2.msra.mxu0 0.0
  %3895 = vmatprep.subr.mxu0 0.0
  %3896 = vmatpush2.msra.mxu0 0.0
  %3897 = vmatprep.subr.mxu0 0.0
  %3898 = vmatpush2.msra.mxu0 0.0
  %3899 = vmatprep.mubr.f32.mxu0 0.0
  %v3900 = vand.u32 %v3440, 4294901760
  %3901 = vmatmul.mubr.f32.gmra.mxu0 %v3900
  %v3902 = vpop.f32.mrf.mxu0
  %v3903 = vadd.f32 %v3829, %v3902
  %v3904 = vpop.f32.mrf.mxu0
  %v3905 = vadd.f32 %v3831, %v3904
  %3906 = vdwg.mxu0
  %v3907 = vadd.f32 %v3423, %v3903
  %v3908 = vadd.f32 %v3424, %v3905
  %3909 = vrot.lane.b32.xlu0 %v21, 111
  %v3910 = vpop.permute.xlu0 %3909
  %3911 = vrot.lane.b32.xlu0 %v22, 111
  %v3912 = vpop.permute.xlu0 %3911
  %vm3913 = vcmp.lt.s32.totalorder %v38, 111
  %v3914 = vsel %vm3913, %v3910, %v3912
  %v3915 = vsel %vm3913, %v3912, %v3910
  %s3916 = scalar_lea.vmem %s1, 128
  %v3917 = vld [vmem:[%s3916] sm:$0xff]
  %v3918 = vld [vmem:[%s3916 + $0x8] sm:$0xff]
  %v3919 = vmul.f32 %v3914, %v3917
  %v3920 = vmul.f32 %v3915, %v3918
  %s3921 = scalar_lea.vmem %s2, 64
  %v3922 = vld [vmem:[%s3921] sm:$0xff]
  %v3924 = vsel %vm80, %v3922, 0
  %3926 = vmatprep.subr.mxu0 0.0
  %3927 = vmatpush1.msra.mxu0 0.0
  %3928 = vmatprep.subr.mxu0 0.0
  %3929 = vmatpush1.msra.mxu0 0.0
  %3930 = vmatprep.subr.mxu0 0.0
  %3931 = vmatpush1.msra.mxu0 0.0
  %3932 = vmatprep.subr.mxu0 0.0
  %3933 = vmatpush1.msra.mxu0 0.0
  %3934 = vmatprep.subr.mxu0 0.0
  %3935 = vmatpush1.msra.mxu0 0.0
  %3936 = vmatprep.subr.mxu0 0.0
  %3937 = vmatpush1.msra.mxu0 0.0
  %3938 = vmatprep.subr.mxu0 0.0
  %3939 = vmatpush1.msra.mxu0 0.0
  %3940 = vmatprep.subr.mxu0 0.0
  %3941 = vmatpush1.msra.mxu0 0.0
  %3942 = vmatprep.subr.mxu0 0.0
  %3943 = vmatpush1.msra.mxu0 0.0
  %3944 = vmatprep.subr.mxu0 0.0
  %3945 = vmatpush1.msra.mxu0 0.0
  %3946 = vmatprep.subr.mxu0 0.0
  %3947 = vmatpush1.msra.mxu0 0.0
  %3948 = vmatprep.subr.mxu0 0.0
  %3949 = vmatpush1.msra.mxu0 0.0
  %3950 = vmatprep.subr.mxu0 0.0
  %3951 = vmatpush1.msra.mxu0 0.0
  %3952 = vmatprep.subr.mxu0 0.0
  %3953 = vmatpush1.msra.mxu0 0.0
  %3954 = vmatprep.subr.mxu0 0.0
  %3955 = vmatpush1.msra.mxu0 0.0
  %v3956 = vand.u32 %v3920, 4294901760
  %3957 = vmatprep.subr.mxu0 %v3956
  %v3958 = vand.u32 %v3919, 4294901760
  %3959 = vmatpush1.msra.mxu0 %v3958
  %3960 = vmatprep.subr.mxu0 0.0
  %3961 = vmatpush2.msra.mxu0 0.0
  %3962 = vmatprep.subr.mxu0 0.0
  %3963 = vmatpush2.msra.mxu0 0.0
  %3964 = vmatprep.subr.mxu0 0.0
  %3965 = vmatpush2.msra.mxu0 0.0
  %3966 = vmatprep.subr.mxu0 0.0
  %3967 = vmatpush2.msra.mxu0 0.0
  %3968 = vmatprep.subr.mxu0 0.0
  %3969 = vmatpush2.msra.mxu0 0.0
  %3970 = vmatprep.subr.mxu0 0.0
  %3971 = vmatpush2.msra.mxu0 0.0
  %3972 = vmatprep.subr.mxu0 0.0
  %3973 = vmatpush2.msra.mxu0 0.0
  %3974 = vmatprep.subr.mxu0 0.0
  %3975 = vmatpush2.msra.mxu0 0.0
  %3976 = vmatprep.subr.mxu0 0.0
  %3977 = vmatpush2.msra.mxu0 0.0
  %3978 = vmatprep.subr.mxu0 0.0
  %3979 = vmatpush2.msra.mxu0 0.0
  %3980 = vmatprep.subr.mxu0 0.0
  %3981 = vmatpush2.msra.mxu0 0.0
  %3982 = vmatprep.subr.mxu0 0.0
  %3983 = vmatpush2.msra.mxu0 0.0
  %3984 = vmatprep.subr.mxu0 0.0
  %3985 = vmatpush2.msra.mxu0 0.0
  %3986 = vmatprep.subr.mxu0 0.0
  %3987 = vmatpush2.msra.mxu0 0.0
  %3988 = vmatprep.subr.mxu0 0.0
  %3989 = vmatpush2.msra.mxu0 0.0
  %3990 = vmatprep.subr.mxu0 0.0
  %3991 = vmatpush2.msra.mxu0 0.0
  %3992 = vmatprep.mubr.f32.mxu0 0.0
  %v3993 = vand.u32 %v3924, 4294901760
  %v3994 = vsub.f32 %v3924, %v3993
  %v3995 = vand.u32 %v3994, 4294901760
  %v3996 = vsub.f32 %v3994, %v3995
  %v3997 = vand.u32 %v3996, 4294901760
  %3998 = vmatmul.mubr.f32.gmra.mxu0 %v3997
  %v3999 = vpop.f32.mrf.mxu0
  %v4000 = vadd.f32 0.0, %v3999
  %v4001 = vpop.f32.mrf.mxu0
  %v4002 = vadd.f32 0.0, %v4001
  %4003 = vdwg.mxu0
  %4004 = vmatprep.subr.mxu0 0.0
  %4005 = vmatpush1.msra.mxu0 0.0
  %4006 = vmatprep.subr.mxu0 0.0
  %4007 = vmatpush1.msra.mxu0 0.0
  %4008 = vmatprep.subr.mxu0 0.0
  %4009 = vmatpush1.msra.mxu0 0.0
  %4010 = vmatprep.subr.mxu0 0.0
  %4011 = vmatpush1.msra.mxu0 0.0
  %4012 = vmatprep.subr.mxu0 0.0
  %4013 = vmatpush1.msra.mxu0 0.0
  %4014 = vmatprep.subr.mxu0 0.0
  %4015 = vmatpush1.msra.mxu0 0.0
  %4016 = vmatprep.subr.mxu0 0.0
  %4017 = vmatpush1.msra.mxu0 0.0
  %4018 = vmatprep.subr.mxu0 0.0
  %4019 = vmatpush1.msra.mxu0 0.0
  %4020 = vmatprep.subr.mxu0 0.0
  %4021 = vmatpush1.msra.mxu0 0.0
  %4022 = vmatprep.subr.mxu0 0.0
  %4023 = vmatpush1.msra.mxu0 0.0
  %4024 = vmatprep.subr.mxu0 0.0
  %4025 = vmatpush1.msra.mxu0 0.0
  %4026 = vmatprep.subr.mxu0 0.0
  %4027 = vmatpush1.msra.mxu0 0.0
  %4028 = vmatprep.subr.mxu0 0.0
  %4029 = vmatpush1.msra.mxu0 0.0
  %4030 = vmatprep.subr.mxu0 0.0
  %4031 = vmatpush1.msra.mxu0 0.0
  %4032 = vmatprep.subr.mxu0 0.0
  %4033 = vmatpush1.msra.mxu0 0.0
  %v4034 = vand.u32 %v3920, 4294901760
  %v4035 = vsub.f32 %v3920, %v4034
  %v4036 = vand.u32 %v4035, 4294901760
  %v4037 = vsub.f32 %v4035, %v4036
  %v4038 = vand.u32 %v4037, 4294901760
  %4039 = vmatprep.subr.mxu0 %v4038
  %v4040 = vand.u32 %v3919, 4294901760
  %v4041 = vsub.f32 %v3919, %v4040
  %v4042 = vand.u32 %v4041, 4294901760
  %v4043 = vsub.f32 %v4041, %v4042
  %v4044 = vand.u32 %v4043, 4294901760
  %4045 = vmatpush1.msra.mxu0 %v4044
  %4046 = vmatprep.subr.mxu0 0.0
  %4047 = vmatpush2.msra.mxu0 0.0
  %4048 = vmatprep.subr.mxu0 0.0
  %4049 = vmatpush2.msra.mxu0 0.0
  %4050 = vmatprep.subr.mxu0 0.0
  %4051 = vmatpush2.msra.mxu0 0.0
  %4052 = vmatprep.subr.mxu0 0.0
  %4053 = vmatpush2.msra.mxu0 0.0
  %4054 = vmatprep.subr.mxu0 0.0
  %4055 = vmatpush2.msra.mxu0 0.0
  %4056 = vmatprep.subr.mxu0 0.0
  %4057 = vmatpush2.msra.mxu0 0.0
  %4058 = vmatprep.subr.mxu0 0.0
  %4059 = vmatpush2.msra.mxu0 0.0
  %4060 = vmatprep.subr.mxu0 0.0
  %4061 = vmatpush2.msra.mxu0 0.0
  %4062 = vmatprep.subr.mxu0 0.0
  %4063 = vmatpush2.msra.mxu0 0.0
  %4064 = vmatprep.subr.mxu0 0.0
  %4065 = vmatpush2.msra.mxu0 0.0
  %4066 = vmatprep.subr.mxu0 0.0
  %4067 = vmatpush2.msra.mxu0 0.0
  %4068 = vmatprep.subr.mxu0 0.0
  %4069 = vmatpush2.msra.mxu0 0.0
  %4070 = vmatprep.subr.mxu0 0.0
  %4071 = vmatpush2.msra.mxu0 0.0
  %4072 = vmatprep.subr.mxu0 0.0
  %4073 = vmatpush2.msra.mxu0 0.0
  %4074 = vmatprep.subr.mxu0 0.0
  %4075 = vmatpush2.msra.mxu0 0.0
  %4076 = vmatprep.subr.mxu0 0.0
  %4077 = vmatpush2.msra.mxu0 0.0
  %4078 = vmatprep.mubr.f32.mxu0 0.0
  %v4079 = vand.u32 %v3924, 4294901760
  %4080 = vmatmul.mubr.f32.gmra.mxu0 %v4079
  %v4081 = vpop.f32.mrf.mxu0
  %v4082 = vadd.f32 %v4000, %v4081
  %v4083 = vpop.f32.mrf.mxu0
  %v4084 = vadd.f32 %v4002, %v4083
  %4085 = vdwg.mxu0
  %4086 = vmatprep.subr.mxu0 0.0
  %4087 = vmatpush1.msra.mxu0 0.0
  %4088 = vmatprep.subr.mxu0 0.0
  %4089 = vmatpush1.msra.mxu0 0.0
  %4090 = vmatprep.subr.mxu0 0.0
  %4091 = vmatpush1.msra.mxu0 0.0
  %4092 = vmatprep.subr.mxu0 0.0
  %4093 = vmatpush1.msra.mxu0 0.0
  %4094 = vmatprep.subr.mxu0 0.0
  %4095 = vmatpush1.msra.mxu0 0.0
  %4096 = vmatprep.subr.mxu0 0.0
  %4097 = vmatpush1.msra.mxu0 0.0
  %4098 = vmatprep.subr.mxu0 0.0
  %4099 = vmatpush1.msra.mxu0 0.0
  %4100 = vmatprep.subr.mxu0 0.0
  %4101 = vmatpush1.msra.mxu0 0.0
  %4102 = vmatprep.subr.mxu0 0.0
  %4103 = vmatpush1.msra.mxu0 0.0
  %4104 = vmatprep.subr.mxu0 0.0
  %4105 = vmatpush1.msra.mxu0 0.0
  %4106 = vmatprep.subr.mxu0 0.0
  %4107 = vmatpush1.msra.mxu0 0.0
  %4108 = vmatprep.subr.mxu0 0.0
  %4109 = vmatpush1.msra.mxu0 0.0
  %4110 = vmatprep.subr.mxu0 0.0
  %4111 = vmatpush1.msra.mxu0 0.0
  %4112 = vmatprep.subr.mxu0 0.0
  %4113 = vmatpush1.msra.mxu0 0.0
  %4114 = vmatprep.subr.mxu0 0.0
  %4115 = vmatpush1.msra.mxu0 0.0
  %v4116 = vand.u32 %v3920, 4294901760
  %v4117 = vsub.f32 %v3920, %v4116
  %4118 = vmatprep.subr.mxu0 %v4117
  %v4119 = vand.u32 %v3919, 4294901760
  %v4120 = vsub.f32 %v3919, %v4119
  %4121 = vmatpush1.msra.mxu0 %v4120
  %4122 = vmatprep.subr.mxu0 0.0
  %4123 = vmatpush2.msra.mxu0 0.0
  %4124 = vmatprep.subr.mxu0 0.0
  %4125 = vmatpush2.msra.mxu0 0.0
  %4126 = vmatprep.subr.mxu0 0.0
  %4127 = vmatpush2.msra.mxu0 0.0
  %4128 = vmatprep.subr.mxu0 0.0
  %4129 = vmatpush2.msra.mxu0 0.0
  %4130 = vmatprep.subr.mxu0 0.0
  %4131 = vmatpush2.msra.mxu0 0.0
  %4132 = vmatprep.subr.mxu0 0.0
  %4133 = vmatpush2.msra.mxu0 0.0
  %4134 = vmatprep.subr.mxu0 0.0
  %4135 = vmatpush2.msra.mxu0 0.0
  %4136 = vmatprep.subr.mxu0 0.0
  %4137 = vmatpush2.msra.mxu0 0.0
  %4138 = vmatprep.subr.mxu0 0.0
  %4139 = vmatpush2.msra.mxu0 0.0
  %4140 = vmatprep.subr.mxu0 0.0
  %4141 = vmatpush2.msra.mxu0 0.0
  %4142 = vmatprep.subr.mxu0 0.0
  %4143 = vmatpush2.msra.mxu0 0.0
  %4144 = vmatprep.subr.mxu0 0.0
  %4145 = vmatpush2.msra.mxu0 0.0
  %4146 = vmatprep.subr.mxu0 0.0
  %4147 = vmatpush2.msra.mxu0 0.0
  %4148 = vmatprep.subr.mxu0 0.0
  %4149 = vmatpush2.msra.mxu0 0.0
  %4150 = vmatprep.subr.mxu0 0.0
  %4151 = vmatpush2.msra.mxu0 0.0
  %4152 = vmatprep.subr.mxu0 0.0
  %4153 = vmatpush2.msra.mxu0 0.0
  %4154 = vmatprep.mubr.f32.mxu0 0.0
  %v4155 = vand.u32 %v3924, 4294901760
  %v4156 = vsub.f32 %v3924, %v4155
  %4157 = vmatmul.mubr.f32.gmra.mxu0 %v4156
  %v4158 = vpop.f32.mrf.mxu0
  %v4159 = vadd.f32 %v4082, %v4158
  %v4160 = vpop.f32.mrf.mxu0
  %v4161 = vadd.f32 %v4084, %v4160
  %4162 = vdwg.mxu0
  %4163 = vmatprep.subr.mxu0 0.0
  %4164 = vmatpush1.msra.mxu0 0.0
  %4165 = vmatprep.subr.mxu0 0.0
  %4166 = vmatpush1.msra.mxu0 0.0
  %4167 = vmatprep.subr.mxu0 0.0
  %4168 = vmatpush1.msra.mxu0 0.0
  %4169 = vmatprep.subr.mxu0 0.0
  %4170 = vmatpush1.msra.mxu0 0.0
  %4171 = vmatprep.subr.mxu0 0.0
  %4172 = vmatpush1.msra.mxu0 0.0
  %4173 = vmatprep.subr.mxu0 0.0
  %4174 = vmatpush1.msra.mxu0 0.0
  %4175 = vmatprep.subr.mxu0 0.0
  %4176 = vmatpush1.msra.mxu0 0.0
  %4177 = vmatprep.subr.mxu0 0.0
  %4178 = vmatpush1.msra.mxu0 0.0
  %4179 = vmatprep.subr.mxu0 0.0
  %4180 = vmatpush1.msra.mxu0 0.0
  %4181 = vmatprep.subr.mxu0 0.0
  %4182 = vmatpush1.msra.mxu0 0.0
  %4183 = vmatprep.subr.mxu0 0.0
  %4184 = vmatpush1.msra.mxu0 0.0
  %4185 = vmatprep.subr.mxu0 0.0
  %4186 = vmatpush1.msra.mxu0 0.0
  %4187 = vmatprep.subr.mxu0 0.0
  %4188 = vmatpush1.msra.mxu0 0.0
  %4189 = vmatprep.subr.mxu0 0.0
  %4190 = vmatpush1.msra.mxu0 0.0
  %4191 = vmatprep.subr.mxu0 0.0
  %4192 = vmatpush1.msra.mxu0 0.0
  %v4193 = vand.u32 %v3920, 4294901760
  %4194 = vmatprep.subr.mxu0 %v4193
  %v4195 = vand.u32 %v3919, 4294901760
  %4196 = vmatpush1.msra.mxu0 %v4195
  %4197 = vmatprep.subr.mxu0 0.0
  %4198 = vmatpush2.msra.mxu0 0.0
  %4199 = vmatprep.subr.mxu0 0.0
  %4200 = vmatpush2.msra.mxu0 0.0
  %4201 = vmatprep.subr.mxu0 0.0
  %4202 = vmatpush2.msra.mxu0 0.0
  %4203 = vmatprep.subr.mxu0 0.0
  %4204 = vmatpush2.msra.mxu0 0.0
  %4205 = vmatprep.subr.mxu0 0.0
  %4206 = vmatpush2.msra.mxu0 0.0
  %4207 = vmatprep.subr.mxu0 0.0
  %4208 = vmatpush2.msra.mxu0 0.0
  %4209 = vmatprep.subr.mxu0 0.0
  %4210 = vmatpush2.msra.mxu0 0.0
  %4211 = vmatprep.subr.mxu0 0.0
  %4212 = vmatpush2.msra.mxu0 0.0
  %4213 = vmatprep.subr.mxu0 0.0
  %4214 = vmatpush2.msra.mxu0 0.0
  %4215 = vmatprep.subr.mxu0 0.0
  %4216 = vmatpush2.msra.mxu0 0.0
  %4217 = vmatprep.subr.mxu0 0.0
  %4218 = vmatpush2.msra.mxu0 0.0
  %4219 = vmatprep.subr.mxu0 0.0
  %4220 = vmatpush2.msra.mxu0 0.0
  %4221 = vmatprep.subr.mxu0 0.0
  %4222 = vmatpush2.msra.mxu0 0.0
  %4223 = vmatprep.subr.mxu0 0.0
  %4224 = vmatpush2.msra.mxu0 0.0
  %4225 = vmatprep.subr.mxu0 0.0
  %4226 = vmatpush2.msra.mxu0 0.0
  %4227 = vmatprep.subr.mxu0 0.0
  %4228 = vmatpush2.msra.mxu0 0.0
  %4229 = vmatprep.mubr.f32.mxu0 0.0
  %v4230 = vand.u32 %v3924, 4294901760
  %v4231 = vsub.f32 %v3924, %v4230
  %v4232 = vand.u32 %v4231, 4294901760
  %4233 = vmatmul.mubr.f32.gmra.mxu0 %v4232
  %v4234 = vpop.f32.mrf.mxu0
  %v4235 = vadd.f32 %v4159, %v4234
  %v4236 = vpop.f32.mrf.mxu0
  %v4237 = vadd.f32 %v4161, %v4236
  %4238 = vdwg.mxu0
  %4239 = vmatprep.subr.mxu0 0.0
  %4240 = vmatpush1.msra.mxu0 0.0
  %4241 = vmatprep.subr.mxu0 0.0
  %4242 = vmatpush1.msra.mxu0 0.0
  %4243 = vmatprep.subr.mxu0 0.0
  %4244 = vmatpush1.msra.mxu0 0.0
  %4245 = vmatprep.subr.mxu0 0.0
  %4246 = vmatpush1.msra.mxu0 0.0
  %4247 = vmatprep.subr.mxu0 0.0
  %4248 = vmatpush1.msra.mxu0 0.0
  %4249 = vmatprep.subr.mxu0 0.0
  %4250 = vmatpush1.msra.mxu0 0.0
  %4251 = vmatprep.subr.mxu0 0.0
  %4252 = vmatpush1.msra.mxu0 0.0
  %4253 = vmatprep.subr.mxu0 0.0
  %4254 = vmatpush1.msra.mxu0 0.0
  %4255 = vmatprep.subr.mxu0 0.0
  %4256 = vmatpush1.msra.mxu0 0.0
  %4257 = vmatprep.subr.mxu0 0.0
  %4258 = vmatpush1.msra.mxu0 0.0
  %4259 = vmatprep.subr.mxu0 0.0
  %4260 = vmatpush1.msra.mxu0 0.0
  %4261 = vmatprep.subr.mxu0 0.0
  %4262 = vmatpush1.msra.mxu0 0.0
  %4263 = vmatprep.subr.mxu0 0.0
  %4264 = vmatpush1.msra.mxu0 0.0
  %4265 = vmatprep.subr.mxu0 0.0
  %4266 = vmatpush1.msra.mxu0 0.0
  %4267 = vmatprep.subr.mxu0 0.0
  %4268 = vmatpush1.msra.mxu0 0.0
  %v4269 = vand.u32 %v3920, 4294901760
  %v4270 = vsub.f32 %v3920, %v4269
  %v4271 = vand.u32 %v4270, 4294901760
  %4272 = vmatprep.subr.mxu0 %v4271
  %v4273 = vand.u32 %v3919, 4294901760
  %v4274 = vsub.f32 %v3919, %v4273
  %v4275 = vand.u32 %v4274, 4294901760
  %4276 = vmatpush1.msra.mxu0 %v4275
  %4277 = vmatprep.subr.mxu0 0.0
  %4278 = vmatpush2.msra.mxu0 0.0
  %4279 = vmatprep.subr.mxu0 0.0
  %4280 = vmatpush2.msra.mxu0 0.0
  %4281 = vmatprep.subr.mxu0 0.0
  %4282 = vmatpush2.msra.mxu0 0.0
  %4283 = vmatprep.subr.mxu0 0.0
  %4284 = vmatpush2.msra.mxu0 0.0
  %4285 = vmatprep.subr.mxu0 0.0
  %4286 = vmatpush2.msra.mxu0 0.0
  %4287 = vmatprep.subr.mxu0 0.0
  %4288 = vmatpush2.msra.mxu0 0.0
  %4289 = vmatprep.subr.mxu0 0.0
  %4290 = vmatpush2.msra.mxu0 0.0
  %4291 = vmatprep.subr.mxu0 0.0
  %4292 = vmatpush2.msra.mxu0 0.0
  %4293 = vmatprep.subr.mxu0 0.0
  %4294 = vmatpush2.msra.mxu0 0.0
  %4295 = vmatprep.subr.mxu0 0.0
  %4296 = vmatpush2.msra.mxu0 0.0
  %4297 = vmatprep.subr.mxu0 0.0
  %4298 = vmatpush2.msra.mxu0 0.0
  %4299 = vmatprep.subr.mxu0 0.0
  %4300 = vmatpush2.msra.mxu0 0.0
  %4301 = vmatprep.subr.mxu0 0.0
  %4302 = vmatpush2.msra.mxu0 0.0
  %4303 = vmatprep.subr.mxu0 0.0
  %4304 = vmatpush2.msra.mxu0 0.0
  %4305 = vmatprep.subr.mxu0 0.0
  %4306 = vmatpush2.msra.mxu0 0.0
  %4307 = vmatprep.subr.mxu0 0.0
  %4308 = vmatpush2.msra.mxu0 0.0
  %4309 = vmatprep.mubr.f32.mxu0 0.0
  %v4310 = vand.u32 %v3924, 4294901760
  %4311 = vmatmul.mubr.f32.gmra.mxu0 %v4310
  %v4312 = vpop.f32.mrf.mxu0
  %v4313 = vadd.f32 %v4235, %v4312
  %v4314 = vpop.f32.mrf.mxu0
  %v4315 = vadd.f32 %v4237, %v4314
  %4316 = vdwg.mxu0
  %4317 = vmatprep.subr.mxu0 0.0
  %4318 = vmatpush1.msra.mxu0 0.0
  %4319 = vmatprep.subr.mxu0 0.0
  %4320 = vmatpush1.msra.mxu0 0.0
  %4321 = vmatprep.subr.mxu0 0.0
  %4322 = vmatpush1.msra.mxu0 0.0
  %4323 = vmatprep.subr.mxu0 0.0
  %4324 = vmatpush1.msra.mxu0 0.0
  %4325 = vmatprep.subr.mxu0 0.0
  %4326 = vmatpush1.msra.mxu0 0.0
  %4327 = vmatprep.subr.mxu0 0.0
  %4328 = vmatpush1.msra.mxu0 0.0
  %4329 = vmatprep.subr.mxu0 0.0
  %4330 = vmatpush1.msra.mxu0 0.0
  %4331 = vmatprep.subr.mxu0 0.0
  %4332 = vmatpush1.msra.mxu0 0.0
  %4333 = vmatprep.subr.mxu0 0.0
  %4334 = vmatpush1.msra.mxu0 0.0
  %4335 = vmatprep.subr.mxu0 0.0
  %4336 = vmatpush1.msra.mxu0 0.0
  %4337 = vmatprep.subr.mxu0 0.0
  %4338 = vmatpush1.msra.mxu0 0.0
  %4339 = vmatprep.subr.mxu0 0.0
  %4340 = vmatpush1.msra.mxu0 0.0
  %4341 = vmatprep.subr.mxu0 0.0
  %4342 = vmatpush1.msra.mxu0 0.0
  %4343 = vmatprep.subr.mxu0 0.0
  %4344 = vmatpush1.msra.mxu0 0.0
  %4345 = vmatprep.subr.mxu0 0.0
  %4346 = vmatpush1.msra.mxu0 0.0
  %v4347 = vand.u32 %v3920, 4294901760
  %4348 = vmatprep.subr.mxu0 %v4347
  %v4349 = vand.u32 %v3919, 4294901760
  %4350 = vmatpush1.msra.mxu0 %v4349
  %4351 = vmatprep.subr.mxu0 0.0
  %4352 = vmatpush2.msra.mxu0 0.0
  %4353 = vmatprep.subr.mxu0 0.0
  %4354 = vmatpush2.msra.mxu0 0.0
  %4355 = vmatprep.subr.mxu0 0.0
  %4356 = vmatpush2.msra.mxu0 0.0
  %4357 = vmatprep.subr.mxu0 0.0
  %4358 = vmatpush2.msra.mxu0 0.0
  %4359 = vmatprep.subr.mxu0 0.0
  %4360 = vmatpush2.msra.mxu0 0.0
  %4361 = vmatprep.subr.mxu0 0.0
  %4362 = vmatpush2.msra.mxu0 0.0
  %4363 = vmatprep.subr.mxu0 0.0
  %4364 = vmatpush2.msra.mxu0 0.0
  %4365 = vmatprep.subr.mxu0 0.0
  %4366 = vmatpush2.msra.mxu0 0.0
  %4367 = vmatprep.subr.mxu0 0.0
  %4368 = vmatpush2.msra.mxu0 0.0
  %4369 = vmatprep.subr.mxu0 0.0
  %4370 = vmatpush2.msra.mxu0 0.0
  %4371 = vmatprep.subr.mxu0 0.0
  %4372 = vmatpush2.msra.mxu0 0.0
  %4373 = vmatprep.subr.mxu0 0.0
  %4374 = vmatpush2.msra.mxu0 0.0
  %4375 = vmatprep.subr.mxu0 0.0
  %4376 = vmatpush2.msra.mxu0 0.0
  %4377 = vmatprep.subr.mxu0 0.0
  %4378 = vmatpush2.msra.mxu0 0.0
  %4379 = vmatprep.subr.mxu0 0.0
  %4380 = vmatpush2.msra.mxu0 0.0
  %4381 = vmatprep.subr.mxu0 0.0
  %4382 = vmatpush2.msra.mxu0 0.0
  %4383 = vmatprep.mubr.f32.mxu0 0.0
  %v4384 = vand.u32 %v3924, 4294901760
  %4385 = vmatmul.mubr.f32.gmra.mxu0 %v4384
  %v4386 = vpop.f32.mrf.mxu0
  %v4387 = vadd.f32 %v4313, %v4386
  %v4388 = vpop.f32.mrf.mxu0
  %v4389 = vadd.f32 %v4315, %v4388
  %4390 = vdwg.mxu0
  %v4391 = vadd.f32 %v3907, %v4387
  %v4392 = vadd.f32 %v3908, %v4389
  %v4393 = vld [vmem:[%s3] sm:$0xff]
  %v4394 = vadd.f32 %v4391, %v4392
  %4395 = vadd.xlane.f32.xlu0 %v4394
  %v4396 = vpop.xlane.xlu0 %4395
  %v4397 = vmul.f32 %v4391, %v4391
  %v4398 = vmul.f32 %v4392, %v4392
  %v4399 = vadd.f32 %v4397, %v4398
  %4400 = vadd.xlane.f32.xlu0 %v4399
  %v4401 = vpop.xlane.xlu0 %4400
  %vm4402 = vcmask 7168
  %v4403 = vsel %vm4402, %v4396, %v4401
  %v4405 = vsel %vm80, %v53, 0
  %4407 = vmatprep.subr.mxu0 0.0
  %4408 = vmatpush1.msra.mxu0 0.0
  %4409 = vmatprep.subr.mxu0 0.0
  %4410 = vmatpush1.msra.mxu0 0.0
  %4411 = vmatprep.subr.mxu0 0.0
  %4412 = vmatpush1.msra.mxu0 0.0
  %4413 = vmatprep.subr.mxu0 0.0
  %4414 = vmatpush1.msra.mxu0 0.0
  %4415 = vmatprep.subr.mxu0 0.0
  %4416 = vmatpush1.msra.mxu0 0.0
  %4417 = vmatprep.subr.mxu0 0.0
  %4418 = vmatpush1.msra.mxu0 0.0
  %4419 = vmatprep.subr.mxu0 0.0
  %4420 = vmatpush1.msra.mxu0 0.0
  %4421 = vmatprep.subr.mxu0 0.0
  %4422 = vmatpush1.msra.mxu0 0.0
  %4423 = vmatprep.subr.mxu0 0.0
  %4424 = vmatpush1.msra.mxu0 0.0
  %4425 = vmatprep.subr.mxu0 0.0
  %4426 = vmatpush1.msra.mxu0 0.0
  %4427 = vmatprep.subr.mxu0 0.0
  %4428 = vmatpush1.msra.mxu0 0.0
  %4429 = vmatprep.subr.mxu0 0.0
  %4430 = vmatpush1.msra.mxu0 0.0
  %4431 = vmatprep.subr.mxu0 0.0
  %4432 = vmatpush1.msra.mxu0 0.0
  %4433 = vmatprep.subr.mxu0 0.0
  %4434 = vmatpush1.msra.mxu0 0.0
  %4435 = vmatprep.subr.mxu0 0.0
  %4436 = vmatpush1.msra.mxu0 0.0
  %4437 = vmatprep.subr.mxu0 0.0
  %v4438 = vand.u32 %v4403, 4294901760
  %4439 = vmatpush1.msra.mxu0 %v4438
  %4440 = vmatprep.subr.mxu0 0.0
  %4441 = vmatpush2.msra.mxu0 0.0
  %4442 = vmatprep.subr.mxu0 0.0
  %4443 = vmatpush2.msra.mxu0 0.0
  %4444 = vmatprep.subr.mxu0 0.0
  %4445 = vmatpush2.msra.mxu0 0.0
  %4446 = vmatprep.subr.mxu0 0.0
  %4447 = vmatpush2.msra.mxu0 0.0
  %4448 = vmatprep.subr.mxu0 0.0
  %4449 = vmatpush2.msra.mxu0 0.0
  %4450 = vmatprep.subr.mxu0 0.0
  %4451 = vmatpush2.msra.mxu0 0.0
  %4452 = vmatprep.subr.mxu0 0.0
  %4453 = vmatpush2.msra.mxu0 0.0
  %4454 = vmatprep.subr.mxu0 0.0
  %4455 = vmatpush2.msra.mxu0 0.0
  %4456 = vmatprep.subr.mxu0 0.0
  %4457 = vmatpush2.msra.mxu0 0.0
  %4458 = vmatprep.subr.mxu0 0.0
  %4459 = vmatpush2.msra.mxu0 0.0
  %4460 = vmatprep.subr.mxu0 0.0
  %4461 = vmatpush2.msra.mxu0 0.0
  %4462 = vmatprep.subr.mxu0 0.0
  %4463 = vmatpush2.msra.mxu0 0.0
  %4464 = vmatprep.subr.mxu0 0.0
  %4465 = vmatpush2.msra.mxu0 0.0
  %4466 = vmatprep.subr.mxu0 0.0
  %4467 = vmatpush2.msra.mxu0 0.0
  %4468 = vmatprep.subr.mxu0 0.0
  %4469 = vmatpush2.msra.mxu0 0.0
  %4470 = vmatprep.subr.mxu0 0.0
  %4471 = vmatpush2.msra.mxu0 0.0
  %4472 = vmatprep.mubr.f32.mxu0 0.0
  %v4473 = vand.u32 %v4405, 4294901760
  %v4474 = vsub.f32 %v4405, %v4473
  %v4475 = vand.u32 %v4474, 4294901760
  %v4476 = vsub.f32 %v4474, %v4475
  %v4477 = vand.u32 %v4476, 4294901760
  %4478 = vmatmul.mubr.f32.gmra.mxu0 %v4477
  %v4479 = vpop.f32.mrf.mxu0
  %v4480 = vadd.f32 0.0, %v4479
  %v4481 = vpop.f32.mrf.mxu0
  %4482 = vdwg.mxu0
  %4483 = vmatprep.subr.mxu0 0.0
  %4484 = vmatpush1.msra.mxu0 0.0
  %4485 = vmatprep.subr.mxu0 0.0
  %4486 = vmatpush1.msra.mxu0 0.0
  %4487 = vmatprep.subr.mxu0 0.0
  %4488 = vmatpush1.msra.mxu0 0.0
  %4489 = vmatprep.subr.mxu0 0.0
  %4490 = vmatpush1.msra.mxu0 0.0
  %4491 = vmatprep.subr.mxu0 0.0
  %4492 = vmatpush1.msra.mxu0 0.0
  %4493 = vmatprep.subr.mxu0 0.0
  %4494 = vmatpush1.msra.mxu0 0.0
  %4495 = vmatprep.subr.mxu0 0.0
  %4496 = vmatpush1.msra.mxu0 0.0
  %4497 = vmatprep.subr.mxu0 0.0
  %4498 = vmatpush1.msra.mxu0 0.0
  %4499 = vmatprep.subr.mxu0 0.0
  %4500 = vmatpush1.msra.mxu0 0.0
  %4501 = vmatprep.subr.mxu0 0.0
  %4502 = vmatpush1.msra.mxu0 0.0
  %4503 = vmatprep.subr.mxu0 0.0
  %4504 = vmatpush1.msra.mxu0 0.0
  %4505 = vmatprep.subr.mxu0 0.0
  %4506 = vmatpush1.msra.mxu0 0.0
  %4507 = vmatprep.subr.mxu0 0.0
  %4508 = vmatpush1.msra.mxu0 0.0
  %4509 = vmatprep.subr.mxu0 0.0
  %4510 = vmatpush1.msra.mxu0 0.0
  %4511 = vmatprep.subr.mxu0 0.0
  %4512 = vmatpush1.msra.mxu0 0.0
  %4513 = vmatprep.subr.mxu0 0.0
  %v4514 = vand.u32 %v4403, 4294901760
  %v4515 = vsub.f32 %v4403, %v4514
  %v4516 = vand.u32 %v4515, 4294901760
  %v4517 = vsub.f32 %v4515, %v4516
  %v4518 = vand.u32 %v4517, 4294901760
  %4519 = vmatpush1.msra.mxu0 %v4518
  %4520 = vmatprep.subr.mxu0 0.0
  %4521 = vmatpush2.msra.mxu0 0.0
  %4522 = vmatprep.subr.mxu0 0.0
  %4523 = vmatpush2.msra.mxu0 0.0
  %4524 = vmatprep.subr.mxu0 0.0
  %4525 = vmatpush2.msra.mxu0 0.0
  %4526 = vmatprep.subr.mxu0 0.0
  %4527 = vmatpush2.msra.mxu0 0.0
  %4528 = vmatprep.subr.mxu0 0.0
  %4529 = vmatpush2.msra.mxu0 0.0
  %4530 = vmatprep.subr.mxu0 0.0
  %4531 = vmatpush2.msra.mxu0 0.0
  %4532 = vmatprep.subr.mxu0 0.0
  %4533 = vmatpush2.msra.mxu0 0.0
  %4534 = vmatprep.subr.mxu0 0.0
  %4535 = vmatpush2.msra.mxu0 0.0
  %4536 = vmatprep.subr.mxu0 0.0
  %4537 = vmatpush2.msra.mxu0 0.0
  %4538 = vmatprep.subr.mxu0 0.0
  %4539 = vmatpush2.msra.mxu0 0.0
  %4540 = vmatprep.subr.mxu0 0.0
  %4541 = vmatpush2.msra.mxu0 0.0
  %4542 = vmatprep.subr.mxu0 0.0
  %4543 = vmatpush2.msra.mxu0 0.0
  %4544 = vmatprep.subr.mxu0 0.0
  %4545 = vmatpush2.msra.mxu0 0.0
  %4546 = vmatprep.subr.mxu0 0.0
  %4547 = vmatpush2.msra.mxu0 0.0
  %4548 = vmatprep.subr.mxu0 0.0
  %4549 = vmatpush2.msra.mxu0 0.0
  %4550 = vmatprep.subr.mxu0 0.0
  %4551 = vmatpush2.msra.mxu0 0.0
  %4552 = vmatprep.mubr.f32.mxu0 0.0
  %v4553 = vand.u32 %v4405, 4294901760
  %4554 = vmatmul.mubr.f32.gmra.mxu0 %v4553
  %v4555 = vpop.f32.mrf.mxu0
  %v4556 = vadd.f32 %v4480, %v4555
  %v4557 = vpop.f32.mrf.mxu0
  %4558 = vdwg.mxu0
  %4559 = vmatprep.subr.mxu0 0.0
  %4560 = vmatpush1.msra.mxu0 0.0
  %4561 = vmatprep.subr.mxu0 0.0
  %4562 = vmatpush1.msra.mxu0 0.0
  %4563 = vmatprep.subr.mxu0 0.0
  %4564 = vmatpush1.msra.mxu0 0.0
  %4565 = vmatprep.subr.mxu0 0.0
  %4566 = vmatpush1.msra.mxu0 0.0
  %4567 = vmatprep.subr.mxu0 0.0
  %4568 = vmatpush1.msra.mxu0 0.0
  %4569 = vmatprep.subr.mxu0 0.0
  %4570 = vmatpush1.msra.mxu0 0.0
  %4571 = vmatprep.subr.mxu0 0.0
  %4572 = vmatpush1.msra.mxu0 0.0
  %4573 = vmatprep.subr.mxu0 0.0
  %4574 = vmatpush1.msra.mxu0 0.0
  %4575 = vmatprep.subr.mxu0 0.0
  %4576 = vmatpush1.msra.mxu0 0.0
  %4577 = vmatprep.subr.mxu0 0.0
  %4578 = vmatpush1.msra.mxu0 0.0
  %4579 = vmatprep.subr.mxu0 0.0
  %4580 = vmatpush1.msra.mxu0 0.0
  %4581 = vmatprep.subr.mxu0 0.0
  %4582 = vmatpush1.msra.mxu0 0.0
  %4583 = vmatprep.subr.mxu0 0.0
  %4584 = vmatpush1.msra.mxu0 0.0
  %4585 = vmatprep.subr.mxu0 0.0
  %4586 = vmatpush1.msra.mxu0 0.0
  %4587 = vmatprep.subr.mxu0 0.0
  %4588 = vmatpush1.msra.mxu0 0.0
  %4589 = vmatprep.subr.mxu0 0.0
  %v4590 = vand.u32 %v4403, 4294901760
  %v4591 = vsub.f32 %v4403, %v4590
  %4592 = vmatpush1.msra.mxu0 %v4591
  %4593 = vmatprep.subr.mxu0 0.0
  %4594 = vmatpush2.msra.mxu0 0.0
  %4595 = vmatprep.subr.mxu0 0.0
  %4596 = vmatpush2.msra.mxu0 0.0
  %4597 = vmatprep.subr.mxu0 0.0
  %4598 = vmatpush2.msra.mxu0 0.0
  %4599 = vmatprep.subr.mxu0 0.0
  %4600 = vmatpush2.msra.mxu0 0.0
  %4601 = vmatprep.subr.mxu0 0.0
  %4602 = vmatpush2.msra.mxu0 0.0
  %4603 = vmatprep.subr.mxu0 0.0
  %4604 = vmatpush2.msra.mxu0 0.0
  %4605 = vmatprep.subr.mxu0 0.0
  %4606 = vmatpush2.msra.mxu0 0.0
  %4607 = vmatprep.subr.mxu0 0.0
  %4608 = vmatpush2.msra.mxu0 0.0
  %4609 = vmatprep.subr.mxu0 0.0
  %4610 = vmatpush2.msra.mxu0 0.0
  %4611 = vmatprep.subr.mxu0 0.0
  %4612 = vmatpush2.msra.mxu0 0.0
  %4613 = vmatprep.subr.mxu0 0.0
  %4614 = vmatpush2.msra.mxu0 0.0
  %4615 = vmatprep.subr.mxu0 0.0
  %4616 = vmatpush2.msra.mxu0 0.0
  %4617 = vmatprep.subr.mxu0 0.0
  %4618 = vmatpush2.msra.mxu0 0.0
  %4619 = vmatprep.subr.mxu0 0.0
  %4620 = vmatpush2.msra.mxu0 0.0
  %4621 = vmatprep.subr.mxu0 0.0
  %4622 = vmatpush2.msra.mxu0 0.0
  %4623 = vmatprep.subr.mxu0 0.0
  %4624 = vmatpush2.msra.mxu0 0.0
  %4625 = vmatprep.mubr.f32.mxu0 0.0
  %v4626 = vand.u32 %v4405, 4294901760
  %v4627 = vsub.f32 %v4405, %v4626
  %4628 = vmatmul.mubr.f32.gmra.mxu0 %v4627
  %v4629 = vpop.f32.mrf.mxu0
  %v4630 = vadd.f32 %v4556, %v4629
  %v4631 = vpop.f32.mrf.mxu0
  %4632 = vdwg.mxu0
  %4633 = vmatprep.subr.mxu0 0.0
  %4634 = vmatpush1.msra.mxu0 0.0
  %4635 = vmatprep.subr.mxu0 0.0
  %4636 = vmatpush1.msra.mxu0 0.0
  %4637 = vmatprep.subr.mxu0 0.0
  %4638 = vmatpush1.msra.mxu0 0.0
  %4639 = vmatprep.subr.mxu0 0.0
  %4640 = vmatpush1.msra.mxu0 0.0
  %4641 = vmatprep.subr.mxu0 0.0
  %4642 = vmatpush1.msra.mxu0 0.0
  %4643 = vmatprep.subr.mxu0 0.0
  %4644 = vmatpush1.msra.mxu0 0.0
  %4645 = vmatprep.subr.mxu0 0.0
  %4646 = vmatpush1.msra.mxu0 0.0
  %4647 = vmatprep.subr.mxu0 0.0
  %4648 = vmatpush1.msra.mxu0 0.0
  %4649 = vmatprep.subr.mxu0 0.0
  %4650 = vmatpush1.msra.mxu0 0.0
  %4651 = vmatprep.subr.mxu0 0.0
  %4652 = vmatpush1.msra.mxu0 0.0
  %4653 = vmatprep.subr.mxu0 0.0
  %4654 = vmatpush1.msra.mxu0 0.0
  %4655 = vmatprep.subr.mxu0 0.0
  %4656 = vmatpush1.msra.mxu0 0.0
  %4657 = vmatprep.subr.mxu0 0.0
  %4658 = vmatpush1.msra.mxu0 0.0
  %4659 = vmatprep.subr.mxu0 0.0
  %4660 = vmatpush1.msra.mxu0 0.0
  %4661 = vmatprep.subr.mxu0 0.0
  %4662 = vmatpush1.msra.mxu0 0.0
  %4663 = vmatprep.subr.mxu0 0.0
  %v4664 = vand.u32 %v4403, 4294901760
  %4665 = vmatpush1.msra.mxu0 %v4664
  %4666 = vmatprep.subr.mxu0 0.0
  %4667 = vmatpush2.msra.mxu0 0.0
  %4668 = vmatprep.subr.mxu0 0.0
  %4669 = vmatpush2.msra.mxu0 0.0
  %4670 = vmatprep.subr.mxu0 0.0
  %4671 = vmatpush2.msra.mxu0 0.0
  %4672 = vmatprep.subr.mxu0 0.0
  %4673 = vmatpush2.msra.mxu0 0.0
  %4674 = vmatprep.subr.mxu0 0.0
  %4675 = vmatpush2.msra.mxu0 0.0
  %4676 = vmatprep.subr.mxu0 0.0
  %4677 = vmatpush2.msra.mxu0 0.0
  %4678 = vmatprep.subr.mxu0 0.0
  %4679 = vmatpush2.msra.mxu0 0.0
  %4680 = vmatprep.subr.mxu0 0.0
  %4681 = vmatpush2.msra.mxu0 0.0
  %4682 = vmatprep.subr.mxu0 0.0
  %4683 = vmatpush2.msra.mxu0 0.0
  %4684 = vmatprep.subr.mxu0 0.0
  %4685 = vmatpush2.msra.mxu0 0.0
  %4686 = vmatprep.subr.mxu0 0.0
  %4687 = vmatpush2.msra.mxu0 0.0
  %4688 = vmatprep.subr.mxu0 0.0
  %4689 = vmatpush2.msra.mxu0 0.0
  %4690 = vmatprep.subr.mxu0 0.0
  %4691 = vmatpush2.msra.mxu0 0.0
  %4692 = vmatprep.subr.mxu0 0.0
  %4693 = vmatpush2.msra.mxu0 0.0
  %4694 = vmatprep.subr.mxu0 0.0
  %4695 = vmatpush2.msra.mxu0 0.0
  %4696 = vmatprep.subr.mxu0 0.0
  %4697 = vmatpush2.msra.mxu0 0.0
  %4698 = vmatprep.mubr.f32.mxu0 0.0
  %v4699 = vand.u32 %v4405, 4294901760
  %v4700 = vsub.f32 %v4405, %v4699
  %v4701 = vand.u32 %v4700, 4294901760
  %4702 = vmatmul.mubr.f32.gmra.mxu0 %v4701
  %v4703 = vpop.f32.mrf.mxu0
  %v4704 = vadd.f32 %v4630, %v4703
  %v4705 = vpop.f32.mrf.mxu0
  %4706 = vdwg.mxu0
  %4707 = vmatprep.subr.mxu0 0.0
  %4708 = vmatpush1.msra.mxu0 0.0
  %4709 = vmatprep.subr.mxu0 0.0
  %4710 = vmatpush1.msra.mxu0 0.0
  %4711 = vmatprep.subr.mxu0 0.0
  %4712 = vmatpush1.msra.mxu0 0.0
  %4713 = vmatprep.subr.mxu0 0.0
  %4714 = vmatpush1.msra.mxu0 0.0
  %4715 = vmatprep.subr.mxu0 0.0
  %4716 = vmatpush1.msra.mxu0 0.0
  %4717 = vmatprep.subr.mxu0 0.0
  %4718 = vmatpush1.msra.mxu0 0.0
  %4719 = vmatprep.subr.mxu0 0.0
  %4720 = vmatpush1.msra.mxu0 0.0
  %4721 = vmatprep.subr.mxu0 0.0
  %4722 = vmatpush1.msra.mxu0 0.0
  %4723 = vmatprep.subr.mxu0 0.0
  %4724 = vmatpush1.msra.mxu0 0.0
  %4725 = vmatprep.subr.mxu0 0.0
  %4726 = vmatpush1.msra.mxu0 0.0
  %4727 = vmatprep.subr.mxu0 0.0
  %4728 = vmatpush1.msra.mxu0 0.0
  %4729 = vmatprep.subr.mxu0 0.0
  %4730 = vmatpush1.msra.mxu0 0.0
  %4731 = vmatprep.subr.mxu0 0.0
  %4732 = vmatpush1.msra.mxu0 0.0
  %4733 = vmatprep.subr.mxu0 0.0
  %4734 = vmatpush1.msra.mxu0 0.0
  %4735 = vmatprep.subr.mxu0 0.0
  %4736 = vmatpush1.msra.mxu0 0.0
  %4737 = vmatprep.subr.mxu0 0.0
  %v4738 = vand.u32 %v4403, 4294901760
  %v4739 = vsub.f32 %v4403, %v4738
  %v4740 = vand.u32 %v4739, 4294901760
  %4741 = vmatpush1.msra.mxu0 %v4740
  %4742 = vmatprep.subr.mxu0 0.0
  %4743 = vmatpush2.msra.mxu0 0.0
  %4744 = vmatprep.subr.mxu0 0.0
  %4745 = vmatpush2.msra.mxu0 0.0
  %4746 = vmatprep.subr.mxu0 0.0
  %4747 = vmatpush2.msra.mxu0 0.0
  %4748 = vmatprep.subr.mxu0 0.0
  %4749 = vmatpush2.msra.mxu0 0.0
  %4750 = vmatprep.subr.mxu0 0.0
  %4751 = vmatpush2.msra.mxu0 0.0
  %4752 = vmatprep.subr.mxu0 0.0
  %4753 = vmatpush2.msra.mxu0 0.0
  %4754 = vmatprep.subr.mxu0 0.0
  %4755 = vmatpush2.msra.mxu0 0.0
  %4756 = vmatprep.subr.mxu0 0.0
  %4757 = vmatpush2.msra.mxu0 0.0
  %4758 = vmatprep.subr.mxu0 0.0
  %4759 = vmatpush2.msra.mxu0 0.0
  %4760 = vmatprep.subr.mxu0 0.0
  %4761 = vmatpush2.msra.mxu0 0.0
  %4762 = vmatprep.subr.mxu0 0.0
  %4763 = vmatpush2.msra.mxu0 0.0
  %4764 = vmatprep.subr.mxu0 0.0
  %4765 = vmatpush2.msra.mxu0 0.0
  %4766 = vmatprep.subr.mxu0 0.0
  %4767 = vmatpush2.msra.mxu0 0.0
  %4768 = vmatprep.subr.mxu0 0.0
  %4769 = vmatpush2.msra.mxu0 0.0
  %4770 = vmatprep.subr.mxu0 0.0
  %4771 = vmatpush2.msra.mxu0 0.0
  %4772 = vmatprep.subr.mxu0 0.0
  %4773 = vmatpush2.msra.mxu0 0.0
  %4774 = vmatprep.mubr.f32.mxu0 0.0
  %v4775 = vand.u32 %v4405, 4294901760
  %4776 = vmatmul.mubr.f32.gmra.mxu0 %v4775
  %v4777 = vpop.f32.mrf.mxu0
  %v4778 = vadd.f32 %v4704, %v4777
  %v4779 = vpop.f32.mrf.mxu0
  %4780 = vdwg.mxu0
  %4781 = vmatprep.subr.mxu0 0.0
  %4782 = vmatpush1.msra.mxu0 0.0
  %4783 = vmatprep.subr.mxu0 0.0
  %4784 = vmatpush1.msra.mxu0 0.0
  %4785 = vmatprep.subr.mxu0 0.0
  %4786 = vmatpush1.msra.mxu0 0.0
  %4787 = vmatprep.subr.mxu0 0.0
  %4788 = vmatpush1.msra.mxu0 0.0
  %4789 = vmatprep.subr.mxu0 0.0
  %4790 = vmatpush1.msra.mxu0 0.0
  %4791 = vmatprep.subr.mxu0 0.0
  %4792 = vmatpush1.msra.mxu0 0.0
  %4793 = vmatprep.subr.mxu0 0.0
  %4794 = vmatpush1.msra.mxu0 0.0
  %4795 = vmatprep.subr.mxu0 0.0
  %4796 = vmatpush1.msra.mxu0 0.0
  %4797 = vmatprep.subr.mxu0 0.0
  %4798 = vmatpush1.msra.mxu0 0.0
  %4799 = vmatprep.subr.mxu0 0.0
  %4800 = vmatpush1.msra.mxu0 0.0
  %4801 = vmatprep.subr.mxu0 0.0
  %4802 = vmatpush1.msra.mxu0 0.0
  %4803 = vmatprep.subr.mxu0 0.0
  %4804 = vmatpush1.msra.mxu0 0.0
  %4805 = vmatprep.subr.mxu0 0.0
  %4806 = vmatpush1.msra.mxu0 0.0
  %4807 = vmatprep.subr.mxu0 0.0
  %4808 = vmatpush1.msra.mxu0 0.0
  %4809 = vmatprep.subr.mxu0 0.0
  %4810 = vmatpush1.msra.mxu0 0.0
  %4811 = vmatprep.subr.mxu0 0.0
  %v4812 = vand.u32 %v4403, 4294901760
  %4813 = vmatpush1.msra.mxu0 %v4812
  %4814 = vmatprep.subr.mxu0 0.0
  %4815 = vmatpush2.msra.mxu0 0.0
  %4816 = vmatprep.subr.mxu0 0.0
  %4817 = vmatpush2.msra.mxu0 0.0
  %4818 = vmatprep.subr.mxu0 0.0
  %4819 = vmatpush2.msra.mxu0 0.0
  %4820 = vmatprep.subr.mxu0 0.0
  %4821 = vmatpush2.msra.mxu0 0.0
  %4822 = vmatprep.subr.mxu0 0.0
  %4823 = vmatpush2.msra.mxu0 0.0
  %4824 = vmatprep.subr.mxu0 0.0
  %4825 = vmatpush2.msra.mxu0 0.0
  %4826 = vmatprep.subr.mxu0 0.0
  %4827 = vmatpush2.msra.mxu0 0.0
  %4828 = vmatprep.subr.mxu0 0.0
  %4829 = vmatpush2.msra.mxu0 0.0
  %4830 = vmatprep.subr.mxu0 0.0
  %4831 = vmatpush2.msra.mxu0 0.0
  %4832 = vmatprep.subr.mxu0 0.0
  %4833 = vmatpush2.msra.mxu0 0.0
  %4834 = vmatprep.subr.mxu0 0.0
  %4835 = vmatpush2.msra.mxu0 0.0
  %4836 = vmatprep.subr.mxu0 0.0
  %4837 = vmatpush2.msra.mxu0 0.0
  %4838 = vmatprep.subr.mxu0 0.0
  %4839 = vmatpush2.msra.mxu0 0.0
  %4840 = vmatprep.subr.mxu0 0.0
  %4841 = vmatpush2.msra.mxu0 0.0
  %4842 = vmatprep.subr.mxu0 0.0
  %4843 = vmatpush2.msra.mxu0 0.0
  %4844 = vmatprep.subr.mxu0 0.0
  %4845 = vmatpush2.msra.mxu0 0.0
  %4846 = vmatprep.mubr.f32.mxu0 0.0
  %v4847 = vand.u32 %v4405, 4294901760
  %4848 = vmatmul.mubr.f32.gmra.mxu0 %v4847
  %v4849 = vpop.f32.mrf.mxu0
  %v4850 = vadd.f32 %v4778, %v4849
  %v4851 = vpop.f32.mrf.mxu0
  %4852 = vdwg.mxu0
  %v4853 = vmul.f32 %v4850, 0.001953125
  %v4854 = vmul.f32 %v4853, %v4853
  %4856 = vrot.lane.b32.xlu0 %v4854, 1
  %v4857 = vpop.permute.xlu0 %4856
  %v4859 = vsub.f32 %v4853, %v4857
  %v4860 = vadd.f32 %v4859, 1e-05
  %v4861 = vrsqrt.pop %v4860
  %4863 = vrot.lane.b32.xlu0 %v4393, 1
  %v4864 = vpop.permute.xlu0 %4863
  %v4866 = vmul.f32 %v4861, %v4864
  %4868 = vrot.lane.b32.xlu0 %v4866, 127
  %v4869 = vpop.permute.xlu0 %4868
  %v4871 = vmul.f32 %v4853, %v4869
  %4873 = vrot.lane.b32.xlu0 %v4871, 1
  %v4874 = vpop.permute.xlu0 %4873
  %v4876 = vsub.f32 %v4393, %v4874
  %4877 = vset.pattern.permute.xlu0 1
  %4878 = vperm.xlu0 %4877, %v4866
  %v4879 = vpop.permute.xlu0 %4878
  %v4881 = vmul.f32 %v4391, %v4879
  %v4882 = vmul.f32 %v4392, %v4879
  %4884 = vset.pattern.permute.xlu0 1
  %4885 = vperm.xlu0 %4884, %v4876
  %v4886 = vpop.permute.xlu0 %4885
  %v4888 = vadd.f32 %v4881, %v4886
  %v4889 = vadd.f32 %v4882, %v4886
  %s4890 = sld [smem:[#allocation2]]
  %vm4891 = vcmp.ge.f32.partialorder %v4888, 0.0
  %vm4892 = vcmp.ge.f32.partialorder %v4889, 0.0
  %v4893 = vstv %s4890
  %v4894 = vmul.f32 %v4893, %v4888
  %v4895 = vmul.f32 %v4893, %v4889
  %v4896 = vsel %vm4891, %v4888, %v4894
  %v4897 = vsel %vm4892, %v4889, %v4895
  %4898 = vrot.lane.b32.xlu0 %v4896, 17
  %v4899 = vpop.permute.xlu0 %4898
  %4900 = vrot.lane.b32.xlu0 %v4897, 17
  %v4901 = vpop.permute.xlu0 %4900
  %v4902 = vsel %vm58, %v4899, %v4901
  %v4903 = vsel %vm58, %v4901, %v4899
  %v4904 = vmul.f32 %v4903, %v61
  %v4905 = vmul.f32 %v4902, %v62
  %s4906 = scalar_lea.vmem %s2, 72
  %v4907 = vld [vmem:[%s4906] sm:$0xff]
  %4908 = vrot.lane.b32.xlu0 %v4896, 16
  %v4909 = vpop.permute.xlu0 %4908
  %4910 = vrot.lane.b32.xlu0 %v4897, 16
  %v4911 = vpop.permute.xlu0 %4910
  %v4912 = vsel %vm70, %v4909, %v4911
  %v4913 = vsel %vm70, %v4911, %v4909
  %v4914 = vmul.f32 %v4913, %v74
  %v4915 = vmul.f32 %v4912, %v75
  %s4916 = scalar_lea.vmem %s2, 80
  %v4917 = vld [vmem:[%s4916] sm:$0xff]
  %v4919 = vsel %vm80, %v4917, 0
  %4921 = vmatprep.subr.mxu0 0.0
  %4922 = vmatpush1.msra.mxu0 0.0
  %4923 = vmatprep.subr.mxu0 0.0
  %4924 = vmatpush1.msra.mxu0 0.0
  %4925 = vmatprep.subr.mxu0 0.0
  %4926 = vmatpush1.msra.mxu0 0.0
  %4927 = vmatprep.subr.mxu0 0.0
  %4928 = vmatpush1.msra.mxu0 0.0
  %4929 = vmatprep.subr.mxu0 0.0
  %4930 = vmatpush1.msra.mxu0 0.0
  %4931 = vmatprep.subr.mxu0 0.0
  %4932 = vmatpush1.msra.mxu0 0.0
  %4933 = vmatprep.subr.mxu0 0.0
  %4934 = vmatpush1.msra.mxu0 0.0
  %4935 = vmatprep.subr.mxu0 0.0
  %4936 = vmatpush1.msra.mxu0 0.0
  %4937 = vmatprep.subr.mxu0 0.0
  %4938 = vmatpush1.msra.mxu0 0.0
  %4939 = vmatprep.subr.mxu0 0.0
  %4940 = vmatpush1.msra.mxu0 0.0
  %4941 = vmatprep.subr.mxu0 0.0
  %4942 = vmatpush1.msra.mxu0 0.0
  %4943 = vmatprep.subr.mxu0 0.0
  %4944 = vmatpush1.msra.mxu0 0.0
  %4945 = vmatprep.subr.mxu0 0.0
  %4946 = vmatpush1.msra.mxu0 0.0
  %4947 = vmatprep.subr.mxu0 0.0
  %4948 = vmatpush1.msra.mxu0 0.0
  %4949 = vmatprep.subr.mxu0 0.0
  %4950 = vmatpush1.msra.mxu0 0.0
  %v4951 = vand.u32 %v4915, 4294901760
  %4952 = vmatprep.subr.mxu0 %v4951
  %v4953 = vand.u32 %v4914, 4294901760
  %4954 = vmatpush1.msra.mxu0 %v4953
  %4955 = vmatprep.subr.mxu0 0.0
  %4956 = vmatpush2.msra.mxu0 0.0
  %4957 = vmatprep.subr.mxu0 0.0
  %4958 = vmatpush2.msra.mxu0 0.0
  %4959 = vmatprep.subr.mxu0 0.0
  %4960 = vmatpush2.msra.mxu0 0.0
  %4961 = vmatprep.subr.mxu0 0.0
  %4962 = vmatpush2.msra.mxu0 0.0
  %4963 = vmatprep.subr.mxu0 0.0
  %4964 = vmatpush2.msra.mxu0 0.0
  %4965 = vmatprep.subr.mxu0 0.0
  %4966 = vmatpush2.msra.mxu0 0.0
  %4967 = vmatprep.subr.mxu0 0.0
  %4968 = vmatpush2.msra.mxu0 0.0
  %4969 = vmatprep.subr.mxu0 0.0
  %4970 = vmatpush2.msra.mxu0 0.0
  %4971 = vmatprep.subr.mxu0 0.0
  %4972 = vmatpush2.msra.mxu0 0.0
  %4973 = vmatprep.subr.mxu0 0.0
  %4974 = vmatpush2.msra.mxu0 0.0
  %4975 = vmatprep.subr.mxu0 0.0
  %4976 = vmatpush2.msra.mxu0 0.0
  %4977 = vmatprep.subr.mxu0 0.0
  %4978 = vmatpush2.msra.mxu0 0.0
  %4979 = vmatprep.subr.mxu0 0.0
  %4980 = vmatpush2.msra.mxu0 0.0
  %4981 = vmatprep.subr.mxu0 0.0
  %4982 = vmatpush2.msra.mxu0 0.0
  %4983 = vmatprep.subr.mxu0 0.0
  %4984 = vmatpush2.msra.mxu0 0.0
  %4985 = vmatprep.subr.mxu0 0.0
  %4986 = vmatpush2.msra.mxu0 0.0
  %4987 = vmatprep.mubr.f32.mxu0 0.0
  %v4988 = vand.u32 %v4919, 4294901760
  %v4989 = vsub.f32 %v4919, %v4988
  %v4990 = vand.u32 %v4989, 4294901760
  %v4991 = vsub.f32 %v4989, %v4990
  %v4992 = vand.u32 %v4991, 4294901760
  %4993 = vmatmul.mubr.f32.gmra.mxu0 %v4992
  %v4994 = vpop.f32.mrf.mxu0
  %v4995 = vadd.f32 0.0, %v4994
  %v4996 = vpop.f32.mrf.mxu0
  %v4997 = vadd.f32 0.0, %v4996
  %4998 = vdwg.mxu0
  %4999 = vmatprep.subr.mxu0 0.0
  %5000 = vmatpush1.msra.mxu0 0.0
  %5001 = vmatprep.subr.mxu0 0.0
  %5002 = vmatpush1.msra.mxu0 0.0
  %5003 = vmatprep.subr.mxu0 0.0
  %5004 = vmatpush1.msra.mxu0 0.0
  %5005 = vmatprep.subr.mxu0 0.0
  %5006 = vmatpush1.msra.mxu0 0.0
  %5007 = vmatprep.subr.mxu0 0.0
  %5008 = vmatpush1.msra.mxu0 0.0
  %5009 = vmatprep.subr.mxu0 0.0
  %5010 = vmatpush1.msra.mxu0 0.0
  %5011 = vmatprep.subr.mxu0 0.0
  %5012 = vmatpush1.msra.mxu0 0.0
  %5013 = vmatprep.subr.mxu0 0.0
  %5014 = vmatpush1.msra.mxu0 0.0
  %5015 = vmatprep.subr.mxu0 0.0
  %5016 = vmatpush1.msra.mxu0 0.0
  %5017 = vmatprep.subr.mxu0 0.0
  %5018 = vmatpush1.msra.mxu0 0.0
  %5019 = vmatprep.subr.mxu0 0.0
  %5020 = vmatpush1.msra.mxu0 0.0
  %5021 = vmatprep.subr.mxu0 0.0
  %5022 = vmatpush1.msra.mxu0 0.0
  %5023 = vmatprep.subr.mxu0 0.0
  %5024 = vmatpush1.msra.mxu0 0.0
  %5025 = vmatprep.subr.mxu0 0.0
  %5026 = vmatpush1.msra.mxu0 0.0
  %5027 = vmatprep.subr.mxu0 0.0
  %5028 = vmatpush1.msra.mxu0 0.0
  %v5029 = vand.u32 %v4915, 4294901760
  %v5030 = vsub.f32 %v4915, %v5029
  %v5031 = vand.u32 %v5030, 4294901760
  %v5032 = vsub.f32 %v5030, %v5031
  %v5033 = vand.u32 %v5032, 4294901760
  %5034 = vmatprep.subr.mxu0 %v5033
  %v5035 = vand.u32 %v4914, 4294901760
  %v5036 = vsub.f32 %v4914, %v5035
  %v5037 = vand.u32 %v5036, 4294901760
  %v5038 = vsub.f32 %v5036, %v5037
  %v5039 = vand.u32 %v5038, 4294901760
  %5040 = vmatpush1.msra.mxu0 %v5039
  %5041 = vmatprep.subr.mxu0 0.0
  %5042 = vmatpush2.msra.mxu0 0.0
  %5043 = vmatprep.subr.mxu0 0.0
  %5044 = vmatpush2.msra.mxu0 0.0
  %5045 = vmatprep.subr.mxu0 0.0
  %5046 = vmatpush2.msra.mxu0 0.0
  %5047 = vmatprep.subr.mxu0 0.0
  %5048 = vmatpush2.msra.mxu0 0.0
  %5049 = vmatprep.subr.mxu0 0.0
  %5050 = vmatpush2.msra.mxu0 0.0
  %5051 = vmatprep.subr.mxu0 0.0
  %5052 = vmatpush2.msra.mxu0 0.0
  %5053 = vmatprep.subr.mxu0 0.0
  %5054 = vmatpush2.msra.mxu0 0.0
  %5055 = vmatprep.subr.mxu0 0.0
  %5056 = vmatpush2.msra.mxu0 0.0
  %5057 = vmatprep.subr.mxu0 0.0
  %5058 = vmatpush2.msra.mxu0 0.0
  %5059 = vmatprep.subr.mxu0 0.0
  %5060 = vmatpush2.msra.mxu0 0.0
  %5061 = vmatprep.subr.mxu0 0.0
  %5062 = vmatpush2.msra.mxu0 0.0
  %5063 = vmatprep.subr.mxu0 0.0
  %5064 = vmatpush2.msra.mxu0 0.0
  %5065 = vmatprep.subr.mxu0 0.0
  %5066 = vmatpush2.msra.mxu0 0.0
  %5067 = vmatprep.subr.mxu0 0.0
  %5068 = vmatpush2.msra.mxu0 0.0
  %5069 = vmatprep.subr.mxu0 0.0
  %5070 = vmatpush2.msra.mxu0 0.0
  %5071 = vmatprep.subr.mxu0 0.0
  %5072 = vmatpush2.msra.mxu0 0.0
  %5073 = vmatprep.mubr.f32.mxu0 0.0
  %v5074 = vand.u32 %v4919, 4294901760
  %5075 = vmatmul.mubr.f32.gmra.mxu0 %v5074
  %v5076 = vpop.f32.mrf.mxu0
  %v5077 = vadd.f32 %v4995, %v5076
  %v5078 = vpop.f32.mrf.mxu0
  %v5079 = vadd.f32 %v4997, %v5078
  %5080 = vdwg.mxu0
  %5081 = vmatprep.subr.mxu0 0.0
  %5082 = vmatpush1.msra.mxu0 0.0
  %5083 = vmatprep.subr.mxu0 0.0
  %5084 = vmatpush1.msra.mxu0 0.0
  %5085 = vmatprep.subr.mxu0 0.0
  %5086 = vmatpush1.msra.mxu0 0.0
  %5087 = vmatprep.subr.mxu0 0.0
  %5088 = vmatpush1.msra.mxu0 0.0
  %5089 = vmatprep.subr.mxu0 0.0
  %5090 = vmatpush1.msra.mxu0 0.0
  %5091 = vmatprep.subr.mxu0 0.0
  %5092 = vmatpush1.msra.mxu0 0.0
  %5093 = vmatprep.subr.mxu0 0.0
  %5094 = vmatpush1.msra.mxu0 0.0
  %5095 = vmatprep.subr.mxu0 0.0
  %5096 = vmatpush1.msra.mxu0 0.0
  %5097 = vmatprep.subr.mxu0 0.0
  %5098 = vmatpush1.msra.mxu0 0.0
  %5099 = vmatprep.subr.mxu0 0.0
  %5100 = vmatpush1.msra.mxu0 0.0
  %5101 = vmatprep.subr.mxu0 0.0
  %5102 = vmatpush1.msra.mxu0 0.0
  %5103 = vmatprep.subr.mxu0 0.0
  %5104 = vmatpush1.msra.mxu0 0.0
  %5105 = vmatprep.subr.mxu0 0.0
  %5106 = vmatpush1.msra.mxu0 0.0
  %5107 = vmatprep.subr.mxu0 0.0
  %5108 = vmatpush1.msra.mxu0 0.0
  %5109 = vmatprep.subr.mxu0 0.0
  %5110 = vmatpush1.msra.mxu0 0.0
  %v5111 = vand.u32 %v4915, 4294901760
  %v5112 = vsub.f32 %v4915, %v5111
  %5113 = vmatprep.subr.mxu0 %v5112
  %v5114 = vand.u32 %v4914, 4294901760
  %v5115 = vsub.f32 %v4914, %v5114
  %5116 = vmatpush1.msra.mxu0 %v5115
  %5117 = vmatprep.subr.mxu0 0.0
  %5118 = vmatpush2.msra.mxu0 0.0
  %5119 = vmatprep.subr.mxu0 0.0
  %5120 = vmatpush2.msra.mxu0 0.0
  %5121 = vmatprep.subr.mxu0 0.0
  %5122 = vmatpush2.msra.mxu0 0.0
  %5123 = vmatprep.subr.mxu0 0.0
  %5124 = vmatpush2.msra.mxu0 0.0
  %5125 = vmatprep.subr.mxu0 0.0
  %5126 = vmatpush2.msra.mxu0 0.0
  %5127 = vmatprep.subr.mxu0 0.0
  %5128 = vmatpush2.msra.mxu0 0.0
  %5129 = vmatprep.subr.mxu0 0.0
  %5130 = vmatpush2.msra.mxu0 0.0
  %5131 = vmatprep.subr.mxu0 0.0
  %5132 = vmatpush2.msra.mxu0 0.0
  %5133 = vmatprep.subr.mxu0 0.0
  %5134 = vmatpush2.msra.mxu0 0.0
  %5135 = vmatprep.subr.mxu0 0.0
  %5136 = vmatpush2.msra.mxu0 0.0
  %5137 = vmatprep.subr.mxu0 0.0
  %5138 = vmatpush2.msra.mxu0 0.0
  %5139 = vmatprep.subr.mxu0 0.0
  %5140 = vmatpush2.msra.mxu0 0.0
  %5141 = vmatprep.subr.mxu0 0.0
  %5142 = vmatpush2.msra.mxu0 0.0
  %5143 = vmatprep.subr.mxu0 0.0
  %5144 = vmatpush2.msra.mxu0 0.0
  %5145 = vmatprep.subr.mxu0 0.0
  %5146 = vmatpush2.msra.mxu0 0.0
  %5147 = vmatprep.subr.mxu0 0.0
  %5148 = vmatpush2.msra.mxu0 0.0
  %5149 = vmatprep.mubr.f32.mxu0 0.0
  %v5150 = vand.u32 %v4919, 4294901760
  %v5151 = vsub.f32 %v4919, %v5150
  %5152 = vmatmul.mubr.f32.gmra.mxu0 %v5151
  %v5153 = vpop.f32.mrf.mxu0
  %v5154 = vadd.f32 %v5077, %v5153
  %v5155 = vpop.f32.mrf.mxu0
  %v5156 = vadd.f32 %v5079, %v5155
  %5157 = vdwg.mxu0
  %5158 = vmatprep.subr.mxu0 0.0
  %5159 = vmatpush1.msra.mxu0 0.0
  %5160 = vmatprep.subr.mxu0 0.0
  %5161 = vmatpush1.msra.mxu0 0.0
  %5162 = vmatprep.subr.mxu0 0.0
  %5163 = vmatpush1.msra.mxu0 0.0
  %5164 = vmatprep.subr.mxu0 0.0
  %5165 = vmatpush1.msra.mxu0 0.0
  %5166 = vmatprep.subr.mxu0 0.0
  %5167 = vmatpush1.msra.mxu0 0.0
  %5168 = vmatprep.subr.mxu0 0.0
  %5169 = vmatpush1.msra.mxu0 0.0
  %5170 = vmatprep.subr.mxu0 0.0
  %5171 = vmatpush1.msra.mxu0 0.0
  %5172 = vmatprep.subr.mxu0 0.0
  %5173 = vmatpush1.msra.mxu0 0.0
  %5174 = vmatprep.subr.mxu0 0.0
  %5175 = vmatpush1.msra.mxu0 0.0
  %5176 = vmatprep.subr.mxu0 0.0
  %5177 = vmatpush1.msra.mxu0 0.0
  %5178 = vmatprep.subr.mxu0 0.0
  %5179 = vmatpush1.msra.mxu0 0.0
  %5180 = vmatprep.subr.mxu0 0.0
  %5181 = vmatpush1.msra.mxu0 0.0
  %5182 = vmatprep.subr.mxu0 0.0
  %5183 = vmatpush1.msra.mxu0 0.0
  %5184 = vmatprep.subr.mxu0 0.0
  %5185 = vmatpush1.msra.mxu0 0.0
  %5186 = vmatprep.subr.mxu0 0.0
  %5187 = vmatpush1.msra.mxu0 0.0
  %v5188 = vand.u32 %v4915, 4294901760
  %5189 = vmatprep.subr.mxu0 %v5188
  %v5190 = vand.u32 %v4914, 4294901760
  %5191 = vmatpush1.msra.mxu0 %v5190
  %5192 = vmatprep.subr.mxu0 0.0
  %5193 = vmatpush2.msra.mxu0 0.0
  %5194 = vmatprep.subr.mxu0 0.0
  %5195 = vmatpush2.msra.mxu0 0.0
  %5196 = vmatprep.subr.mxu0 0.0
  %5197 = vmatpush2.msra.mxu0 0.0
  %5198 = vmatprep.subr.mxu0 0.0
  %5199 = vmatpush2.msra.mxu0 0.0
  %5200 = vmatprep.subr.mxu0 0.0
  %5201 = vmatpush2.msra.mxu0 0.0
  %5202 = vmatprep.subr.mxu0 0.0
  %5203 = vmatpush2.msra.mxu0 0.0
  %5204 = vmatprep.subr.mxu0 0.0
  %5205 = vmatpush2.msra.mxu0 0.0
  %5206 = vmatprep.subr.mxu0 0.0
  %5207 = vmatpush2.msra.mxu0 0.0
  %5208 = vmatprep.subr.mxu0 0.0
  %5209 = vmatpush2.msra.mxu0 0.0
  %5210 = vmatprep.subr.mxu0 0.0
  %5211 = vmatpush2.msra.mxu0 0.0
  %5212 = vmatprep.subr.mxu0 0.0
  %5213 = vmatpush2.msra.mxu0 0.0
  %5214 = vmatprep.subr.mxu0 0.0
  %5215 = vmatpush2.msra.mxu0 0.0
  %5216 = vmatprep.subr.mxu0 0.0
  %5217 = vmatpush2.msra.mxu0 0.0
  %5218 = vmatprep.subr.mxu0 0.0
  %5219 = vmatpush2.msra.mxu0 0.0
  %5220 = vmatprep.subr.mxu0 0.0
  %5221 = vmatpush2.msra.mxu0 0.0
  %5222 = vmatprep.subr.mxu0 0.0
  %5223 = vmatpush2.msra.mxu0 0.0
  %5224 = vmatprep.mubr.f32.mxu0 0.0
  %v5225 = vand.u32 %v4919, 4294901760
  %v5226 = vsub.f32 %v4919, %v5225
  %v5227 = vand.u32 %v5226, 4294901760
  %5228 = vmatmul.mubr.f32.gmra.mxu0 %v5227
  %v5229 = vpop.f32.mrf.mxu0
  %v5230 = vadd.f32 %v5154, %v5229
  %v5231 = vpop.f32.mrf.mxu0
  %v5232 = vadd.f32 %v5156, %v5231
  %5233 = vdwg.mxu0
  %5234 = vmatprep.subr.mxu0 0.0
  %5235 = vmatpush1.msra.mxu0 0.0
  %5236 = vmatprep.subr.mxu0 0.0
  %5237 = vmatpush1.msra.mxu0 0.0
  %5238 = vmatprep.subr.mxu0 0.0
  %5239 = vmatpush1.msra.mxu0 0.0
  %5240 = vmatprep.subr.mxu0 0.0
  %5241 = vmatpush1.msra.mxu0 0.0
  %5242 = vmatprep.subr.mxu0 0.0
  %5243 = vmatpush1.msra.mxu0 0.0
  %5244 = vmatprep.subr.mxu0 0.0
  %5245 = vmatpush1.msra.mxu0 0.0
  %5246 = vmatprep.subr.mxu0 0.0
  %5247 = vmatpush1.msra.mxu0 0.0
  %5248 = vmatprep.subr.mxu0 0.0
  %5249 = vmatpush1.msra.mxu0 0.0
  %5250 = vmatprep.subr.mxu0 0.0
  %5251 = vmatpush1.msra.mxu0 0.0
  %5252 = vmatprep.subr.mxu0 0.0
  %5253 = vmatpush1.msra.mxu0 0.0
  %5254 = vmatprep.subr.mxu0 0.0
  %5255 = vmatpush1.msra.mxu0 0.0
  %5256 = vmatprep.subr.mxu0 0.0
  %5257 = vmatpush1.msra.mxu0 0.0
  %5258 = vmatprep.subr.mxu0 0.0
  %5259 = vmatpush1.msra.mxu0 0.0
  %5260 = vmatprep.subr.mxu0 0.0
  %5261 = vmatpush1.msra.mxu0 0.0
  %5262 = vmatprep.subr.mxu0 0.0
  %5263 = vmatpush1.msra.mxu0 0.0
  %v5264 = vand.u32 %v4915, 4294901760
  %v5265 = vsub.f32 %v4915, %v5264
  %v5266 = vand.u32 %v5265, 4294901760
  %5267 = vmatprep.subr.mxu0 %v5266
  %v5268 = vand.u32 %v4914, 4294901760
  %v5269 = vsub.f32 %v4914, %v5268
  %v5270 = vand.u32 %v5269, 4294901760
  %5271 = vmatpush1.msra.mxu0 %v5270
  %5272 = vmatprep.subr.mxu0 0.0
  %5273 = vmatpush2.msra.mxu0 0.0
  %5274 = vmatprep.subr.mxu0 0.0
  %5275 = vmatpush2.msra.mxu0 0.0
  %5276 = vmatprep.subr.mxu0 0.0
  %5277 = vmatpush2.msra.mxu0 0.0
  %5278 = vmatprep.subr.mxu0 0.0
  %5279 = vmatpush2.msra.mxu0 0.0
  %5280 = vmatprep.subr.mxu0 0.0
  %5281 = vmatpush2.msra.mxu0 0.0
  %5282 = vmatprep.subr.mxu0 0.0
  %5283 = vmatpush2.msra.mxu0 0.0
  %5284 = vmatprep.subr.mxu0 0.0
  %5285 = vmatpush2.msra.mxu0 0.0
  %5286 = vmatprep.subr.mxu0 0.0
  %5287 = vmatpush2.msra.mxu0 0.0
  %5288 = vmatprep.subr.mxu0 0.0
  %5289 = vmatpush2.msra.mxu0 0.0
  %5290 = vmatprep.subr.mxu0 0.0
  %5291 = vmatpush2.msra.mxu0 0.0
  %5292 = vmatprep.subr.mxu0 0.0
  %5293 = vmatpush2.msra.mxu0 0.0
  %5294 = vmatprep.subr.mxu0 0.0
  %5295 = vmatpush2.msra.mxu0 0.0
  %5296 = vmatprep.subr.mxu0 0.0
  %5297 = vmatpush2.msra.mxu0 0.0
  %5298 = vmatprep.subr.mxu0 0.0
  %5299 = vmatpush2.msra.mxu0 0.0
  %5300 = vmatprep.subr.mxu0 0.0
  %5301 = vmatpush2.msra.mxu0 0.0
  %5302 = vmatprep.subr.mxu0 0.0
  %5303 = vmatpush2.msra.mxu0 0.0
  %5304 = vmatprep.mubr.f32.mxu0 0.0
  %v5305 = vand.u32 %v4919, 4294901760
  %5306 = vmatmul.mubr.f32.gmra.mxu0 %v5305
  %v5307 = vpop.f32.mrf.mxu0
  %v5308 = vadd.f32 %v5230, %v5307
  %v5309 = vpop.f32.mrf.mxu0
  %v5310 = vadd.f32 %v5232, %v5309
  %5311 = vdwg.mxu0
  %5312 = vmatprep.subr.mxu0 0.0
  %5313 = vmatpush1.msra.mxu0 0.0
  %5314 = vmatprep.subr.mxu0 0.0
  %5315 = vmatpush1.msra.mxu0 0.0
  %5316 = vmatprep.subr.mxu0 0.0
  %5317 = vmatpush1.msra.mxu0 0.0
  %5318 = vmatprep.subr.mxu0 0.0
  %5319 = vmatpush1.msra.mxu0 0.0
  %5320 = vmatprep.subr.mxu0 0.0
  %5321 = vmatpush1.msra.mxu0 0.0
  %5322 = vmatprep.subr.mxu0 0.0
  %5323 = vmatpush1.msra.mxu0 0.0
  %5324 = vmatprep.subr.mxu0 0.0
  %5325 = vmatpush1.msra.mxu0 0.0
  %5326 = vmatprep.subr.mxu0 0.0
  %5327 = vmatpush1.msra.mxu0 0.0
  %5328 = vmatprep.subr.mxu0 0.0
  %5329 = vmatpush1.msra.mxu0 0.0
  %5330 = vmatprep.subr.mxu0 0.0
  %5331 = vmatpush1.msra.mxu0 0.0
  %5332 = vmatprep.subr.mxu0 0.0
  %5333 = vmatpush1.msra.mxu0 0.0
  %5334 = vmatprep.subr.mxu0 0.0
  %5335 = vmatpush1.msra.mxu0 0.0
  %5336 = vmatprep.subr.mxu0 0.0
  %5337 = vmatpush1.msra.mxu0 0.0
  %5338 = vmatprep.subr.mxu0 0.0
  %5339 = vmatpush1.msra.mxu0 0.0
  %5340 = vmatprep.subr.mxu0 0.0
  %5341 = vmatpush1.msra.mxu0 0.0
  %v5342 = vand.u32 %v4915, 4294901760
  %5343 = vmatprep.subr.mxu0 %v5342
  %v5344 = vand.u32 %v4914, 4294901760
  %5345 = vmatpush1.msra.mxu0 %v5344
  %5346 = vmatprep.subr.mxu0 0.0
  %5347 = vmatpush2.msra.mxu0 0.0
  %5348 = vmatprep.subr.mxu0 0.0
  %5349 = vmatpush2.msra.mxu0 0.0
  %5350 = vmatprep.subr.mxu0 0.0
  %5351 = vmatpush2.msra.mxu0 0.0
  %5352 = vmatprep.subr.mxu0 0.0
  %5353 = vmatpush2.msra.mxu0 0.0
  %5354 = vmatprep.subr.mxu0 0.0
  %5355 = vmatpush2.msra.mxu0 0.0
  %5356 = vmatprep.subr.mxu0 0.0
  %5357 = vmatpush2.msra.mxu0 0.0
  %5358 = vmatprep.subr.mxu0 0.0
  %5359 = vmatpush2.msra.mxu0 0.0
  %5360 = vmatprep.subr.mxu0 0.0
  %5361 = vmatpush2.msra.mxu0 0.0
  %5362 = vmatprep.subr.mxu0 0.0
  %5363 = vmatpush2.msra.mxu0 0.0
  %5364 = vmatprep.subr.mxu0 0.0
  %5365 = vmatpush2.msra.mxu0 0.0
  %5366 = vmatprep.subr.mxu0 0.0
  %5367 = vmatpush2.msra.mxu0 0.0
  %5368 = vmatprep.subr.mxu0 0.0
  %5369 = vmatpush2.msra.mxu0 0.0
  %5370 = vmatprep.subr.mxu0 0.0
  %5371 = vmatpush2.msra.mxu0 0.0
  %5372 = vmatprep.subr.mxu0 0.0
  %5373 = vmatpush2.msra.mxu0 0.0
  %5374 = vmatprep.subr.mxu0 0.0
  %5375 = vmatpush2.msra.mxu0 0.0
  %5376 = vmatprep.subr.mxu0 0.0
  %5377 = vmatpush2.msra.mxu0 0.0
  %5378 = vmatprep.mubr.f32.mxu0 0.0
  %v5379 = vand.u32 %v4919, 4294901760
  %5380 = vmatmul.mubr.f32.gmra.mxu0 %v5379
  %v5381 = vpop.f32.mrf.mxu0
  %v5382 = vadd.f32 %v5308, %v5381
  %v5383 = vpop.f32.mrf.mxu0
  %v5384 = vadd.f32 %v5310, %v5383
  %5385 = vdwg.mxu0
  %v5387 = vsel %vm80, %v4907, 0
  %5389 = vmatprep.subr.mxu0 0.0
  %5390 = vmatpush1.msra.mxu0 0.0
  %5391 = vmatprep.subr.mxu0 0.0
  %5392 = vmatpush1.msra.mxu0 0.0
  %5393 = vmatprep.subr.mxu0 0.0
  %5394 = vmatpush1.msra.mxu0 0.0
  %5395 = vmatprep.subr.mxu0 0.0
  %5396 = vmatpush1.msra.mxu0 0.0
  %5397 = vmatprep.subr.mxu0 0.0
  %5398 = vmatpush1.msra.mxu0 0.0
  %5399 = vmatprep.subr.mxu0 0.0
  %5400 = vmatpush1.msra.mxu0 0.0
  %5401 = vmatprep.subr.mxu0 0.0
  %5402 = vmatpush1.msra.mxu0 0.0
  %5403 = vmatprep.subr.mxu0 0.0
  %5404 = vmatpush1.msra.mxu0 0.0
  %5405 = vmatprep.subr.mxu0 0.0
  %5406 = vmatpush1.msra.mxu0 0.0
  %5407 = vmatprep.subr.mxu0 0.0
  %5408 = vmatpush1.msra.mxu0 0.0
  %5409 = vmatprep.subr.mxu0 0.0
  %5410 = vmatpush1.msra.mxu0 0.0
  %5411 = vmatprep.subr.mxu0 0.0
  %5412 = vmatpush1.msra.mxu0 0.0
  %5413 = vmatprep.subr.mxu0 0.0
  %5414 = vmatpush1.msra.mxu0 0.0
  %5415 = vmatprep.subr.mxu0 0.0
  %5416 = vmatpush1.msra.mxu0 0.0
  %5417 = vmatprep.subr.mxu0 0.0
  %5418 = vmatpush1.msra.mxu0 0.0
  %v5419 = vand.u32 %v4905, 4294901760
  %5420 = vmatprep.subr.mxu0 %v5419
  %v5421 = vand.u32 %v4904, 4294901760
  %5422 = vmatpush1.msra.mxu0 %v5421
  %5423 = vmatprep.subr.mxu0 0.0
  %5424 = vmatpush2.msra.mxu0 0.0
  %5425 = vmatprep.subr.mxu0 0.0
  %5426 = vmatpush2.msra.mxu0 0.0
  %5427 = vmatprep.subr.mxu0 0.0
  %5428 = vmatpush2.msra.mxu0 0.0
  %5429 = vmatprep.subr.mxu0 0.0
  %5430 = vmatpush2.msra.mxu0 0.0
  %5431 = vmatprep.subr.mxu0 0.0
  %5432 = vmatpush2.msra.mxu0 0.0
  %5433 = vmatprep.subr.mxu0 0.0
  %5434 = vmatpush2.msra.mxu0 0.0
  %5435 = vmatprep.subr.mxu0 0.0
  %5436 = vmatpush2.msra.mxu0 0.0
  %5437 = vmatprep.subr.mxu0 0.0
  %5438 = vmatpush2.msra.mxu0 0.0
  %5439 = vmatprep.subr.mxu0 0.0
  %5440 = vmatpush2.msra.mxu0 0.0
  %5441 = vmatprep.subr.mxu0 0.0
  %5442 = vmatpush2.msra.mxu0 0.0
  %5443 = vmatprep.subr.mxu0 0.0
  %5444 = vmatpush2.msra.mxu0 0.0
  %5445 = vmatprep.subr.mxu0 0.0
  %5446 = vmatpush2.msra.mxu0 0.0
  %5447 = vmatprep.subr.mxu0 0.0
  %5448 = vmatpush2.msra.mxu0 0.0
  %5449 = vmatprep.subr.mxu0 0.0
  %5450 = vmatpush2.msra.mxu0 0.0
  %5451 = vmatprep.subr.mxu0 0.0
  %5452 = vmatpush2.msra.mxu0 0.0
  %5453 = vmatprep.subr.mxu0 0.0
  %5454 = vmatpush2.msra.mxu0 0.0
  %5455 = vmatprep.mubr.f32.mxu0 0.0
  %v5456 = vand.u32 %v5387, 4294901760
  %v5457 = vsub.f32 %v5387, %v5456
  %v5458 = vand.u32 %v5457, 4294901760
  %v5459 = vsub.f32 %v5457, %v5458
  %v5460 = vand.u32 %v5459, 4294901760
  %5461 = vmatmul.mubr.f32.gmra.mxu0 %v5460
  %v5462 = vpop.f32.mrf.mxu0
  %v5463 = vadd.f32 %v5382, %v5462
  %v5464 = vpop.f32.mrf.mxu0
  %v5465 = vadd.f32 %v5384, %v5464
  %5466 = vdwg.mxu0
  %5467 = vmatprep.subr.mxu0 0.0
  %5468 = vmatpush1.msra.mxu0 0.0
  %5469 = vmatprep.subr.mxu0 0.0
  %5470 = vmatpush1.msra.mxu0 0.0
  %5471 = vmatprep.subr.mxu0 0.0
  %5472 = vmatpush1.msra.mxu0 0.0
  %5473 = vmatprep.subr.mxu0 0.0
  %5474 = vmatpush1.msra.mxu0 0.0
  %5475 = vmatprep.subr.mxu0 0.0
  %5476 = vmatpush1.msra.mxu0 0.0
  %5477 = vmatprep.subr.mxu0 0.0
  %5478 = vmatpush1.msra.mxu0 0.0
  %5479 = vmatprep.subr.mxu0 0.0
  %5480 = vmatpush1.msra.mxu0 0.0
  %5481 = vmatprep.subr.mxu0 0.0
  %5482 = vmatpush1.msra.mxu0 0.0
  %5483 = vmatprep.subr.mxu0 0.0
  %5484 = vmatpush1.msra.mxu0 0.0
  %5485 = vmatprep.subr.mxu0 0.0
  %5486 = vmatpush1.msra.mxu0 0.0
  %5487 = vmatprep.subr.mxu0 0.0
  %5488 = vmatpush1.msra.mxu0 0.0
  %5489 = vmatprep.subr.mxu0 0.0
  %5490 = vmatpush1.msra.mxu0 0.0
  %5491 = vmatprep.subr.mxu0 0.0
  %5492 = vmatpush1.msra.mxu0 0.0
  %5493 = vmatprep.subr.mxu0 0.0
  %5494 = vmatpush1.msra.mxu0 0.0
  %5495 = vmatprep.subr.mxu0 0.0
  %5496 = vmatpush1.msra.mxu0 0.0
  %v5497 = vand.u32 %v4905, 4294901760
  %v5498 = vsub.f32 %v4905, %v5497
  %v5499 = vand.u32 %v5498, 4294901760
  %v5500 = vsub.f32 %v5498, %v5499
  %v5501 = vand.u32 %v5500, 4294901760
  %5502 = vmatprep.subr.mxu0 %v5501
  %v5503 = vand.u32 %v4904, 4294901760
  %v5504 = vsub.f32 %v4904, %v5503
  %v5505 = vand.u32 %v5504, 4294901760
  %v5506 = vsub.f32 %v5504, %v5505
  %v5507 = vand.u32 %v5506, 4294901760
  %5508 = vmatpush1.msra.mxu0 %v5507
  %5509 = vmatprep.subr.mxu0 0.0
  %5510 = vmatpush2.msra.mxu0 0.0
  %5511 = vmatprep.subr.mxu0 0.0
  %5512 = vmatpush2.msra.mxu0 0.0
  %5513 = vmatprep.subr.mxu0 0.0
  %5514 = vmatpush2.msra.mxu0 0.0
  %5515 = vmatprep.subr.mxu0 0.0
  %5516 = vmatpush2.msra.mxu0 0.0
  %5517 = vmatprep.subr.mxu0 0.0
  %5518 = vmatpush2.msra.mxu0 0.0
  %5519 = vmatprep.subr.mxu0 0.0
  %5520 = vmatpush2.msra.mxu0 0.0
  %5521 = vmatprep.subr.mxu0 0.0
  %5522 = vmatpush2.msra.mxu0 0.0
  %5523 = vmatprep.subr.mxu0 0.0
  %5524 = vmatpush2.msra.mxu0 0.0
  %5525 = vmatprep.subr.mxu0 0.0
  %5526 = vmatpush2.msra.mxu0 0.0
  %5527 = vmatprep.subr.mxu0 0.0
  %5528 = vmatpush2.msra.mxu0 0.0
  %5529 = vmatprep.subr.mxu0 0.0
  %5530 = vmatpush2.msra.mxu0 0.0
  %5531 = vmatprep.subr.mxu0 0.0
  %5532 = vmatpush2.msra.mxu0 0.0
  %5533 = vmatprep.subr.mxu0 0.0
  %5534 = vmatpush2.msra.mxu0 0.0
  %5535 = vmatprep.subr.mxu0 0.0
  %5536 = vmatpush2.msra.mxu0 0.0
  %5537 = vmatprep.subr.mxu0 0.0
  %5538 = vmatpush2.msra.mxu0 0.0
  %5539 = vmatprep.subr.mxu0 0.0
  %5540 = vmatpush2.msra.mxu0 0.0
  %5541 = vmatprep.mubr.f32.mxu0 0.0
  %v5542 = vand.u32 %v5387, 4294901760
  %5543 = vmatmul.mubr.f32.gmra.mxu0 %v5542
  %v5544 = vpop.f32.mrf.mxu0
  %v5545 = vadd.f32 %v5463, %v5544
  %v5546 = vpop.f32.mrf.mxu0
  %v5547 = vadd.f32 %v5465, %v5546
  %5548 = vdwg.mxu0
  %5549 = vmatprep.subr.mxu0 0.0
  %5550 = vmatpush1.msra.mxu0 0.0
  %5551 = vmatprep.subr.mxu0 0.0
  %5552 = vmatpush1.msra.mxu0 0.0
  %5553 = vmatprep.subr.mxu0 0.0
  %5554 = vmatpush1.msra.mxu0 0.0
  %5555 = vmatprep.subr.mxu0 0.0
  %5556 = vmatpush1.msra.mxu0 0.0
  %5557 = vmatprep.subr.mxu0 0.0
  %5558 = vmatpush1.msra.mxu0 0.0
  %5559 = vmatprep.subr.mxu0 0.0
  %5560 = vmatpush1.msra.mxu0 0.0
  %5561 = vmatprep.subr.mxu0 0.0
  %5562 = vmatpush1.msra.mxu0 0.0
  %5563 = vmatprep.subr.mxu0 0.0
  %5564 = vmatpush1.msra.mxu0 0.0
  %5565 = vmatprep.subr.mxu0 0.0
  %5566 = vmatpush1.msra.mxu0 0.0
  %5567 = vmatprep.subr.mxu0 0.0
  %5568 = vmatpush1.msra.mxu0 0.0
  %5569 = vmatprep.subr.mxu0 0.0
  %5570 = vmatpush1.msra.mxu0 0.0
  %5571 = vmatprep.subr.mxu0 0.0
  %5572 = vmatpush1.msra.mxu0 0.0
  %5573 = vmatprep.subr.mxu0 0.0
  %5574 = vmatpush1.msra.mxu0 0.0
  %5575 = vmatprep.subr.mxu0 0.0
  %5576 = vmatpush1.msra.mxu0 0.0
  %5577 = vmatprep.subr.mxu0 0.0
  %5578 = vmatpush1.msra.mxu0 0.0
  %v5579 = vand.u32 %v4905, 4294901760
  %v5580 = vsub.f32 %v4905, %v5579
  %5581 = vmatprep.subr.mxu0 %v5580
  %v5582 = vand.u32 %v4904, 4294901760
  %v5583 = vsub.f32 %v4904, %v5582
  %5584 = vmatpush1.msra.mxu0 %v5583
  %5585 = vmatprep.subr.mxu0 0.0
  %5586 = vmatpush2.msra.mxu0 0.0
  %5587 = vmatprep.subr.mxu0 0.0
  %5588 = vmatpush2.msra.mxu0 0.0
  %5589 = vmatprep.subr.mxu0 0.0
  %5590 = vmatpush2.msra.mxu0 0.0
  %5591 = vmatprep.subr.mxu0 0.0
  %5592 = vmatpush2.msra.mxu0 0.0
  %5593 = vmatprep.subr.mxu0 0.0
  %5594 = vmatpush2.msra.mxu0 0.0
  %5595 = vmatprep.subr.mxu0 0.0
  %5596 = vmatpush2.msra.mxu0 0.0
  %5597 = vmatprep.subr.mxu0 0.0
  %5598 = vmatpush2.msra.mxu0 0.0
  %5599 = vmatprep.subr.mxu0 0.0
  %5600 = vmatpush2.msra.mxu0 0.0
  %5601 = vmatprep.subr.mxu0 0.0
  %5602 = vmatpush2.msra.mxu0 0.0
  %5603 = vmatprep.subr.mxu0 0.0
  %5604 = vmatpush2.msra.mxu0 0.0
  %5605 = vmatprep.subr.mxu0 0.0
  %5606 = vmatpush2.msra.mxu0 0.0
  %5607 = vmatprep.subr.mxu0 0.0
  %5608 = vmatpush2.msra.mxu0 0.0
  %5609 = vmatprep.subr.mxu0 0.0
  %5610 = vmatpush2.msra.mxu0 0.0
  %5611 = vmatprep.subr.mxu0 0.0
  %5612 = vmatpush2.msra.mxu0 0.0
  %5613 = vmatprep.subr.mxu0 0.0
  %5614 = vmatpush2.msra.mxu0 0.0
  %5615 = vmatprep.subr.mxu0 0.0
  %5616 = vmatpush2.msra.mxu0 0.0
  %5617 = vmatprep.mubr.f32.mxu0 0.0
  %v5618 = vand.u32 %v5387, 4294901760
  %v5619 = vsub.f32 %v5387, %v5618
  %5620 = vmatmul.mubr.f32.gmra.mxu0 %v5619
  %v5621 = vpop.f32.mrf.mxu0
  %v5622 = vadd.f32 %v5545, %v5621
  %v5623 = vpop.f32.mrf.mxu0
  %v5624 = vadd.f32 %v5547, %v5623
  %5625 = vdwg.mxu0
  %5626 = vmatprep.subr.mxu0 0.0
  %5627 = vmatpush1.msra.mxu0 0.0
  %5628 = vmatprep.subr.mxu0 0.0
  %5629 = vmatpush1.msra.mxu0 0.0
  %5630 = vmatprep.subr.mxu0 0.0
  %5631 = vmatpush1.msra.mxu0 0.0
  %5632 = vmatprep.subr.mxu0 0.0
  %5633 = vmatpush1.msra.mxu0 0.0
  %5634 = vmatprep.subr.mxu0 0.0
  %5635 = vmatpush1.msra.mxu0 0.0
  %5636 = vmatprep.subr.mxu0 0.0
  %5637 = vmatpush1.msra.mxu0 0.0
  %5638 = vmatprep.subr.mxu0 0.0
  %5639 = vmatpush1.msra.mxu0 0.0
  %5640 = vmatprep.subr.mxu0 0.0
  %5641 = vmatpush1.msra.mxu0 0.0
  %5642 = vmatprep.subr.mxu0 0.0
  %5643 = vmatpush1.msra.mxu0 0.0
  %5644 = vmatprep.subr.mxu0 0.0
  %5645 = vmatpush1.msra.mxu0 0.0
  %5646 = vmatprep.subr.mxu0 0.0
  %5647 = vmatpush1.msra.mxu0 0.0
  %5648 = vmatprep.subr.mxu0 0.0
  %5649 = vmatpush1.msra.mxu0 0.0
  %5650 = vmatprep.subr.mxu0 0.0
  %5651 = vmatpush1.msra.mxu0 0.0
  %5652 = vmatprep.subr.mxu0 0.0
  %5653 = vmatpush1.msra.mxu0 0.0
  %5654 = vmatprep.subr.mxu0 0.0
  %5655 = vmatpush1.msra.mxu0 0.0
  %v5656 = vand.u32 %v4905, 4294901760
  %5657 = vmatprep.subr.mxu0 %v5656
  %v5658 = vand.u32 %v4904, 4294901760
  %5659 = vmatpush1.msra.mxu0 %v5658
  %5660 = vmatprep.subr.mxu0 0.0
  %5661 = vmatpush2.msra.mxu0 0.0
  %5662 = vmatprep.subr.mxu0 0.0
  %5663 = vmatpush2.msra.mxu0 0.0
  %5664 = vmatprep.subr.mxu0 0.0
  %5665 = vmatpush2.msra.mxu0 0.0
  %5666 = vmatprep.subr.mxu0 0.0
  %5667 = vmatpush2.msra.mxu0 0.0
  %5668 = vmatprep.subr.mxu0 0.0
  %5669 = vmatpush2.msra.mxu0 0.0
  %5670 = vmatprep.subr.mxu0 0.0
  %5671 = vmatpush2.msra.mxu0 0.0
  %5672 = vmatprep.subr.mxu0 0.0
  %5673 = vmatpush2.msra.mxu0 0.0
  %5674 = vmatprep.subr.mxu0 0.0
  %5675 = vmatpush2.msra.mxu0 0.0
  %5676 = vmatprep.subr.mxu0 0.0
  %5677 = vmatpush2.msra.mxu0 0.0
  %5678 = vmatprep.subr.mxu0 0.0
  %5679 = vmatpush2.msra.mxu0 0.0
  %5680 = vmatprep.subr.mxu0 0.0
  %5681 = vmatpush2.msra.mxu0 0.0
  %5682 = vmatprep.subr.mxu0 0.0
  %5683 = vmatpush2.msra.mxu0 0.0
  %5684 = vmatprep.subr.mxu0 0.0
  %5685 = vmatpush2.msra.mxu0 0.0
  %5686 = vmatprep.subr.mxu0 0.0
  %5687 = vmatpush2.msra.mxu0 0.0
  %5688 = vmatprep.subr.mxu0 0.0
  %5689 = vmatpush2.msra.mxu0 0.0
  %5690 = vmatprep.subr.mxu0 0.0
  %5691 = vmatpush2.msra.mxu0 0.0
  %5692 = vmatprep.mubr.f32.mxu0 0.0
  %v5693 = vand.u32 %v5387, 4294901760
  %v5694 = vsub.f32 %v5387, %v5693
  %v5695 = vand.u32 %v5694, 4294901760
  %5696 = vmatmul.mubr.f32.gmra.mxu0 %v5695
  %v5697 = vpop.f32.mrf.mxu0
  %v5698 = vadd.f32 %v5622, %v5697
  %v5699 = vpop.f32.mrf.mxu0
  %v5700 = vadd.f32 %v5624, %v5699
  %5701 = vdwg.mxu0
  %5702 = vmatprep.subr.mxu0 0.0
  %5703 = vmatpush1.msra.mxu0 0.0
  %5704 = vmatprep.subr.mxu0 0.0
  %5705 = vmatpush1.msra.mxu0 0.0
  %5706 = vmatprep.subr.mxu0 0.0
  %5707 = vmatpush1.msra.mxu0 0.0
  %5708 = vmatprep.subr.mxu0 0.0
  %5709 = vmatpush1.msra.mxu0 0.0
  %5710 = vmatprep.subr.mxu0 0.0
  %5711 = vmatpush1.msra.mxu0 0.0
  %5712 = vmatprep.subr.mxu0 0.0
  %5713 = vmatpush1.msra.mxu0 0.0
  %5714 = vmatprep.subr.mxu0 0.0
  %5715 = vmatpush1.msra.mxu0 0.0
  %5716 = vmatprep.subr.mxu0 0.0
  %5717 = vmatpush1.msra.mxu0 0.0
  %5718 = vmatprep.subr.mxu0 0.0
  %5719 = vmatpush1.msra.mxu0 0.0
  %5720 = vmatprep.subr.mxu0 0.0
  %5721 = vmatpush1.msra.mxu0 0.0
  %5722 = vmatprep.subr.mxu0 0.0
  %5723 = vmatpush1.msra.mxu0 0.0
  %5724 = vmatprep.subr.mxu0 0.0
  %5725 = vmatpush1.msra.mxu0 0.0
  %5726 = vmatprep.subr.mxu0 0.0
  %5727 = vmatpush1.msra.mxu0 0.0
  %5728 = vmatprep.subr.mxu0 0.0
  %5729 = vmatpush1.msra.mxu0 0.0
  %5730 = vmatprep.subr.mxu0 0.0
  %5731 = vmatpush1.msra.mxu0 0.0
  %v5732 = vand.u32 %v4905, 4294901760
  %v5733 = vsub.f32 %v4905, %v5732
  %v5734 = vand.u32 %v5733, 4294901760
  %5735 = vmatprep.subr.mxu0 %v5734
  %v5736 = vand.u32 %v4904, 4294901760
  %v5737 = vsub.f32 %v4904, %v5736
  %v5738 = vand.u32 %v5737, 4294901760
  %5739 = vmatpush1.msra.mxu0 %v5738
  %5740 = vmatprep.subr.mxu0 0.0
  %5741 = vmatpush2.msra.mxu0 0.0
  %5742 = vmatprep.subr.mxu0 0.0
  %5743 = vmatpush2.msra.mxu0 0.0
  %5744 = vmatprep.subr.mxu0 0.0
  %5745 = vmatpush2.msra.mxu0 0.0
  %5746 = vmatprep.subr.mxu0 0.0
  %5747 = vmatpush2.msra.mxu0 0.0
  %5748 = vmatprep.subr.mxu0 0.0
  %5749 = vmatpush2.msra.mxu0 0.0
  %5750 = vmatprep.subr.mxu0 0.0
  %5751 = vmatpush2.msra.mxu0 0.0
  %5752 = vmatprep.subr.mxu0 0.0
  %5753 = vmatpush2.msra.mxu0 0.0
  %5754 = vmatprep.subr.mxu0 0.0
  %5755 = vmatpush2.msra.mxu0 0.0
  %5756 = vmatprep.subr.mxu0 0.0
  %5757 = vmatpush2.msra.mxu0 0.0
  %5758 = vmatprep.subr.mxu0 0.0
  %5759 = vmatpush2.msra.mxu0 0.0
  %5760 = vmatprep.subr.mxu0 0.0
  %5761 = vmatpush2.msra.mxu0 0.0
  %5762 = vmatprep.subr.mxu0 0.0
  %5763 = vmatpush2.msra.mxu0 0.0
  %5764 = vmatprep.subr.mxu0 0.0
  %5765 = vmatpush2.msra.mxu0 0.0
  %5766 = vmatprep.subr.mxu0 0.0
  %5767 = vmatpush2.msra.mxu0 0.0
  %5768 = vmatprep.subr.mxu0 0.0
  %5769 = vmatpush2.msra.mxu0 0.0
  %5770 = vmatprep.subr.mxu0 0.0
  %5771 = vmatpush2.msra.mxu0 0.0
  %5772 = vmatprep.mubr.f32.mxu0 0.0
  %v5773 = vand.u32 %v5387, 4294901760
  %5774 = vmatmul.mubr.f32.gmra.mxu0 %v5773
  %v5775 = vpop.f32.mrf.mxu0
  %v5776 = vadd.f32 %v5698, %v5775
  %v5777 = vpop.f32.mrf.mxu0
  %v5778 = vadd.f32 %v5700, %v5777
  %5779 = vdwg.mxu0
  %5780 = vmatprep.subr.mxu0 0.0
  %5781 = vmatpush1.msra.mxu0 0.0
  %5782 = vmatprep.subr.mxu0 0.0
  %5783 = vmatpush1.msra.mxu0 0.0
  %5784 = vmatprep.subr.mxu0 0.0
  %5785 = vmatpush1.msra.mxu0 0.0
  %5786 = vmatprep.subr.mxu0 0.0
  %5787 = vmatpush1.msra.mxu0 0.0
  %5788 = vmatprep.subr.mxu0 0.0
  %5789 = vmatpush1.msra.mxu0 0.0
  %5790 = vmatprep.subr.mxu0 0.0
  %5791 = vmatpush1.msra.mxu0 0.0
  %5792 = vmatprep.subr.mxu0 0.0
  %5793 = vmatpush1.msra.mxu0 0.0
  %5794 = vmatprep.subr.mxu0 0.0
  %5795 = vmatpush1.msra.mxu0 0.0
  %5796 = vmatprep.subr.mxu0 0.0
  %5797 = vmatpush1.msra.mxu0 0.0
  %5798 = vmatprep.subr.mxu0 0.0
  %5799 = vmatpush1.msra.mxu0 0.0
  %5800 = vmatprep.subr.mxu0 0.0
  %5801 = vmatpush1.msra.mxu0 0.0
  %5802 = vmatprep.subr.mxu0 0.0
  %5803 = vmatpush1.msra.mxu0 0.0
  %5804 = vmatprep.subr.mxu0 0.0
  %5805 = vmatpush1.msra.mxu0 0.0
  %5806 = vmatprep.subr.mxu0 0.0
  %5807 = vmatpush1.msra.mxu0 0.0
  %5808 = vmatprep.subr.mxu0 0.0
  %5809 = vmatpush1.msra.mxu0 0.0
  %v5810 = vand.u32 %v4905, 4294901760
  %5811 = vmatprep.subr.mxu0 %v5810
  %v5812 = vand.u32 %v4904, 4294901760
  %5813 = vmatpush1.msra.mxu0 %v5812
  %5814 = vmatprep.subr.mxu0 0.0
  %5815 = vmatpush2.msra.mxu0 0.0
  %5816 = vmatprep.subr.mxu0 0.0
  %5817 = vmatpush2.msra.mxu0 0.0
  %5818 = vmatprep.subr.mxu0 0.0
  %5819 = vmatpush2.msra.mxu0 0.0
  %5820 = vmatprep.subr.mxu0 0.0
  %5821 = vmatpush2.msra.mxu0 0.0
  %5822 = vmatprep.subr.mxu0 0.0
  %5823 = vmatpush2.msra.mxu0 0.0
  %5824 = vmatprep.subr.mxu0 0.0
  %5825 = vmatpush2.msra.mxu0 0.0
  %5826 = vmatprep.subr.mxu0 0.0
  %5827 = vmatpush2.msra.mxu0 0.0
  %5828 = vmatprep.subr.mxu0 0.0
  %5829 = vmatpush2.msra.mxu0 0.0
  %5830 = vmatprep.subr.mxu0 0.0
  %5831 = vmatpush2.msra.mxu0 0.0
  %5832 = vmatprep.subr.mxu0 0.0
  %5833 = vmatpush2.msra.mxu0 0.0
  %5834 = vmatprep.subr.mxu0 0.0
  %5835 = vmatpush2.msra.mxu0 0.0
  %5836 = vmatprep.subr.mxu0 0.0
  %5837 = vmatpush2.msra.mxu0 0.0
  %5838 = vmatprep.subr.mxu0 0.0
  %5839 = vmatpush2.msra.mxu0 0.0
  %5840 = vmatprep.subr.mxu0 0.0
  %5841 = vmatpush2.msra.mxu0 0.0
  %5842 = vmatprep.subr.mxu0 0.0
  %5843 = vmatpush2.msra.mxu0 0.0
  %5844 = vmatprep.subr.mxu0 0.0
  %5845 = vmatpush2.msra.mxu0 0.0
  %5846 = vmatprep.mubr.f32.mxu0 0.0
  %v5847 = vand.u32 %v5387, 4294901760
  %5848 = vmatmul.mubr.f32.gmra.mxu0 %v5847
  %v5849 = vpop.f32.mrf.mxu0
  %v5850 = vadd.f32 %v5776, %v5849
  %v5851 = vpop.f32.mrf.mxu0
  %v5852 = vadd.f32 %v5778, %v5851
  %5853 = vdwg.mxu0
  %5854 = vrot.lane.b32.xlu0 %v4896, 15
  %v5855 = vpop.permute.xlu0 %5854
  %5856 = vrot.lane.b32.xlu0 %v4897, 15
  %v5857 = vpop.permute.xlu0 %5856
  %v5858 = vsel %vm1021, %v5855, %v5857
  %v5859 = vsel %vm1021, %v5857, %v5855
  %v5860 = vmul.f32 %v5859, %v1025
  %v5861 = vmul.f32 %v5858, %v1026
  %s5862 = scalar_lea.vmem %s2, 88
  %v5863 = vld [vmem:[%s5862] sm:$0xff]
  %v5865 = vsel %vm80, %v5863, 0
  %5867 = vmatprep.subr.mxu0 0.0
  %5868 = vmatpush1.msra.mxu0 0.0
  %5869 = vmatprep.subr.mxu0 0.0
  %5870 = vmatpush1.msra.mxu0 0.0
  %5871 = vmatprep.subr.mxu0 0.0
  %5872 = vmatpush1.msra.mxu0 0.0
  %5873 = vmatprep.subr.mxu0 0.0
  %5874 = vmatpush1.msra.mxu0 0.0
  %5875 = vmatprep.subr.mxu0 0.0
  %5876 = vmatpush1.msra.mxu0 0.0
  %5877 = vmatprep.subr.mxu0 0.0
  %5878 = vmatpush1.msra.mxu0 0.0
  %5879 = vmatprep.subr.mxu0 0.0
  %5880 = vmatpush1.msra.mxu0 0.0
  %5881 = vmatprep.subr.mxu0 0.0
  %5882 = vmatpush1.msra.mxu0 0.0
  %5883 = vmatprep.subr.mxu0 0.0
  %5884 = vmatpush1.msra.mxu0 0.0
  %5885 = vmatprep.subr.mxu0 0.0
  %5886 = vmatpush1.msra.mxu0 0.0
  %5887 = vmatprep.subr.mxu0 0.0
  %5888 = vmatpush1.msra.mxu0 0.0
  %5889 = vmatprep.subr.mxu0 0.0
  %5890 = vmatpush1.msra.mxu0 0.0
  %5891 = vmatprep.subr.mxu0 0.0
  %5892 = vmatpush1.msra.mxu0 0.0
  %5893 = vmatprep.subr.mxu0 0.0
  %5894 = vmatpush1.msra.mxu0 0.0
  %5895 = vmatprep.subr.mxu0 0.0
  %5896 = vmatpush1.msra.mxu0 0.0
  %v5897 = vand.u32 %v5861, 4294901760
  %5898 = vmatprep.subr.mxu0 %v5897
  %v5899 = vand.u32 %v5860, 4294901760
  %5900 = vmatpush1.msra.mxu0 %v5899
  %5901 = vmatprep.subr.mxu0 0.0
  %5902 = vmatpush2.msra.mxu0 0.0
  %5903 = vmatprep.subr.mxu0 0.0
  %5904 = vmatpush2.msra.mxu0 0.0
  %5905 = vmatprep.subr.mxu0 0.0
  %5906 = vmatpush2.msra.mxu0 0.0
  %5907 = vmatprep.subr.mxu0 0.0
  %5908 = vmatpush2.msra.mxu0 0.0
  %5909 = vmatprep.subr.mxu0 0.0
  %5910 = vmatpush2.msra.mxu0 0.0
  %5911 = vmatprep.subr.mxu0 0.0
  %5912 = vmatpush2.msra.mxu0 0.0
  %5913 = vmatprep.subr.mxu0 0.0
  %5914 = vmatpush2.msra.mxu0 0.0
  %5915 = vmatprep.subr.mxu0 0.0
  %5916 = vmatpush2.msra.mxu0 0.0
  %5917 = vmatprep.subr.mxu0 0.0
  %5918 = vmatpush2.msra.mxu0 0.0
  %5919 = vmatprep.subr.mxu0 0.0
  %5920 = vmatpush2.msra.mxu0 0.0
  %5921 = vmatprep.subr.mxu0 0.0
  %5922 = vmatpush2.msra.mxu0 0.0
  %5923 = vmatprep.subr.mxu0 0.0
  %5924 = vmatpush2.msra.mxu0 0.0
  %5925 = vmatprep.subr.mxu0 0.0
  %5926 = vmatpush2.msra.mxu0 0.0
  %5927 = vmatprep.subr.mxu0 0.0
  %5928 = vmatpush2.msra.mxu0 0.0
  %5929 = vmatprep.subr.mxu0 0.0
  %5930 = vmatpush2.msra.mxu0 0.0
  %5931 = vmatprep.subr.mxu0 0.0
  %5932 = vmatpush2.msra.mxu0 0.0
  %5933 = vmatprep.mubr.f32.mxu0 0.0
  %v5934 = vand.u32 %v5865, 4294901760
  %v5935 = vsub.f32 %v5865, %v5934
  %v5936 = vand.u32 %v5935, 4294901760
  %v5937 = vsub.f32 %v5935, %v5936
  %v5938 = vand.u32 %v5937, 4294901760
  %5939 = vmatmul.mubr.f32.gmra.mxu0 %v5938
  %v5940 = vpop.f32.mrf.mxu0
  %v5941 = vadd.f32 0.0, %v5940
  %v5942 = vpop.f32.mrf.mxu0
  %v5943 = vadd.f32 0.0, %v5942
  %5944 = vdwg.mxu0
  %5945 = vmatprep.subr.mxu0 0.0
  %5946 = vmatpush1.msra.mxu0 0.0
  %5947 = vmatprep.subr.mxu0 0.0
  %5948 = vmatpush1.msra.mxu0 0.0
  %5949 = vmatprep.subr.mxu0 0.0
  %5950 = vmatpush1.msra.mxu0 0.0
  %5951 = vmatprep.subr.mxu0 0.0
  %5952 = vmatpush1.msra.mxu0 0.0
  %5953 = vmatprep.subr.mxu0 0.0
  %5954 = vmatpush1.msra.mxu0 0.0
  %5955 = vmatprep.subr.mxu0 0.0
  %5956 = vmatpush1.msra.mxu0 0.0
  %5957 = vmatprep.subr.mxu0 0.0
  %5958 = vmatpush1.msra.mxu0 0.0
  %5959 = vmatprep.subr.mxu0 0.0
  %5960 = vmatpush1.msra.mxu0 0.0
  %5961 = vmatprep.subr.mxu0 0.0
  %5962 = vmatpush1.msra.mxu0 0.0
  %5963 = vmatprep.subr.mxu0 0.0
  %5964 = vmatpush1.msra.mxu0 0.0
  %5965 = vmatprep.subr.mxu0 0.0
  %5966 = vmatpush1.msra.mxu0 0.0
  %5967 = vmatprep.subr.mxu0 0.0
  %5968 = vmatpush1.msra.mxu0 0.0
  %5969 = vmatprep.subr.mxu0 0.0
  %5970 = vmatpush1.msra.mxu0 0.0
  %5971 = vmatprep.subr.mxu0 0.0
  %5972 = vmatpush1.msra.mxu0 0.0
  %5973 = vmatprep.subr.mxu0 0.0
  %5974 = vmatpush1.msra.mxu0 0.0
  %v5975 = vand.u32 %v5861, 4294901760
  %v5976 = vsub.f32 %v5861, %v5975
  %v5977 = vand.u32 %v5976, 4294901760
  %v5978 = vsub.f32 %v5976, %v5977
  %v5979 = vand.u32 %v5978, 4294901760
  %5980 = vmatprep.subr.mxu0 %v5979
  %v5981 = vand.u32 %v5860, 4294901760
  %v5982 = vsub.f32 %v5860, %v5981
  %v5983 = vand.u32 %v5982, 4294901760
  %v5984 = vsub.f32 %v5982, %v5983
  %v5985 = vand.u32 %v5984, 4294901760
  %5986 = vmatpush1.msra.mxu0 %v5985
  %5987 = vmatprep.subr.mxu0 0.0
  %5988 = vmatpush2.msra.mxu0 0.0
  %5989 = vmatprep.subr.mxu0 0.0
  %5990 = vmatpush2.msra.mxu0 0.0
  %5991 = vmatprep.subr.mxu0 0.0
  %5992 = vmatpush2.msra.mxu0 0.0
  %5993 = vmatprep.subr.mxu0 0.0
  %5994 = vmatpush2.msra.mxu0 0.0
  %5995 = vmatprep.subr.mxu0 0.0
  %5996 = vmatpush2.msra.mxu0 0.0
  %5997 = vmatprep.subr.mxu0 0.0
  %5998 = vmatpush2.msra.mxu0 0.0
  %5999 = vmatprep.subr.mxu0 0.0
  %6000 = vmatpush2.msra.mxu0 0.0
  %6001 = vmatprep.subr.mxu0 0.0
  %6002 = vmatpush2.msra.mxu0 0.0
  %6003 = vmatprep.subr.mxu0 0.0
  %6004 = vmatpush2.msra.mxu0 0.0
  %6005 = vmatprep.subr.mxu0 0.0
  %6006 = vmatpush2.msra.mxu0 0.0
  %6007 = vmatprep.subr.mxu0 0.0
  %6008 = vmatpush2.msra.mxu0 0.0
  %6009 = vmatprep.subr.mxu0 0.0
  %6010 = vmatpush2.msra.mxu0 0.0
  %6011 = vmatprep.subr.mxu0 0.0
  %6012 = vmatpush2.msra.mxu0 0.0
  %6013 = vmatprep.subr.mxu0 0.0
  %6014 = vmatpush2.msra.mxu0 0.0
  %6015 = vmatprep.subr.mxu0 0.0
  %6016 = vmatpush2.msra.mxu0 0.0
  %6017 = vmatprep.subr.mxu0 0.0
  %6018 = vmatpush2.msra.mxu0 0.0
  %6019 = vmatprep.mubr.f32.mxu0 0.0
  %v6020 = vand.u32 %v5865, 4294901760
  %6021 = vmatmul.mubr.f32.gmra.mxu0 %v6020
  %v6022 = vpop.f32.mrf.mxu0
  %v6023 = vadd.f32 %v5941, %v6022
  %v6024 = vpop.f32.mrf.mxu0
  %v6025 = vadd.f32 %v5943, %v6024
  %6026 = vdwg.mxu0
  %6027 = vmatprep.subr.mxu0 0.0
  %6028 = vmatpush1.msra.mxu0 0.0
  %6029 = vmatprep.subr.mxu0 0.0
  %6030 = vmatpush1.msra.mxu0 0.0
  %6031 = vmatprep.subr.mxu0 0.0
  %6032 = vmatpush1.msra.mxu0 0.0
  %6033 = vmatprep.subr.mxu0 0.0
  %6034 = vmatpush1.msra.mxu0 0.0
  %6035 = vmatprep.subr.mxu0 0.0
  %6036 = vmatpush1.msra.mxu0 0.0
  %6037 = vmatprep.subr.mxu0 0.0
  %6038 = vmatpush1.msra.mxu0 0.0
  %6039 = vmatprep.subr.mxu0 0.0
  %6040 = vmatpush1.msra.mxu0 0.0
  %6041 = vmatprep.subr.mxu0 0.0
  %6042 = vmatpush1.msra.mxu0 0.0
  %6043 = vmatprep.subr.mxu0 0.0
  %6044 = vmatpush1.msra.mxu0 0.0
  %6045 = vmatprep.subr.mxu0 0.0
  %6046 = vmatpush1.msra.mxu0 0.0
  %6047 = vmatprep.subr.mxu0 0.0
  %6048 = vmatpush1.msra.mxu0 0.0
  %6049 = vmatprep.subr.mxu0 0.0
  %6050 = vmatpush1.msra.mxu0 0.0
  %6051 = vmatprep.subr.mxu0 0.0
  %6052 = vmatpush1.msra.mxu0 0.0
  %6053 = vmatprep.subr.mxu0 0.0
  %6054 = vmatpush1.msra.mxu0 0.0
  %6055 = vmatprep.subr.mxu0 0.0
  %6056 = vmatpush1.msra.mxu0 0.0
  %v6057 = vand.u32 %v5861, 4294901760
  %v6058 = vsub.f32 %v5861, %v6057
  %6059 = vmatprep.subr.mxu0 %v6058
  %v6060 = vand.u32 %v5860, 4294901760
  %v6061 = vsub.f32 %v5860, %v6060
  %6062 = vmatpush1.msra.mxu0 %v6061
  %6063 = vmatprep.subr.mxu0 0.0
  %6064 = vmatpush2.msra.mxu0 0.0
  %6065 = vmatprep.subr.mxu0 0.0
  %6066 = vmatpush2.msra.mxu0 0.0
  %6067 = vmatprep.subr.mxu0 0.0
  %6068 = vmatpush2.msra.mxu0 0.0
  %6069 = vmatprep.subr.mxu0 0.0
  %6070 = vmatpush2.msra.mxu0 0.0
  %6071 = vmatprep.subr.mxu0 0.0
  %6072 = vmatpush2.msra.mxu0 0.0
  %6073 = vmatprep.subr.mxu0 0.0
  %6074 = vmatpush2.msra.mxu0 0.0
  %6075 = vmatprep.subr.mxu0 0.0
  %6076 = vmatpush2.msra.mxu0 0.0
  %6077 = vmatprep.subr.mxu0 0.0
  %6078 = vmatpush2.msra.mxu0 0.0
  %6079 = vmatprep.subr.mxu0 0.0
  %6080 = vmatpush2.msra.mxu0 0.0
  %6081 = vmatprep.subr.mxu0 0.0
  %6082 = vmatpush2.msra.mxu0 0.0
  %6083 = vmatprep.subr.mxu0 0.0
  %6084 = vmatpush2.msra.mxu0 0.0
  %6085 = vmatprep.subr.mxu0 0.0
  %6086 = vmatpush2.msra.mxu0 0.0
  %6087 = vmatprep.subr.mxu0 0.0
  %6088 = vmatpush2.msra.mxu0 0.0
  %6089 = vmatprep.subr.mxu0 0.0
  %6090 = vmatpush2.msra.mxu0 0.0
  %6091 = vmatprep.subr.mxu0 0.0
  %6092 = vmatpush2.msra.mxu0 0.0
  %6093 = vmatprep.subr.mxu0 0.0
  %6094 = vmatpush2.msra.mxu0 0.0
  %6095 = vmatprep.mubr.f32.mxu0 0.0
  %v6096 = vand.u32 %v5865, 4294901760
  %v6097 = vsub.f32 %v5865, %v6096
  %6098 = vmatmul.mubr.f32.gmra.mxu0 %v6097
  %v6099 = vpop.f32.mrf.mxu0
  %v6100 = vadd.f32 %v6023, %v6099
  %v6101 = vpop.f32.mrf.mxu0
  %v6102 = vadd.f32 %v6025, %v6101
  %6103 = vdwg.mxu0
  %6104 = vmatprep.subr.mxu0 0.0
  %6105 = vmatpush1.msra.mxu0 0.0
  %6106 = vmatprep.subr.mxu0 0.0
  %6107 = vmatpush1.msra.mxu0 0.0
  %6108 = vmatprep.subr.mxu0 0.0
  %6109 = vmatpush1.msra.mxu0 0.0
  %6110 = vmatprep.subr.mxu0 0.0
  %6111 = vmatpush1.msra.mxu0 0.0
  %6112 = vmatprep.subr.mxu0 0.0
  %6113 = vmatpush1.msra.mxu0 0.0
  %6114 = vmatprep.subr.mxu0 0.0
  %6115 = vmatpush1.msra.mxu0 0.0
  %6116 = vmatprep.subr.mxu0 0.0
  %6117 = vmatpush1.msra.mxu0 0.0
  %6118 = vmatprep.subr.mxu0 0.0
  %6119 = vmatpush1.msra.mxu0 0.0
  %6120 = vmatprep.subr.mxu0 0.0
  %6121 = vmatpush1.msra.mxu0 0.0
  %6122 = vmatprep.subr.mxu0 0.0
  %6123 = vmatpush1.msra.mxu0 0.0
  %6124 = vmatprep.subr.mxu0 0.0
  %6125 = vmatpush1.msra.mxu0 0.0
  %6126 = vmatprep.subr.mxu0 0.0
  %6127 = vmatpush1.msra.mxu0 0.0
  %6128 = vmatprep.subr.mxu0 0.0
  %6129 = vmatpush1.msra.mxu0 0.0
  %6130 = vmatprep.subr.mxu0 0.0
  %6131 = vmatpush1.msra.mxu0 0.0
  %6132 = vmatprep.subr.mxu0 0.0
  %6133 = vmatpush1.msra.mxu0 0.0
  %v6134 = vand.u32 %v5861, 4294901760
  %6135 = vmatprep.subr.mxu0 %v6134
  %v6136 = vand.u32 %v5860, 4294901760
  %6137 = vmatpush1.msra.mxu0 %v6136
  %6138 = vmatprep.subr.mxu0 0.0
  %6139 = vmatpush2.msra.mxu0 0.0
  %6140 = vmatprep.subr.mxu0 0.0
  %6141 = vmatpush2.msra.mxu0 0.0
  %6142 = vmatprep.subr.mxu0 0.0
  %6143 = vmatpush2.msra.mxu0 0.0
  %6144 = vmatprep.subr.mxu0 0.0
  %6145 = vmatpush2.msra.mxu0 0.0
  %6146 = vmatprep.subr.mxu0 0.0
  %6147 = vmatpush2.msra.mxu0 0.0
  %6148 = vmatprep.subr.mxu0 0.0
  %6149 = vmatpush2.msra.mxu0 0.0
  %6150 = vmatprep.subr.mxu0 0.0
  %6151 = vmatpush2.msra.mxu0 0.0
  %6152 = vmatprep.subr.mxu0 0.0
  %6153 = vmatpush2.msra.mxu0 0.0
  %6154 = vmatprep.subr.mxu0 0.0
  %6155 = vmatpush2.msra.mxu0 0.0
  %6156 = vmatprep.subr.mxu0 0.0
  %6157 = vmatpush2.msra.mxu0 0.0
  %6158 = vmatprep.subr.mxu0 0.0
  %6159 = vmatpush2.msra.mxu0 0.0
  %6160 = vmatprep.subr.mxu0 0.0
  %6161 = vmatpush2.msra.mxu0 0.0
  %6162 = vmatprep.subr.mxu0 0.0
  %6163 = vmatpush2.msra.mxu0 0.0
  %6164 = vmatprep.subr.mxu0 0.0
  %6165 = vmatpush2.msra.mxu0 0.0
  %6166 = vmatprep.subr.mxu0 0.0
  %6167 = vmatpush2.msra.mxu0 0.0
  %6168 = vmatprep.subr.mxu0 0.0
  %6169 = vmatpush2.msra.mxu0 0.0
  %6170 = vmatprep.mubr.f32.mxu0 0.0
  %v6171 = vand.u32 %v5865, 4294901760
  %v6172 = vsub.f32 %v5865, %v6171
  %v6173 = vand.u32 %v6172, 4294901760
  %6174 = vmatmul.mubr.f32.gmra.mxu0 %v6173
  %v6175 = vpop.f32.mrf.mxu0
  %v6176 = vadd.f32 %v6100, %v6175
  %v6177 = vpop.f32.mrf.mxu0
  %v6178 = vadd.f32 %v6102, %v6177
  %6179 = vdwg.mxu0
  %6180 = vmatprep.subr.mxu0 0.0
  %6181 = vmatpush1.msra.mxu0 0.0
  %6182 = vmatprep.subr.mxu0 0.0
  %6183 = vmatpush1.msra.mxu0 0.0
  %6184 = vmatprep.subr.mxu0 0.0
  %6185 = vmatpush1.msra.mxu0 0.0
  %6186 = vmatprep.subr.mxu0 0.0
  %6187 = vmatpush1.msra.mxu0 0.0
  %6188 = vmatprep.subr.mxu0 0.0
  %6189 = vmatpush1.msra.mxu0 0.0
  %6190 = vmatprep.subr.mxu0 0.0
  %6191 = vmatpush1.msra.mxu0 0.0
  %6192 = vmatprep.subr.mxu0 0.0
  %6193 = vmatpush1.msra.mxu0 0.0
  %6194 = vmatprep.subr.mxu0 0.0
  %6195 = vmatpush1.msra.mxu0 0.0
  %6196 = vmatprep.subr.mxu0 0.0
  %6197 = vmatpush1.msra.mxu0 0.0
  %6198 = vmatprep.subr.mxu0 0.0
  %6199 = vmatpush1.msra.mxu0 0.0
  %6200 = vmatprep.subr.mxu0 0.0
  %6201 = vmatpush1.msra.mxu0 0.0
  %6202 = vmatprep.subr.mxu0 0.0
  %6203 = vmatpush1.msra.mxu0 0.0
  %6204 = vmatprep.subr.mxu0 0.0
  %6205 = vmatpush1.msra.mxu0 0.0
  %6206 = vmatprep.subr.mxu0 0.0
  %6207 = vmatpush1.msra.mxu0 0.0
  %6208 = vmatprep.subr.mxu0 0.0
  %6209 = vmatpush1.msra.mxu0 0.0
  %v6210 = vand.u32 %v5861, 4294901760
  %v6211 = vsub.f32 %v5861, %v6210
  %v6212 = vand.u32 %v6211, 4294901760
  %6213 = vmatprep.subr.mxu0 %v6212
  %v6214 = vand.u32 %v5860, 4294901760
  %v6215 = vsub.f32 %v5860, %v6214
  %v6216 = vand.u32 %v6215, 4294901760
  %6217 = vmatpush1.msra.mxu0 %v6216
  %6218 = vmatprep.subr.mxu0 0.0
  %6219 = vmatpush2.msra.mxu0 0.0
  %6220 = vmatprep.subr.mxu0 0.0
  %6221 = vmatpush2.msra.mxu0 0.0
  %6222 = vmatprep.subr.mxu0 0.0
  %6223 = vmatpush2.msra.mxu0 0.0
  %6224 = vmatprep.subr.mxu0 0.0
  %6225 = vmatpush2.msra.mxu0 0.0
  %6226 = vmatprep.subr.mxu0 0.0
  %6227 = vmatpush2.msra.mxu0 0.0
  %6228 = vmatprep.subr.mxu0 0.0
  %6229 = vmatpush2.msra.mxu0 0.0
  %6230 = vmatprep.subr.mxu0 0.0
  %6231 = vmatpush2.msra.mxu0 0.0
  %6232 = vmatprep.subr.mxu0 0.0
  %6233 = vmatpush2.msra.mxu0 0.0
  %6234 = vmatprep.subr.mxu0 0.0
  %6235 = vmatpush2.msra.mxu0 0.0
  %6236 = vmatprep.subr.mxu0 0.0
  %6237 = vmatpush2.msra.mxu0 0.0
  %6238 = vmatprep.subr.mxu0 0.0
  %6239 = vmatpush2.msra.mxu0 0.0
  %6240 = vmatprep.subr.mxu0 0.0
  %6241 = vmatpush2.msra.mxu0 0.0
  %6242 = vmatprep.subr.mxu0 0.0
  %6243 = vmatpush2.msra.mxu0 0.0
  %6244 = vmatprep.subr.mxu0 0.0
  %6245 = vmatpush2.msra.mxu0 0.0
  %6246 = vmatprep.subr.mxu0 0.0
  %6247 = vmatpush2.msra.mxu0 0.0
  %6248 = vmatprep.subr.mxu0 0.0
  %6249 = vmatpush2.msra.mxu0 0.0
  %6250 = vmatprep.mubr.f32.mxu0 0.0
  %v6251 = vand.u32 %v5865, 4294901760
  %6252 = vmatmul.mubr.f32.gmra.mxu0 %v6251
  %v6253 = vpop.f32.mrf.mxu0
  %v6254 = vadd.f32 %v6176, %v6253
  %v6255 = vpop.f32.mrf.mxu0
  %v6256 = vadd.f32 %v6178, %v6255
  %6257 = vdwg.mxu0
  %6258 = vmatprep.subr.mxu0 0.0
  %6259 = vmatpush1.msra.mxu0 0.0
  %6260 = vmatprep.subr.mxu0 0.0
  %6261 = vmatpush1.msra.mxu0 0.0
  %6262 = vmatprep.subr.mxu0 0.0
  %6263 = vmatpush1.msra.mxu0 0.0
  %6264 = vmatprep.subr.mxu0 0.0
  %6265 = vmatpush1.msra.mxu0 0.0
  %6266 = vmatprep.subr.mxu0 0.0
  %6267 = vmatpush1.msra.mxu0 0.0
  %6268 = vmatprep.subr.mxu0 0.0
  %6269 = vmatpush1.msra.mxu0 0.0
  %6270 = vmatprep.subr.mxu0 0.0
  %6271 = vmatpush1.msra.mxu0 0.0
  %6272 = vmatprep.subr.mxu0 0.0
  %6273 = vmatpush1.msra.mxu0 0.0
  %6274 = vmatprep.subr.mxu0 0.0
  %6275 = vmatpush1.msra.mxu0 0.0
  %6276 = vmatprep.subr.mxu0 0.0
  %6277 = vmatpush1.msra.mxu0 0.0
  %6278 = vmatprep.subr.mxu0 0.0
  %6279 = vmatpush1.msra.mxu0 0.0
  %6280 = vmatprep.subr.mxu0 0.0
  %6281 = vmatpush1.msra.mxu0 0.0
  %6282 = vmatprep.subr.mxu0 0.0
  %6283 = vmatpush1.msra.mxu0 0.0
  %6284 = vmatprep.subr.mxu0 0.0
  %6285 = vmatpush1.msra.mxu0 0.0
  %6286 = vmatprep.subr.mxu0 0.0
  %6287 = vmatpush1.msra.mxu0 0.0
  %v6288 = vand.u32 %v5861, 4294901760
  %6289 = vmatprep.subr.mxu0 %v6288
  %v6290 = vand.u32 %v5860, 4294901760
  %6291 = vmatpush1.msra.mxu0 %v6290
  %6292 = vmatprep.subr.mxu0 0.0
  %6293 = vmatpush2.msra.mxu0 0.0
  %6294 = vmatprep.subr.mxu0 0.0
  %6295 = vmatpush2.msra.mxu0 0.0
  %6296 = vmatprep.subr.mxu0 0.0
  %6297 = vmatpush2.msra.mxu0 0.0
  %6298 = vmatprep.subr.mxu0 0.0
  %6299 = vmatpush2.msra.mxu0 0.0
  %6300 = vmatprep.subr.mxu0 0.0
  %6301 = vmatpush2.msra.mxu0 0.0
  %6302 = vmatprep.subr.mxu0 0.0
  %6303 = vmatpush2.msra.mxu0 0.0
  %6304 = vmatprep.subr.mxu0 0.0
  %6305 = vmatpush2.msra.mxu0 0.0
  %6306 = vmatprep.subr.mxu0 0.0
  %6307 = vmatpush2.msra.mxu0 0.0
  %6308 = vmatprep.subr.mxu0 0.0
  %6309 = vmatpush2.msra.mxu0 0.0
  %6310 = vmatprep.subr.mxu0 0.0
  %6311 = vmatpush2.msra.mxu0 0.0
  %6312 = vmatprep.subr.mxu0 0.0
  %6313 = vmatpush2.msra.mxu0 0.0
  %6314 = vmatprep.subr.mxu0 0.0
  %6315 = vmatpush2.msra.mxu0 0.0
  %6316 = vmatprep.subr.mxu0 0.0
  %6317 = vmatpush2.msra.mxu0 0.0
  %6318 = vmatprep.subr.mxu0 0.0
  %6319 = vmatpush2.msra.mxu0 0.0
  %6320 = vmatprep.subr.mxu0 0.0
  %6321 = vmatpush2.msra.mxu0 0.0
  %6322 = vmatprep.subr.mxu0 0.0
  %6323 = vmatpush2.msra.mxu0 0.0
  %6324 = vmatprep.mubr.f32.mxu0 0.0
  %v6325 = vand.u32 %v5865, 4294901760
  %6326 = vmatmul.mubr.f32.gmra.mxu0 %v6325
  %v6327 = vpop.f32.mrf.mxu0
  %v6328 = vadd.f32 %v6254, %v6327
  %v6329 = vpop.f32.mrf.mxu0
  %v6330 = vadd.f32 %v6256, %v6329
  %6331 = vdwg.mxu0
  %v6332 = vadd.f32 %v5850, %v6328
  %v6333 = vadd.f32 %v5852, %v6330
  %6334 = vrot.lane.b32.xlu0 %v4896, 1
  %v6335 = vpop.permute.xlu0 %6334
  %6336 = vrot.lane.b32.xlu0 %v4897, 1
  %v6337 = vpop.permute.xlu0 %6336
  %v6338 = vsel %vm1505, %v6335, %v6337
  %v6339 = vsel %vm1505, %v6337, %v6335
  %v6340 = vmul.f32 %v6339, %v1509
  %v6341 = vmul.f32 %v6338, %v1510
  %s6342 = scalar_lea.vmem %s2, 96
  %v6343 = vld [vmem:[%s6342] sm:$0xff]
  %v6345 = vsel %vm80, %v6343, 0
  %6347 = vmatprep.subr.mxu0 0.0
  %6348 = vmatpush1.msra.mxu0 0.0
  %6349 = vmatprep.subr.mxu0 0.0
  %6350 = vmatpush1.msra.mxu0 0.0
  %6351 = vmatprep.subr.mxu0 0.0
  %6352 = vmatpush1.msra.mxu0 0.0
  %6353 = vmatprep.subr.mxu0 0.0
  %6354 = vmatpush1.msra.mxu0 0.0
  %6355 = vmatprep.subr.mxu0 0.0
  %6356 = vmatpush1.msra.mxu0 0.0
  %6357 = vmatprep.subr.mxu0 0.0
  %6358 = vmatpush1.msra.mxu0 0.0
  %6359 = vmatprep.subr.mxu0 0.0
  %6360 = vmatpush1.msra.mxu0 0.0
  %6361 = vmatprep.subr.mxu0 0.0
  %6362 = vmatpush1.msra.mxu0 0.0
  %6363 = vmatprep.subr.mxu0 0.0
  %6364 = vmatpush1.msra.mxu0 0.0
  %6365 = vmatprep.subr.mxu0 0.0
  %6366 = vmatpush1.msra.mxu0 0.0
  %6367 = vmatprep.subr.mxu0 0.0
  %6368 = vmatpush1.msra.mxu0 0.0
  %6369 = vmatprep.subr.mxu0 0.0
  %6370 = vmatpush1.msra.mxu0 0.0
  %6371 = vmatprep.subr.mxu0 0.0
  %6372 = vmatpush1.msra.mxu0 0.0
  %6373 = vmatprep.subr.mxu0 0.0
  %6374 = vmatpush1.msra.mxu0 0.0
  %6375 = vmatprep.subr.mxu0 0.0
  %6376 = vmatpush1.msra.mxu0 0.0
  %v6377 = vand.u32 %v6341, 4294901760
  %6378 = vmatprep.subr.mxu0 %v6377
  %v6379 = vand.u32 %v6340, 4294901760
  %6380 = vmatpush1.msra.mxu0 %v6379
  %6381 = vmatprep.subr.mxu0 0.0
  %6382 = vmatpush2.msra.mxu0 0.0
  %6383 = vmatprep.subr.mxu0 0.0
  %6384 = vmatpush2.msra.mxu0 0.0
  %6385 = vmatprep.subr.mxu0 0.0
  %6386 = vmatpush2.msra.mxu0 0.0
  %6387 = vmatprep.subr.mxu0 0.0
  %6388 = vmatpush2.msra.mxu0 0.0
  %6389 = vmatprep.subr.mxu0 0.0
  %6390 = vmatpush2.msra.mxu0 0.0
  %6391 = vmatprep.subr.mxu0 0.0
  %6392 = vmatpush2.msra.mxu0 0.0
  %6393 = vmatprep.subr.mxu0 0.0
  %6394 = vmatpush2.msra.mxu0 0.0
  %6395 = vmatprep.subr.mxu0 0.0
  %6396 = vmatpush2.msra.mxu0 0.0
  %6397 = vmatprep.subr.mxu0 0.0
  %6398 = vmatpush2.msra.mxu0 0.0
  %6399 = vmatprep.subr.mxu0 0.0
  %6400 = vmatpush2.msra.mxu0 0.0
  %6401 = vmatprep.subr.mxu0 0.0
  %6402 = vmatpush2.msra.mxu0 0.0
  %6403 = vmatprep.subr.mxu0 0.0
  %6404 = vmatpush2.msra.mxu0 0.0
  %6405 = vmatprep.subr.mxu0 0.0
  %6406 = vmatpush2.msra.mxu0 0.0
  %6407 = vmatprep.subr.mxu0 0.0
  %6408 = vmatpush2.msra.mxu0 0.0
  %6409 = vmatprep.subr.mxu0 0.0
  %6410 = vmatpush2.msra.mxu0 0.0
  %6411 = vmatprep.subr.mxu0 0.0
  %6412 = vmatpush2.msra.mxu0 0.0
  %6413 = vmatprep.mubr.f32.mxu0 0.0
  %v6414 = vand.u32 %v6345, 4294901760
  %v6415 = vsub.f32 %v6345, %v6414
  %v6416 = vand.u32 %v6415, 4294901760
  %v6417 = vsub.f32 %v6415, %v6416
  %v6418 = vand.u32 %v6417, 4294901760
  %6419 = vmatmul.mubr.f32.gmra.mxu0 %v6418
  %v6420 = vpop.f32.mrf.mxu0
  %v6421 = vadd.f32 0.0, %v6420
  %v6422 = vpop.f32.mrf.mxu0
  %v6423 = vadd.f32 0.0, %v6422
  %6424 = vdwg.mxu0
  %6425 = vmatprep.subr.mxu0 0.0
  %6426 = vmatpush1.msra.mxu0 0.0
  %6427 = vmatprep.subr.mxu0 0.0
  %6428 = vmatpush1.msra.mxu0 0.0
  %6429 = vmatprep.subr.mxu0 0.0
  %6430 = vmatpush1.msra.mxu0 0.0
  %6431 = vmatprep.subr.mxu0 0.0
  %6432 = vmatpush1.msra.mxu0 0.0
  %6433 = vmatprep.subr.mxu0 0.0
  %6434 = vmatpush1.msra.mxu0 0.0
  %6435 = vmatprep.subr.mxu0 0.0
  %6436 = vmatpush1.msra.mxu0 0.0
  %6437 = vmatprep.subr.mxu0 0.0
  %6438 = vmatpush1.msra.mxu0 0.0
  %6439 = vmatprep.subr.mxu0 0.0
  %6440 = vmatpush1.msra.mxu0 0.0
  %6441 = vmatprep.subr.mxu0 0.0
  %6442 = vmatpush1.msra.mxu0 0.0
  %6443 = vmatprep.subr.mxu0 0.0
  %6444 = vmatpush1.msra.mxu0 0.0
  %6445 = vmatprep.subr.mxu0 0.0
  %6446 = vmatpush1.msra.mxu0 0.0
  %6447 = vmatprep.subr.mxu0 0.0
  %6448 = vmatpush1.msra.mxu0 0.0
  %6449 = vmatprep.subr.mxu0 0.0
  %6450 = vmatpush1.msra.mxu0 0.0
  %6451 = vmatprep.subr.mxu0 0.0
  %6452 = vmatpush1.msra.mxu0 0.0
  %6453 = vmatprep.subr.mxu0 0.0
  %6454 = vmatpush1.msra.mxu0 0.0
  %v6455 = vand.u32 %v6341, 4294901760
  %v6456 = vsub.f32 %v6341, %v6455
  %v6457 = vand.u32 %v6456, 4294901760
  %v6458 = vsub.f32 %v6456, %v6457
  %v6459 = vand.u32 %v6458, 4294901760
  %6460 = vmatprep.subr.mxu0 %v6459
  %v6461 = vand.u32 %v6340, 4294901760
  %v6462 = vsub.f32 %v6340, %v6461
  %v6463 = vand.u32 %v6462, 4294901760
  %v6464 = vsub.f32 %v6462, %v6463
  %v6465 = vand.u32 %v6464, 4294901760
  %6466 = vmatpush1.msra.mxu0 %v6465
  %6467 = vmatprep.subr.mxu0 0.0
  %6468 = vmatpush2.msra.mxu0 0.0
  %6469 = vmatprep.subr.mxu0 0.0
  %6470 = vmatpush2.msra.mxu0 0.0
  %6471 = vmatprep.subr.mxu0 0.0
  %6472 = vmatpush2.msra.mxu0 0.0
  %6473 = vmatprep.subr.mxu0 0.0
  %6474 = vmatpush2.msra.mxu0 0.0
  %6475 = vmatprep.subr.mxu0 0.0
  %6476 = vmatpush2.msra.mxu0 0.0
  %6477 = vmatprep.subr.mxu0 0.0
  %6478 = vmatpush2.msra.mxu0 0.0
  %6479 = vmatprep.subr.mxu0 0.0
  %6480 = vmatpush2.msra.mxu0 0.0
  %6481 = vmatprep.subr.mxu0 0.0
  %6482 = vmatpush2.msra.mxu0 0.0
  %6483 = vmatprep.subr.mxu0 0.0
  %6484 = vmatpush2.msra.mxu0 0.0
  %6485 = vmatprep.subr.mxu0 0.0
  %6486 = vmatpush2.msra.mxu0 0.0
  %6487 = vmatprep.subr.mxu0 0.0
  %6488 = vmatpush2.msra.mxu0 0.0
  %6489 = vmatprep.subr.mxu0 0.0
  %6490 = vmatpush2.msra.mxu0 0.0
  %6491 = vmatprep.subr.mxu0 0.0
  %6492 = vmatpush2.msra.mxu0 0.0
  %6493 = vmatprep.subr.mxu0 0.0
  %6494 = vmatpush2.msra.mxu0 0.0
  %6495 = vmatprep.subr.mxu0 0.0
  %6496 = vmatpush2.msra.mxu0 0.0
  %6497 = vmatprep.subr.mxu0 0.0
  %6498 = vmatpush2.msra.mxu0 0.0
  %6499 = vmatprep.mubr.f32.mxu0 0.0
  %v6500 = vand.u32 %v6345, 4294901760
  %6501 = vmatmul.mubr.f32.gmra.mxu0 %v6500
  %v6502 = vpop.f32.mrf.mxu0
  %v6503 = vadd.f32 %v6421, %v6502
  %v6504 = vpop.f32.mrf.mxu0
  %v6505 = vadd.f32 %v6423, %v6504
  %6506 = vdwg.mxu0
  %6507 = vmatprep.subr.mxu0 0.0
  %6508 = vmatpush1.msra.mxu0 0.0
  %6509 = vmatprep.subr.mxu0 0.0
  %6510 = vmatpush1.msra.mxu0 0.0
  %6511 = vmatprep.subr.mxu0 0.0
  %6512 = vmatpush1.msra.mxu0 0.0
  %6513 = vmatprep.subr.mxu0 0.0
  %6514 = vmatpush1.msra.mxu0 0.0
  %6515 = vmatprep.subr.mxu0 0.0
  %6516 = vmatpush1.msra.mxu0 0.0
  %6517 = vmatprep.subr.mxu0 0.0
  %6518 = vmatpush1.msra.mxu0 0.0
  %6519 = vmatprep.subr.mxu0 0.0
  %6520 = vmatpush1.msra.mxu0 0.0
  %6521 = vmatprep.subr.mxu0 0.0
  %6522 = vmatpush1.msra.mxu0 0.0
  %6523 = vmatprep.subr.mxu0 0.0
  %6524 = vmatpush1.msra.mxu0 0.0
  %6525 = vmatprep.subr.mxu0 0.0
  %6526 = vmatpush1.msra.mxu0 0.0
  %6527 = vmatprep.subr.mxu0 0.0
  %6528 = vmatpush1.msra.mxu0 0.0
  %6529 = vmatprep.subr.mxu0 0.0
  %6530 = vmatpush1.msra.mxu0 0.0
  %6531 = vmatprep.subr.mxu0 0.0
  %6532 = vmatpush1.msra.mxu0 0.0
  %6533 = vmatprep.subr.mxu0 0.0
  %6534 = vmatpush1.msra.mxu0 0.0
  %6535 = vmatprep.subr.mxu0 0.0
  %6536 = vmatpush1.msra.mxu0 0.0
  %v6537 = vand.u32 %v6341, 4294901760
  %v6538 = vsub.f32 %v6341, %v6537
  %6539 = vmatprep.subr.mxu0 %v6538
  %v6540 = vand.u32 %v6340, 4294901760
  %v6541 = vsub.f32 %v6340, %v6540
  %6542 = vmatpush1.msra.mxu0 %v6541
  %6543 = vmatprep.subr.mxu0 0.0
  %6544 = vmatpush2.msra.mxu0 0.0
  %6545 = vmatprep.subr.mxu0 0.0
  %6546 = vmatpush2.msra.mxu0 0.0
  %6547 = vmatprep.subr.mxu0 0.0
  %6548 = vmatpush2.msra.mxu0 0.0
  %6549 = vmatprep.subr.mxu0 0.0
  %6550 = vmatpush2.msra.mxu0 0.0
  %6551 = vmatprep.subr.mxu0 0.0
  %6552 = vmatpush2.msra.mxu0 0.0
  %6553 = vmatprep.subr.mxu0 0.0
  %6554 = vmatpush2.msra.mxu0 0.0
  %6555 = vmatprep.subr.mxu0 0.0
  %6556 = vmatpush2.msra.mxu0 0.0
  %6557 = vmatprep.subr.mxu0 0.0
  %6558 = vmatpush2.msra.mxu0 0.0
  %6559 = vmatprep.subr.mxu0 0.0
  %6560 = vmatpush2.msra.mxu0 0.0
  %6561 = vmatprep.subr.mxu0 0.0
  %6562 = vmatpush2.msra.mxu0 0.0
  %6563 = vmatprep.subr.mxu0 0.0
  %6564 = vmatpush2.msra.mxu0 0.0
  %6565 = vmatprep.subr.mxu0 0.0
  %6566 = vmatpush2.msra.mxu0 0.0
  %6567 = vmatprep.subr.mxu0 0.0
  %6568 = vmatpush2.msra.mxu0 0.0
  %6569 = vmatprep.subr.mxu0 0.0
  %6570 = vmatpush2.msra.mxu0 0.0
  %6571 = vmatprep.subr.mxu0 0.0
  %6572 = vmatpush2.msra.mxu0 0.0
  %6573 = vmatprep.subr.mxu0 0.0
  %6574 = vmatpush2.msra.mxu0 0.0
  %6575 = vmatprep.mubr.f32.mxu0 0.0
  %v6576 = vand.u32 %v6345, 4294901760
  %v6577 = vsub.f32 %v6345, %v6576
  %6578 = vmatmul.mubr.f32.gmra.mxu0 %v6577
  %v6579 = vpop.f32.mrf.mxu0
  %v6580 = vadd.f32 %v6503, %v6579
  %v6581 = vpop.f32.mrf.mxu0
  %v6582 = vadd.f32 %v6505, %v6581
  %6583 = vdwg.mxu0
  %6584 = vmatprep.subr.mxu0 0.0
  %6585 = vmatpush1.msra.mxu0 0.0
  %6586 = vmatprep.subr.mxu0 0.0
  %6587 = vmatpush1.msra.mxu0 0.0
  %6588 = vmatprep.subr.mxu0 0.0
  %6589 = vmatpush1.msra.mxu0 0.0
  %6590 = vmatprep.subr.mxu0 0.0
  %6591 = vmatpush1.msra.mxu0 0.0
  %6592 = vmatprep.subr.mxu0 0.0
  %6593 = vmatpush1.msra.mxu0 0.0
  %6594 = vmatprep.subr.mxu0 0.0
  %6595 = vmatpush1.msra.mxu0 0.0
  %6596 = vmatprep.subr.mxu0 0.0
  %6597 = vmatpush1.msra.mxu0 0.0
  %6598 = vmatprep.subr.mxu0 0.0
  %6599 = vmatpush1.msra.mxu0 0.0
  %6600 = vmatprep.subr.mxu0 0.0
  %6601 = vmatpush1.msra.mxu0 0.0
  %6602 = vmatprep.subr.mxu0 0.0
  %6603 = vmatpush1.msra.mxu0 0.0
  %6604 = vmatprep.subr.mxu0 0.0
  %6605 = vmatpush1.msra.mxu0 0.0
  %6606 = vmatprep.subr.mxu0 0.0
  %6607 = vmatpush1.msra.mxu0 0.0
  %6608 = vmatprep.subr.mxu0 0.0
  %6609 = vmatpush1.msra.mxu0 0.0
  %6610 = vmatprep.subr.mxu0 0.0
  %6611 = vmatpush1.msra.mxu0 0.0
  %6612 = vmatprep.subr.mxu0 0.0
  %6613 = vmatpush1.msra.mxu0 0.0
  %v6614 = vand.u32 %v6341, 4294901760
  %6615 = vmatprep.subr.mxu0 %v6614
  %v6616 = vand.u32 %v6340, 4294901760
  %6617 = vmatpush1.msra.mxu0 %v6616
  %6618 = vmatprep.subr.mxu0 0.0
  %6619 = vmatpush2.msra.mxu0 0.0
  %6620 = vmatprep.subr.mxu0 0.0
  %6621 = vmatpush2.msra.mxu0 0.0
  %6622 = vmatprep.subr.mxu0 0.0
  %6623 = vmatpush2.msra.mxu0 0.0
  %6624 = vmatprep.subr.mxu0 0.0
  %6625 = vmatpush2.msra.mxu0 0.0
  %6626 = vmatprep.subr.mxu0 0.0
  %6627 = vmatpush2.msra.mxu0 0.0
  %6628 = vmatprep.subr.mxu0 0.0
  %6629 = vmatpush2.msra.mxu0 0.0
  %6630 = vmatprep.subr.mxu0 0.0
  %6631 = vmatpush2.msra.mxu0 0.0
  %6632 = vmatprep.subr.mxu0 0.0
  %6633 = vmatpush2.msra.mxu0 0.0
  %6634 = vmatprep.subr.mxu0 0.0
  %6635 = vmatpush2.msra.mxu0 0.0
  %6636 = vmatprep.subr.mxu0 0.0
  %6637 = vmatpush2.msra.mxu0 0.0
  %6638 = vmatprep.subr.mxu0 0.0
  %6639 = vmatpush2.msra.mxu0 0.0
  %6640 = vmatprep.subr.mxu0 0.0
  %6641 = vmatpush2.msra.mxu0 0.0
  %6642 = vmatprep.subr.mxu0 0.0
  %6643 = vmatpush2.msra.mxu0 0.0
  %6644 = vmatprep.subr.mxu0 0.0
  %6645 = vmatpush2.msra.mxu0 0.0
  %6646 = vmatprep.subr.mxu0 0.0
  %6647 = vmatpush2.msra.mxu0 0.0
  %6648 = vmatprep.subr.mxu0 0.0
  %6649 = vmatpush2.msra.mxu0 0.0
  %6650 = vmatprep.mubr.f32.mxu0 0.0
  %v6651 = vand.u32 %v6345, 4294901760
  %v6652 = vsub.f32 %v6345, %v6651
  %v6653 = vand.u32 %v6652, 4294901760
  %6654 = vmatmul.mubr.f32.gmra.mxu0 %v6653
  %v6655 = vpop.f32.mrf.mxu0
  %v6656 = vadd.f32 %v6580, %v6655
  %v6657 = vpop.f32.mrf.mxu0
  %v6658 = vadd.f32 %v6582, %v6657
  %6659 = vdwg.mxu0
  %6660 = vmatprep.subr.mxu0 0.0
  %6661 = vmatpush1.msra.mxu0 0.0
  %6662 = vmatprep.subr.mxu0 0.0
  %6663 = vmatpush1.msra.mxu0 0.0
  %6664 = vmatprep.subr.mxu0 0.0
  %6665 = vmatpush1.msra.mxu0 0.0
  %6666 = vmatprep.subr.mxu0 0.0
  %6667 = vmatpush1.msra.mxu0 0.0
  %6668 = vmatprep.subr.mxu0 0.0
  %6669 = vmatpush1.msra.mxu0 0.0
  %6670 = vmatprep.subr.mxu0 0.0
  %6671 = vmatpush1.msra.mxu0 0.0
  %6672 = vmatprep.subr.mxu0 0.0
  %6673 = vmatpush1.msra.mxu0 0.0
  %6674 = vmatprep.subr.mxu0 0.0
  %6675 = vmatpush1.msra.mxu0 0.0
  %6676 = vmatprep.subr.mxu0 0.0
  %6677 = vmatpush1.msra.mxu0 0.0
  %6678 = vmatprep.subr.mxu0 0.0
  %6679 = vmatpush1.msra.mxu0 0.0
  %6680 = vmatprep.subr.mxu0 0.0
  %6681 = vmatpush1.msra.mxu0 0.0
  %6682 = vmatprep.subr.mxu0 0.0
  %6683 = vmatpush1.msra.mxu0 0.0
  %6684 = vmatprep.subr.mxu0 0.0
  %6685 = vmatpush1.msra.mxu0 0.0
  %6686 = vmatprep.subr.mxu0 0.0
  %6687 = vmatpush1.msra.mxu0 0.0
  %6688 = vmatprep.subr.mxu0 0.0
  %6689 = vmatpush1.msra.mxu0 0.0
  %v6690 = vand.u32 %v6341, 4294901760
  %v6691 = vsub.f32 %v6341, %v6690
  %v6692 = vand.u32 %v6691, 4294901760
  %6693 = vmatprep.subr.mxu0 %v6692
  %v6694 = vand.u32 %v6340, 4294901760
  %v6695 = vsub.f32 %v6340, %v6694
  %v6696 = vand.u32 %v6695, 4294901760
  %6697 = vmatpush1.msra.mxu0 %v6696
  %6698 = vmatprep.subr.mxu0 0.0
  %6699 = vmatpush2.msra.mxu0 0.0
  %6700 = vmatprep.subr.mxu0 0.0
  %6701 = vmatpush2.msra.mxu0 0.0
  %6702 = vmatprep.subr.mxu0 0.0
  %6703 = vmatpush2.msra.mxu0 0.0
  %6704 = vmatprep.subr.mxu0 0.0
  %6705 = vmatpush2.msra.mxu0 0.0
  %6706 = vmatprep.subr.mxu0 0.0
  %6707 = vmatpush2.msra.mxu0 0.0
  %6708 = vmatprep.subr.mxu0 0.0
  %6709 = vmatpush2.msra.mxu0 0.0
  %6710 = vmatprep.subr.mxu0 0.0
  %6711 = vmatpush2.msra.mxu0 0.0
  %6712 = vmatprep.subr.mxu0 0.0
  %6713 = vmatpush2.msra.mxu0 0.0
  %6714 = vmatprep.subr.mxu0 0.0
  %6715 = vmatpush2.msra.mxu0 0.0
  %6716 = vmatprep.subr.mxu0 0.0
  %6717 = vmatpush2.msra.mxu0 0.0
  %6718 = vmatprep.subr.mxu0 0.0
  %6719 = vmatpush2.msra.mxu0 0.0
  %6720 = vmatprep.subr.mxu0 0.0
  %6721 = vmatpush2.msra.mxu0 0.0
  %6722 = vmatprep.subr.mxu0 0.0
  %6723 = vmatpush2.msra.mxu0 0.0
  %6724 = vmatprep.subr.mxu0 0.0
  %6725 = vmatpush2.msra.mxu0 0.0
  %6726 = vmatprep.subr.mxu0 0.0
  %6727 = vmatpush2.msra.mxu0 0.0
  %6728 = vmatprep.subr.mxu0 0.0
  %6729 = vmatpush2.msra.mxu0 0.0
  %6730 = vmatprep.mubr.f32.mxu0 0.0
  %v6731 = vand.u32 %v6345, 4294901760
  %6732 = vmatmul.mubr.f32.gmra.mxu0 %v6731
  %v6733 = vpop.f32.mrf.mxu0
  %v6734 = vadd.f32 %v6656, %v6733
  %v6735 = vpop.f32.mrf.mxu0
  %v6736 = vadd.f32 %v6658, %v6735
  %6737 = vdwg.mxu0
  %6738 = vmatprep.subr.mxu0 0.0
  %6739 = vmatpush1.msra.mxu0 0.0
  %6740 = vmatprep.subr.mxu0 0.0
  %6741 = vmatpush1.msra.mxu0 0.0
  %6742 = vmatprep.subr.mxu0 0.0
  %6743 = vmatpush1.msra.mxu0 0.0
  %6744 = vmatprep.subr.mxu0 0.0
  %6745 = vmatpush1.msra.mxu0 0.0
  %6746 = vmatprep.subr.mxu0 0.0
  %6747 = vmatpush1.msra.mxu0 0.0
  %6748 = vmatprep.subr.mxu0 0.0
  %6749 = vmatpush1.msra.mxu0 0.0
  %6750 = vmatprep.subr.mxu0 0.0
  %6751 = vmatpush1.msra.mxu0 0.0
  %6752 = vmatprep.subr.mxu0 0.0
  %6753 = vmatpush1.msra.mxu0 0.0
  %6754 = vmatprep.subr.mxu0 0.0
  %6755 = vmatpush1.msra.mxu0 0.0
  %6756 = vmatprep.subr.mxu0 0.0
  %6757 = vmatpush1.msra.mxu0 0.0
  %6758 = vmatprep.subr.mxu0 0.0
  %6759 = vmatpush1.msra.mxu0 0.0
  %6760 = vmatprep.subr.mxu0 0.0
  %6761 = vmatpush1.msra.mxu0 0.0
  %6762 = vmatprep.subr.mxu0 0.0
  %6763 = vmatpush1.msra.mxu0 0.0
  %6764 = vmatprep.subr.mxu0 0.0
  %6765 = vmatpush1.msra.mxu0 0.0
  %6766 = vmatprep.subr.mxu0 0.0
  %6767 = vmatpush1.msra.mxu0 0.0
  %v6768 = vand.u32 %v6341, 4294901760
  %6769 = vmatprep.subr.mxu0 %v6768
  %v6770 = vand.u32 %v6340, 4294901760
  %6771 = vmatpush1.msra.mxu0 %v6770
  %6772 = vmatprep.subr.mxu0 0.0
  %6773 = vmatpush2.msra.mxu0 0.0
  %6774 = vmatprep.subr.mxu0 0.0
  %6775 = vmatpush2.msra.mxu0 0.0
  %6776 = vmatprep.subr.mxu0 0.0
  %6777 = vmatpush2.msra.mxu0 0.0
  %6778 = vmatprep.subr.mxu0 0.0
  %6779 = vmatpush2.msra.mxu0 0.0
  %6780 = vmatprep.subr.mxu0 0.0
  %6781 = vmatpush2.msra.mxu0 0.0
  %6782 = vmatprep.subr.mxu0 0.0
  %6783 = vmatpush2.msra.mxu0 0.0
  %6784 = vmatprep.subr.mxu0 0.0
  %6785 = vmatpush2.msra.mxu0 0.0
  %6786 = vmatprep.subr.mxu0 0.0
  %6787 = vmatpush2.msra.mxu0 0.0
  %6788 = vmatprep.subr.mxu0 0.0
  %6789 = vmatpush2.msra.mxu0 0.0
  %6790 = vmatprep.subr.mxu0 0.0
  %6791 = vmatpush2.msra.mxu0 0.0
  %6792 = vmatprep.subr.mxu0 0.0
  %6793 = vmatpush2.msra.mxu0 0.0
  %6794 = vmatprep.subr.mxu0 0.0
  %6795 = vmatpush2.msra.mxu0 0.0
  %6796 = vmatprep.subr.mxu0 0.0
  %6797 = vmatpush2.msra.mxu0 0.0
  %6798 = vmatprep.subr.mxu0 0.0
  %6799 = vmatpush2.msra.mxu0 0.0
  %6800 = vmatprep.subr.mxu0 0.0
  %6801 = vmatpush2.msra.mxu0 0.0
  %6802 = vmatprep.subr.mxu0 0.0
  %6803 = vmatpush2.msra.mxu0 0.0
  %6804 = vmatprep.mubr.f32.mxu0 0.0
  %v6805 = vand.u32 %v6345, 4294901760
  %6806 = vmatmul.mubr.f32.gmra.mxu0 %v6805
  %v6807 = vpop.f32.mrf.mxu0
  %v6808 = vadd.f32 %v6734, %v6807
  %v6809 = vpop.f32.mrf.mxu0
  %v6810 = vadd.f32 %v6736, %v6809
  %6811 = vdwg.mxu0
  %v6812 = vadd.f32 %v6332, %v6808
  %v6813 = vadd.f32 %v6333, %v6810
  %s6814 = scalar_lea.vmem %s2, 104
  %v6815 = vld [vmem:[%s6814] sm:$0xff]
  %v6817 = vsel %vm80, %v6815, 0
  %6819 = vmatprep.subr.mxu0 0.0
  %6820 = vmatpush1.msra.mxu0 0.0
  %6821 = vmatprep.subr.mxu0 0.0
  %6822 = vmatpush1.msra.mxu0 0.0
  %6823 = vmatprep.subr.mxu0 0.0
  %6824 = vmatpush1.msra.mxu0 0.0
  %6825 = vmatprep.subr.mxu0 0.0
  %6826 = vmatpush1.msra.mxu0 0.0
  %6827 = vmatprep.subr.mxu0 0.0
  %6828 = vmatpush1.msra.mxu0 0.0
  %6829 = vmatprep.subr.mxu0 0.0
  %6830 = vmatpush1.msra.mxu0 0.0
  %6831 = vmatprep.subr.mxu0 0.0
  %6832 = vmatpush1.msra.mxu0 0.0
  %6833 = vmatprep.subr.mxu0 0.0
  %6834 = vmatpush1.msra.mxu0 0.0
  %6835 = vmatprep.subr.mxu0 0.0
  %6836 = vmatpush1.msra.mxu0 0.0
  %6837 = vmatprep.subr.mxu0 0.0
  %6838 = vmatpush1.msra.mxu0 0.0
  %6839 = vmatprep.subr.mxu0 0.0
  %6840 = vmatpush1.msra.mxu0 0.0
  %6841 = vmatprep.subr.mxu0 0.0
  %6842 = vmatpush1.msra.mxu0 0.0
  %6843 = vmatprep.subr.mxu0 0.0
  %6844 = vmatpush1.msra.mxu0 0.0
  %6845 = vmatprep.subr.mxu0 0.0
  %6846 = vmatpush1.msra.mxu0 0.0
  %6847 = vmatprep.subr.mxu0 0.0
  %6848 = vmatpush1.msra.mxu0 0.0
  %v6849 = vand.u32 %v4897, 4294901760
  %6850 = vmatprep.subr.mxu0 %v6849
  %v6851 = vand.u32 %v4896, 4294901760
  %6852 = vmatpush1.msra.mxu0 %v6851
  %6853 = vmatprep.subr.mxu0 0.0
  %6854 = vmatpush2.msra.mxu0 0.0
  %6855 = vmatprep.subr.mxu0 0.0
  %6856 = vmatpush2.msra.mxu0 0.0
  %6857 = vmatprep.subr.mxu0 0.0
  %6858 = vmatpush2.msra.mxu0 0.0
  %6859 = vmatprep.subr.mxu0 0.0
  %6860 = vmatpush2.msra.mxu0 0.0
  %6861 = vmatprep.subr.mxu0 0.0
  %6862 = vmatpush2.msra.mxu0 0.0
  %6863 = vmatprep.subr.mxu0 0.0
  %6864 = vmatpush2.msra.mxu0 0.0
  %6865 = vmatprep.subr.mxu0 0.0
  %6866 = vmatpush2.msra.mxu0 0.0
  %6867 = vmatprep.subr.mxu0 0.0
  %6868 = vmatpush2.msra.mxu0 0.0
  %6869 = vmatprep.subr.mxu0 0.0
  %6870 = vmatpush2.msra.mxu0 0.0
  %6871 = vmatprep.subr.mxu0 0.0
  %6872 = vmatpush2.msra.mxu0 0.0
  %6873 = vmatprep.subr.mxu0 0.0
  %6874 = vmatpush2.msra.mxu0 0.0
  %6875 = vmatprep.subr.mxu0 0.0
  %6876 = vmatpush2.msra.mxu0 0.0
  %6877 = vmatprep.subr.mxu0 0.0
  %6878 = vmatpush2.msra.mxu0 0.0
  %6879 = vmatprep.subr.mxu0 0.0
  %6880 = vmatpush2.msra.mxu0 0.0
  %6881 = vmatprep.subr.mxu0 0.0
  %6882 = vmatpush2.msra.mxu0 0.0
  %6883 = vmatprep.subr.mxu0 0.0
  %6884 = vmatpush2.msra.mxu0 0.0
  %6885 = vmatprep.mubr.f32.mxu0 0.0
  %v6886 = vand.u32 %v6817, 4294901760
  %v6887 = vsub.f32 %v6817, %v6886
  %v6888 = vand.u32 %v6887, 4294901760
  %v6889 = vsub.f32 %v6887, %v6888
  %v6890 = vand.u32 %v6889, 4294901760
  %6891 = vmatmul.mubr.f32.gmra.mxu0 %v6890
  %v6892 = vpop.f32.mrf.mxu0
  %v6893 = vadd.f32 0.0, %v6892
  %v6894 = vpop.f32.mrf.mxu0
  %v6895 = vadd.f32 0.0, %v6894
  %6896 = vdwg.mxu0
  %6897 = vmatprep.subr.mxu0 0.0
  %6898 = vmatpush1.msra.mxu0 0.0
  %6899 = vmatprep.subr.mxu0 0.0
  %6900 = vmatpush1.msra.mxu0 0.0
  %6901 = vmatprep.subr.mxu0 0.0
  %6902 = vmatpush1.msra.mxu0 0.0
  %6903 = vmatprep.subr.mxu0 0.0
  %6904 = vmatpush1.msra.mxu0 0.0
  %6905 = vmatprep.subr.mxu0 0.0
  %6906 = vmatpush1.msra.mxu0 0.0
  %6907 = vmatprep.subr.mxu0 0.0
  %6908 = vmatpush1.msra.mxu0 0.0
  %6909 = vmatprep.subr.mxu0 0.0
  %6910 = vmatpush1.msra.mxu0 0.0
  %6911 = vmatprep.subr.mxu0 0.0
  %6912 = vmatpush1.msra.mxu0 0.0
  %6913 = vmatprep.subr.mxu0 0.0
  %6914 = vmatpush1.msra.mxu0 0.0
  %6915 = vmatprep.subr.mxu0 0.0
  %6916 = vmatpush1.msra.mxu0 0.0
  %6917 = vmatprep.subr.mxu0 0.0
  %6918 = vmatpush1.msra.mxu0 0.0
  %6919 = vmatprep.subr.mxu0 0.0
  %6920 = vmatpush1.msra.mxu0 0.0
  %6921 = vmatprep.subr.mxu0 0.0
  %6922 = vmatpush1.msra.mxu0 0.0
  %6923 = vmatprep.subr.mxu0 0.0
  %6924 = vmatpush1.msra.mxu0 0.0
  %6925 = vmatprep.subr.mxu0 0.0
  %6926 = vmatpush1.msra.mxu0 0.0
  %v6927 = vand.u32 %v4897, 4294901760
  %v6928 = vsub.f32 %v4897, %v6927
  %v6929 = vand.u32 %v6928, 4294901760
  %v6930 = vsub.f32 %v6928, %v6929
  %v6931 = vand.u32 %v6930, 4294901760
  %6932 = vmatprep.subr.mxu0 %v6931
  %v6933 = vand.u32 %v4896, 4294901760
  %v6934 = vsub.f32 %v4896, %v6933
  %v6935 = vand.u32 %v6934, 4294901760
  %v6936 = vsub.f32 %v6934, %v6935
  %v6937 = vand.u32 %v6936, 4294901760
  %6938 = vmatpush1.msra.mxu0 %v6937
  %6939 = vmatprep.subr.mxu0 0.0
  %6940 = vmatpush2.msra.mxu0 0.0
  %6941 = vmatprep.subr.mxu0 0.0
  %6942 = vmatpush2.msra.mxu0 0.0
  %6943 = vmatprep.subr.mxu0 0.0
  %6944 = vmatpush2.msra.mxu0 0.0
  %6945 = vmatprep.subr.mxu0 0.0
  %6946 = vmatpush2.msra.mxu0 0.0
  %6947 = vmatprep.subr.mxu0 0.0
  %6948 = vmatpush2.msra.mxu0 0.0
  %6949 = vmatprep.subr.mxu0 0.0
  %6950 = vmatpush2.msra.mxu0 0.0
  %6951 = vmatprep.subr.mxu0 0.0
  %6952 = vmatpush2.msra.mxu0 0.0
  %6953 = vmatprep.subr.mxu0 0.0
  %6954 = vmatpush2.msra.mxu0 0.0
  %6955 = vmatprep.subr.mxu0 0.0
  %6956 = vmatpush2.msra.mxu0 0.0
  %6957 = vmatprep.subr.mxu0 0.0
  %6958 = vmatpush2.msra.mxu0 0.0
  %6959 = vmatprep.subr.mxu0 0.0
  %6960 = vmatpush2.msra.mxu0 0.0
  %6961 = vmatprep.subr.mxu0 0.0
  %6962 = vmatpush2.msra.mxu0 0.0
  %6963 = vmatprep.subr.mxu0 0.0
  %6964 = vmatpush2.msra.mxu0 0.0
  %6965 = vmatprep.subr.mxu0 0.0
  %6966 = vmatpush2.msra.mxu0 0.0
  %6967 = vmatprep.subr.mxu0 0.0
  %6968 = vmatpush2.msra.mxu0 0.0
  %6969 = vmatprep.subr.mxu0 0.0
  %6970 = vmatpush2.msra.mxu0 0.0
  %6971 = vmatprep.mubr.f32.mxu0 0.0
  %v6972 = vand.u32 %v6817, 4294901760
  %6973 = vmatmul.mubr.f32.gmra.mxu0 %v6972
  %v6974 = vpop.f32.mrf.mxu0
  %v6975 = vadd.f32 %v6893, %v6974
  %v6976 = vpop.f32.mrf.mxu0
  %v6977 = vadd.f32 %v6895, %v6976
  %6978 = vdwg.mxu0
  %6979 = vmatprep.subr.mxu0 0.0
  %6980 = vmatpush1.msra.mxu0 0.0
  %6981 = vmatprep.subr.mxu0 0.0
  %6982 = vmatpush1.msra.mxu0 0.0
  %6983 = vmatprep.subr.mxu0 0.0
  %6984 = vmatpush1.msra.mxu0 0.0
  %6985 = vmatprep.subr.mxu0 0.0
  %6986 = vmatpush1.msra.mxu0 0.0
  %6987 = vmatprep.subr.mxu0 0.0
  %6988 = vmatpush1.msra.mxu0 0.0
  %6989 = vmatprep.subr.mxu0 0.0
  %6990 = vmatpush1.msra.mxu0 0.0
  %6991 = vmatprep.subr.mxu0 0.0
  %6992 = vmatpush1.msra.mxu0 0.0
  %6993 = vmatprep.subr.mxu0 0.0
  %6994 = vmatpush1.msra.mxu0 0.0
  %6995 = vmatprep.subr.mxu0 0.0
  %6996 = vmatpush1.msra.mxu0 0.0
  %6997 = vmatprep.subr.mxu0 0.0
  %6998 = vmatpush1.msra.mxu0 0.0
  %6999 = vmatprep.subr.mxu0 0.0
  %7000 = vmatpush1.msra.mxu0 0.0
  %7001 = vmatprep.subr.mxu0 0.0
  %7002 = vmatpush1.msra.mxu0 0.0
  %7003 = vmatprep.subr.mxu0 0.0
  %7004 = vmatpush1.msra.mxu0 0.0
  %7005 = vmatprep.subr.mxu0 0.0
  %7006 = vmatpush1.msra.mxu0 0.0
  %7007 = vmatprep.subr.mxu0 0.0
  %7008 = vmatpush1.msra.mxu0 0.0
  %v7009 = vand.u32 %v4897, 4294901760
  %v7010 = vsub.f32 %v4897, %v7009
  %7011 = vmatprep.subr.mxu0 %v7010
  %v7012 = vand.u32 %v4896, 4294901760
  %v7013 = vsub.f32 %v4896, %v7012
  %7014 = vmatpush1.msra.mxu0 %v7013
  %7015 = vmatprep.subr.mxu0 0.0
  %7016 = vmatpush2.msra.mxu0 0.0
  %7017 = vmatprep.subr.mxu0 0.0
  %7018 = vmatpush2.msra.mxu0 0.0
  %7019 = vmatprep.subr.mxu0 0.0
  %7020 = vmatpush2.msra.mxu0 0.0
  %7021 = vmatprep.subr.mxu0 0.0
  %7022 = vmatpush2.msra.mxu0 0.0
  %7023 = vmatprep.subr.mxu0 0.0
  %7024 = vmatpush2.msra.mxu0 0.0
  %7025 = vmatprep.subr.mxu0 0.0
  %7026 = vmatpush2.msra.mxu0 0.0
  %7027 = vmatprep.subr.mxu0 0.0
  %7028 = vmatpush2.msra.mxu0 0.0
  %7029 = vmatprep.subr.mxu0 0.0
  %7030 = vmatpush2.msra.mxu0 0.0
  %7031 = vmatprep.subr.mxu0 0.0
  %7032 = vmatpush2.msra.mxu0 0.0
  %7033 = vmatprep.subr.mxu0 0.0
  %7034 = vmatpush2.msra.mxu0 0.0
  %7035 = vmatprep.subr.mxu0 0.0
  %7036 = vmatpush2.msra.mxu0 0.0
  %7037 = vmatprep.subr.mxu0 0.0
  %7038 = vmatpush2.msra.mxu0 0.0
  %7039 = vmatprep.subr.mxu0 0.0
  %7040 = vmatpush2.msra.mxu0 0.0
  %7041 = vmatprep.subr.mxu0 0.0
  %7042 = vmatpush2.msra.mxu0 0.0
  %7043 = vmatprep.subr.mxu0 0.0
  %7044 = vmatpush2.msra.mxu0 0.0
  %7045 = vmatprep.subr.mxu0 0.0
  %7046 = vmatpush2.msra.mxu0 0.0
  %7047 = vmatprep.mubr.f32.mxu0 0.0
  %v7048 = vand.u32 %v6817, 4294901760
  %v7049 = vsub.f32 %v6817, %v7048
  %7050 = vmatmul.mubr.f32.gmra.mxu0 %v7049
  %v7051 = vpop.f32.mrf.mxu0
  %v7052 = vadd.f32 %v6975, %v7051
  %v7053 = vpop.f32.mrf.mxu0
  %v7054 = vadd.f32 %v6977, %v7053
  %7055 = vdwg.mxu0
  %7056 = vmatprep.subr.mxu0 0.0
  %7057 = vmatpush1.msra.mxu0 0.0
  %7058 = vmatprep.subr.mxu0 0.0
  %7059 = vmatpush1.msra.mxu0 0.0
  %7060 = vmatprep.subr.mxu0 0.0
  %7061 = vmatpush1.msra.mxu0 0.0
  %7062 = vmatprep.subr.mxu0 0.0
  %7063 = vmatpush1.msra.mxu0 0.0
  %7064 = vmatprep.subr.mxu0 0.0
  %7065 = vmatpush1.msra.mxu0 0.0
  %7066 = vmatprep.subr.mxu0 0.0
  %7067 = vmatpush1.msra.mxu0 0.0
  %7068 = vmatprep.subr.mxu0 0.0
  %7069 = vmatpush1.msra.mxu0 0.0
  %7070 = vmatprep.subr.mxu0 0.0
  %7071 = vmatpush1.msra.mxu0 0.0
  %7072 = vmatprep.subr.mxu0 0.0
  %7073 = vmatpush1.msra.mxu0 0.0
  %7074 = vmatprep.subr.mxu0 0.0
  %7075 = vmatpush1.msra.mxu0 0.0
  %7076 = vmatprep.subr.mxu0 0.0
  %7077 = vmatpush1.msra.mxu0 0.0
  %7078 = vmatprep.subr.mxu0 0.0
  %7079 = vmatpush1.msra.mxu0 0.0
  %7080 = vmatprep.subr.mxu0 0.0
  %7081 = vmatpush1.msra.mxu0 0.0
  %7082 = vmatprep.subr.mxu0 0.0
  %7083 = vmatpush1.msra.mxu0 0.0
  %7084 = vmatprep.subr.mxu0 0.0
  %7085 = vmatpush1.msra.mxu0 0.0
  %v7086 = vand.u32 %v4897, 4294901760
  %7087 = vmatprep.subr.mxu0 %v7086
  %v7088 = vand.u32 %v4896, 4294901760
  %7089 = vmatpush1.msra.mxu0 %v7088
  %7090 = vmatprep.subr.mxu0 0.0
  %7091 = vmatpush2.msra.mxu0 0.0
  %7092 = vmatprep.subr.mxu0 0.0
  %7093 = vmatpush2.msra.mxu0 0.0
  %7094 = vmatprep.subr.mxu0 0.0
  %7095 = vmatpush2.msra.mxu0 0.0
  %7096 = vmatprep.subr.mxu0 0.0
  %7097 = vmatpush2.msra.mxu0 0.0
  %7098 = vmatprep.subr.mxu0 0.0
  %7099 = vmatpush2.msra.mxu0 0.0
  %7100 = vmatprep.subr.mxu0 0.0
  %7101 = vmatpush2.msra.mxu0 0.0
  %7102 = vmatprep.subr.mxu0 0.0
  %7103 = vmatpush2.msra.mxu0 0.0
  %7104 = vmatprep.subr.mxu0 0.0
  %7105 = vmatpush2.msra.mxu0 0.0
  %7106 = vmatprep.subr.mxu0 0.0
  %7107 = vmatpush2.msra.mxu0 0.0
  %7108 = vmatprep.subr.mxu0 0.0
  %7109 = vmatpush2.msra.mxu0 0.0
  %7110 = vmatprep.subr.mxu0 0.0
  %7111 = vmatpush2.msra.mxu0 0.0
  %7112 = vmatprep.subr.mxu0 0.0
  %7113 = vmatpush2.msra.mxu0 0.0
  %7114 = vmatprep.subr.mxu0 0.0
  %7115 = vmatpush2.msra.mxu0 0.0
  %7116 = vmatprep.subr.mxu0 0.0
  %7117 = vmatpush2.msra.mxu0 0.0
  %7118 = vmatprep.subr.mxu0 0.0
  %7119 = vmatpush2.msra.mxu0 0.0
  %7120 = vmatprep.subr.mxu0 0.0
  %7121 = vmatpush2.msra.mxu0 0.0
  %7122 = vmatprep.mubr.f32.mxu0 0.0
  %v7123 = vand.u32 %v6817, 4294901760
  %v7124 = vsub.f32 %v6817, %v7123
  %v7125 = vand.u32 %v7124, 4294901760
  %7126 = vmatmul.mubr.f32.gmra.mxu0 %v7125
  %v7127 = vpop.f32.mrf.mxu0
  %v7128 = vadd.f32 %v7052, %v7127
  %v7129 = vpop.f32.mrf.mxu0
  %v7130 = vadd.f32 %v7054, %v7129
  %7131 = vdwg.mxu0
  %7132 = vmatprep.subr.mxu0 0.0
  %7133 = vmatpush1.msra.mxu0 0.0
  %7134 = vmatprep.subr.mxu0 0.0
  %7135 = vmatpush1.msra.mxu0 0.0
  %7136 = vmatprep.subr.mxu0 0.0
  %7137 = vmatpush1.msra.mxu0 0.0
  %7138 = vmatprep.subr.mxu0 0.0
  %7139 = vmatpush1.msra.mxu0 0.0
  %7140 = vmatprep.subr.mxu0 0.0
  %7141 = vmatpush1.msra.mxu0 0.0
  %7142 = vmatprep.subr.mxu0 0.0
  %7143 = vmatpush1.msra.mxu0 0.0
  %7144 = vmatprep.subr.mxu0 0.0
  %7145 = vmatpush1.msra.mxu0 0.0
  %7146 = vmatprep.subr.mxu0 0.0
  %7147 = vmatpush1.msra.mxu0 0.0
  %7148 = vmatprep.subr.mxu0 0.0
  %7149 = vmatpush1.msra.mxu0 0.0
  %7150 = vmatprep.subr.mxu0 0.0
  %7151 = vmatpush1.msra.mxu0 0.0
  %7152 = vmatprep.subr.mxu0 0.0
  %7153 = vmatpush1.msra.mxu0 0.0
  %7154 = vmatprep.subr.mxu0 0.0
  %7155 = vmatpush1.msra.mxu0 0.0
  %7156 = vmatprep.subr.mxu0 0.0
  %7157 = vmatpush1.msra.mxu0 0.0
  %7158 = vmatprep.subr.mxu0 0.0
  %7159 = vmatpush1.msra.mxu0 0.0
  %7160 = vmatprep.subr.mxu0 0.0
  %7161 = vmatpush1.msra.mxu0 0.0
  %v7162 = vand.u32 %v4897, 4294901760
  %v7163 = vsub.f32 %v4897, %v7162
  %v7164 = vand.u32 %v7163, 4294901760
  %7165 = vmatprep.subr.mxu0 %v7164
  %v7166 = vand.u32 %v4896, 4294901760
  %v7167 = vsub.f32 %v4896, %v7166
  %v7168 = vand.u32 %v7167, 4294901760
  %7169 = vmatpush1.msra.mxu0 %v7168
  %7170 = vmatprep.subr.mxu0 0.0
  %7171 = vmatpush2.msra.mxu0 0.0
  %7172 = vmatprep.subr.mxu0 0.0
  %7173 = vmatpush2.msra.mxu0 0.0
  %7174 = vmatprep.subr.mxu0 0.0
  %7175 = vmatpush2.msra.mxu0 0.0
  %7176 = vmatprep.subr.mxu0 0.0
  %7177 = vmatpush2.msra.mxu0 0.0
  %7178 = vmatprep.subr.mxu0 0.0
  %7179 = vmatpush2.msra.mxu0 0.0
  %7180 = vmatprep.subr.mxu0 0.0
  %7181 = vmatpush2.msra.mxu0 0.0
  %7182 = vmatprep.subr.mxu0 0.0
  %7183 = vmatpush2.msra.mxu0 0.0
  %7184 = vmatprep.subr.mxu0 0.0
  %7185 = vmatpush2.msra.mxu0 0.0
  %7186 = vmatprep.subr.mxu0 0.0
  %7187 = vmatpush2.msra.mxu0 0.0
  %7188 = vmatprep.subr.mxu0 0.0
  %7189 = vmatpush2.msra.mxu0 0.0
  %7190 = vmatprep.subr.mxu0 0.0
  %7191 = vmatpush2.msra.mxu0 0.0
  %7192 = vmatprep.subr.mxu0 0.0
  %7193 = vmatpush2.msra.mxu0 0.0
  %7194 = vmatprep.subr.mxu0 0.0
  %7195 = vmatpush2.msra.mxu0 0.0
  %7196 = vmatprep.subr.mxu0 0.0
  %7197 = vmatpush2.msra.mxu0 0.0
  %7198 = vmatprep.subr.mxu0 0.0
  %7199 = vmatpush2.msra.mxu0 0.0
  %7200 = vmatprep.subr.mxu0 0.0
  %7201 = vmatpush2.msra.mxu0 0.0
  %7202 = vmatprep.mubr.f32.mxu0 0.0
  %v7203 = vand.u32 %v6817, 4294901760
  %7204 = vmatmul.mubr.f32.gmra.mxu0 %v7203
  %v7205 = vpop.f32.mrf.mxu0
  %v7206 = vadd.f32 %v7128, %v7205
  %v7207 = vpop.f32.mrf.mxu0
  %v7208 = vadd.f32 %v7130, %v7207
  %7209 = vdwg.mxu0
  %7210 = vmatprep.subr.mxu0 0.0
  %7211 = vmatpush1.msra.mxu0 0.0
  %7212 = vmatprep.subr.mxu0 0.0
  %7213 = vmatpush1.msra.mxu0 0.0
  %7214 = vmatprep.subr.mxu0 0.0
  %7215 = vmatpush1.msra.mxu0 0.0
  %7216 = vmatprep.subr.mxu0 0.0
  %7217 = vmatpush1.msra.mxu0 0.0
  %7218 = vmatprep.subr.mxu0 0.0
  %7219 = vmatpush1.msra.mxu0 0.0
  %7220 = vmatprep.subr.mxu0 0.0
  %7221 = vmatpush1.msra.mxu0 0.0
  %7222 = vmatprep.subr.mxu0 0.0
  %7223 = vmatpush1.msra.mxu0 0.0
  %7224 = vmatprep.subr.mxu0 0.0
  %7225 = vmatpush1.msra.mxu0 0.0
  %7226 = vmatprep.subr.mxu0 0.0
  %7227 = vmatpush1.msra.mxu0 0.0
  %7228 = vmatprep.subr.mxu0 0.0
  %7229 = vmatpush1.msra.mxu0 0.0
  %7230 = vmatprep.subr.mxu0 0.0
  %7231 = vmatpush1.msra.mxu0 0.0
  %7232 = vmatprep.subr.mxu0 0.0
  %7233 = vmatpush1.msra.mxu0 0.0
  %7234 = vmatprep.subr.mxu0 0.0
  %7235 = vmatpush1.msra.mxu0 0.0
  %7236 = vmatprep.subr.mxu0 0.0
  %7237 = vmatpush1.msra.mxu0 0.0
  %7238 = vmatprep.subr.mxu0 0.0
  %7239 = vmatpush1.msra.mxu0 0.0
  %v7240 = vand.u32 %v4897, 4294901760
  %7241 = vmatprep.subr.mxu0 %v7240
  %v7242 = vand.u32 %v4896, 4294901760
  %7243 = vmatpush1.msra.mxu0 %v7242
  %7244 = vmatprep.subr.mxu0 0.0
  %7245 = vmatpush2.msra.mxu0 0.0
  %7246 = vmatprep.subr.mxu0 0.0
  %7247 = vmatpush2.msra.mxu0 0.0
  %7248 = vmatprep.subr.mxu0 0.0
  %7249 = vmatpush2.msra.mxu0 0.0
  %7250 = vmatprep.subr.mxu0 0.0
  %7251 = vmatpush2.msra.mxu0 0.0
  %7252 = vmatprep.subr.mxu0 0.0
  %7253 = vmatpush2.msra.mxu0 0.0
  %7254 = vmatprep.subr.mxu0 0.0
  %7255 = vmatpush2.msra.mxu0 0.0
  %7256 = vmatprep.subr.mxu0 0.0
  %7257 = vmatpush2.msra.mxu0 0.0
  %7258 = vmatprep.subr.mxu0 0.0
  %7259 = vmatpush2.msra.mxu0 0.0
  %7260 = vmatprep.subr.mxu0 0.0
  %7261 = vmatpush2.msra.mxu0 0.0
  %7262 = vmatprep.subr.mxu0 0.0
  %7263 = vmatpush2.msra.mxu0 0.0
  %7264 = vmatprep.subr.mxu0 0.0
  %7265 = vmatpush2.msra.mxu0 0.0
  %7266 = vmatprep.subr.mxu0 0.0
  %7267 = vmatpush2.msra.mxu0 0.0
  %7268 = vmatprep.subr.mxu0 0.0
  %7269 = vmatpush2.msra.mxu0 0.0
  %7270 = vmatprep.subr.mxu0 0.0
  %7271 = vmatpush2.msra.mxu0 0.0
  %7272 = vmatprep.subr.mxu0 0.0
  %7273 = vmatpush2.msra.mxu0 0.0
  %7274 = vmatprep.subr.mxu0 0.0
  %7275 = vmatpush2.msra.mxu0 0.0
  %7276 = vmatprep.mubr.f32.mxu0 0.0
  %v7277 = vand.u32 %v6817, 4294901760
  %7278 = vmatmul.mubr.f32.gmra.mxu0 %v7277
  %v7279 = vpop.f32.mrf.mxu0
  %v7280 = vadd.f32 %v7206, %v7279
  %v7281 = vpop.f32.mrf.mxu0
  %v7282 = vadd.f32 %v7208, %v7281
  %7283 = vdwg.mxu0
  %v7284 = vadd.f32 %v6812, %v7280
  %v7285 = vadd.f32 %v6813, %v7282
  %7286 = vrot.lane.b32.xlu0 %v4896, 127
  %v7287 = vpop.permute.xlu0 %7286
  %7288 = vrot.lane.b32.xlu0 %v4897, 127
  %v7289 = vpop.permute.xlu0 %7288
  %v7290 = vsel %vm2461, %v7287, %v7289
  %v7291 = vsel %vm2461, %v7289, %v7287
  %v7292 = vmul.f32 %v7290, %v2465
  %v7293 = vmul.f32 %v7291, %v2466
  %s7294 = scalar_lea.vmem %s2, 112
  %v7295 = vld [vmem:[%s7294] sm:$0xff]
  %v7297 = vsel %vm80, %v7295, 0
  %7299 = vmatprep.subr.mxu0 0.0
  %7300 = vmatpush1.msra.mxu0 0.0
  %7301 = vmatprep.subr.mxu0 0.0
  %7302 = vmatpush1.msra.mxu0 0.0
  %7303 = vmatprep.subr.mxu0 0.0
  %7304 = vmatpush1.msra.mxu0 0.0
  %7305 = vmatprep.subr.mxu0 0.0
  %7306 = vmatpush1.msra.mxu0 0.0
  %7307 = vmatprep.subr.mxu0 0.0
  %7308 = vmatpush1.msra.mxu0 0.0
  %7309 = vmatprep.subr.mxu0 0.0
  %7310 = vmatpush1.msra.mxu0 0.0
  %7311 = vmatprep.subr.mxu0 0.0
  %7312 = vmatpush1.msra.mxu0 0.0
  %7313 = vmatprep.subr.mxu0 0.0
  %7314 = vmatpush1.msra.mxu0 0.0
  %7315 = vmatprep.subr.mxu0 0.0
  %7316 = vmatpush1.msra.mxu0 0.0
  %7317 = vmatprep.subr.mxu0 0.0
  %7318 = vmatpush1.msra.mxu0 0.0
  %7319 = vmatprep.subr.mxu0 0.0
  %7320 = vmatpush1.msra.mxu0 0.0
  %7321 = vmatprep.subr.mxu0 0.0
  %7322 = vmatpush1.msra.mxu0 0.0
  %7323 = vmatprep.subr.mxu0 0.0
  %7324 = vmatpush1.msra.mxu0 0.0
  %7325 = vmatprep.subr.mxu0 0.0
  %7326 = vmatpush1.msra.mxu0 0.0
  %7327 = vmatprep.subr.mxu0 0.0
  %7328 = vmatpush1.msra.mxu0 0.0
  %v7329 = vand.u32 %v7293, 4294901760
  %7330 = vmatprep.subr.mxu0 %v7329
  %v7331 = vand.u32 %v7292, 4294901760
  %7332 = vmatpush1.msra.mxu0 %v7331
  %7333 = vmatprep.subr.mxu0 0.0
  %7334 = vmatpush2.msra.mxu0 0.0
  %7335 = vmatprep.subr.mxu0 0.0
  %7336 = vmatpush2.msra.mxu0 0.0
  %7337 = vmatprep.subr.mxu0 0.0
  %7338 = vmatpush2.msra.mxu0 0.0
  %7339 = vmatprep.subr.mxu0 0.0
  %7340 = vmatpush2.msra.mxu0 0.0
  %7341 = vmatprep.subr.mxu0 0.0
  %7342 = vmatpush2.msra.mxu0 0.0
  %7343 = vmatprep.subr.mxu0 0.0
  %7344 = vmatpush2.msra.mxu0 0.0
  %7345 = vmatprep.subr.mxu0 0.0
  %7346 = vmatpush2.msra.mxu0 0.0
  %7347 = vmatprep.subr.mxu0 0.0
  %7348 = vmatpush2.msra.mxu0 0.0
  %7349 = vmatprep.subr.mxu0 0.0
  %7350 = vmatpush2.msra.mxu0 0.0
  %7351 = vmatprep.subr.mxu0 0.0
  %7352 = vmatpush2.msra.mxu0 0.0
  %7353 = vmatprep.subr.mxu0 0.0
  %7354 = vmatpush2.msra.mxu0 0.0
  %7355 = vmatprep.subr.mxu0 0.0
  %7356 = vmatpush2.msra.mxu0 0.0
  %7357 = vmatprep.subr.mxu0 0.0
  %7358 = vmatpush2.msra.mxu0 0.0
  %7359 = vmatprep.subr.mxu0 0.0
  %7360 = vmatpush2.msra.mxu0 0.0
  %7361 = vmatprep.subr.mxu0 0.0
  %7362 = vmatpush2.msra.mxu0 0.0
  %7363 = vmatprep.subr.mxu0 0.0
  %7364 = vmatpush2.msra.mxu0 0.0
  %7365 = vmatprep.mubr.f32.mxu0 0.0
  %v7366 = vand.u32 %v7297, 4294901760
  %v7367 = vsub.f32 %v7297, %v7366
  %v7368 = vand.u32 %v7367, 4294901760
  %v7369 = vsub.f32 %v7367, %v7368
  %v7370 = vand.u32 %v7369, 4294901760
  %7371 = vmatmul.mubr.f32.gmra.mxu0 %v7370
  %v7372 = vpop.f32.mrf.mxu0
  %v7373 = vadd.f32 0.0, %v7372
  %v7374 = vpop.f32.mrf.mxu0
  %v7375 = vadd.f32 0.0, %v7374
  %7376 = vdwg.mxu0
  %7377 = vmatprep.subr.mxu0 0.0
  %7378 = vmatpush1.msra.mxu0 0.0
  %7379 = vmatprep.subr.mxu0 0.0
  %7380 = vmatpush1.msra.mxu0 0.0
  %7381 = vmatprep.subr.mxu0 0.0
  %7382 = vmatpush1.msra.mxu0 0.0
  %7383 = vmatprep.subr.mxu0 0.0
  %7384 = vmatpush1.msra.mxu0 0.0
  %7385 = vmatprep.subr.mxu0 0.0
  %7386 = vmatpush1.msra.mxu0 0.0
  %7387 = vmatprep.subr.mxu0 0.0
  %7388 = vmatpush1.msra.mxu0 0.0
  %7389 = vmatprep.subr.mxu0 0.0
  %7390 = vmatpush1.msra.mxu0 0.0
  %7391 = vmatprep.subr.mxu0 0.0
  %7392 = vmatpush1.msra.mxu0 0.0
  %7393 = vmatprep.subr.mxu0 0.0
  %7394 = vmatpush1.msra.mxu0 0.0
  %7395 = vmatprep.subr.mxu0 0.0
  %7396 = vmatpush1.msra.mxu0 0.0
  %7397 = vmatprep.subr.mxu0 0.0
  %7398 = vmatpush1.msra.mxu0 0.0
  %7399 = vmatprep.subr.mxu0 0.0
  %7400 = vmatpush1.msra.mxu0 0.0
  %7401 = vmatprep.subr.mxu0 0.0
  %7402 = vmatpush1.msra.mxu0 0.0
  %7403 = vmatprep.subr.mxu0 0.0
  %7404 = vmatpush1.msra.mxu0 0.0
  %7405 = vmatprep.subr.mxu0 0.0
  %7406 = vmatpush1.msra.mxu0 0.0
  %v7407 = vand.u32 %v7293, 4294901760
  %v7408 = vsub.f32 %v7293, %v7407
  %v7409 = vand.u32 %v7408, 4294901760
  %v7410 = vsub.f32 %v7408, %v7409
  %v7411 = vand.u32 %v7410, 4294901760
  %7412 = vmatprep.subr.mxu0 %v7411
  %v7413 = vand.u32 %v7292, 4294901760
  %v7414 = vsub.f32 %v7292, %v7413
  %v7415 = vand.u32 %v7414, 4294901760
  %v7416 = vsub.f32 %v7414, %v7415
  %v7417 = vand.u32 %v7416, 4294901760
  %7418 = vmatpush1.msra.mxu0 %v7417
  %7419 = vmatprep.subr.mxu0 0.0
  %7420 = vmatpush2.msra.mxu0 0.0
  %7421 = vmatprep.subr.mxu0 0.0
  %7422 = vmatpush2.msra.mxu0 0.0
  %7423 = vmatprep.subr.mxu0 0.0
  %7424 = vmatpush2.msra.mxu0 0.0
  %7425 = vmatprep.subr.mxu0 0.0
  %7426 = vmatpush2.msra.mxu0 0.0
  %7427 = vmatprep.subr.mxu0 0.0
  %7428 = vmatpush2.msra.mxu0 0.0
  %7429 = vmatprep.subr.mxu0 0.0
  %7430 = vmatpush2.msra.mxu0 0.0
  %7431 = vmatprep.subr.mxu0 0.0
  %7432 = vmatpush2.msra.mxu0 0.0
  %7433 = vmatprep.subr.mxu0 0.0
  %7434 = vmatpush2.msra.mxu0 0.0
  %7435 = vmatprep.subr.mxu0 0.0
  %7436 = vmatpush2.msra.mxu0 0.0
  %7437 = vmatprep.subr.mxu0 0.0
  %7438 = vmatpush2.msra.mxu0 0.0
  %7439 = vmatprep.subr.mxu0 0.0
  %7440 = vmatpush2.msra.mxu0 0.0
  %7441 = vmatprep.subr.mxu0 0.0
  %7442 = vmatpush2.msra.mxu0 0.0
  %7443 = vmatprep.subr.mxu0 0.0
  %7444 = vmatpush2.msra.mxu0 0.0
  %7445 = vmatprep.subr.mxu0 0.0
  %7446 = vmatpush2.msra.mxu0 0.0
  %7447 = vmatprep.subr.mxu0 0.0
  %7448 = vmatpush2.msra.mxu0 0.0
  %7449 = vmatprep.subr.mxu0 0.0
  %7450 = vmatpush2.msra.mxu0 0.0
  %7451 = vmatprep.mubr.f32.mxu0 0.0
  %v7452 = vand.u32 %v7297, 4294901760
  %7453 = vmatmul.mubr.f32.gmra.mxu0 %v7452
  %v7454 = vpop.f32.mrf.mxu0
  %v7455 = vadd.f32 %v7373, %v7454
  %v7456 = vpop.f32.mrf.mxu0
  %v7457 = vadd.f32 %v7375, %v7456
  %7458 = vdwg.mxu0
  %7459 = vmatprep.subr.mxu0 0.0
  %7460 = vmatpush1.msra.mxu0 0.0
  %7461 = vmatprep.subr.mxu0 0.0
  %7462 = vmatpush1.msra.mxu0 0.0
  %7463 = vmatprep.subr.mxu0 0.0
  %7464 = vmatpush1.msra.mxu0 0.0
  %7465 = vmatprep.subr.mxu0 0.0
  %7466 = vmatpush1.msra.mxu0 0.0
  %7467 = vmatprep.subr.mxu0 0.0
  %7468 = vmatpush1.msra.mxu0 0.0
  %7469 = vmatprep.subr.mxu0 0.0
  %7470 = vmatpush1.msra.mxu0 0.0
  %7471 = vmatprep.subr.mxu0 0.0
  %7472 = vmatpush1.msra.mxu0 0.0
  %7473 = vmatprep.subr.mxu0 0.0
  %7474 = vmatpush1.msra.mxu0 0.0
  %7475 = vmatprep.subr.mxu0 0.0
  %7476 = vmatpush1.msra.mxu0 0.0
  %7477 = vmatprep.subr.mxu0 0.0
  %7478 = vmatpush1.msra.mxu0 0.0
  %7479 = vmatprep.subr.mxu0 0.0
  %7480 = vmatpush1.msra.mxu0 0.0
  %7481 = vmatprep.subr.mxu0 0.0
  %7482 = vmatpush1.msra.mxu0 0.0
  %7483 = vmatprep.subr.mxu0 0.0
  %7484 = vmatpush1.msra.mxu0 0.0
  %7485 = vmatprep.subr.mxu0 0.0
  %7486 = vmatpush1.msra.mxu0 0.0
  %7487 = vmatprep.subr.mxu0 0.0
  %7488 = vmatpush1.msra.mxu0 0.0
  %v7489 = vand.u32 %v7293, 4294901760
  %v7490 = vsub.f32 %v7293, %v7489
  %7491 = vmatprep.subr.mxu0 %v7490
  %v7492 = vand.u32 %v7292, 4294901760
  %v7493 = vsub.f32 %v7292, %v7492
  %7494 = vmatpush1.msra.mxu0 %v7493
  %7495 = vmatprep.subr.mxu0 0.0
  %7496 = vmatpush2.msra.mxu0 0.0
  %7497 = vmatprep.subr.mxu0 0.0
  %7498 = vmatpush2.msra.mxu0 0.0
  %7499 = vmatprep.subr.mxu0 0.0
  %7500 = vmatpush2.msra.mxu0 0.0
  %7501 = vmatprep.subr.mxu0 0.0
  %7502 = vmatpush2.msra.mxu0 0.0
  %7503 = vmatprep.subr.mxu0 0.0
  %7504 = vmatpush2.msra.mxu0 0.0
  %7505 = vmatprep.subr.mxu0 0.0
  %7506 = vmatpush2.msra.mxu0 0.0
  %7507 = vmatprep.subr.mxu0 0.0
  %7508 = vmatpush2.msra.mxu0 0.0
  %7509 = vmatprep.subr.mxu0 0.0
  %7510 = vmatpush2.msra.mxu0 0.0
  %7511 = vmatprep.subr.mxu0 0.0
  %7512 = vmatpush2.msra.mxu0 0.0
  %7513 = vmatprep.subr.mxu0 0.0
  %7514 = vmatpush2.msra.mxu0 0.0
  %7515 = vmatprep.subr.mxu0 0.0
  %7516 = vmatpush2.msra.mxu0 0.0
  %7517 = vmatprep.subr.mxu0 0.0
  %7518 = vmatpush2.msra.mxu0 0.0
  %7519 = vmatprep.subr.mxu0 0.0
  %7520 = vmatpush2.msra.mxu0 0.0
  %7521 = vmatprep.subr.mxu0 0.0
  %7522 = vmatpush2.msra.mxu0 0.0
  %7523 = vmatprep.subr.mxu0 0.0
  %7524 = vmatpush2.msra.mxu0 0.0
  %7525 = vmatprep.subr.mxu0 0.0
  %7526 = vmatpush2.msra.mxu0 0.0
  %7527 = vmatprep.mubr.f32.mxu0 0.0
  %v7528 = vand.u32 %v7297, 4294901760
  %v7529 = vsub.f32 %v7297, %v7528
  %7530 = vmatmul.mubr.f32.gmra.mxu0 %v7529
  %v7531 = vpop.f32.mrf.mxu0
  %v7532 = vadd.f32 %v7455, %v7531
  %v7533 = vpop.f32.mrf.mxu0
  %v7534 = vadd.f32 %v7457, %v7533
  %7535 = vdwg.mxu0
  %7536 = vmatprep.subr.mxu0 0.0
  %7537 = vmatpush1.msra.mxu0 0.0
  %7538 = vmatprep.subr.mxu0 0.0
  %7539 = vmatpush1.msra.mxu0 0.0
  %7540 = vmatprep.subr.mxu0 0.0
  %7541 = vmatpush1.msra.mxu0 0.0
  %7542 = vmatprep.subr.mxu0 0.0
  %7543 = vmatpush1.msra.mxu0 0.0
  %7544 = vmatprep.subr.mxu0 0.0
  %7545 = vmatpush1.msra.mxu0 0.0
  %7546 = vmatprep.subr.mxu0 0.0
  %7547 = vmatpush1.msra.mxu0 0.0
  %7548 = vmatprep.subr.mxu0 0.0
  %7549 = vmatpush1.msra.mxu0 0.0
  %7550 = vmatprep.subr.mxu0 0.0
  %7551 = vmatpush1.msra.mxu0 0.0
  %7552 = vmatprep.subr.mxu0 0.0
  %7553 = vmatpush1.msra.mxu0 0.0
  %7554 = vmatprep.subr.mxu0 0.0
  %7555 = vmatpush1.msra.mxu0 0.0
  %7556 = vmatprep.subr.mxu0 0.0
  %7557 = vmatpush1.msra.mxu0 0.0
  %7558 = vmatprep.subr.mxu0 0.0
  %7559 = vmatpush1.msra.mxu0 0.0
  %7560 = vmatprep.subr.mxu0 0.0
  %7561 = vmatpush1.msra.mxu0 0.0
  %7562 = vmatprep.subr.mxu0 0.0
  %7563 = vmatpush1.msra.mxu0 0.0
  %7564 = vmatprep.subr.mxu0 0.0
  %7565 = vmatpush1.msra.mxu0 0.0
  %v7566 = vand.u32 %v7293, 4294901760
  %7567 = vmatprep.subr.mxu0 %v7566
  %v7568 = vand.u32 %v7292, 4294901760
  %7569 = vmatpush1.msra.mxu0 %v7568
  %7570 = vmatprep.subr.mxu0 0.0
  %7571 = vmatpush2.msra.mxu0 0.0
  %7572 = vmatprep.subr.mxu0 0.0
  %7573 = vmatpush2.msra.mxu0 0.0
  %7574 = vmatprep.subr.mxu0 0.0
  %7575 = vmatpush2.msra.mxu0 0.0
  %7576 = vmatprep.subr.mxu0 0.0
  %7577 = vmatpush2.msra.mxu0 0.0
  %7578 = vmatprep.subr.mxu0 0.0
  %7579 = vmatpush2.msra.mxu0 0.0
  %7580 = vmatprep.subr.mxu0 0.0
  %7581 = vmatpush2.msra.mxu0 0.0
  %7582 = vmatprep.subr.mxu0 0.0
  %7583 = vmatpush2.msra.mxu0 0.0
  %7584 = vmatprep.subr.mxu0 0.0
  %7585 = vmatpush2.msra.mxu0 0.0
  %7586 = vmatprep.subr.mxu0 0.0
  %7587 = vmatpush2.msra.mxu0 0.0
  %7588 = vmatprep.subr.mxu0 0.0
  %7589 = vmatpush2.msra.mxu0 0.0
  %7590 = vmatprep.subr.mxu0 0.0
  %7591 = vmatpush2.msra.mxu0 0.0
  %7592 = vmatprep.subr.mxu0 0.0
  %7593 = vmatpush2.msra.mxu0 0.0
  %7594 = vmatprep.subr.mxu0 0.0
  %7595 = vmatpush2.msra.mxu0 0.0
  %7596 = vmatprep.subr.mxu0 0.0
  %7597 = vmatpush2.msra.mxu0 0.0
  %7598 = vmatprep.subr.mxu0 0.0
  %7599 = vmatpush2.msra.mxu0 0.0
  %7600 = vmatprep.subr.mxu0 0.0
  %7601 = vmatpush2.msra.mxu0 0.0
  %7602 = vmatprep.mubr.f32.mxu0 0.0
  %v7603 = vand.u32 %v7297, 4294901760
  %v7604 = vsub.f32 %v7297, %v7603
  %v7605 = vand.u32 %v7604, 4294901760
  %7606 = vmatmul.mubr.f32.gmra.mxu0 %v7605
  %v7607 = vpop.f32.mrf.mxu0
  %v7608 = vadd.f32 %v7532, %v7607
  %v7609 = vpop.f32.mrf.mxu0
  %v7610 = vadd.f32 %v7534, %v7609
  %7611 = vdwg.mxu0
  %7612 = vmatprep.subr.mxu0 0.0
  %7613 = vmatpush1.msra.mxu0 0.0
  %7614 = vmatprep.subr.mxu0 0.0
  %7615 = vmatpush1.msra.mxu0 0.0
  %7616 = vmatprep.subr.mxu0 0.0
  %7617 = vmatpush1.msra.mxu0 0.0
  %7618 = vmatprep.subr.mxu0 0.0
  %7619 = vmatpush1.msra.mxu0 0.0
  %7620 = vmatprep.subr.mxu0 0.0
  %7621 = vmatpush1.msra.mxu0 0.0
  %7622 = vmatprep.subr.mxu0 0.0
  %7623 = vmatpush1.msra.mxu0 0.0
  %7624 = vmatprep.subr.mxu0 0.0
  %7625 = vmatpush1.msra.mxu0 0.0
  %7626 = vmatprep.subr.mxu0 0.0
  %7627 = vmatpush1.msra.mxu0 0.0
  %7628 = vmatprep.subr.mxu0 0.0
  %7629 = vmatpush1.msra.mxu0 0.0
  %7630 = vmatprep.subr.mxu0 0.0
  %7631 = vmatpush1.msra.mxu0 0.0
  %7632 = vmatprep.subr.mxu0 0.0
  %7633 = vmatpush1.msra.mxu0 0.0
  %7634 = vmatprep.subr.mxu0 0.0
  %7635 = vmatpush1.msra.mxu0 0.0
  %7636 = vmatprep.subr.mxu0 0.0
  %7637 = vmatpush1.msra.mxu0 0.0
  %7638 = vmatprep.subr.mxu0 0.0
  %7639 = vmatpush1.msra.mxu0 0.0
  %7640 = vmatprep.subr.mxu0 0.0
  %7641 = vmatpush1.msra.mxu0 0.0
  %v7642 = vand.u32 %v7293, 4294901760
  %v7643 = vsub.f32 %v7293, %v7642
  %v7644 = vand.u32 %v7643, 4294901760
  %7645 = vmatprep.subr.mxu0 %v7644
  %v7646 = vand.u32 %v7292, 4294901760
  %v7647 = vsub.f32 %v7292, %v7646
  %v7648 = vand.u32 %v7647, 4294901760
  %7649 = vmatpush1.msra.mxu0 %v7648
  %7650 = vmatprep.subr.mxu0 0.0
  %7651 = vmatpush2.msra.mxu0 0.0
  %7652 = vmatprep.subr.mxu0 0.0
  %7653 = vmatpush2.msra.mxu0 0.0
  %7654 = vmatprep.subr.mxu0 0.0
  %7655 = vmatpush2.msra.mxu0 0.0
  %7656 = vmatprep.subr.mxu0 0.0
  %7657 = vmatpush2.msra.mxu0 0.0
  %7658 = vmatprep.subr.mxu0 0.0
  %7659 = vmatpush2.msra.mxu0 0.0
  %7660 = vmatprep.subr.mxu0 0.0
  %7661 = vmatpush2.msra.mxu0 0.0
  %7662 = vmatprep.subr.mxu0 0.0
  %7663 = vmatpush2.msra.mxu0 0.0
  %7664 = vmatprep.subr.mxu0 0.0
  %7665 = vmatpush2.msra.mxu0 0.0
  %7666 = vmatprep.subr.mxu0 0.0
  %7667 = vmatpush2.msra.mxu0 0.0
  %7668 = vmatprep.subr.mxu0 0.0
  %7669 = vmatpush2.msra.mxu0 0.0
  %7670 = vmatprep.subr.mxu0 0.0
  %7671 = vmatpush2.msra.mxu0 0.0
  %7672 = vmatprep.subr.mxu0 0.0
  %7673 = vmatpush2.msra.mxu0 0.0
  %7674 = vmatprep.subr.mxu0 0.0
  %7675 = vmatpush2.msra.mxu0 0.0
  %7676 = vmatprep.subr.mxu0 0.0
  %7677 = vmatpush2.msra.mxu0 0.0
  %7678 = vmatprep.subr.mxu0 0.0
  %7679 = vmatpush2.msra.mxu0 0.0
  %7680 = vmatprep.subr.mxu0 0.0
  %7681 = vmatpush2.msra.mxu0 0.0
  %7682 = vmatprep.mubr.f32.mxu0 0.0
  %v7683 = vand.u32 %v7297, 4294901760
  %7684 = vmatmul.mubr.f32.gmra.mxu0 %v7683
  %v7685 = vpop.f32.mrf.mxu0
  %v7686 = vadd.f32 %v7608, %v7685
  %v7687 = vpop.f32.mrf.mxu0
  %v7688 = vadd.f32 %v7610, %v7687
  %7689 = vdwg.mxu0
  %7690 = vmatprep.subr.mxu0 0.0
  %7691 = vmatpush1.msra.mxu0 0.0
  %7692 = vmatprep.subr.mxu0 0.0
  %7693 = vmatpush1.msra.mxu0 0.0
  %7694 = vmatprep.subr.mxu0 0.0
  %7695 = vmatpush1.msra.mxu0 0.0
  %7696 = vmatprep.subr.mxu0 0.0
  %7697 = vmatpush1.msra.mxu0 0.0
  %7698 = vmatprep.subr.mxu0 0.0
  %7699 = vmatpush1.msra.mxu0 0.0
  %7700 = vmatprep.subr.mxu0 0.0
  %7701 = vmatpush1.msra.mxu0 0.0
  %7702 = vmatprep.subr.mxu0 0.0
  %7703 = vmatpush1.msra.mxu0 0.0
  %7704 = vmatprep.subr.mxu0 0.0
  %7705 = vmatpush1.msra.mxu0 0.0
  %7706 = vmatprep.subr.mxu0 0.0
  %7707 = vmatpush1.msra.mxu0 0.0
  %7708 = vmatprep.subr.mxu0 0.0
  %7709 = vmatpush1.msra.mxu0 0.0
  %7710 = vmatprep.subr.mxu0 0.0
  %7711 = vmatpush1.msra.mxu0 0.0
  %7712 = vmatprep.subr.mxu0 0.0
  %7713 = vmatpush1.msra.mxu0 0.0
  %7714 = vmatprep.subr.mxu0 0.0
  %7715 = vmatpush1.msra.mxu0 0.0
  %7716 = vmatprep.subr.mxu0 0.0
  %7717 = vmatpush1.msra.mxu0 0.0
  %7718 = vmatprep.subr.mxu0 0.0
  %7719 = vmatpush1.msra.mxu0 0.0
  %v7720 = vand.u32 %v7293, 4294901760
  %7721 = vmatprep.subr.mxu0 %v7720
  %v7722 = vand.u32 %v7292, 4294901760
  %7723 = vmatpush1.msra.mxu0 %v7722
  %7724 = vmatprep.subr.mxu0 0.0
  %7725 = vmatpush2.msra.mxu0 0.0
  %7726 = vmatprep.subr.mxu0 0.0
  %7727 = vmatpush2.msra.mxu0 0.0
  %7728 = vmatprep.subr.mxu0 0.0
  %7729 = vmatpush2.msra.mxu0 0.0
  %7730 = vmatprep.subr.mxu0 0.0
  %7731 = vmatpush2.msra.mxu0 0.0
  %7732 = vmatprep.subr.mxu0 0.0
  %7733 = vmatpush2.msra.mxu0 0.0
  %7734 = vmatprep.subr.mxu0 0.0
  %7735 = vmatpush2.msra.mxu0 0.0
  %7736 = vmatprep.subr.mxu0 0.0
  %7737 = vmatpush2.msra.mxu0 0.0
  %7738 = vmatprep.subr.mxu0 0.0
  %7739 = vmatpush2.msra.mxu0 0.0
  %7740 = vmatprep.subr.mxu0 0.0
  %7741 = vmatpush2.msra.mxu0 0.0
  %7742 = vmatprep.subr.mxu0 0.0
  %7743 = vmatpush2.msra.mxu0 0.0
  %7744 = vmatprep.subr.mxu0 0.0
  %7745 = vmatpush2.msra.mxu0 0.0
  %7746 = vmatprep.subr.mxu0 0.0
  %7747 = vmatpush2.msra.mxu0 0.0
  %7748 = vmatprep.subr.mxu0 0.0
  %7749 = vmatpush2.msra.mxu0 0.0
  %7750 = vmatprep.subr.mxu0 0.0
  %7751 = vmatpush2.msra.mxu0 0.0
  %7752 = vmatprep.subr.mxu0 0.0
  %7753 = vmatpush2.msra.mxu0 0.0
  %7754 = vmatprep.subr.mxu0 0.0
  %7755 = vmatpush2.msra.mxu0 0.0
  %7756 = vmatprep.mubr.f32.mxu0 0.0
  %v7757 = vand.u32 %v7297, 4294901760
  %7758 = vmatmul.mubr.f32.gmra.mxu0 %v7757
  %v7759 = vpop.f32.mrf.mxu0
  %v7760 = vadd.f32 %v7686, %v7759
  %v7761 = vpop.f32.mrf.mxu0
  %v7762 = vadd.f32 %v7688, %v7761
  %7763 = vdwg.mxu0
  %v7764 = vadd.f32 %v7284, %v7760
  %v7765 = vadd.f32 %v7285, %v7762
  %7766 = vrot.lane.b32.xlu0 %v4896, 113
  %v7767 = vpop.permute.xlu0 %7766
  %7768 = vrot.lane.b32.xlu0 %v4897, 113
  %v7769 = vpop.permute.xlu0 %7768
  %v7770 = vsel %vm2945, %v7767, %v7769
  %v7771 = vsel %vm2945, %v7769, %v7767
  %v7772 = vmul.f32 %v7770, %v2949
  %v7773 = vmul.f32 %v7771, %v2950
  %s7774 = scalar_lea.vmem %s2, 120
  %v7775 = vld [vmem:[%s7774] sm:$0xff]
  %v7777 = vsel %vm80, %v7775, 0
  %7779 = vmatprep.subr.mxu0 0.0
  %7780 = vmatpush1.msra.mxu0 0.0
  %7781 = vmatprep.subr.mxu0 0.0
  %7782 = vmatpush1.msra.mxu0 0.0
  %7783 = vmatprep.subr.mxu0 0.0
  %7784 = vmatpush1.msra.mxu0 0.0
  %7785 = vmatprep.subr.mxu0 0.0
  %7786 = vmatpush1.msra.mxu0 0.0
  %7787 = vmatprep.subr.mxu0 0.0
  %7788 = vmatpush1.msra.mxu0 0.0
  %7789 = vmatprep.subr.mxu0 0.0
  %7790 = vmatpush1.msra.mxu0 0.0
  %7791 = vmatprep.subr.mxu0 0.0
  %7792 = vmatpush1.msra.mxu0 0.0
  %7793 = vmatprep.subr.mxu0 0.0
  %7794 = vmatpush1.msra.mxu0 0.0
  %7795 = vmatprep.subr.mxu0 0.0
  %7796 = vmatpush1.msra.mxu0 0.0
  %7797 = vmatprep.subr.mxu0 0.0
  %7798 = vmatpush1.msra.mxu0 0.0
  %7799 = vmatprep.subr.mxu0 0.0
  %7800 = vmatpush1.msra.mxu0 0.0
  %7801 = vmatprep.subr.mxu0 0.0
  %7802 = vmatpush1.msra.mxu0 0.0
  %7803 = vmatprep.subr.mxu0 0.0
  %7804 = vmatpush1.msra.mxu0 0.0
  %7805 = vmatprep.subr.mxu0 0.0
  %7806 = vmatpush1.msra.mxu0 0.0
  %7807 = vmatprep.subr.mxu0 0.0
  %7808 = vmatpush1.msra.mxu0 0.0
  %v7809 = vand.u32 %v7773, 4294901760
  %7810 = vmatprep.subr.mxu0 %v7809
  %v7811 = vand.u32 %v7772, 4294901760
  %7812 = vmatpush1.msra.mxu0 %v7811
  %7813 = vmatprep.subr.mxu0 0.0
  %7814 = vmatpush2.msra.mxu0 0.0
  %7815 = vmatprep.subr.mxu0 0.0
  %7816 = vmatpush2.msra.mxu0 0.0
  %7817 = vmatprep.subr.mxu0 0.0
  %7818 = vmatpush2.msra.mxu0 0.0
  %7819 = vmatprep.subr.mxu0 0.0
  %7820 = vmatpush2.msra.mxu0 0.0
  %7821 = vmatprep.subr.mxu0 0.0
  %7822 = vmatpush2.msra.mxu0 0.0
  %7823 = vmatprep.subr.mxu0 0.0
  %7824 = vmatpush2.msra.mxu0 0.0
  %7825 = vmatprep.subr.mxu0 0.0
  %7826 = vmatpush2.msra.mxu0 0.0
  %7827 = vmatprep.subr.mxu0 0.0
  %7828 = vmatpush2.msra.mxu0 0.0
  %7829 = vmatprep.subr.mxu0 0.0
  %7830 = vmatpush2.msra.mxu0 0.0
  %7831 = vmatprep.subr.mxu0 0.0
  %7832 = vmatpush2.msra.mxu0 0.0
  %7833 = vmatprep.subr.mxu0 0.0
  %7834 = vmatpush2.msra.mxu0 0.0
  %7835 = vmatprep.subr.mxu0 0.0
  %7836 = vmatpush2.msra.mxu0 0.0
  %7837 = vmatprep.subr.mxu0 0.0
  %7838 = vmatpush2.msra.mxu0 0.0
  %7839 = vmatprep.subr.mxu0 0.0
  %7840 = vmatpush2.msra.mxu0 0.0
  %7841 = vmatprep.subr.mxu0 0.0
  %7842 = vmatpush2.msra.mxu0 0.0
  %7843 = vmatprep.subr.mxu0 0.0
  %7844 = vmatpush2.msra.mxu0 0.0
  %7845 = vmatprep.mubr.f32.mxu0 0.0
  %v7846 = vand.u32 %v7777, 4294901760
  %v7847 = vsub.f32 %v7777, %v7846
  %v7848 = vand.u32 %v7847, 4294901760
  %v7849 = vsub.f32 %v7847, %v7848
  %v7850 = vand.u32 %v7849, 4294901760
  %7851 = vmatmul.mubr.f32.gmra.mxu0 %v7850
  %v7852 = vpop.f32.mrf.mxu0
  %v7853 = vadd.f32 0.0, %v7852
  %v7854 = vpop.f32.mrf.mxu0
  %v7855 = vadd.f32 0.0, %v7854
  %7856 = vdwg.mxu0
  %7857 = vmatprep.subr.mxu0 0.0
  %7858 = vmatpush1.msra.mxu0 0.0
  %7859 = vmatprep.subr.mxu0 0.0
  %7860 = vmatpush1.msra.mxu0 0.0
  %7861 = vmatprep.subr.mxu0 0.0
  %7862 = vmatpush1.msra.mxu0 0.0
  %7863 = vmatprep.subr.mxu0 0.0
  %7864 = vmatpush1.msra.mxu0 0.0
  %7865 = vmatprep.subr.mxu0 0.0
  %7866 = vmatpush1.msra.mxu0 0.0
  %7867 = vmatprep.subr.mxu0 0.0
  %7868 = vmatpush1.msra.mxu0 0.0
  %7869 = vmatprep.subr.mxu0 0.0
  %7870 = vmatpush1.msra.mxu0 0.0
  %7871 = vmatprep.subr.mxu0 0.0
  %7872 = vmatpush1.msra.mxu0 0.0
  %7873 = vmatprep.subr.mxu0 0.0
  %7874 = vmatpush1.msra.mxu0 0.0
  %7875 = vmatprep.subr.mxu0 0.0
  %7876 = vmatpush1.msra.mxu0 0.0
  %7877 = vmatprep.subr.mxu0 0.0
  %7878 = vmatpush1.msra.mxu0 0.0
  %7879 = vmatprep.subr.mxu0 0.0
  %7880 = vmatpush1.msra.mxu0 0.0
  %7881 = vmatprep.subr.mxu0 0.0
  %7882 = vmatpush1.msra.mxu0 0.0
  %7883 = vmatprep.subr.mxu0 0.0
  %7884 = vmatpush1.msra.mxu0 0.0
  %7885 = vmatprep.subr.mxu0 0.0
  %7886 = vmatpush1.msra.mxu0 0.0
  %v7887 = vand.u32 %v7773, 4294901760
  %v7888 = vsub.f32 %v7773, %v7887
  %v7889 = vand.u32 %v7888, 4294901760
  %v7890 = vsub.f32 %v7888, %v7889
  %v7891 = vand.u32 %v7890, 4294901760
  %7892 = vmatprep.subr.mxu0 %v7891
  %v7893 = vand.u32 %v7772, 4294901760
  %v7894 = vsub.f32 %v7772, %v7893
  %v7895 = vand.u32 %v7894, 4294901760
  %v7896 = vsub.f32 %v7894, %v7895
  %v7897 = vand.u32 %v7896, 4294901760
  %7898 = vmatpush1.msra.mxu0 %v7897
  %7899 = vmatprep.subr.mxu0 0.0
  %7900 = vmatpush2.msra.mxu0 0.0
  %7901 = vmatprep.subr.mxu0 0.0
  %7902 = vmatpush2.msra.mxu0 0.0
  %7903 = vmatprep.subr.mxu0 0.0
  %7904 = vmatpush2.msra.mxu0 0.0
  %7905 = vmatprep.subr.mxu0 0.0
  %7906 = vmatpush2.msra.mxu0 0.0
  %7907 = vmatprep.subr.mxu0 0.0
  %7908 = vmatpush2.msra.mxu0 0.0
  %7909 = vmatprep.subr.mxu0 0.0
  %7910 = vmatpush2.msra.mxu0 0.0
  %7911 = vmatprep.subr.mxu0 0.0
  %7912 = vmatpush2.msra.mxu0 0.0
  %7913 = vmatprep.subr.mxu0 0.0
  %7914 = vmatpush2.msra.mxu0 0.0
  %7915 = vmatprep.subr.mxu0 0.0
  %7916 = vmatpush2.msra.mxu0 0.0
  %7917 = vmatprep.subr.mxu0 0.0
  %7918 = vmatpush2.msra.mxu0 0.0
  %7919 = vmatprep.subr.mxu0 0.0
  %7920 = vmatpush2.msra.mxu0 0.0
  %7921 = vmatprep.subr.mxu0 0.0
  %7922 = vmatpush2.msra.mxu0 0.0
  %7923 = vmatprep.subr.mxu0 0.0
  %7924 = vmatpush2.msra.mxu0 0.0
  %7925 = vmatprep.subr.mxu0 0.0
  %7926 = vmatpush2.msra.mxu0 0.0
  %7927 = vmatprep.subr.mxu0 0.0
  %7928 = vmatpush2.msra.mxu0 0.0
  %7929 = vmatprep.subr.mxu0 0.0
  %7930 = vmatpush2.msra.mxu0 0.0
  %7931 = vmatprep.mubr.f32.mxu0 0.0
  %v7932 = vand.u32 %v7777, 4294901760
  %7933 = vmatmul.mubr.f32.gmra.mxu0 %v7932
  %v7934 = vpop.f32.mrf.mxu0
  %v7935 = vadd.f32 %v7853, %v7934
  %v7936 = vpop.f32.mrf.mxu0
  %v7937 = vadd.f32 %v7855, %v7936
  %7938 = vdwg.mxu0
  %7939 = vmatprep.subr.mxu0 0.0
  %7940 = vmatpush1.msra.mxu0 0.0
  %7941 = vmatprep.subr.mxu0 0.0
  %7942 = vmatpush1.msra.mxu0 0.0
  %7943 = vmatprep.subr.mxu0 0.0
  %7944 = vmatpush1.msra.mxu0 0.0
  %7945 = vmatprep.subr.mxu0 0.0
  %7946 = vmatpush1.msra.mxu0 0.0
  %7947 = vmatprep.subr.mxu0 0.0
  %7948 = vmatpush1.msra.mxu0 0.0
  %7949 = vmatprep.subr.mxu0 0.0
  %7950 = vmatpush1.msra.mxu0 0.0
  %7951 = vmatprep.subr.mxu0 0.0
  %7952 = vmatpush1.msra.mxu0 0.0
  %7953 = vmatprep.subr.mxu0 0.0
  %7954 = vmatpush1.msra.mxu0 0.0
  %7955 = vmatprep.subr.mxu0 0.0
  %7956 = vmatpush1.msra.mxu0 0.0
  %7957 = vmatprep.subr.mxu0 0.0
  %7958 = vmatpush1.msra.mxu0 0.0
  %7959 = vmatprep.subr.mxu0 0.0
  %7960 = vmatpush1.msra.mxu0 0.0
  %7961 = vmatprep.subr.mxu0 0.0
  %7962 = vmatpush1.msra.mxu0 0.0
  %7963 = vmatprep.subr.mxu0 0.0
  %7964 = vmatpush1.msra.mxu0 0.0
  %7965 = vmatprep.subr.mxu0 0.0
  %7966 = vmatpush1.msra.mxu0 0.0
  %7967 = vmatprep.subr.mxu0 0.0
  %7968 = vmatpush1.msra.mxu0 0.0
  %v7969 = vand.u32 %v7773, 4294901760
  %v7970 = vsub.f32 %v7773, %v7969
  %7971 = vmatprep.subr.mxu0 %v7970
  %v7972 = vand.u32 %v7772, 4294901760
  %v7973 = vsub.f32 %v7772, %v7972
  %7974 = vmatpush1.msra.mxu0 %v7973
  %7975 = vmatprep.subr.mxu0 0.0
  %7976 = vmatpush2.msra.mxu0 0.0
  %7977 = vmatprep.subr.mxu0 0.0
  %7978 = vmatpush2.msra.mxu0 0.0
  %7979 = vmatprep.subr.mxu0 0.0
  %7980 = vmatpush2.msra.mxu0 0.0
  %7981 = vmatprep.subr.mxu0 0.0
  %7982 = vmatpush2.msra.mxu0 0.0
  %7983 = vmatprep.subr.mxu0 0.0
  %7984 = vmatpush2.msra.mxu0 0.0
  %7985 = vmatprep.subr.mxu0 0.0
  %7986 = vmatpush2.msra.mxu0 0.0
  %7987 = vmatprep.subr.mxu0 0.0
  %7988 = vmatpush2.msra.mxu0 0.0
  %7989 = vmatprep.subr.mxu0 0.0
  %7990 = vmatpush2.msra.mxu0 0.0
  %7991 = vmatprep.subr.mxu0 0.0
  %7992 = vmatpush2.msra.mxu0 0.0
  %7993 = vmatprep.subr.mxu0 0.0
  %7994 = vmatpush2.msra.mxu0 0.0
  %7995 = vmatprep.subr.mxu0 0.0
  %7996 = vmatpush2.msra.mxu0 0.0
  %7997 = vmatprep.subr.mxu0 0.0
  %7998 = vmatpush2.msra.mxu0 0.0
  %7999 = vmatprep.subr.mxu0 0.0
  %8000 = vmatpush2.msra.mxu0 0.0
  %8001 = vmatprep.subr.mxu0 0.0
  %8002 = vmatpush2.msra.mxu0 0.0
  %8003 = vmatprep.subr.mxu0 0.0
  %8004 = vmatpush2.msra.mxu0 0.0
  %8005 = vmatprep.subr.mxu0 0.0
  %8006 = vmatpush2.msra.mxu0 0.0
  %8007 = vmatprep.mubr.f32.mxu0 0.0
  %v8008 = vand.u32 %v7777, 4294901760
  %v8009 = vsub.f32 %v7777, %v8008
  %8010 = vmatmul.mubr.f32.gmra.mxu0 %v8009
  %v8011 = vpop.f32.mrf.mxu0
  %v8012 = vadd.f32 %v7935, %v8011
  %v8013 = vpop.f32.mrf.mxu0
  %v8014 = vadd.f32 %v7937, %v8013
  %8015 = vdwg.mxu0
  %8016 = vmatprep.subr.mxu0 0.0
  %8017 = vmatpush1.msra.mxu0 0.0
  %8018 = vmatprep.subr.mxu0 0.0
  %8019 = vmatpush1.msra.mxu0 0.0
  %8020 = vmatprep.subr.mxu0 0.0
  %8021 = vmatpush1.msra.mxu0 0.0
  %8022 = vmatprep.subr.mxu0 0.0
  %8023 = vmatpush1.msra.mxu0 0.0
  %8024 = vmatprep.subr.mxu0 0.0
  %8025 = vmatpush1.msra.mxu0 0.0
  %8026 = vmatprep.subr.mxu0 0.0
  %8027 = vmatpush1.msra.mxu0 0.0
  %8028 = vmatprep.subr.mxu0 0.0
  %8029 = vmatpush1.msra.mxu0 0.0
  %8030 = vmatprep.subr.mxu0 0.0
  %8031 = vmatpush1.msra.mxu0 0.0
  %8032 = vmatprep.subr.mxu0 0.0
  %8033 = vmatpush1.msra.mxu0 0.0
  %8034 = vmatprep.subr.mxu0 0.0
  %8035 = vmatpush1.msra.mxu0 0.0
  %8036 = vmatprep.subr.mxu0 0.0
  %8037 = vmatpush1.msra.mxu0 0.0
  %8038 = vmatprep.subr.mxu0 0.0
  %8039 = vmatpush1.msra.mxu0 0.0
  %8040 = vmatprep.subr.mxu0 0.0
  %8041 = vmatpush1.msra.mxu0 0.0
  %8042 = vmatprep.subr.mxu0 0.0
  %8043 = vmatpush1.msra.mxu0 0.0
  %8044 = vmatprep.subr.mxu0 0.0
  %8045 = vmatpush1.msra.mxu0 0.0
  %v8046 = vand.u32 %v7773, 4294901760
  %8047 = vmatprep.subr.mxu0 %v8046
  %v8048 = vand.u32 %v7772, 4294901760
  %8049 = vmatpush1.msra.mxu0 %v8048
  %8050 = vmatprep.subr.mxu0 0.0
  %8051 = vmatpush2.msra.mxu0 0.0
  %8052 = vmatprep.subr.mxu0 0.0
  %8053 = vmatpush2.msra.mxu0 0.0
  %8054 = vmatprep.subr.mxu0 0.0
  %8055 = vmatpush2.msra.mxu0 0.0
  %8056 = vmatprep.subr.mxu0 0.0
  %8057 = vmatpush2.msra.mxu0 0.0
  %8058 = vmatprep.subr.mxu0 0.0
  %8059 = vmatpush2.msra.mxu0 0.0
  %8060 = vmatprep.subr.mxu0 0.0
  %8061 = vmatpush2.msra.mxu0 0.0
  %8062 = vmatprep.subr.mxu0 0.0
  %8063 = vmatpush2.msra.mxu0 0.0
  %8064 = vmatprep.subr.mxu0 0.0
  %8065 = vmatpush2.msra.mxu0 0.0
  %8066 = vmatprep.subr.mxu0 0.0
  %8067 = vmatpush2.msra.mxu0 0.0
  %8068 = vmatprep.subr.mxu0 0.0
  %8069 = vmatpush2.msra.mxu0 0.0
  %8070 = vmatprep.subr.mxu0 0.0
  %8071 = vmatpush2.msra.mxu0 0.0
  %8072 = vmatprep.subr.mxu0 0.0
  %8073 = vmatpush2.msra.mxu0 0.0
  %8074 = vmatprep.subr.mxu0 0.0
  %8075 = vmatpush2.msra.mxu0 0.0
  %8076 = vmatprep.subr.mxu0 0.0
  %8077 = vmatpush2.msra.mxu0 0.0
  %8078 = vmatprep.subr.mxu0 0.0
  %8079 = vmatpush2.msra.mxu0 0.0
  %8080 = vmatprep.subr.mxu0 0.0
  %8081 = vmatpush2.msra.mxu0 0.0
  %8082 = vmatprep.mubr.f32.mxu0 0.0
  %v8083 = vand.u32 %v7777, 4294901760
  %v8084 = vsub.f32 %v7777, %v8083
  %v8085 = vand.u32 %v8084, 4294901760
  %8086 = vmatmul.mubr.f32.gmra.mxu0 %v8085
  %v8087 = vpop.f32.mrf.mxu0
  %v8088 = vadd.f32 %v8012, %v8087
  %v8089 = vpop.f32.mrf.mxu0
  %v8090 = vadd.f32 %v8014, %v8089
  %8091 = vdwg.mxu0
  %8092 = vmatprep.subr.mxu0 0.0
  %8093 = vmatpush1.msra.mxu0 0.0
  %8094 = vmatprep.subr.mxu0 0.0
  %8095 = vmatpush1.msra.mxu0 0.0
  %8096 = vmatprep.subr.mxu0 0.0
  %8097 = vmatpush1.msra.mxu0 0.0
  %8098 = vmatprep.subr.mxu0 0.0
  %8099 = vmatpush1.msra.mxu0 0.0
  %8100 = vmatprep.subr.mxu0 0.0
  %8101 = vmatpush1.msra.mxu0 0.0
  %8102 = vmatprep.subr.mxu0 0.0
  %8103 = vmatpush1.msra.mxu0 0.0
  %8104 = vmatprep.subr.mxu0 0.0
  %8105 = vmatpush1.msra.mxu0 0.0
  %8106 = vmatprep.subr.mxu0 0.0
  %8107 = vmatpush1.msra.mxu0 0.0
  %8108 = vmatprep.subr.mxu0 0.0
  %8109 = vmatpush1.msra.mxu0 0.0
  %8110 = vmatprep.subr.mxu0 0.0
  %8111 = vmatpush1.msra.mxu0 0.0
  %8112 = vmatprep.subr.mxu0 0.0
  %8113 = vmatpush1.msra.mxu0 0.0
  %8114 = vmatprep.subr.mxu0 0.0
  %8115 = vmatpush1.msra.mxu0 0.0
  %8116 = vmatprep.subr.mxu0 0.0
  %8117 = vmatpush1.msra.mxu0 0.0
  %8118 = vmatprep.subr.mxu0 0.0
  %8119 = vmatpush1.msra.mxu0 0.0
  %8120 = vmatprep.subr.mxu0 0.0
  %8121 = vmatpush1.msra.mxu0 0.0
  %v8122 = vand.u32 %v7773, 4294901760
  %v8123 = vsub.f32 %v7773, %v8122
  %v8124 = vand.u32 %v8123, 4294901760
  %8125 = vmatprep.subr.mxu0 %v8124
  %v8126 = vand.u32 %v7772, 4294901760
  %v8127 = vsub.f32 %v7772, %v8126
  %v8128 = vand.u32 %v8127, 4294901760
  %8129 = vmatpush1.msra.mxu0 %v8128
  %8130 = vmatprep.subr.mxu0 0.0
  %8131 = vmatpush2.msra.mxu0 0.0
  %8132 = vmatprep.subr.mxu0 0.0
  %8133 = vmatpush2.msra.mxu0 0.0
  %8134 = vmatprep.subr.mxu0 0.0
  %8135 = vmatpush2.msra.mxu0 0.0
  %8136 = vmatprep.subr.mxu0 0.0
  %8137 = vmatpush2.msra.mxu0 0.0
  %8138 = vmatprep.subr.mxu0 0.0
  %8139 = vmatpush2.msra.mxu0 0.0
  %8140 = vmatprep.subr.mxu0 0.0
  %8141 = vmatpush2.msra.mxu0 0.0
  %8142 = vmatprep.subr.mxu0 0.0
  %8143 = vmatpush2.msra.mxu0 0.0
  %8144 = vmatprep.subr.mxu0 0.0
  %8145 = vmatpush2.msra.mxu0 0.0
  %8146 = vmatprep.subr.mxu0 0.0
  %8147 = vmatpush2.msra.mxu0 0.0
  %8148 = vmatprep.subr.mxu0 0.0
  %8149 = vmatpush2.msra.mxu0 0.0
  %8150 = vmatprep.subr.mxu0 0.0
  %8151 = vmatpush2.msra.mxu0 0.0
  %8152 = vmatprep.subr.mxu0 0.0
  %8153 = vmatpush2.msra.mxu0 0.0
  %8154 = vmatprep.subr.mxu0 0.0
  %8155 = vmatpush2.msra.mxu0 0.0
  %8156 = vmatprep.subr.mxu0 0.0
  %8157 = vmatpush2.msra.mxu0 0.0
  %8158 = vmatprep.subr.mxu0 0.0
  %8159 = vmatpush2.msra.mxu0 0.0
  %8160 = vmatprep.subr.mxu0 0.0
  %8161 = vmatpush2.msra.mxu0 0.0
  %8162 = vmatprep.mubr.f32.mxu0 0.0
  %v8163 = vand.u32 %v7777, 4294901760
  %8164 = vmatmul.mubr.f32.gmra.mxu0 %v8163
  %v8165 = vpop.f32.mrf.mxu0
  %v8166 = vadd.f32 %v8088, %v8165
  %v8167 = vpop.f32.mrf.mxu0
  %v8168 = vadd.f32 %v8090, %v8167
  %8169 = vdwg.mxu0
  %8170 = vmatprep.subr.mxu0 0.0
  %8171 = vmatpush1.msra.mxu0 0.0
  %8172 = vmatprep.subr.mxu0 0.0
  %8173 = vmatpush1.msra.mxu0 0.0
  %8174 = vmatprep.subr.mxu0 0.0
  %8175 = vmatpush1.msra.mxu0 0.0
  %8176 = vmatprep.subr.mxu0 0.0
  %8177 = vmatpush1.msra.mxu0 0.0
  %8178 = vmatprep.subr.mxu0 0.0
  %8179 = vmatpush1.msra.mxu0 0.0
  %8180 = vmatprep.subr.mxu0 0.0
  %8181 = vmatpush1.msra.mxu0 0.0
  %8182 = vmatprep.subr.mxu0 0.0
  %8183 = vmatpush1.msra.mxu0 0.0
  %8184 = vmatprep.subr.mxu0 0.0
  %8185 = vmatpush1.msra.mxu0 0.0
  %8186 = vmatprep.subr.mxu0 0.0
  %8187 = vmatpush1.msra.mxu0 0.0
  %8188 = vmatprep.subr.mxu0 0.0
  %8189 = vmatpush1.msra.mxu0 0.0
  %8190 = vmatprep.subr.mxu0 0.0
  %8191 = vmatpush1.msra.mxu0 0.0
  %8192 = vmatprep.subr.mxu0 0.0
  %8193 = vmatpush1.msra.mxu0 0.0
  %8194 = vmatprep.subr.mxu0 0.0
  %8195 = vmatpush1.msra.mxu0 0.0
  %8196 = vmatprep.subr.mxu0 0.0
  %8197 = vmatpush1.msra.mxu0 0.0
  %8198 = vmatprep.subr.mxu0 0.0
  %8199 = vmatpush1.msra.mxu0 0.0
  %v8200 = vand.u32 %v7773, 4294901760
  %8201 = vmatprep.subr.mxu0 %v8200
  %v8202 = vand.u32 %v7772, 4294901760
  %8203 = vmatpush1.msra.mxu0 %v8202
  %8204 = vmatprep.subr.mxu0 0.0
  %8205 = vmatpush2.msra.mxu0 0.0
  %8206 = vmatprep.subr.mxu0 0.0
  %8207 = vmatpush2.msra.mxu0 0.0
  %8208 = vmatprep.subr.mxu0 0.0
  %8209 = vmatpush2.msra.mxu0 0.0
  %8210 = vmatprep.subr.mxu0 0.0
  %8211 = vmatpush2.msra.mxu0 0.0
  %8212 = vmatprep.subr.mxu0 0.0
  %8213 = vmatpush2.msra.mxu0 0.0
  %8214 = vmatprep.subr.mxu0 0.0
  %8215 = vmatpush2.msra.mxu0 0.0
  %8216 = vmatprep.subr.mxu0 0.0
  %8217 = vmatpush2.msra.mxu0 0.0
  %8218 = vmatprep.subr.mxu0 0.0
  %8219 = vmatpush2.msra.mxu0 0.0
  %8220 = vmatprep.subr.mxu0 0.0
  %8221 = vmatpush2.msra.mxu0 0.0
  %8222 = vmatprep.subr.mxu0 0.0
  %8223 = vmatpush2.msra.mxu0 0.0
  %8224 = vmatprep.subr.mxu0 0.0
  %8225 = vmatpush2.msra.mxu0 0.0
  %8226 = vmatprep.subr.mxu0 0.0
  %8227 = vmatpush2.msra.mxu0 0.0
  %8228 = vmatprep.subr.mxu0 0.0
  %8229 = vmatpush2.msra.mxu0 0.0
  %8230 = vmatprep.subr.mxu0 0.0
  %8231 = vmatpush2.msra.mxu0 0.0
  %8232 = vmatprep.subr.mxu0 0.0
  %8233 = vmatpush2.msra.mxu0 0.0
  %8234 = vmatprep.subr.mxu0 0.0
  %8235 = vmatpush2.msra.mxu0 0.0
  %8236 = vmatprep.mubr.f32.mxu0 0.0
  %v8237 = vand.u32 %v7777, 4294901760
  %8238 = vmatmul.mubr.f32.gmra.mxu0 %v8237
  %v8239 = vpop.f32.mrf.mxu0
  %v8240 = vadd.f32 %v8166, %v8239
  %v8241 = vpop.f32.mrf.mxu0
  %v8242 = vadd.f32 %v8168, %v8241
  %8243 = vdwg.mxu0
  %v8244 = vadd.f32 %v7764, %v8240
  %v8245 = vadd.f32 %v7765, %v8242
  %8246 = vrot.lane.b32.xlu0 %v4896, 112
  %v8247 = vpop.permute.xlu0 %8246
  %8248 = vrot.lane.b32.xlu0 %v4897, 112
  %v8249 = vpop.permute.xlu0 %8248
  %v8250 = vsel %vm3429, %v8247, %v8249
  %v8251 = vsel %vm3429, %v8249, %v8247
  %v8252 = vmul.f32 %v8250, %v3433
  %v8253 = vmul.f32 %v8251, %v3434
  %s8254 = scalar_lea.vmem %s2, 128
  %v8255 = vld [vmem:[%s8254] sm:$0xff]
  %v8257 = vsel %vm80, %v8255, 0
  %8259 = vmatprep.subr.mxu0 0.0
  %8260 = vmatpush1.msra.mxu0 0.0
  %8261 = vmatprep.subr.mxu0 0.0
  %8262 = vmatpush1.msra.mxu0 0.0
  %8263 = vmatprep.subr.mxu0 0.0
  %8264 = vmatpush1.msra.mxu0 0.0
  %8265 = vmatprep.subr.mxu0 0.0
  %8266 = vmatpush1.msra.mxu0 0.0
  %8267 = vmatprep.subr.mxu0 0.0
  %8268 = vmatpush1.msra.mxu0 0.0
  %8269 = vmatprep.subr.mxu0 0.0
  %8270 = vmatpush1.msra.mxu0 0.0
  %8271 = vmatprep.subr.mxu0 0.0
  %8272 = vmatpush1.msra.mxu0 0.0
  %8273 = vmatprep.subr.mxu0 0.0
  %8274 = vmatpush1.msra.mxu0 0.0
  %8275 = vmatprep.subr.mxu0 0.0
  %8276 = vmatpush1.msra.mxu0 0.0
  %8277 = vmatprep.subr.mxu0 0.0
  %8278 = vmatpush1.msra.mxu0 0.0
  %8279 = vmatprep.subr.mxu0 0.0
  %8280 = vmatpush1.msra.mxu0 0.0
  %8281 = vmatprep.subr.mxu0 0.0
  %8282 = vmatpush1.msra.mxu0 0.0
  %8283 = vmatprep.subr.mxu0 0.0
  %8284 = vmatpush1.msra.mxu0 0.0
  %8285 = vmatprep.subr.mxu0 0.0
  %8286 = vmatpush1.msra.mxu0 0.0
  %8287 = vmatprep.subr.mxu0 0.0
  %8288 = vmatpush1.msra.mxu0 0.0
  %v8289 = vand.u32 %v8253, 4294901760
  %8290 = vmatprep.subr.mxu0 %v8289
  %v8291 = vand.u32 %v8252, 4294901760
  %8292 = vmatpush1.msra.mxu0 %v8291
  %8293 = vmatprep.subr.mxu0 0.0
  %8294 = vmatpush2.msra.mxu0 0.0
  %8295 = vmatprep.subr.mxu0 0.0
  %8296 = vmatpush2.msra.mxu0 0.0
  %8297 = vmatprep.subr.mxu0 0.0
  %8298 = vmatpush2.msra.mxu0 0.0
  %8299 = vmatprep.subr.mxu0 0.0
  %8300 = vmatpush2.msra.mxu0 0.0
  %8301 = vmatprep.subr.mxu0 0.0
  %8302 = vmatpush2.msra.mxu0 0.0
  %8303 = vmatprep.subr.mxu0 0.0
  %8304 = vmatpush2.msra.mxu0 0.0
  %8305 = vmatprep.subr.mxu0 0.0
  %8306 = vmatpush2.msra.mxu0 0.0
  %8307 = vmatprep.subr.mxu0 0.0
  %8308 = vmatpush2.msra.mxu0 0.0
  %8309 = vmatprep.subr.mxu0 0.0
  %8310 = vmatpush2.msra.mxu0 0.0
  %8311 = vmatprep.subr.mxu0 0.0
  %8312 = vmatpush2.msra.mxu0 0.0
  %8313 = vmatprep.subr.mxu0 0.0
  %8314 = vmatpush2.msra.mxu0 0.0
  %8315 = vmatprep.subr.mxu0 0.0
  %8316 = vmatpush2.msra.mxu0 0.0
  %8317 = vmatprep.subr.mxu0 0.0
  %8318 = vmatpush2.msra.mxu0 0.0
  %8319 = vmatprep.subr.mxu0 0.0
  %8320 = vmatpush2.msra.mxu0 0.0
  %8321 = vmatprep.subr.mxu0 0.0
  %8322 = vmatpush2.msra.mxu0 0.0
  %8323 = vmatprep.subr.mxu0 0.0
  %8324 = vmatpush2.msra.mxu0 0.0
  %8325 = vmatprep.mubr.f32.mxu0 0.0
  %v8326 = vand.u32 %v8257, 4294901760
  %v8327 = vsub.f32 %v8257, %v8326
  %v8328 = vand.u32 %v8327, 4294901760
  %v8329 = vsub.f32 %v8327, %v8328
  %v8330 = vand.u32 %v8329, 4294901760
  %8331 = vmatmul.mubr.f32.gmra.mxu0 %v8330
  %v8332 = vpop.f32.mrf.mxu0
  %v8333 = vadd.f32 0.0, %v8332
  %v8334 = vpop.f32.mrf.mxu0
  %v8335 = vadd.f32 0.0, %v8334
  %8336 = vdwg.mxu0
  %8337 = vmatprep.subr.mxu0 0.0
  %8338 = vmatpush1.msra.mxu0 0.0
  %8339 = vmatprep.subr.mxu0 0.0
  %8340 = vmatpush1.msra.mxu0 0.0
  %8341 = vmatprep.subr.mxu0 0.0
  %8342 = vmatpush1.msra.mxu0 0.0
  %8343 = vmatprep.subr.mxu0 0.0
  %8344 = vmatpush1.msra.mxu0 0.0
  %8345 = vmatprep.subr.mxu0 0.0
  %8346 = vmatpush1.msra.mxu0 0.0
  %8347 = vmatprep.subr.mxu0 0.0
  %8348 = vmatpush1.msra.mxu0 0.0
  %8349 = vmatprep.subr.mxu0 0.0
  %8350 = vmatpush1.msra.mxu0 0.0
  %8351 = vmatprep.subr.mxu0 0.0
  %8352 = vmatpush1.msra.mxu0 0.0
  %8353 = vmatprep.subr.mxu0 0.0
  %8354 = vmatpush1.msra.mxu0 0.0
  %8355 = vmatprep.subr.mxu0 0.0
  %8356 = vmatpush1.msra.mxu0 0.0
  %8357 = vmatprep.subr.mxu0 0.0
  %8358 = vmatpush1.msra.mxu0 0.0
  %8359 = vmatprep.subr.mxu0 0.0
  %8360 = vmatpush1.msra.mxu0 0.0
  %8361 = vmatprep.subr.mxu0 0.0
  %8362 = vmatpush1.msra.mxu0 0.0
  %8363 = vmatprep.subr.mxu0 0.0
  %8364 = vmatpush1.msra.mxu0 0.0
  %8365 = vmatprep.subr.mxu0 0.0
  %8366 = vmatpush1.msra.mxu0 0.0
  %v8367 = vand.u32 %v8253, 4294901760
  %v8368 = vsub.f32 %v8253, %v8367
  %v8369 = vand.u32 %v8368, 4294901760
  %v8370 = vsub.f32 %v8368, %v8369
  %v8371 = vand.u32 %v8370, 4294901760
  %8372 = vmatprep.subr.mxu0 %v8371
  %v8373 = vand.u32 %v8252, 4294901760
  %v8374 = vsub.f32 %v8252, %v8373
  %v8375 = vand.u32 %v8374, 4294901760
  %v8376 = vsub.f32 %v8374, %v8375
  %v8377 = vand.u32 %v8376, 4294901760
  %8378 = vmatpush1.msra.mxu0 %v8377
  %8379 = vmatprep.subr.mxu0 0.0
  %8380 = vmatpush2.msra.mxu0 0.0
  %8381 = vmatprep.subr.mxu0 0.0
  %8382 = vmatpush2.msra.mxu0 0.0
  %8383 = vmatprep.subr.mxu0 0.0
  %8384 = vmatpush2.msra.mxu0 0.0
  %8385 = vmatprep.subr.mxu0 0.0
  %8386 = vmatpush2.msra.mxu0 0.0
  %8387 = vmatprep.subr.mxu0 0.0
  %8388 = vmatpush2.msra.mxu0 0.0
  %8389 = vmatprep.subr.mxu0 0.0
  %8390 = vmatpush2.msra.mxu0 0.0
  %8391 = vmatprep.subr.mxu0 0.0
  %8392 = vmatpush2.msra.mxu0 0.0
  %8393 = vmatprep.subr.mxu0 0.0
  %8394 = vmatpush2.msra.mxu0 0.0
  %8395 = vmatprep.subr.mxu0 0.0
  %8396 = vmatpush2.msra.mxu0 0.0
  %8397 = vmatprep.subr.mxu0 0.0
  %8398 = vmatpush2.msra.mxu0 0.0
  %8399 = vmatprep.subr.mxu0 0.0
  %8400 = vmatpush2.msra.mxu0 0.0
  %8401 = vmatprep.subr.mxu0 0.0
  %8402 = vmatpush2.msra.mxu0 0.0
  %8403 = vmatprep.subr.mxu0 0.0
  %8404 = vmatpush2.msra.mxu0 0.0
  %8405 = vmatprep.subr.mxu0 0.0
  %8406 = vmatpush2.msra.mxu0 0.0
  %8407 = vmatprep.subr.mxu0 0.0
  %8408 = vmatpush2.msra.mxu0 0.0
  %8409 = vmatprep.subr.mxu0 0.0
  %8410 = vmatpush2.msra.mxu0 0.0
  %8411 = vmatprep.mubr.f32.mxu0 0.0
  %v8412 = vand.u32 %v8257, 4294901760
  %8413 = vmatmul.mubr.f32.gmra.mxu0 %v8412
  %v8414 = vpop.f32.mrf.mxu0
  %v8415 = vadd.f32 %v8333, %v8414
  %v8416 = vpop.f32.mrf.mxu0
  %v8417 = vadd.f32 %v8335, %v8416
  %8418 = vdwg.mxu0
  %8419 = vmatprep.subr.mxu0 0.0
  %8420 = vmatpush1.msra.mxu0 0.0
  %8421 = vmatprep.subr.mxu0 0.0
  %8422 = vmatpush1.msra.mxu0 0.0
  %8423 = vmatprep.subr.mxu0 0.0
  %8424 = vmatpush1.msra.mxu0 0.0
  %8425 = vmatprep.subr.mxu0 0.0
  %8426 = vmatpush1.msra.mxu0 0.0
  %8427 = vmatprep.subr.mxu0 0.0
  %8428 = vmatpush1.msra.mxu0 0.0
  %8429 = vmatprep.subr.mxu0 0.0
  %8430 = vmatpush1.msra.mxu0 0.0
  %8431 = vmatprep.subr.mxu0 0.0
  %8432 = vmatpush1.msra.mxu0 0.0
  %8433 = vmatprep.subr.mxu0 0.0
  %8434 = vmatpush1.msra.mxu0 0.0
  %8435 = vmatprep.subr.mxu0 0.0
  %8436 = vmatpush1.msra.mxu0 0.0
  %8437 = vmatprep.subr.mxu0 0.0
  %8438 = vmatpush1.msra.mxu0 0.0
  %8439 = vmatprep.subr.mxu0 0.0
  %8440 = vmatpush1.msra.mxu0 0.0
  %8441 = vmatprep.subr.mxu0 0.0
  %8442 = vmatpush1.msra.mxu0 0.0
  %8443 = vmatprep.subr.mxu0 0.0
  %8444 = vmatpush1.msra.mxu0 0.0
  %8445 = vmatprep.subr.mxu0 0.0
  %8446 = vmatpush1.msra.mxu0 0.0
  %8447 = vmatprep.subr.mxu0 0.0
  %8448 = vmatpush1.msra.mxu0 0.0
  %v8449 = vand.u32 %v8253, 4294901760
  %v8450 = vsub.f32 %v8253, %v8449
  %8451 = vmatprep.subr.mxu0 %v8450
  %v8452 = vand.u32 %v8252, 4294901760
  %v8453 = vsub.f32 %v8252, %v8452
  %8454 = vmatpush1.msra.mxu0 %v8453
  %8455 = vmatprep.subr.mxu0 0.0
  %8456 = vmatpush2.msra.mxu0 0.0
  %8457 = vmatprep.subr.mxu0 0.0
  %8458 = vmatpush2.msra.mxu0 0.0
  %8459 = vmatprep.subr.mxu0 0.0
  %8460 = vmatpush2.msra.mxu0 0.0
  %8461 = vmatprep.subr.mxu0 0.0
  %8462 = vmatpush2.msra.mxu0 0.0
  %8463 = vmatprep.subr.mxu0 0.0
  %8464 = vmatpush2.msra.mxu0 0.0
  %8465 = vmatprep.subr.mxu0 0.0
  %8466 = vmatpush2.msra.mxu0 0.0
  %8467 = vmatprep.subr.mxu0 0.0
  %8468 = vmatpush2.msra.mxu0 0.0
  %8469 = vmatprep.subr.mxu0 0.0
  %8470 = vmatpush2.msra.mxu0 0.0
  %8471 = vmatprep.subr.mxu0 0.0
  %8472 = vmatpush2.msra.mxu0 0.0
  %8473 = vmatprep.subr.mxu0 0.0
  %8474 = vmatpush2.msra.mxu0 0.0
  %8475 = vmatprep.subr.mxu0 0.0
  %8476 = vmatpush2.msra.mxu0 0.0
  %8477 = vmatprep.subr.mxu0 0.0
  %8478 = vmatpush2.msra.mxu0 0.0
  %8479 = vmatprep.subr.mxu0 0.0
  %8480 = vmatpush2.msra.mxu0 0.0
  %8481 = vmatprep.subr.mxu0 0.0
  %8482 = vmatpush2.msra.mxu0 0.0
  %8483 = vmatprep.subr.mxu0 0.0
  %8484 = vmatpush2.msra.mxu0 0.0
  %8485 = vmatprep.subr.mxu0 0.0
  %8486 = vmatpush2.msra.mxu0 0.0
  %8487 = vmatprep.mubr.f32.mxu0 0.0
  %v8488 = vand.u32 %v8257, 4294901760
  %v8489 = vsub.f32 %v8257, %v8488
  %8490 = vmatmul.mubr.f32.gmra.mxu0 %v8489
  %v8491 = vpop.f32.mrf.mxu0
  %v8492 = vadd.f32 %v8415, %v8491
  %v8493 = vpop.f32.mrf.mxu0
  %v8494 = vadd.f32 %v8417, %v8493
  %8495 = vdwg.mxu0
  %8496 = vmatprep.subr.mxu0 0.0
  %8497 = vmatpush1.msra.mxu0 0.0
  %8498 = vmatprep.subr.mxu0 0.0
  %8499 = vmatpush1.msra.mxu0 0.0
  %8500 = vmatprep.subr.mxu0 0.0
  %8501 = vmatpush1.msra.mxu0 0.0
  %8502 = vmatprep.subr.mxu0 0.0
  %8503 = vmatpush1.msra.mxu0 0.0
  %8504 = vmatprep.subr.mxu0 0.0
  %8505 = vmatpush1.msra.mxu0 0.0
  %8506 = vmatprep.subr.mxu0 0.0
  %8507 = vmatpush1.msra.mxu0 0.0
  %8508 = vmatprep.subr.mxu0 0.0
  %8509 = vmatpush1.msra.mxu0 0.0
  %8510 = vmatprep.subr.mxu0 0.0
  %8511 = vmatpush1.msra.mxu0 0.0
  %8512 = vmatprep.subr.mxu0 0.0
  %8513 = vmatpush1.msra.mxu0 0.0
  %8514 = vmatprep.subr.mxu0 0.0
  %8515 = vmatpush1.msra.mxu0 0.0
  %8516 = vmatprep.subr.mxu0 0.0
  %8517 = vmatpush1.msra.mxu0 0.0
  %8518 = vmatprep.subr.mxu0 0.0
  %8519 = vmatpush1.msra.mxu0 0.0
  %8520 = vmatprep.subr.mxu0 0.0
  %8521 = vmatpush1.msra.mxu0 0.0
  %8522 = vmatprep.subr.mxu0 0.0
  %8523 = vmatpush1.msra.mxu0 0.0
  %8524 = vmatprep.subr.mxu0 0.0
  %8525 = vmatpush1.msra.mxu0 0.0
  %v8526 = vand.u32 %v8253, 4294901760
  %8527 = vmatprep.subr.mxu0 %v8526
  %v8528 = vand.u32 %v8252, 4294901760
  %8529 = vmatpush1.msra.mxu0 %v8528
  %8530 = vmatprep.subr.mxu0 0.0
  %8531 = vmatpush2.msra.mxu0 0.0
  %8532 = vmatprep.subr.mxu0 0.0
  %8533 = vmatpush2.msra.mxu0 0.0
  %8534 = vmatprep.subr.mxu0 0.0
  %8535 = vmatpush2.msra.mxu0 0.0
  %8536 = vmatprep.subr.mxu0 0.0
  %8537 = vmatpush2.msra.mxu0 0.0
  %8538 = vmatprep.subr.mxu0 0.0
  %8539 = vmatpush2.msra.mxu0 0.0
  %8540 = vmatprep.subr.mxu0 0.0
  %8541 = vmatpush2.msra.mxu0 0.0
  %8542 = vmatprep.subr.mxu0 0.0
  %8543 = vmatpush2.msra.mxu0 0.0
  %8544 = vmatprep.subr.mxu0 0.0
  %8545 = vmatpush2.msra.mxu0 0.0
  %8546 = vmatprep.subr.mxu0 0.0
  %8547 = vmatpush2.msra.mxu0 0.0
  %8548 = vmatprep.subr.mxu0 0.0
  %8549 = vmatpush2.msra.mxu0 0.0
  %8550 = vmatprep.subr.mxu0 0.0
  %8551 = vmatpush2.msra.mxu0 0.0
  %8552 = vmatprep.subr.mxu0 0.0
  %8553 = vmatpush2.msra.mxu0 0.0
  %8554 = vmatprep.subr.mxu0 0.0
  %8555 = vmatpush2.msra.mxu0 0.0
  %8556 = vmatprep.subr.mxu0 0.0
  %8557 = vmatpush2.msra.mxu0 0.0
  %8558 = vmatprep.subr.mxu0 0.0
  %8559 = vmatpush2.msra.mxu0 0.0
  %8560 = vmatprep.subr.mxu0 0.0
  %8561 = vmatpush2.msra.mxu0 0.0
  %8562 = vmatprep.mubr.f32.mxu0 0.0
  %v8563 = vand.u32 %v8257, 4294901760
  %v8564 = vsub.f32 %v8257, %v8563
  %v8565 = vand.u32 %v8564, 4294901760
  %8566 = vmatmul.mubr.f32.gmra.mxu0 %v8565
  %v8567 = vpop.f32.mrf.mxu0
  %v8568 = vadd.f32 %v8492, %v8567
  %v8569 = vpop.f32.mrf.mxu0
  %v8570 = vadd.f32 %v8494, %v8569
  %8571 = vdwg.mxu0
  %8572 = vmatprep.subr.mxu0 0.0
  %8573 = vmatpush1.msra.mxu0 0.0
  %8574 = vmatprep.subr.mxu0 0.0
  %8575 = vmatpush1.msra.mxu0 0.0
  %8576 = vmatprep.subr.mxu0 0.0
  %8577 = vmatpush1.msra.mxu0 0.0
  %8578 = vmatprep.subr.mxu0 0.0
  %8579 = vmatpush1.msra.mxu0 0.0
  %8580 = vmatprep.subr.mxu0 0.0
  %8581 = vmatpush1.msra.mxu0 0.0
  %8582 = vmatprep.subr.mxu0 0.0
  %8583 = vmatpush1.msra.mxu0 0.0
  %8584 = vmatprep.subr.mxu0 0.0
  %8585 = vmatpush1.msra.mxu0 0.0
  %8586 = vmatprep.subr.mxu0 0.0
  %8587 = vmatpush1.msra.mxu0 0.0
  %8588 = vmatprep.subr.mxu0 0.0
  %8589 = vmatpush1.msra.mxu0 0.0
  %8590 = vmatprep.subr.mxu0 0.0
  %8591 = vmatpush1.msra.mxu0 0.0
  %8592 = vmatprep.subr.mxu0 0.0
  %8593 = vmatpush1.msra.mxu0 0.0
  %8594 = vmatprep.subr.mxu0 0.0
  %8595 = vmatpush1.msra.mxu0 0.0
  %8596 = vmatprep.subr.mxu0 0.0
  %8597 = vmatpush1.msra.mxu0 0.0
  %8598 = vmatprep.subr.mxu0 0.0
  %8599 = vmatpush1.msra.mxu0 0.0
  %8600 = vmatprep.subr.mxu0 0.0
  %8601 = vmatpush1.msra.mxu0 0.0
  %v8602 = vand.u32 %v8253, 4294901760
  %v8603 = vsub.f32 %v8253, %v8602
  %v8604 = vand.u32 %v8603, 4294901760
  %8605 = vmatprep.subr.mxu0 %v8604
  %v8606 = vand.u32 %v8252, 4294901760
  %v8607 = vsub.f32 %v8252, %v8606
  %v8608 = vand.u32 %v8607, 4294901760
  %8609 = vmatpush1.msra.mxu0 %v8608
  %8610 = vmatprep.subr.mxu0 0.0
  %8611 = vmatpush2.msra.mxu0 0.0
  %8612 = vmatprep.subr.mxu0 0.0
  %8613 = vmatpush2.msra.mxu0 0.0
  %8614 = vmatprep.subr.mxu0 0.0
  %8615 = vmatpush2.msra.mxu0 0.0
  %8616 = vmatprep.subr.mxu0 0.0
  %8617 = vmatpush2.msra.mxu0 0.0
  %8618 = vmatprep.subr.mxu0 0.0
  %8619 = vmatpush2.msra.mxu0 0.0
  %8620 = vmatprep.subr.mxu0 0.0
  %8621 = vmatpush2.msra.mxu0 0.0
  %8622 = vmatprep.subr.mxu0 0.0
  %8623 = vmatpush2.msra.mxu0 0.0
  %8624 = vmatprep.subr.mxu0 0.0
  %8625 = vmatpush2.msra.mxu0 0.0
  %8626 = vmatprep.subr.mxu0 0.0
  %8627 = vmatpush2.msra.mxu0 0.0
  %8628 = vmatprep.subr.mxu0 0.0
  %8629 = vmatpush2.msra.mxu0 0.0
  %8630 = vmatprep.subr.mxu0 0.0
  %8631 = vmatpush2.msra.mxu0 0.0
  %8632 = vmatprep.subr.mxu0 0.0
  %8633 = vmatpush2.msra.mxu0 0.0
  %8634 = vmatprep.subr.mxu0 0.0
  %8635 = vmatpush2.msra.mxu0 0.0
  %8636 = vmatprep.subr.mxu0 0.0
  %8637 = vmatpush2.msra.mxu0 0.0
  %8638 = vmatprep.subr.mxu0 0.0
  %8639 = vmatpush2.msra.mxu0 0.0
  %8640 = vmatprep.subr.mxu0 0.0
  %8641 = vmatpush2.msra.mxu0 0.0
  %8642 = vmatprep.mubr.f32.mxu0 0.0
  %v8643 = vand.u32 %v8257, 4294901760
  %8644 = vmatmul.mubr.f32.gmra.mxu0 %v8643
  %v8645 = vpop.f32.mrf.mxu0
  %v8646 = vadd.f32 %v8568, %v8645
  %v8647 = vpop.f32.mrf.mxu0
  %v8648 = vadd.f32 %v8570, %v8647
  %8649 = vdwg.mxu0
  %8650 = vmatprep.subr.mxu0 0.0
  %8651 = vmatpush1.msra.mxu0 0.0
  %8652 = vmatprep.subr.mxu0 0.0
  %8653 = vmatpush1.msra.mxu0 0.0
  %8654 = vmatprep.subr.mxu0 0.0
  %8655 = vmatpush1.msra.mxu0 0.0
  %8656 = vmatprep.subr.mxu0 0.0
  %8657 = vmatpush1.msra.mxu0 0.0
  %8658 = vmatprep.subr.mxu0 0.0
  %8659 = vmatpush1.msra.mxu0 0.0
  %8660 = vmatprep.subr.mxu0 0.0
  %8661 = vmatpush1.msra.mxu0 0.0
  %8662 = vmatprep.subr.mxu0 0.0
  %8663 = vmatpush1.msra.mxu0 0.0
  %8664 = vmatprep.subr.mxu0 0.0
  %8665 = vmatpush1.msra.mxu0 0.0
  %8666 = vmatprep.subr.mxu0 0.0
  %8667 = vmatpush1.msra.mxu0 0.0
  %8668 = vmatprep.subr.mxu0 0.0
  %8669 = vmatpush1.msra.mxu0 0.0
  %8670 = vmatprep.subr.mxu0 0.0
  %8671 = vmatpush1.msra.mxu0 0.0
  %8672 = vmatprep.subr.mxu0 0.0
  %8673 = vmatpush1.msra.mxu0 0.0
  %8674 = vmatprep.subr.mxu0 0.0
  %8675 = vmatpush1.msra.mxu0 0.0
  %8676 = vmatprep.subr.mxu0 0.0
  %8677 = vmatpush1.msra.mxu0 0.0
  %8678 = vmatprep.subr.mxu0 0.0
  %8679 = vmatpush1.msra.mxu0 0.0
  %v8680 = vand.u32 %v8253, 4294901760
  %8681 = vmatprep.subr.mxu0 %v8680
  %v8682 = vand.u32 %v8252, 4294901760
  %8683 = vmatpush1.msra.mxu0 %v8682
  %8684 = vmatprep.subr.mxu0 0.0
  %8685 = vmatpush2.msra.mxu0 0.0
  %8686 = vmatprep.subr.mxu0 0.0
  %8687 = vmatpush2.msra.mxu0 0.0
  %8688 = vmatprep.subr.mxu0 0.0
  %8689 = vmatpush2.msra.mxu0 0.0
  %8690 = vmatprep.subr.mxu0 0.0
  %8691 = vmatpush2.msra.mxu0 0.0
  %8692 = vmatprep.subr.mxu0 0.0
  %8693 = vmatpush2.msra.mxu0 0.0
  %8694 = vmatprep.subr.mxu0 0.0
  %8695 = vmatpush2.msra.mxu0 0.0
  %8696 = vmatprep.subr.mxu0 0.0
  %8697 = vmatpush2.msra.mxu0 0.0
  %8698 = vmatprep.subr.mxu0 0.0
  %8699 = vmatpush2.msra.mxu0 0.0
  %8700 = vmatprep.subr.mxu0 0.0
  %8701 = vmatpush2.msra.mxu0 0.0
  %8702 = vmatprep.subr.mxu0 0.0
  %8703 = vmatpush2.msra.mxu0 0.0
  %8704 = vmatprep.subr.mxu0 0.0
  %8705 = vmatpush2.msra.mxu0 0.0
  %8706 = vmatprep.subr.mxu0 0.0
  %8707 = vmatpush2.msra.mxu0 0.0
  %8708 = vmatprep.subr.mxu0 0.0
  %8709 = vmatpush2.msra.mxu0 0.0
  %8710 = vmatprep.subr.mxu0 0.0
  %8711 = vmatpush2.msra.mxu0 0.0
  %8712 = vmatprep.subr.mxu0 0.0
  %8713 = vmatpush2.msra.mxu0 0.0
  %8714 = vmatprep.subr.mxu0 0.0
  %8715 = vmatpush2.msra.mxu0 0.0
  %8716 = vmatprep.mubr.f32.mxu0 0.0
  %v8717 = vand.u32 %v8257, 4294901760
  %8718 = vmatmul.mubr.f32.gmra.mxu0 %v8717
  %v8719 = vpop.f32.mrf.mxu0
  %v8720 = vadd.f32 %v8646, %v8719
  %v8721 = vpop.f32.mrf.mxu0
  %v8722 = vadd.f32 %v8648, %v8721
  %8723 = vdwg.mxu0
  %v8724 = vadd.f32 %v8244, %v8720
  %v8725 = vadd.f32 %v8245, %v8722
  %8726 = vrot.lane.b32.xlu0 %v4896, 111
  %v8727 = vpop.permute.xlu0 %8726
  %8728 = vrot.lane.b32.xlu0 %v4897, 111
  %v8729 = vpop.permute.xlu0 %8728
  %v8730 = vsel %vm3913, %v8727, %v8729
  %v8731 = vsel %vm3913, %v8729, %v8727
  %v8732 = vmul.f32 %v8730, %v3917
  %v8733 = vmul.f32 %v8731, %v3918
  %s8734 = scalar_lea.vmem %s2, 136
  %v8735 = vld [vmem:[%s8734] sm:$0xff]
  %v8737 = vsel %vm80, %v8735, 0
  %8739 = vmatprep.subr.mxu0 0.0
  %8740 = vmatpush1.msra.mxu0 0.0
  %8741 = vmatprep.subr.mxu0 0.0
  %8742 = vmatpush1.msra.mxu0 0.0
  %8743 = vmatprep.subr.mxu0 0.0
  %8744 = vmatpush1.msra.mxu0 0.0
  %8745 = vmatprep.subr.mxu0 0.0
  %8746 = vmatpush1.msra.mxu0 0.0
  %8747 = vmatprep.subr.mxu0 0.0
  %8748 = vmatpush1.msra.mxu0 0.0
  %8749 = vmatprep.subr.mxu0 0.0
  %8750 = vmatpush1.msra.mxu0 0.0
  %8751 = vmatprep.subr.mxu0 0.0
  %8752 = vmatpush1.msra.mxu0 0.0
  %8753 = vmatprep.subr.mxu0 0.0
  %8754 = vmatpush1.msra.mxu0 0.0
  %8755 = vmatprep.subr.mxu0 0.0
  %8756 = vmatpush1.msra.mxu0 0.0
  %8757 = vmatprep.subr.mxu0 0.0
  %8758 = vmatpush1.msra.mxu0 0.0
  %8759 = vmatprep.subr.mxu0 0.0
  %8760 = vmatpush1.msra.mxu0 0.0
  %8761 = vmatprep.subr.mxu0 0.0
  %8762 = vmatpush1.msra.mxu0 0.0
  %8763 = vmatprep.subr.mxu0 0.0
  %8764 = vmatpush1.msra.mxu0 0.0
  %8765 = vmatprep.subr.mxu0 0.0
  %8766 = vmatpush1.msra.mxu0 0.0
  %8767 = vmatprep.subr.mxu0 0.0
  %8768 = vmatpush1.msra.mxu0 0.0
  %v8769 = vand.u32 %v8733, 4294901760
  %8770 = vmatprep.subr.mxu0 %v8769
  %v8771 = vand.u32 %v8732, 4294901760
  %8772 = vmatpush1.msra.mxu0 %v8771
  %8773 = vmatprep.subr.mxu0 0.0
  %8774 = vmatpush2.msra.mxu0 0.0
  %8775 = vmatprep.subr.mxu0 0.0
  %8776 = vmatpush2.msra.mxu0 0.0
  %8777 = vmatprep.subr.mxu0 0.0
  %8778 = vmatpush2.msra.mxu0 0.0
  %8779 = vmatprep.subr.mxu0 0.0
  %8780 = vmatpush2.msra.mxu0 0.0
  %8781 = vmatprep.subr.mxu0 0.0
  %8782 = vmatpush2.msra.mxu0 0.0
  %8783 = vmatprep.subr.mxu0 0.0
  %8784 = vmatpush2.msra.mxu0 0.0
  %8785 = vmatprep.subr.mxu0 0.0
  %8786 = vmatpush2.msra.mxu0 0.0
  %8787 = vmatprep.subr.mxu0 0.0
  %8788 = vmatpush2.msra.mxu0 0.0
  %8789 = vmatprep.subr.mxu0 0.0
  %8790 = vmatpush2.msra.mxu0 0.0
  %8791 = vmatprep.subr.mxu0 0.0
  %8792 = vmatpush2.msra.mxu0 0.0
  %8793 = vmatprep.subr.mxu0 0.0
  %8794 = vmatpush2.msra.mxu0 0.0
  %8795 = vmatprep.subr.mxu0 0.0
  %8796 = vmatpush2.msra.mxu0 0.0
  %8797 = vmatprep.subr.mxu0 0.0
  %8798 = vmatpush2.msra.mxu0 0.0
  %8799 = vmatprep.subr.mxu0 0.0
  %8800 = vmatpush2.msra.mxu0 0.0
  %8801 = vmatprep.subr.mxu0 0.0
  %8802 = vmatpush2.msra.mxu0 0.0
  %8803 = vmatprep.subr.mxu0 0.0
  %8804 = vmatpush2.msra.mxu0 0.0
  %8805 = vmatprep.mubr.f32.mxu0 0.0
  %v8806 = vand.u32 %v8737, 4294901760
  %v8807 = vsub.f32 %v8737, %v8806
  %v8808 = vand.u32 %v8807, 4294901760
  %v8809 = vsub.f32 %v8807, %v8808
  %v8810 = vand.u32 %v8809, 4294901760
  %8811 = vmatmul.mubr.f32.gmra.mxu0 %v8810
  %v8812 = vpop.f32.mrf.mxu0
  %v8813 = vadd.f32 0.0, %v8812
  %v8814 = vpop.f32.mrf.mxu0
  %v8815 = vadd.f32 0.0, %v8814
  %8816 = vdwg.mxu0
  %8817 = vmatprep.subr.mxu0 0.0
  %8818 = vmatpush1.msra.mxu0 0.0
  %8819 = vmatprep.subr.mxu0 0.0
  %8820 = vmatpush1.msra.mxu0 0.0
  %8821 = vmatprep.subr.mxu0 0.0
  %8822 = vmatpush1.msra.mxu0 0.0
  %8823 = vmatprep.subr.mxu0 0.0
  %8824 = vmatpush1.msra.mxu0 0.0
  %8825 = vmatprep.subr.mxu0 0.0
  %8826 = vmatpush1.msra.mxu0 0.0
  %8827 = vmatprep.subr.mxu0 0.0
  %8828 = vmatpush1.msra.mxu0 0.0
  %8829 = vmatprep.subr.mxu0 0.0
  %8830 = vmatpush1.msra.mxu0 0.0
  %8831 = vmatprep.subr.mxu0 0.0
  %8832 = vmatpush1.msra.mxu0 0.0
  %8833 = vmatprep.subr.mxu0 0.0
  %8834 = vmatpush1.msra.mxu0 0.0
  %8835 = vmatprep.subr.mxu0 0.0
  %8836 = vmatpush1.msra.mxu0 0.0
  %8837 = vmatprep.subr.mxu0 0.0
  %8838 = vmatpush1.msra.mxu0 0.0
  %8839 = vmatprep.subr.mxu0 0.0
  %8840 = vmatpush1.msra.mxu0 0.0
  %8841 = vmatprep.subr.mxu0 0.0
  %8842 = vmatpush1.msra.mxu0 0.0
  %8843 = vmatprep.subr.mxu0 0.0
  %8844 = vmatpush1.msra.mxu0 0.0
  %8845 = vmatprep.subr.mxu0 0.0
  %8846 = vmatpush1.msra.mxu0 0.0
  %v8847 = vand.u32 %v8733, 4294901760
  %v8848 = vsub.f32 %v8733, %v8847
  %v8849 = vand.u32 %v8848, 4294901760
  %v8850 = vsub.f32 %v8848, %v8849
  %v8851 = vand.u32 %v8850, 4294901760
  %8852 = vmatprep.subr.mxu0 %v8851
  %v8853 = vand.u32 %v8732, 4294901760
  %v8854 = vsub.f32 %v8732, %v8853
  %v8855 = vand.u32 %v8854, 4294901760
  %v8856 = vsub.f32 %v8854, %v8855
  %v8857 = vand.u32 %v8856, 4294901760
  %8858 = vmatpush1.msra.mxu0 %v8857
  %8859 = vmatprep.subr.mxu0 0.0
  %8860 = vmatpush2.msra.mxu0 0.0
  %8861 = vmatprep.subr.mxu0 0.0
  %8862 = vmatpush2.msra.mxu0 0.0
  %8863 = vmatprep.subr.mxu0 0.0
  %8864 = vmatpush2.msra.mxu0 0.0
  %8865 = vmatprep.subr.mxu0 0.0
  %8866 = vmatpush2.msra.mxu0 0.0
  %8867 = vmatprep.subr.mxu0 0.0
  %8868 = vmatpush2.msra.mxu0 0.0
  %8869 = vmatprep.subr.mxu0 0.0
  %8870 = vmatpush2.msra.mxu0 0.0
  %8871 = vmatprep.subr.mxu0 0.0
  %8872 = vmatpush2.msra.mxu0 0.0
  %8873 = vmatprep.subr.mxu0 0.0
  %8874 = vmatpush2.msra.mxu0 0.0
  %8875 = vmatprep.subr.mxu0 0.0
  %8876 = vmatpush2.msra.mxu0 0.0
  %8877 = vmatprep.subr.mxu0 0.0
  %8878 = vmatpush2.msra.mxu0 0.0
  %8879 = vmatprep.subr.mxu0 0.0
  %8880 = vmatpush2.msra.mxu0 0.0
  %8881 = vmatprep.subr.mxu0 0.0
  %8882 = vmatpush2.msra.mxu0 0.0
  %8883 = vmatprep.subr.mxu0 0.0
  %8884 = vmatpush2.msra.mxu0 0.0
  %8885 = vmatprep.subr.mxu0 0.0
  %8886 = vmatpush2.msra.mxu0 0.0
  %8887 = vmatprep.subr.mxu0 0.0
  %8888 = vmatpush2.msra.mxu0 0.0
  %8889 = vmatprep.subr.mxu0 0.0
  %8890 = vmatpush2.msra.mxu0 0.0
  %8891 = vmatprep.mubr.f32.mxu0 0.0
  %v8892 = vand.u32 %v8737, 4294901760
  %8893 = vmatmul.mubr.f32.gmra.mxu0 %v8892
  %v8894 = vpop.f32.mrf.mxu0
  %v8895 = vadd.f32 %v8813, %v8894
  %v8896 = vpop.f32.mrf.mxu0
  %v8897 = vadd.f32 %v8815, %v8896
  %8898 = vdwg.mxu0
  %8899 = vmatprep.subr.mxu0 0.0
  %8900 = vmatpush1.msra.mxu0 0.0
  %8901 = vmatprep.subr.mxu0 0.0
  %8902 = vmatpush1.msra.mxu0 0.0
  %8903 = vmatprep.subr.mxu0 0.0
  %8904 = vmatpush1.msra.mxu0 0.0
  %8905 = vmatprep.subr.mxu0 0.0
  %8906 = vmatpush1.msra.mxu0 0.0
  %8907 = vmatprep.subr.mxu0 0.0
  %8908 = vmatpush1.msra.mxu0 0.0
  %8909 = vmatprep.subr.mxu0 0.0
  %8910 = vmatpush1.msra.mxu0 0.0
  %8911 = vmatprep.subr.mxu0 0.0
  %8912 = vmatpush1.msra.mxu0 0.0
  %8913 = vmatprep.subr.mxu0 0.0
  %8914 = vmatpush1.msra.mxu0 0.0
  %8915 = vmatprep.subr.mxu0 0.0
  %8916 = vmatpush1.msra.mxu0 0.0
  %8917 = vmatprep.subr.mxu0 0.0
  %8918 = vmatpush1.msra.mxu0 0.0
  %8919 = vmatprep.subr.mxu0 0.0
  %8920 = vmatpush1.msra.mxu0 0.0
  %8921 = vmatprep.subr.mxu0 0.0
  %8922 = vmatpush1.msra.mxu0 0.0
  %8923 = vmatprep.subr.mxu0 0.0
  %8924 = vmatpush1.msra.mxu0 0.0
  %8925 = vmatprep.subr.mxu0 0.0
  %8926 = vmatpush1.msra.mxu0 0.0
  %8927 = vmatprep.subr.mxu0 0.0
  %8928 = vmatpush1.msra.mxu0 0.0
  %v8929 = vand.u32 %v8733, 4294901760
  %v8930 = vsub.f32 %v8733, %v8929
  %8931 = vmatprep.subr.mxu0 %v8930
  %v8932 = vand.u32 %v8732, 4294901760
  %v8933 = vsub.f32 %v8732, %v8932
  %8934 = vmatpush1.msra.mxu0 %v8933
  %8935 = vmatprep.subr.mxu0 0.0
  %8936 = vmatpush2.msra.mxu0 0.0
  %8937 = vmatprep.subr.mxu0 0.0
  %8938 = vmatpush2.msra.mxu0 0.0
  %8939 = vmatprep.subr.mxu0 0.0
  %8940 = vmatpush2.msra.mxu0 0.0
  %8941 = vmatprep.subr.mxu0 0.0
  %8942 = vmatpush2.msra.mxu0 0.0
  %8943 = vmatprep.subr.mxu0 0.0
  %8944 = vmatpush2.msra.mxu0 0.0
  %8945 = vmatprep.subr.mxu0 0.0
  %8946 = vmatpush2.msra.mxu0 0.0
  %8947 = vmatprep.subr.mxu0 0.0
  %8948 = vmatpush2.msra.mxu0 0.0
  %8949 = vmatprep.subr.mxu0 0.0
  %8950 = vmatpush2.msra.mxu0 0.0
  %8951 = vmatprep.subr.mxu0 0.0
  %8952 = vmatpush2.msra.mxu0 0.0
  %8953 = vmatprep.subr.mxu0 0.0
  %8954 = vmatpush2.msra.mxu0 0.0
  %8955 = vmatprep.subr.mxu0 0.0
  %8956 = vmatpush2.msra.mxu0 0.0
  %8957 = vmatprep.subr.mxu0 0.0
  %8958 = vmatpush2.msra.mxu0 0.0
  %8959 = vmatprep.subr.mxu0 0.0
  %8960 = vmatpush2.msra.mxu0 0.0
  %8961 = vmatprep.subr.mxu0 0.0
  %8962 = vmatpush2.msra.mxu0 0.0
  %8963 = vmatprep.subr.mxu0 0.0
  %8964 = vmatpush2.msra.mxu0 0.0
  %8965 = vmatprep.subr.mxu0 0.0
  %8966 = vmatpush2.msra.mxu0 0.0
  %8967 = vmatprep.mubr.f32.mxu0 0.0
  %v8968 = vand.u32 %v8737, 4294901760
  %v8969 = vsub.f32 %v8737, %v8968
  %8970 = vmatmul.mubr.f32.gmra.mxu0 %v8969
  %v8971 = vpop.f32.mrf.mxu0
  %v8972 = vadd.f32 %v8895, %v8971
  %v8973 = vpop.f32.mrf.mxu0
  %v8974 = vadd.f32 %v8897, %v8973
  %8975 = vdwg.mxu0
  %8976 = vmatprep.subr.mxu0 0.0
  %8977 = vmatpush1.msra.mxu0 0.0
  %8978 = vmatprep.subr.mxu0 0.0
  %8979 = vmatpush1.msra.mxu0 0.0
  %8980 = vmatprep.subr.mxu0 0.0
  %8981 = vmatpush1.msra.mxu0 0.0
  %8982 = vmatprep.subr.mxu0 0.0
  %8983 = vmatpush1.msra.mxu0 0.0
  %8984 = vmatprep.subr.mxu0 0.0
  %8985 = vmatpush1.msra.mxu0 0.0
  %8986 = vmatprep.subr.mxu0 0.0
  %8987 = vmatpush1.msra.mxu0 0.0
  %8988 = vmatprep.subr.mxu0 0.0
  %8989 = vmatpush1.msra.mxu0 0.0
  %8990 = vmatprep.subr.mxu0 0.0
  %8991 = vmatpush1.msra.mxu0 0.0
  %8992 = vmatprep.subr.mxu0 0.0
  %8993 = vmatpush1.msra.mxu0 0.0
  %8994 = vmatprep.subr.mxu0 0.0
  %8995 = vmatpush1.msra.mxu0 0.0
  %8996 = vmatprep.subr.mxu0 0.0
  %8997 = vmatpush1.msra.mxu0 0.0
  %8998 = vmatprep.subr.mxu0 0.0
  %8999 = vmatpush1.msra.mxu0 0.0
  %9000 = vmatprep.subr.mxu0 0.0
  %9001 = vmatpush1.msra.mxu0 0.0
  %9002 = vmatprep.subr.mxu0 0.0
  %9003 = vmatpush1.msra.mxu0 0.0
  %9004 = vmatprep.subr.mxu0 0.0
  %9005 = vmatpush1.msra.mxu0 0.0
  %v9006 = vand.u32 %v8733, 4294901760
  %9007 = vmatprep.subr.mxu0 %v9006
  %v9008 = vand.u32 %v8732, 4294901760
  %9009 = vmatpush1.msra.mxu0 %v9008
  %9010 = vmatprep.subr.mxu0 0.0
  %9011 = vmatpush2.msra.mxu0 0.0
  %9012 = vmatprep.subr.mxu0 0.0
  %9013 = vmatpush2.msra.mxu0 0.0
  %9014 = vmatprep.subr.mxu0 0.0
  %9015 = vmatpush2.msra.mxu0 0.0
  %9016 = vmatprep.subr.mxu0 0.0
  %9017 = vmatpush2.msra.mxu0 0.0
  %9018 = vmatprep.subr.mxu0 0.0
  %9019 = vmatpush2.msra.mxu0 0.0
  %9020 = vmatprep.subr.mxu0 0.0
  %9021 = vmatpush2.msra.mxu0 0.0
  %9022 = vmatprep.subr.mxu0 0.0
  %9023 = vmatpush2.msra.mxu0 0.0
  %9024 = vmatprep.subr.mxu0 0.0
  %9025 = vmatpush2.msra.mxu0 0.0
  %9026 = vmatprep.subr.mxu0 0.0
  %9027 = vmatpush2.msra.mxu0 0.0
  %9028 = vmatprep.subr.mxu0 0.0
  %9029 = vmatpush2.msra.mxu0 0.0
  %9030 = vmatprep.subr.mxu0 0.0
  %9031 = vmatpush2.msra.mxu0 0.0
  %9032 = vmatprep.subr.mxu0 0.0
  %9033 = vmatpush2.msra.mxu0 0.0
  %9034 = vmatprep.subr.mxu0 0.0
  %9035 = vmatpush2.msra.mxu0 0.0
  %9036 = vmatprep.subr.mxu0 0.0
  %9037 = vmatpush2.msra.mxu0 0.0
  %9038 = vmatprep.subr.mxu0 0.0
  %9039 = vmatpush2.msra.mxu0 0.0
  %9040 = vmatprep.subr.mxu0 0.0
  %9041 = vmatpush2.msra.mxu0 0.0
  %9042 = vmatprep.mubr.f32.mxu0 0.0
  %v9043 = vand.u32 %v8737, 4294901760
  %v9044 = vsub.f32 %v8737, %v9043
  %v9045 = vand.u32 %v9044, 4294901760
  %9046 = vmatmul.mubr.f32.gmra.mxu0 %v9045
  %v9047 = vpop.f32.mrf.mxu0
  %v9048 = vadd.f32 %v8972, %v9047
  %v9049 = vpop.f32.mrf.mxu0
  %v9050 = vadd.f32 %v8974, %v9049
  %9051 = vdwg.mxu0
  %9052 = vmatprep.subr.mxu0 0.0
  %9053 = vmatpush1.msra.mxu0 0.0
  %9054 = vmatprep.subr.mxu0 0.0
  %9055 = vmatpush1.msra.mxu0 0.0
  %9056 = vmatprep.subr.mxu0 0.0
  %9057 = vmatpush1.msra.mxu0 0.0
  %9058 = vmatprep.subr.mxu0 0.0
  %9059 = vmatpush1.msra.mxu0 0.0
  %9060 = vmatprep.subr.mxu0 0.0
  %9061 = vmatpush1.msra.mxu0 0.0
  %9062 = vmatprep.subr.mxu0 0.0
  %9063 = vmatpush1.msra.mxu0 0.0
  %9064 = vmatprep.subr.mxu0 0.0
  %9065 = vmatpush1.msra.mxu0 0.0
  %9066 = vmatprep.subr.mxu0 0.0
  %9067 = vmatpush1.msra.mxu0 0.0
  %9068 = vmatprep.subr.mxu0 0.0
  %9069 = vmatpush1.msra.mxu0 0.0
  %9070 = vmatprep.subr.mxu0 0.0
  %9071 = vmatpush1.msra.mxu0 0.0
  %9072 = vmatprep.subr.mxu0 0.0
  %9073 = vmatpush1.msra.mxu0 0.0
  %9074 = vmatprep.subr.mxu0 0.0
  %9075 = vmatpush1.msra.mxu0 0.0
  %9076 = vmatprep.subr.mxu0 0.0
  %9077 = vmatpush1.msra.mxu0 0.0
  %9078 = vmatprep.subr.mxu0 0.0
  %9079 = vmatpush1.msra.mxu0 0.0
  %9080 = vmatprep.subr.mxu0 0.0
  %9081 = vmatpush1.msra.mxu0 0.0
  %v9082 = vand.u32 %v8733, 4294901760
  %v9083 = vsub.f32 %v8733, %v9082
  %v9084 = vand.u32 %v9083, 4294901760
  %9085 = vmatprep.subr.mxu0 %v9084
  %v9086 = vand.u32 %v8732, 4294901760
  %v9087 = vsub.f32 %v8732, %v9086
  %v9088 = vand.u32 %v9087, 4294901760
  %9089 = vmatpush1.msra.mxu0 %v9088
  %9090 = vmatprep.subr.mxu0 0.0
  %9091 = vmatpush2.msra.mxu0 0.0
  %9092 = vmatprep.subr.mxu0 0.0
  %9093 = vmatpush2.msra.mxu0 0.0
  %9094 = vmatprep.subr.mxu0 0.0
  %9095 = vmatpush2.msra.mxu0 0.0
  %9096 = vmatprep.subr.mxu0 0.0
  %9097 = vmatpush2.msra.mxu0 0.0
  %9098 = vmatprep.subr.mxu0 0.0
  %9099 = vmatpush2.msra.mxu0 0.0
  %9100 = vmatprep.subr.mxu0 0.0
  %9101 = vmatpush2.msra.mxu0 0.0
  %9102 = vmatprep.subr.mxu0 0.0
  %9103 = vmatpush2.msra.mxu0 0.0
  %9104 = vmatprep.subr.mxu0 0.0
  %9105 = vmatpush2.msra.mxu0 0.0
  %9106 = vmatprep.subr.mxu0 0.0
  %9107 = vmatpush2.msra.mxu0 0.0
  %9108 = vmatprep.subr.mxu0 0.0
  %9109 = vmatpush2.msra.mxu0 0.0
  %9110 = vmatprep.subr.mxu0 0.0
  %9111 = vmatpush2.msra.mxu0 0.0
  %9112 = vmatprep.subr.mxu0 0.0
  %9113 = vmatpush2.msra.mxu0 0.0
  %9114 = vmatprep.subr.mxu0 0.0
  %9115 = vmatpush2.msra.mxu0 0.0
  %9116 = vmatprep.subr.mxu0 0.0
  %9117 = vmatpush2.msra.mxu0 0.0
  %9118 = vmatprep.subr.mxu0 0.0
  %9119 = vmatpush2.msra.mxu0 0.0
  %9120 = vmatprep.subr.mxu0 0.0
  %9121 = vmatpush2.msra.mxu0 0.0
  %9122 = vmatprep.mubr.f32.mxu0 0.0
  %v9123 = vand.u32 %v8737, 4294901760
  %9124 = vmatmul.mubr.f32.gmra.mxu0 %v9123
  %v9125 = vpop.f32.mrf.mxu0
  %v9126 = vadd.f32 %v9048, %v9125
  %v9127 = vpop.f32.mrf.mxu0
  %v9128 = vadd.f32 %v9050, %v9127
  %9129 = vdwg.mxu0
  %9130 = vmatprep.subr.mxu0 0.0
  %9131 = vmatpush1.msra.mxu0 0.0
  %9132 = vmatprep.subr.mxu0 0.0
  %9133 = vmatpush1.msra.mxu0 0.0
  %9134 = vmatprep.subr.mxu0 0.0
  %9135 = vmatpush1.msra.mxu0 0.0
  %9136 = vmatprep.subr.mxu0 0.0
  %9137 = vmatpush1.msra.mxu0 0.0
  %9138 = vmatprep.subr.mxu0 0.0
  %9139 = vmatpush1.msra.mxu0 0.0
  %9140 = vmatprep.subr.mxu0 0.0
  %9141 = vmatpush1.msra.mxu0 0.0
  %9142 = vmatprep.subr.mxu0 0.0
  %9143 = vmatpush1.msra.mxu0 0.0
  %9144 = vmatprep.subr.mxu0 0.0
  %9145 = vmatpush1.msra.mxu0 0.0
  %9146 = vmatprep.subr.mxu0 0.0
  %9147 = vmatpush1.msra.mxu0 0.0
  %9148 = vmatprep.subr.mxu0 0.0
  %9149 = vmatpush1.msra.mxu0 0.0
  %9150 = vmatprep.subr.mxu0 0.0
  %9151 = vmatpush1.msra.mxu0 0.0
  %9152 = vmatprep.subr.mxu0 0.0
  %9153 = vmatpush1.msra.mxu0 0.0
  %9154 = vmatprep.subr.mxu0 0.0
  %9155 = vmatpush1.msra.mxu0 0.0
  %9156 = vmatprep.subr.mxu0 0.0
  %9157 = vmatpush1.msra.mxu0 0.0
  %9158 = vmatprep.subr.mxu0 0.0
  %9159 = vmatpush1.msra.mxu0 0.0
  %v9160 = vand.u32 %v8733, 4294901760
  %9161 = vmatprep.subr.mxu0 %v9160
  %v9162 = vand.u32 %v8732, 4294901760
  %9163 = vmatpush1.msra.mxu0 %v9162
  %9164 = vmatprep.subr.mxu0 0.0
  %9165 = vmatpush2.msra.mxu0 0.0
  %9166 = vmatprep.subr.mxu0 0.0
  %9167 = vmatpush2.msra.mxu0 0.0
  %9168 = vmatprep.subr.mxu0 0.0
  %9169 = vmatpush2.msra.mxu0 0.0
  %9170 = vmatprep.subr.mxu0 0.0
  %9171 = vmatpush2.msra.mxu0 0.0
  %9172 = vmatprep.subr.mxu0 0.0
  %9173 = vmatpush2.msra.mxu0 0.0
  %9174 = vmatprep.subr.mxu0 0.0
  %9175 = vmatpush2.msra.mxu0 0.0
  %9176 = vmatprep.subr.mxu0 0.0
  %9177 = vmatpush2.msra.mxu0 0.0
  %9178 = vmatprep.subr.mxu0 0.0
  %9179 = vmatpush2.msra.mxu0 0.0
  %9180 = vmatprep.subr.mxu0 0.0
  %9181 = vmatpush2.msra.mxu0 0.0
  %9182 = vmatprep.subr.mxu0 0.0
  %9183 = vmatpush2.msra.mxu0 0.0
  %9184 = vmatprep.subr.mxu0 0.0
  %9185 = vmatpush2.msra.mxu0 0.0
  %9186 = vmatprep.subr.mxu0 0.0
  %9187 = vmatpush2.msra.mxu0 0.0
  %9188 = vmatprep.subr.mxu0 0.0
  %9189 = vmatpush2.msra.mxu0 0.0
  %9190 = vmatprep.subr.mxu0 0.0
  %9191 = vmatpush2.msra.mxu0 0.0
  %9192 = vmatprep.subr.mxu0 0.0
  %9193 = vmatpush2.msra.mxu0 0.0
  %9194 = vmatprep.subr.mxu0 0.0
  %9195 = vmatpush2.msra.mxu0 0.0
  %9196 = vmatprep.mubr.f32.mxu0 0.0
  %v9197 = vand.u32 %v8737, 4294901760
  %9198 = vmatmul.mubr.f32.gmra.mxu0 %v9197
  %v9199 = vpop.f32.mrf.mxu0
  %v9200 = vadd.f32 %v9126, %v9199
  %v9201 = vpop.f32.mrf.mxu0
  %v9202 = vadd.f32 %v9128, %v9201
  %9203 = vdwg.mxu0
  %v9204 = vadd.f32 %v8724, %v9200
  %v9205 = vadd.f32 %v8725, %v9202
  %v9206 = vadd.f32 %v9204, %v9205
  %9207 = vadd.xlane.f32.xlu0 %v9206
  %v9208 = vpop.xlane.xlu0 %9207
  %v9209 = vmul.f32 %v9204, %v9204
  %v9210 = vmul.f32 %v9205, %v9205
  %v9211 = vadd.f32 %v9209, %v9210
  %9212 = vadd.xlane.f32.xlu0 %v9211
  %v9213 = vpop.xlane.xlu0 %9212
  %v9214 = vsel %vm4402, %v9208, %v9213
  %9215 = vmatprep.subr.mxu0 0.0
  %9216 = vmatpush1.msra.mxu0 0.0
  %9217 = vmatprep.subr.mxu0 0.0
  %9218 = vmatpush1.msra.mxu0 0.0
  %9219 = vmatprep.subr.mxu0 0.0
  %9220 = vmatpush1.msra.mxu0 0.0
  %9221 = vmatprep.subr.mxu0 0.0
  %9222 = vmatpush1.msra.mxu0 0.0
  %9223 = vmatprep.subr.mxu0 0.0
  %9224 = vmatpush1.msra.mxu0 0.0
  %9225 = vmatprep.subr.mxu0 0.0
  %9226 = vmatpush1.msra.mxu0 0.0
  %9227 = vmatprep.subr.mxu0 0.0
  %9228 = vmatpush1.msra.mxu0 0.0
  %9229 = vmatprep.subr.mxu0 0.0
  %9230 = vmatpush1.msra.mxu0 0.0
  %9231 = vmatprep.subr.mxu0 0.0
  %9232 = vmatpush1.msra.mxu0 0.0
  %9233 = vmatprep.subr.mxu0 0.0
  %9234 = vmatpush1.msra.mxu0 0.0
  %9235 = vmatprep.subr.mxu0 0.0
  %9236 = vmatpush1.msra.mxu0 0.0
  %9237 = vmatprep.subr.mxu0 0.0
  %9238 = vmatpush1.msra.mxu0 0.0
  %9239 = vmatprep.subr.mxu0 0.0
  %9240 = vmatpush1.msra.mxu0 0.0
  %9241 = vmatprep.subr.mxu0 0.0
  %9242 = vmatpush1.msra.mxu0 0.0
  %9243 = vmatprep.subr.mxu0 0.0
  %9244 = vmatpush1.msra.mxu0 0.0
  %9245 = vmatprep.subr.mxu0 0.0
  %v9246 = vand.u32 %v9214, 4294901760
  %9247 = vmatpush1.msra.mxu0 %v9246
  %9248 = vmatprep.subr.mxu0 0.0
  %9249 = vmatpush2.msra.mxu0 0.0
  %9250 = vmatprep.subr.mxu0 0.0
  %9251 = vmatpush2.msra.mxu0 0.0
  %9252 = vmatprep.subr.mxu0 0.0
  %9253 = vmatpush2.msra.mxu0 0.0
  %9254 = vmatprep.subr.mxu0 0.0
  %9255 = vmatpush2.msra.mxu0 0.0
  %9256 = vmatprep.subr.mxu0 0.0
  %9257 = vmatpush2.msra.mxu0 0.0
  %9258 = vmatprep.subr.mxu0 0.0
  %9259 = vmatpush2.msra.mxu0 0.0
  %9260 = vmatprep.subr.mxu0 0.0
  %9261 = vmatpush2.msra.mxu0 0.0
  %9262 = vmatprep.subr.mxu0 0.0
  %9263 = vmatpush2.msra.mxu0 0.0
  %9264 = vmatprep.subr.mxu0 0.0
  %9265 = vmatpush2.msra.mxu0 0.0
  %9266 = vmatprep.subr.mxu0 0.0
  %9267 = vmatpush2.msra.mxu0 0.0
  %9268 = vmatprep.subr.mxu0 0.0
  %9269 = vmatpush2.msra.mxu0 0.0
  %9270 = vmatprep.subr.mxu0 0.0
  %9271 = vmatpush2.msra.mxu0 0.0
  %9272 = vmatprep.subr.mxu0 0.0
  %9273 = vmatpush2.msra.mxu0 0.0
  %9274 = vmatprep.subr.mxu0 0.0
  %9275 = vmatpush2.msra.mxu0 0.0
  %9276 = vmatprep.subr.mxu0 0.0
  %9277 = vmatpush2.msra.mxu0 0.0
  %9278 = vmatprep.subr.mxu0 0.0
  %9279 = vmatpush2.msra.mxu0 0.0
  %9280 = vmatprep.mubr.f32.mxu0 0.0
  %v9281 = vand.u32 %v4405, 4294901760
  %v9282 = vsub.f32 %v4405, %v9281
  %v9283 = vand.u32 %v9282, 4294901760
  %v9284 = vsub.f32 %v9282, %v9283
  %v9285 = vand.u32 %v9284, 4294901760
  %9286 = vmatmul.mubr.f32.gmra.mxu0 %v9285
  %v9287 = vpop.f32.mrf.mxu0
  %v9288 = vadd.f32 0.0, %v9287
  %v9289 = vpop.f32.mrf.mxu0
  %9290 = vdwg.mxu0
  %9291 = vmatprep.subr.mxu0 0.0
  %9292 = vmatpush1.msra.mxu0 0.0
  %9293 = vmatprep.subr.mxu0 0.0
  %9294 = vmatpush1.msra.mxu0 0.0
  %9295 = vmatprep.subr.mxu0 0.0
  %9296 = vmatpush1.msra.mxu0 0.0
  %9297 = vmatprep.subr.mxu0 0.0
  %9298 = vmatpush1.msra.mxu0 0.0
  %9299 = vmatprep.subr.mxu0 0.0
  %9300 = vmatpush1.msra.mxu0 0.0
  %9301 = vmatprep.subr.mxu0 0.0
  %9302 = vmatpush1.msra.mxu0 0.0
  %9303 = vmatprep.subr.mxu0 0.0
  %9304 = vmatpush1.msra.mxu0 0.0
  %9305 = vmatprep.subr.mxu0 0.0
  %9306 = vmatpush1.msra.mxu0 0.0
  %9307 = vmatprep.subr.mxu0 0.0
  %9308 = vmatpush1.msra.mxu0 0.0
  %9309 = vmatprep.subr.mxu0 0.0
  %9310 = vmatpush1.msra.mxu0 0.0
  %9311 = vmatprep.subr.mxu0 0.0
  %9312 = vmatpush1.msra.mxu0 0.0
  %9313 = vmatprep.subr.mxu0 0.0
  %9314 = vmatpush1.msra.mxu0 0.0
  %9315 = vmatprep.subr.mxu0 0.0
  %9316 = vmatpush1.msra.mxu0 0.0
  %9317 = vmatprep.subr.mxu0 0.0
  %9318 = vmatpush1.msra.mxu0 0.0
  %9319 = vmatprep.subr.mxu0 0.0
  %9320 = vmatpush1.msra.mxu0 0.0
  %9321 = vmatprep.subr.mxu0 0.0
  %v9322 = vand.u32 %v9214, 4294901760
  %v9323 = vsub.f32 %v9214, %v9322
  %v9324 = vand.u32 %v9323, 4294901760
  %v9325 = vsub.f32 %v9323, %v9324
  %v9326 = vand.u32 %v9325, 4294901760
  %9327 = vmatpush1.msra.mxu0 %v9326
  %9328 = vmatprep.subr.mxu0 0.0
  %9329 = vmatpush2.msra.mxu0 0.0
  %9330 = vmatprep.subr.mxu0 0.0
  %9331 = vmatpush2.msra.mxu0 0.0
  %9332 = vmatprep.subr.mxu0 0.0
  %9333 = vmatpush2.msra.mxu0 0.0
  %9334 = vmatprep.subr.mxu0 0.0
  %9335 = vmatpush2.msra.mxu0 0.0
  %9336 = vmatprep.subr.mxu0 0.0
  %9337 = vmatpush2.msra.mxu0 0.0
  %9338 = vmatprep.subr.mxu0 0.0
  %9339 = vmatpush2.msra.mxu0 0.0
  %9340 = vmatprep.subr.mxu0 0.0
  %9341 = vmatpush2.msra.mxu0 0.0
  %9342 = vmatprep.subr.mxu0 0.0
  %9343 = vmatpush2.msra.mxu0 0.0
  %9344 = vmatprep.subr.mxu0 0.0
  %9345 = vmatpush2.msra.mxu0 0.0
  %9346 = vmatprep.subr.mxu0 0.0
  %9347 = vmatpush2.msra.mxu0 0.0
  %9348 = vmatprep.subr.mxu0 0.0
  %9349 = vmatpush2.msra.mxu0 0.0
  %9350 = vmatprep.subr.mxu0 0.0
  %9351 = vmatpush2.msra.mxu0 0.0
  %9352 = vmatprep.subr.mxu0 0.0
  %9353 = vmatpush2.msra.mxu0 0.0
  %9354 = vmatprep.subr.mxu0 0.0
  %9355 = vmatpush2.msra.mxu0 0.0
  %9356 = vmatprep.subr.mxu0 0.0
  %9357 = vmatpush2.msra.mxu0 0.0
  %9358 = vmatprep.subr.mxu0 0.0
  %9359 = vmatpush2.msra.mxu0 0.0
  %9360 = vmatprep.mubr.f32.mxu0 0.0
  %v9361 = vand.u32 %v4405, 4294901760
  %9362 = vmatmul.mubr.f32.gmra.mxu0 %v9361
  %v9363 = vpop.f32.mrf.mxu0
  %v9364 = vadd.f32 %v9288, %v9363
  %v9365 = vpop.f32.mrf.mxu0
  %9366 = vdwg.mxu0
  %9367 = vmatprep.subr.mxu0 0.0
  %9368 = vmatpush1.msra.mxu0 0.0
  %9369 = vmatprep.subr.mxu0 0.0
  %9370 = vmatpush1.msra.mxu0 0.0
  %9371 = vmatprep.subr.mxu0 0.0
  %9372 = vmatpush1.msra.mxu0 0.0
  %9373 = vmatprep.subr.mxu0 0.0
  %9374 = vmatpush1.msra.mxu0 0.0
  %9375 = vmatprep.subr.mxu0 0.0
  %9376 = vmatpush1.msra.mxu0 0.0
  %9377 = vmatprep.subr.mxu0 0.0
  %9378 = vmatpush1.msra.mxu0 0.0
  %9379 = vmatprep.subr.mxu0 0.0
  %9380 = vmatpush1.msra.mxu0 0.0
  %9381 = vmatprep.subr.mxu0 0.0
  %9382 = vmatpush1.msra.mxu0 0.0
  %9383 = vmatprep.subr.mxu0 0.0
  %9384 = vmatpush1.msra.mxu0 0.0
  %9385 = vmatprep.subr.mxu0 0.0
  %9386 = vmatpush1.msra.mxu0 0.0
  %9387 = vmatprep.subr.mxu0 0.0
  %9388 = vmatpush1.msra.mxu0 0.0
  %9389 = vmatprep.subr.mxu0 0.0
  %9390 = vmatpush1.msra.mxu0 0.0
  %9391 = vmatprep.subr.mxu0 0.0
  %9392 = vmatpush1.msra.mxu0 0.0
  %9393 = vmatprep.subr.mxu0 0.0
  %9394 = vmatpush1.msra.mxu0 0.0
  %9395 = vmatprep.subr.mxu0 0.0
  %9396 = vmatpush1.msra.mxu0 0.0
  %9397 = vmatprep.subr.mxu0 0.0
  %v9398 = vand.u32 %v9214, 4294901760
  %v9399 = vsub.f32 %v9214, %v9398
  %9400 = vmatpush1.msra.mxu0 %v9399
  %9401 = vmatprep.subr.mxu0 0.0
  %9402 = vmatpush2.msra.mxu0 0.0
  %9403 = vmatprep.subr.mxu0 0.0
  %9404 = vmatpush2.msra.mxu0 0.0
  %9405 = vmatprep.subr.mxu0 0.0
  %9406 = vmatpush2.msra.mxu0 0.0
  %9407 = vmatprep.subr.mxu0 0.0
  %9408 = vmatpush2.msra.mxu0 0.0
  %9409 = vmatprep.subr.mxu0 0.0
  %9410 = vmatpush2.msra.mxu0 0.0
  %9411 = vmatprep.subr.mxu0 0.0
  %9412 = vmatpush2.msra.mxu0 0.0
  %9413 = vmatprep.subr.mxu0 0.0
  %9414 = vmatpush2.msra.mxu0 0.0
  %9415 = vmatprep.subr.mxu0 0.0
  %9416 = vmatpush2.msra.mxu0 0.0
  %9417 = vmatprep.subr.mxu0 0.0
  %9418 = vmatpush2.msra.mxu0 0.0
  %9419 = vmatprep.subr.mxu0 0.0
  %9420 = vmatpush2.msra.mxu0 0.0
  %9421 = vmatprep.subr.mxu0 0.0
  %9422 = vmatpush2.msra.mxu0 0.0
  %9423 = vmatprep.subr.mxu0 0.0
  %9424 = vmatpush2.msra.mxu0 0.0
  %9425 = vmatprep.subr.mxu0 0.0
  %9426 = vmatpush2.msra.mxu0 0.0
  %9427 = vmatprep.subr.mxu0 0.0
  %9428 = vmatpush2.msra.mxu0 0.0
  %9429 = vmatprep.subr.mxu0 0.0
  %9430 = vmatpush2.msra.mxu0 0.0
  %9431 = vmatprep.subr.mxu0 0.0
  %9432 = vmatpush2.msra.mxu0 0.0
  %9433 = vmatprep.mubr.f32.mxu0 0.0
  %v9434 = vand.u32 %v4405, 4294901760
  %v9435 = vsub.f32 %v4405, %v9434
  %9436 = vmatmul.mubr.f32.gmra.mxu0 %v9435
  %v9437 = vpop.f32.mrf.mxu0
  %v9438 = vadd.f32 %v9364, %v9437
  %v9439 = vpop.f32.mrf.mxu0
  %9440 = vdwg.mxu0
  %9441 = vmatprep.subr.mxu0 0.0
  %9442 = vmatpush1.msra.mxu0 0.0
  %9443 = vmatprep.subr.mxu0 0.0
  %9444 = vmatpush1.msra.mxu0 0.0
  %9445 = vmatprep.subr.mxu0 0.0
  %9446 = vmatpush1.msra.mxu0 0.0
  %9447 = vmatprep.subr.mxu0 0.0
  %9448 = vmatpush1.msra.mxu0 0.0
  %9449 = vmatprep.subr.mxu0 0.0
  %9450 = vmatpush1.msra.mxu0 0.0
  %9451 = vmatprep.subr.mxu0 0.0
  %9452 = vmatpush1.msra.mxu0 0.0
  %9453 = vmatprep.subr.mxu0 0.0
  %9454 = vmatpush1.msra.mxu0 0.0
  %9455 = vmatprep.subr.mxu0 0.0
  %9456 = vmatpush1.msra.mxu0 0.0
  %9457 = vmatprep.subr.mxu0 0.0
  %9458 = vmatpush1.msra.mxu0 0.0
  %9459 = vmatprep.subr.mxu0 0.0
  %9460 = vmatpush1.msra.mxu0 0.0
  %9461 = vmatprep.subr.mxu0 0.0
  %9462 = vmatpush1.msra.mxu0 0.0
  %9463 = vmatprep.subr.mxu0 0.0
  %9464 = vmatpush1.msra.mxu0 0.0
  %9465 = vmatprep.subr.mxu0 0.0
  %9466 = vmatpush1.msra.mxu0 0.0
  %9467 = vmatprep.subr.mxu0 0.0
  %9468 = vmatpush1.msra.mxu0 0.0
  %9469 = vmatprep.subr.mxu0 0.0
  %9470 = vmatpush1.msra.mxu0 0.0
  %9471 = vmatprep.subr.mxu0 0.0
  %v9472 = vand.u32 %v9214, 4294901760
  %9473 = vmatpush1.msra.mxu0 %v9472
  %9474 = vmatprep.subr.mxu0 0.0
  %9475 = vmatpush2.msra.mxu0 0.0
  %9476 = vmatprep.subr.mxu0 0.0
  %9477 = vmatpush2.msra.mxu0 0.0
  %9478 = vmatprep.subr.mxu0 0.0
  %9479 = vmatpush2.msra.mxu0 0.0
  %9480 = vmatprep.subr.mxu0 0.0
  %9481 = vmatpush2.msra.mxu0 0.0
  %9482 = vmatprep.subr.mxu0 0.0
  %9483 = vmatpush2.msra.mxu0 0.0
  %9484 = vmatprep.subr.mxu0 0.0
  %9485 = vmatpush2.msra.mxu0 0.0
  %9486 = vmatprep.subr.mxu0 0.0
  %9487 = vmatpush2.msra.mxu0 0.0
  %9488 = vmatprep.subr.mxu0 0.0
  %9489 = vmatpush2.msra.mxu0 0.0
  %9490 = vmatprep.subr.mxu0 0.0
  %9491 = vmatpush2.msra.mxu0 0.0
  %9492 = vmatprep.subr.mxu0 0.0
  %9493 = vmatpush2.msra.mxu0 0.0
  %9494 = vmatprep.subr.mxu0 0.0
  %9495 = vmatpush2.msra.mxu0 0.0
  %9496 = vmatprep.subr.mxu0 0.0
  %9497 = vmatpush2.msra.mxu0 0.0
  %9498 = vmatprep.subr.mxu0 0.0
  %9499 = vmatpush2.msra.mxu0 0.0
  %9500 = vmatprep.subr.mxu0 0.0
  %9501 = vmatpush2.msra.mxu0 0.0
  %9502 = vmatprep.subr.mxu0 0.0
  %9503 = vmatpush2.msra.mxu0 0.0
  %9504 = vmatprep.subr.mxu0 0.0
  %9505 = vmatpush2.msra.mxu0 0.0
  %9506 = vmatprep.mubr.f32.mxu0 0.0
  %v9507 = vand.u32 %v4405, 4294901760
  %v9508 = vsub.f32 %v4405, %v9507
  %v9509 = vand.u32 %v9508, 4294901760
  %9510 = vmatmul.mubr.f32.gmra.mxu0 %v9509
  %v9511 = vpop.f32.mrf.mxu0
  %v9512 = vadd.f32 %v9438, %v9511
  %v9513 = vpop.f32.mrf.mxu0
  %9514 = vdwg.mxu0
  %9515 = vmatprep.subr.mxu0 0.0
  %9516 = vmatpush1.msra.mxu0 0.0
  %9517 = vmatprep.subr.mxu0 0.0
  %9518 = vmatpush1.msra.mxu0 0.0
  %9519 = vmatprep.subr.mxu0 0.0
  %9520 = vmatpush1.msra.mxu0 0.0
  %9521 = vmatprep.subr.mxu0 0.0
  %9522 = vmatpush1.msra.mxu0 0.0
  %9523 = vmatprep.subr.mxu0 0.0
  %9524 = vmatpush1.msra.mxu0 0.0
  %9525 = vmatprep.subr.mxu0 0.0
  %9526 = vmatpush1.msra.mxu0 0.0
  %9527 = vmatprep.subr.mxu0 0.0
  %9528 = vmatpush1.msra.mxu0 0.0
  %9529 = vmatprep.subr.mxu0 0.0
  %9530 = vmatpush1.msra.mxu0 0.0
  %9531 = vmatprep.subr.mxu0 0.0
  %9532 = vmatpush1.msra.mxu0 0.0
  %9533 = vmatprep.subr.mxu0 0.0
  %9534 = vmatpush1.msra.mxu0 0.0
  %9535 = vmatprep.subr.mxu0 0.0
  %9536 = vmatpush1.msra.mxu0 0.0
  %9537 = vmatprep.subr.mxu0 0.0
  %9538 = vmatpush1.msra.mxu0 0.0
  %9539 = vmatprep.subr.mxu0 0.0
  %9540 = vmatpush1.msra.mxu0 0.0
  %9541 = vmatprep.subr.mxu0 0.0
  %9542 = vmatpush1.msra.mxu0 0.0
  %9543 = vmatprep.subr.mxu0 0.0
  %9544 = vmatpush1.msra.mxu0 0.0
  %9545 = vmatprep.subr.mxu0 0.0
  %v9546 = vand.u32 %v9214, 4294901760
  %v9547 = vsub.f32 %v9214, %v9546
  %v9548 = vand.u32 %v9547, 4294901760
  %9549 = vmatpush1.msra.mxu0 %v9548
  %9550 = vmatprep.subr.mxu0 0.0
  %9551 = vmatpush2.msra.mxu0 0.0
  %9552 = vmatprep.subr.mxu0 0.0
  %9553 = vmatpush2.msra.mxu0 0.0
  %9554 = vmatprep.subr.mxu0 0.0
  %9555 = vmatpush2.msra.mxu0 0.0
  %9556 = vmatprep.subr.mxu0 0.0
  %9557 = vmatpush2.msra.mxu0 0.0
  %9558 = vmatprep.subr.mxu0 0.0
  %9559 = vmatpush2.msra.mxu0 0.0
  %9560 = vmatprep.subr.mxu0 0.0
  %9561 = vmatpush2.msra.mxu0 0.0
  %9562 = vmatprep.subr.mxu0 0.0
  %9563 = vmatpush2.msra.mxu0 0.0
  %9564 = vmatprep.subr.mxu0 0.0
  %9565 = vmatpush2.msra.mxu0 0.0
  %9566 = vmatprep.subr.mxu0 0.0
  %9567 = vmatpush2.msra.mxu0 0.0
  %9568 = vmatprep.subr.mxu0 0.0
  %9569 = vmatpush2.msra.mxu0 0.0
  %9570 = vmatprep.subr.mxu0 0.0
  %9571 = vmatpush2.msra.mxu0 0.0
  %9572 = vmatprep.subr.mxu0 0.0
  %9573 = vmatpush2.msra.mxu0 0.0
  %9574 = vmatprep.subr.mxu0 0.0
  %9575 = vmatpush2.msra.mxu0 0.0
  %9576 = vmatprep.subr.mxu0 0.0
  %9577 = vmatpush2.msra.mxu0 0.0
  %9578 = vmatprep.subr.mxu0 0.0
  %9579 = vmatpush2.msra.mxu0 0.0
  %9580 = vmatprep.subr.mxu0 0.0
  %9581 = vmatpush2.msra.mxu0 0.0
  %9582 = vmatprep.mubr.f32.mxu0 0.0
  %v9583 = vand.u32 %v4405, 4294901760
  %9584 = vmatmul.mubr.f32.gmra.mxu0 %v9583
  %v9585 = vpop.f32.mrf.mxu0
  %v9586 = vadd.f32 %v9512, %v9585
  %v9587 = vpop.f32.mrf.mxu0
  %9588 = vdwg.mxu0
  %9589 = vmatprep.subr.mxu0 0.0
  %9590 = vmatpush1.msra.mxu0 0.0
  %9591 = vmatprep.subr.mxu0 0.0
  %9592 = vmatpush1.msra.mxu0 0.0
  %9593 = vmatprep.subr.mxu0 0.0
  %9594 = vmatpush1.msra.mxu0 0.0
  %9595 = vmatprep.subr.mxu0 0.0
  %9596 = vmatpush1.msra.mxu0 0.0
  %9597 = vmatprep.subr.mxu0 0.0
  %9598 = vmatpush1.msra.mxu0 0.0
  %9599 = vmatprep.subr.mxu0 0.0
  %9600 = vmatpush1.msra.mxu0 0.0
  %9601 = vmatprep.subr.mxu0 0.0
  %9602 = vmatpush1.msra.mxu0 0.0
  %9603 = vmatprep.subr.mxu0 0.0
  %9604 = vmatpush1.msra.mxu0 0.0
  %9605 = vmatprep.subr.mxu0 0.0
  %9606 = vmatpush1.msra.mxu0 0.0
  %9607 = vmatprep.subr.mxu0 0.0
  %9608 = vmatpush1.msra.mxu0 0.0
  %9609 = vmatprep.subr.mxu0 0.0
  %9610 = vmatpush1.msra.mxu0 0.0
  %9611 = vmatprep.subr.mxu0 0.0
  %9612 = vmatpush1.msra.mxu0 0.0
  %9613 = vmatprep.subr.mxu0 0.0
  %9614 = vmatpush1.msra.mxu0 0.0
  %9615 = vmatprep.subr.mxu0 0.0
  %9616 = vmatpush1.msra.mxu0 0.0
  %9617 = vmatprep.subr.mxu0 0.0
  %9618 = vmatpush1.msra.mxu0 0.0
  %9619 = vmatprep.subr.mxu0 0.0
  %v9620 = vand.u32 %v9214, 4294901760
  %9621 = vmatpush1.msra.mxu0 %v9620
  %9622 = vmatprep.subr.mxu0 0.0
  %9623 = vmatpush2.msra.mxu0 0.0
  %9624 = vmatprep.subr.mxu0 0.0
  %9625 = vmatpush2.msra.mxu0 0.0
  %9626 = vmatprep.subr.mxu0 0.0
  %9627 = vmatpush2.msra.mxu0 0.0
  %9628 = vmatprep.subr.mxu0 0.0
  %9629 = vmatpush2.msra.mxu0 0.0
  %9630 = vmatprep.subr.mxu0 0.0
  %9631 = vmatpush2.msra.mxu0 0.0
  %9632 = vmatprep.subr.mxu0 0.0
  %9633 = vmatpush2.msra.mxu0 0.0
  %9634 = vmatprep.subr.mxu0 0.0
  %9635 = vmatpush2.msra.mxu0 0.0
  %9636 = vmatprep.subr.mxu0 0.0
  %9637 = vmatpush2.msra.mxu0 0.0
  %9638 = vmatprep.subr.mxu0 0.0
  %9639 = vmatpush2.msra.mxu0 0.0
  %9640 = vmatprep.subr.mxu0 0.0
  %9641 = vmatpush2.msra.mxu0 0.0
  %9642 = vmatprep.subr.mxu0 0.0
  %9643 = vmatpush2.msra.mxu0 0.0
  %9644 = vmatprep.subr.mxu0 0.0
  %9645 = vmatpush2.msra.mxu0 0.0
  %9646 = vmatprep.subr.mxu0 0.0
  %9647 = vmatpush2.msra.mxu0 0.0
  %9648 = vmatprep.subr.mxu0 0.0
  %9649 = vmatpush2.msra.mxu0 0.0
  %9650 = vmatprep.subr.mxu0 0.0
  %9651 = vmatpush2.msra.mxu0 0.0
  %9652 = vmatprep.subr.mxu0 0.0
  %9653 = vmatpush2.msra.mxu0 0.0
  %9654 = vmatprep.mubr.f32.mxu0 0.0
  %v9655 = vand.u32 %v4405, 4294901760
  %9656 = vmatmul.mubr.f32.gmra.mxu0 %v9655
  %v9657 = vpop.f32.mrf.mxu0
  %v9658 = vadd.f32 %v9586, %v9657
  %v9659 = vpop.f32.mrf.mxu0
  %9660 = vdwg.mxu0
  %v9661 = vmul.f32 %v9658, 0.001953125
  %v9662 = vmul.f32 %v9661, %v9661
  %9664 = vrot.lane.b32.xlu0 %v9662, 1
  %v9665 = vpop.permute.xlu0 %9664
  %v9667 = vsub.f32 %v9661, %v9665
  %v9668 = vadd.f32 %v9667, 1e-05
  %v9669 = vrsqrt.pop %v9668
  %9670 = vrot.lane.b32.xlu0 %v4393, 127
  %v9671 = vpop.permute.xlu0 %9670
  %v9673 = vmul.f32 %v9669, %v9671
  %9675 = vrot.lane.b32.xlu0 %v9673, 127
  %v9676 = vpop.permute.xlu0 %9675
  %v9678 = vmul.f32 %v9661, %v9676
  %9680 = vrot.lane.b32.xlu0 %v9678, 3
  %v9681 = vpop.permute.xlu0 %9680
  %v9683 = vsub.f32 %v4393, %v9681
  %9684 = vset.pattern.permute.xlu0 1
  %9685 = vperm.xlu0 %9684, %v9673
  %v9686 = vpop.permute.xlu0 %9685
  %v9688 = vmul.f32 %v9204, %v9686
  %v9689 = vmul.f32 %v9205, %v9686
  %9691 = vset.pattern.permute.xlu0 3
  %9692 = vperm.xlu0 %9691, %v9683
  %v9693 = vpop.permute.xlu0 %9692
  %v9695 = vadd.f32 %v9688, %v9693
  %v9696 = vadd.f32 %v9689, %v9693
  %v9697 = vadd.f32 %v21, %v9695
  %v9698 = vadd.f32 %v22, %v9696
  %9699 = vst [vmem:[%s5] sm:$0xff] %v9697
  %9700 = vst [vmem:[%s5 + $0x8] sm:$0xff] %v9698
  // Predicated region
  $region22: #{residual_block.1} parent=0 // pred_check
    _
  $region23: #{residual_block.1} parent=0 // pred_check_branch
    %9702 = sbr.rel (0) target = $region25
  $region24: #{residual_block.1} parent=0 // pred_region
    _
  $region25: #{residual_block.1} parent=0 // pred_fallthru
    _
  // Predicated region
  $region26: #{residual_block.1} parent=0 // pred_check
    _
  $region27: #{residual_block.1} parent=0 // pred_check_branch
    %9704 = sbr.rel (0) target = $region29
  $region28: #{residual_block.1} parent=0 // pred_region
    _
  $region29: #{residual_block.1} parent=0 // pred_fallthru
    _

</llo_original>
